<compile_context>
chip_gen: v7x
topology: tpu7x:2x2x1
jax: 0.10.0
libtpu: 0.0.40
codegen_flags: <defaults>
</compile_context>

<pallas_src>
import jax
import jax.numpy as jnp
from jax.experimental import pallas as pl
from jax.experimental.pallas import tpu as pltpu


# ---------------------------------------------------------------------------
# In-kernel helpers (pure traced math used inside the two Pallas kernels)
# ---------------------------------------------------------------------------
def _conv_bn_relu(x_ref, w_ref, b_ref, L, relu=True):
    """'same' Conv1d + folded-BN bias + ReLU.

    x_ref : (B, L + K - 1, Cin) ref (input or VMEM scratch) whose K//2 halo rows on
            each side are zero, so K shifted slices implement 'same' padding.
    w_ref : (K, Cin, Cout) bf16 conv weights with the BN scale already folded in.
    b_ref : (1, Cout) f32 folded BN bias.
    Returns a (B, L, Cout) f32 value.
    """
    K, Cin, Cout = w_ref.shape
    B = x_ref.shape[0]
    w = w_ref[...]
    bias = b_ref[...]
    if L % 8 == 0:
        # Fold batch into the matmul M dimension (free relayout when L % 8 == 0).
        acc = jnp.zeros((B * L, Cout), jnp.float32)
        for k in range(K):                                   # static unroll, K <= 7
            xk = x_ref[:, k:k + L, :].reshape(B * L, Cin).astype(jnp.bfloat16)
            acc = acc + jnp.dot(xk, w[k], preferred_element_type=jnp.float32)
        y = acc.reshape(B, L, Cout)
    else:                                                    # tiny tiles (L == 4)
        per_b = []
        for b in range(B):
            acc = jnp.zeros((L, Cout), jnp.float32)
            for k in range(K):
                xk = x_ref[b, k:k + L, :].astype(jnp.bfloat16)
                acc = acc + jnp.dot(xk, w[k], preferred_element_type=jnp.float32)
            per_b.append(acc)
        y = jnp.stack(per_b, axis=0)
    y = y + bias
    if relu:
        y = jnp.maximum(y, 0.0)
    return y


def _mm_bias_relu(x, w, bias, relu=True):
    """(B, M, Cin) value @ (Cin, Cout): 1x1 conv / linear with bias (+ReLU)."""
    B, M, Cin = x.shape
    Cout = w.shape[-1]
    if M % 8 == 0:
        y = jnp.dot(x.reshape(B * M, Cin).astype(jnp.bfloat16), w,
                    preferred_element_type=jnp.float32).reshape(B, M, Cout)
    else:
        y = jnp.stack(
            [jnp.dot(x[b].astype(jnp.bfloat16), w, preferred_element_type=jnp.float32)
             for b in range(B)], axis=0)
    y = y + bias
    if relu:
        y = jnp.maximum(y, 0.0)
    return y


def _maxpool_into(x, S, dst_ref, row0=0):
    """MaxPool1d(kernel=S, stride=S) over the length axis of value x, writing the
    pooled rows into dst_ref[:, row0 : row0 + L//S, :] (pooling fused in-kernel)."""
    B, L, C = x.shape
    for j in range(L // S):                                  # static unroll, <= 16
        m = jnp.max(x[:, j * S:(j + 1) * S, :], axis=1, keepdims=True)
        dst_ref[:, row0 + j:row0 + j + 1, :] = m.astype(dst_ref.dtype)


# ---------------------------------------------------------------------------
# Kernel 1: shared encoder (conv -> conv -> maxpool, three stages) in one call
# ---------------------------------------------------------------------------
def _encoder_kernel(xc_ref,
                    w0a_ref, b0a_ref, w0b_ref, b0b_ref,
                    w1a_ref, b1a_ref, w1b_ref, b1b_ref,
                    w2a_ref, b2a_ref, w2b_ref, b2b_ref,
                    g0_ref, g1_ref, g2_ref,
                    s0, s1, s2, s3, s4):
    B, L, _ = xc_ref.shape
    L1, L2 = L // 4, L // 16

    # Zero the haloed scratch buffers (only the halo rows strictly need it, but the
    # buffers are tiny so a full zero keeps the lowering simple).
    for s in (s0, s1, s2, s3, s4):
        s[...] = jnp.zeros_like(s)

    # ---- stage 0: length L, 1->16->16, k=7 ---------------------------------
    h = _conv_bn_relu(xc_ref, w0a_ref, b0a_ref, L)    # first conv: taps im2col'ed
    s0[:, 3:3 + L, :] = h
    g0 = _conv_bn_relu(s0, w0b_ref, b0b_ref, L)
    g0_ref[...] = g0
    _maxpool_into(g0, 4, s1, row0=2)                  # pooled output -> halo buf

    # ---- stage 1: length L/4, 16->32->32, k=5 ------------------------------
    h = _conv_bn_relu(s1, w1a_ref, b1a_ref, L1)
    s2[:, 2:2 + L1, :] = h
    g1 = _conv_bn_relu(s2, w1b_ref, b1b_ref, L1)
    g1_ref[...] = g1
    _maxpool_into(g1, 4, s3, row0=1)

    # ---- stage 2: length L/16, 32->64->64, k=3 -----------------------------
    h = _conv_bn_relu(s3, w2a_ref, b2a_ref, L2)
    s4[:, 1:1 + L2, :] = h
    g2 = _conv_bn_relu(s4, w2b_ref, b2b_ref, L2)
    g2_ref[...] = g2


def _encoder_call(params, x_col):
    B, L, _ = x_col.shape
    L1, L2 = L // 4, L // 16

    def full_spec(a):
        nd = a.ndim
        return pl.BlockSpec(a.shape, lambda *_: (0,) * nd)

    args = [x_col]
    for w, b in params["enc"]:
        args += [w, b]

    return pl.pallas_call(
        _encoder_kernel,
        grid=(1,),
        out_shape=(jax.ShapeDtypeStruct((B, L, 16), jnp.float32),
                   jax.ShapeDtypeStruct((B, L1, 32), jnp.float32),
                   jax.ShapeDtypeStruct((B, L2, 64), jnp.float32)),
        in_specs=[full_spec(a) for a in args],
        out_specs=(pl.BlockSpec((B, L, 16), lambda i: (0, 0, 0)),
                   pl.BlockSpec((B, L1, 32), lambda i: (0, 0, 0)),
                   pl.BlockSpec((B, L2, 64), lambda i: (0, 0, 0))),
        scratch_shapes=[
            pltpu.VMEM((B, L + 6, 16), jnp.float32),    # conv0b input (halo 3)
            pltpu.VMEM((B, L1 + 4, 16), jnp.float32),   # conv1a input (halo 2)
            pltpu.VMEM((B, L1 + 4, 32), jnp.float32),   # conv1b input (halo 2)
            pltpu.VMEM((B, L2 + 2, 32), jnp.float32),   # conv2a input (halo 1)
            pltpu.VMEM((B, L2 + 2, 64), jnp.float32),   # conv2b input (halo 1)
        ],
        compiler_params=pltpu.CompilerParams(dimension_semantics=("arbitrary",)),
    )(*args)


# ---------------------------------------------------------------------------
# Kernel 2: the two task towers (ECA -> 1x1 conv -> pool, x3, + avgpool + FC),
#           grid=(2,) "parallel" so v7x can run one tower per TensorCore.
# ---------------------------------------------------------------------------
def _tower_kernel(g0_ref, g1_ref, g2_ref,
                  band0_ref, band1_ref, band2_ref,
                  wa0_ref, ba0_ref, wa1_ref, ba1_ref, wa2_ref, ba2_ref,
                  wfc_ref, bfc_ref,
                  out_ref,
                  q0, q1, q2):
    g = (g0_ref[...], g1_ref[...], g2_ref[...])
    bands = (band0_ref[0], band1_ref[0], band2_ref[0])      # per-task (C, C) bands
    wa = (wa0_ref[...], wa1_ref[...], wa2_ref[...])
    ba = (ba0_ref[...], ba1_ref[...], ba2_ref[...])
    qs = (q0, q1, q2)
    pool = (4, 4, 2)

    prev = None
    for j in range(3):                                       # static unroll, 3 stages
        z = g[j] if j == 0 else g[j] + prev
        # att_layer: ECA (GAP -> 3-tap channel conv via precomputed band -> sigmoid)
        # + residual  ==  z * (1 + sigmoid(att))
        y = jnp.mean(z, axis=1)                                         # (B, C)
        att = jax.nn.sigmoid(jnp.dot(y, bands[j],
                                     preferred_element_type=jnp.float32))
        a = z * (1.0 + att)[:, None, :]
        # 1x1 conv + folded-BN bias + ReLU, MaxPool fused in the epilogue.
        c = _mm_bias_relu(a, wa[j], ba[j])
        _maxpool_into(c, pool[j], qs[j], row0=0)
        prev = qs[j][...]

    feat = jnp.mean(prev, axis=1)                    # AdaptiveAvgPool1d(1): (B, 128)
    logits = jnp.dot(feat.astype(jnp.bfloat16), wfc_ref[0],
                     preferred_element_type=jnp.float32) + bfc_ref[0]
    out_ref[0] = logits


def _tower_call(params, g0, g1, g2):
    B, L, _ = g0.shape
    L1, L2 = L // 4, L // 16

    def full_spec(a):
        nd = a.ndim
        return pl.BlockSpec(a.shape, lambda *_: (0,) * nd)

    def task_spec(a):                         # leading dim indexed by the task id
        nd = a.ndim
        return pl.BlockSpec((1,) + a.shape[1:], lambda t: (t,) + (0,) * (nd - 1))

    args = [g0, g1, g2] + list(params["bands"])
    specs = [full_spec(g0), full_spec(g1), full_spec(g2)]
    specs += [task_spec(bd) for bd in params["bands"]]
    for w, b in params["attc"]:
        args += [w, b]
        specs += [full_spec(w), full_spec(b)]
    args += [params["fc_w"], params["fc_b"]]
    specs += [task_spec(params["fc_w"]), task_spec(params["fc_b"])]

    return pl.pallas_call(
        _tower_kernel,
        grid=(2,),
        out_shape=jax.ShapeDtypeStruct((2, B, 16), jnp.float32),
        in_specs=specs,
        out_specs=pl.BlockSpec((1, B, 16), lambda t: (t, 0, 0)),
        scratch_shapes=[
            pltpu.VMEM((B, L1, 32), jnp.float32),        # pooled stage-0 output
            pltpu.VMEM((B, L2, 64), jnp.float32),        # pooled stage-1 output
            pltpu.VMEM((B, L2 // 2, 128), jnp.float32),  # pooled stage-2 output
        ],
        compiler_params=pltpu.CompilerParams(dimension_semantics=("parallel",)),
    )(*args)


# ---------------------------------------------------------------------------
# Parameter construction (deterministic, shapes from MTAGN.__init__), with
# BN scale folded into the conv weights and weights pre-cast to bf16.
# ---------------------------------------------------------------------------
def init_params(seed=0):
    keys = iter(jax.random.split(jax.random.PRNGKey(seed), 64))
    nxt = lambda: next(keys)

    def conv_bn(cin, cout, k):
        fan_out = cout * k                                  # kaiming_normal, fan_out
        w = jax.random.normal(nxt(), (k, cin, cout), jnp.float32) * jnp.sqrt(2.0 / fan_out)
        gamma = 1.0 + 0.1 * jax.random.normal(nxt(), (cout,), jnp.float32)
        beta = 0.1 * jax.random.normal(nxt(), (cout,), jnp.float32)
        mean = 0.1 * jax.random.normal(nxt(), (cout,), jnp.float32)
        var = jax.random.uniform(nxt(), (cout,), jnp.float32, minval=0.5, maxval=1.5)
        scale = gamma / jnp.sqrt(var + 1e-5)
        bias = beta - mean * scale                          # conv bias is 0 at init
        wf = (w * scale[None, None, :]).astype(jnp.bfloat16)   # fold BN scale into W
        return wf, bias.reshape(1, cout)

    # Encoder conv blocks: block_1[i] then block_2[i] for i = 0..2.
    w0a, b0a = conv_bn(1, 16, 7)
    # First layer (Cin=1): taps become the contraction dim (host im2col), pad 7 -> 8.
    w0a = jnp.pad(w0a[:, 0, :], ((0, 1), (0, 0)))[None]     # (1, 8, 16)
    w0b, b0b = conv_bn(16, 16, 7)
    w1a, b1a = conv_bn(16, 32, 5)
    w1b, b1b = conv_bn(32, 32, 5)
    w2a, b2a = conv_bn(32, 64, 3)
    w2b, b2b = conv_bn(64, 64, 3)

    # ECA: Conv1d(1, 1, 3, bias=False) over channels, per (task, stage), realised as
    # a host-precomputed banded (C, C) matrix so the kernel only does y @ band.
    def eca_band(c):
        t = jnp.sqrt(2.0 / 3.0) * jax.random.normal(nxt(), (3,), jnp.float32)
        return (t[1] * jnp.eye(c, dtype=jnp.float32)
                + t[0] * jnp.eye(c, k=1, dtype=jnp.float32)     # tap for y[c-1]
                + t[2] * jnp.eye(c, k=-1, dtype=jnp.float32))   # tap for y[c+1]

    bands = [jnp.stack([eca_band(c) for _ in range(2)], axis=0) for c in (16, 32, 64)]

    # Attention 1x1 conv blocks (shared between the two tasks).
    def conv1x1(cin, cout):
        w, b = conv_bn(cin, cout, 1)
        return w[0], b                                       # (Cin, Cout), (1, Cout)

    attc = [conv1x1(16, 32), conv1x1(32, 64), conv1x1(64, 128)]

    # Classification heads (xavier_normal, zero bias), padded to 16 lanes & stacked.
    def xavier(cin, cout):
        return jax.random.normal(nxt(), (cin, cout), jnp.float32) * jnp.sqrt(
            2.0 / (cin + cout))

    fc_w = jnp.zeros((2, 128, 16), jnp.float32)
    fc_w = fc_w.at[0, :, :10].set(xavier(128, 10))
    fc_w = fc_w.at[1, :, :4].set(xavier(128, 4))
    fc_b = jnp.zeros((2, 1, 16), jnp.float32)

    return {
        "enc": [(w0a, b0a), (w0b, b0b), (w1a, b1a), (w1b, b1b), (w2a, b2a), (w2b, b2b)],
        "bands": bands,
        "attc": attc,
        "fc_w": fc_w.astype(jnp.bfloat16),
        "fc_b": fc_b,
    }


# ---------------------------------------------------------------------------
# Full MTAGN forward: one-time host im2col of the raw input + two pallas_calls.
# ---------------------------------------------------------------------------
def mtagn_forward(params, x):
    """x: (B, L, 1) float32 — the PyTorch (B, 1, L) input with C moved last."""
    B, L, _ = x.shape
    # First layer (Cin=1, k=7): im2col once on the host so the kernel's first matmul
    # has a dense (B*L, 8) operand instead of a zero-padded Cin=8 activation.
    xp = jnp.pad(x[..., 0], ((0, 0), (3, 3)))
    x_col = jnp.stack([xp[:, k:k + L] for k in range(7)]
                      + [jnp.zeros((B, L), x.dtype)], axis=-1)   # (B, L, 8)
    x_col = x_col.astype(jnp.bfloat16)

    g0, g1, g2 = _encoder_call(params, x_col)
    out = _tower_call(params, g0, g1, g2)                        # (2, B, 16)
    return out[0, :, :10], out[1, :, :4]


if __name__ == "__main__":
    B, L = 2, 64
    kx, _ = jax.random.split(jax.random.PRNGKey(0))
    x_ncl = jax.random.normal(kx, (B, 1, L), jnp.float32)        # PyTorch NCL input
    x = jnp.transpose(x_ncl, (0, 2, 1))                          # -> (B, L, C)

    params = init_params(0)
    fwd = jax.jit(mtagn_forward)
    t1, t2 = fwd(params, x)
    jax.block_until_ready((t1, t2))
    assert t1.shape == (B, 10) and t2.shape == (B, 4)
    assert bool(jnp.all(jnp.isfinite(t1))) and bool(jnp.all(jnp.isfinite(t2)))
    print("KERNEL_OK")
</pallas_src>

<mosaic_0001>
module attributes {stable_mosaic.version = 11 : i64} {
  func.func @_tower_kernel(%arg0: i32, %arg1: memref<2x64x16xf32, #tpu.memory_space<vmem>>, %arg2: memref<2x16x32xf32, #tpu.memory_space<vmem>>, %arg3: memref<2x4x64xf32, #tpu.memory_space<vmem>>, %arg4: memref<1x16x16xf32, #tpu.memory_space<vmem>>, %arg5: memref<1x32x32xf32, #tpu.memory_space<vmem>>, %arg6: memref<1x64x64xf32, #tpu.memory_space<vmem>>, %arg7: memref<16x32xbf16, #tpu.memory_space<vmem>>, %arg8: memref<1x32xf32, #tpu.memory_space<vmem>>, %arg9: memref<32x64xbf16, #tpu.memory_space<vmem>>, %arg10: memref<1x64xf32, #tpu.memory_space<vmem>>, %arg11: memref<64x128xbf16, #tpu.memory_space<vmem>>, %arg12: memref<1x128xf32, #tpu.memory_space<vmem>>, %arg13: memref<1x128x16xbf16, #tpu.memory_space<vmem>>, %arg14: memref<1x1x16xf32, #tpu.memory_space<vmem>>, %arg15: memref<1x2x16xf32, #tpu.memory_space<vmem>>, %arg16: memref<2x16x32xf32, #tpu.memory_space<vmem>>, %arg17: memref<2x4x64xf32, #tpu.memory_space<vmem>>, %arg18: memref<2x2x128xf32, #tpu.memory_space<vmem>>) attributes {dimension_semantics = [#tpu.dimension_semantics<parallel>], iteration_bounds = array<i64: 2>, scalar_prefetch = 0 : i64, scratch_operands = 3 : i64, tpu.core_type = #tpu.core_type<tc>, window_params = [{pipeline_mode = #tpu.pipeline_mode<synchronous>, transform_indices = @transform_0, window_bounds = array<i64: 2, 64, 16>}, {pipeline_mode = #tpu.pipeline_mode<synchronous>, transform_indices = @transform_1, window_bounds = array<i64: 2, 16, 32>}, {pipeline_mode = #tpu.pipeline_mode<synchronous>, transform_indices = @transform_2, window_bounds = array<i64: 2, 4, 64>}, {transform_indices = @transform_3, window_bounds = array<i64: 1, 16, 16>}, {transform_indices = @transform_4, window_bounds = array<i64: 1, 32, 32>}, {transform_indices = @transform_5, window_bounds = array<i64: 1, 64, 64>}, {pipeline_mode = #tpu.pipeline_mode<synchronous>, transform_indices = @transform_6, window_bounds = array<i64: 16, 32>}, {pipeline_mode = #tpu.pipeline_mode<synchronous>, transform_indices = @transform_7, window_bounds = array<i64: 1, 32>}, {pipeline_mode = #tpu.pipeline_mode<synchronous>, transform_indices = @transform_8, window_bounds = array<i64: 32, 64>}, {pipeline_mode = #tpu.pipeline_mode<synchronous>, transform_indices = @transform_9, window_bounds = array<i64: 1, 64>}, {pipeline_mode = #tpu.pipeline_mode<synchronous>, transform_indices = @transform_10, window_bounds = array<i64: 64, 128>}, {pipeline_mode = #tpu.pipeline_mode<synchronous>, transform_indices = @transform_11, window_bounds = array<i64: 1, 128>}, {transform_indices = @transform_12, window_bounds = array<i64: 1, 128, 16>}, {transform_indices = @transform_13, window_bounds = array<i64: 1, 1, 16>}, {transform_indices = @transform_14, window_bounds = array<i64: 1, 2, 16>}]} {
    %c0 = arith.constant 0 : index
    %c0_0 = arith.constant 0 : index
    %c0_1 = arith.constant 0 : index
    %0 = vector.load %arg1[%c0, %c0_0, %c0_1] : memref<2x64x16xf32, #tpu.memory_space<vmem>>, vector<2x64x16xf32>
    %c0_2 = arith.constant 0 : index
    %c0_3 = arith.constant 0 : index
    %c0_4 = arith.constant 0 : index
    %1 = vector.load %arg2[%c0_2, %c0_3, %c0_4] : memref<2x16x32xf32, #tpu.memory_space<vmem>>, vector<2x16x32xf32>
    %c0_5 = arith.constant 0 : index
    %c0_6 = arith.constant 0 : index
    %c0_7 = arith.constant 0 : index
    %2 = vector.load %arg3[%c0_5, %c0_6, %c0_7] : memref<2x4x64xf32, #tpu.memory_space<vmem>>, vector<2x4x64xf32>
    %c0_8 = arith.constant 0 : index
    %c0_9 = arith.constant 0 : index
    %c0_10 = arith.constant 0 : index
    %3 = vector.load %arg4[%c0_8, %c0_9, %c0_10] : memref<1x16x16xf32, #tpu.memory_space<vmem>>, vector<1x16x16xf32>
    %4 = vector.shape_cast %3 : vector<1x16x16xf32> to vector<16x16xf32>
    %c0_11 = arith.constant 0 : index
    %c0_12 = arith.constant 0 : index
    %c0_13 = arith.constant 0 : index
    %5 = vector.load %arg5[%c0_11, %c0_12, %c0_13] : memref<1x32x32xf32, #tpu.memory_space<vmem>>, vector<1x32x32xf32>
    %6 = vector.shape_cast %5 : vector<1x32x32xf32> to vector<32x32xf32>
    %c0_14 = arith.constant 0 : index
    %c0_15 = arith.constant 0 : index
    %c0_16 = arith.constant 0 : index
    %7 = vector.load %arg6[%c0_14, %c0_15, %c0_16] : memref<1x64x64xf32, #tpu.memory_space<vmem>>, vector<1x64x64xf32>
    %8 = vector.shape_cast %7 : vector<1x64x64xf32> to vector<64x64xf32>
    %c0_17 = arith.constant 0 : index
    %c0_18 = arith.constant 0 : index
    %9 = vector.load %arg7[%c0_17, %c0_18] : memref<16x32xbf16, #tpu.memory_space<vmem>>, vector<16x32xbf16>
    %c0_19 = arith.constant 0 : index
    %c0_20 = arith.constant 0 : index
    %10 = vector.load %arg9[%c0_19, %c0_20] : memref<32x64xbf16, #tpu.memory_space<vmem>>, vector<32x64xbf16>
    %c0_21 = arith.constant 0 : index
    %c0_22 = arith.constant 0 : index
    %11 = vector.load %arg11[%c0_21, %c0_22] : memref<64x128xbf16, #tpu.memory_space<vmem>>, vector<64x128xbf16>
    %c0_23 = arith.constant 0 : index
    %c0_24 = arith.constant 0 : index
    %12 = vector.load %arg8[%c0_23, %c0_24] : memref<1x32xf32, #tpu.memory_space<vmem>>, vector<1x32xf32>
    %c0_25 = arith.constant 0 : index
    %c0_26 = arith.constant 0 : index
    %13 = vector.load %arg10[%c0_25, %c0_26] : memref<1x64xf32, #tpu.memory_space<vmem>>, vector<1x64xf32>
    %c0_27 = arith.constant 0 : index
    %c0_28 = arith.constant 0 : index
    %14 = vector.load %arg12[%c0_27, %c0_28] : memref<1x128xf32, #tpu.memory_space<vmem>>, vector<1x128xf32>
    %cst = arith.constant dense<0.000000e+00> : vector<2x16xf32>
    %15 = vector.multi_reduction <add>, %0, %cst [1] : vector<2x64x16xf32> to vector<2x16xf32>
    %cst_29 = arith.constant 6.400000e+01 : f32
    %16 = vector.broadcast %cst_29 : f32 to vector<2x16xf32>
    %17 = arith.divf %15, %16 : vector<2x16xf32>
    %cst_30 = arith.constant dense<0.000000e+00> : vector<2x16xf32>
    %18 = tpu.matmul %17, %4, %cst_30 {dimension_numbers = #tpu.dot_dimension_numbers<[1], [0], [0], [1], [0, 0, 1, 1], [], []>} : vector<2x16xf32>, vector<16x16xf32>, vector<2x16xf32> -> vector<2x16xf32>
    %19 = arith.negf %18 : vector<2x16xf32>
    %20 = math.exp %19 : vector<2x16xf32>
    %cst_31 = arith.constant 1.000000e+00 : f32
    %21 = vector.broadcast %cst_31 : f32 to vector<2x16xf32>
    %22 = arith.addf %21, %20 : vector<2x16xf32>
    %23 = arith.divf %21, %22 : vector<2x16xf32>
    %cst_32 = arith.constant 1.000000e+00 : f32
    %24 = vector.broadcast %cst_32 : f32 to vector<2x16xf32>
    %25 = arith.addf %24, %23 : vector<2x16xf32>
    %26 = vector.shape_cast %25 : vector<2x16xf32> to vector<2x1x16xf32>
    %27 = vector.broadcast %26 : vector<2x1x16xf32> to vector<2x64x16xf32>
    %28 = arith.mulf %0, %27 : vector<2x64x16xf32>
    %29 = vector.shape_cast %28 : vector<2x64x16xf32> to vector<128x16xf32>
    %30 = arith.truncf %29 : vector<128x16xf32> to vector<128x16xbf16>
    %cst_33 = arith.constant dense<0.000000e+00> : vector<128x32xf32>
    %31 = tpu.matmul %30, %9, %cst_33 {dimension_numbers = #tpu.dot_dimension_numbers<[1], [0], [0], [1], [0, 0, 1, 1], [], []>} : vector<128x16xbf16>, vector<16x32xbf16>, vector<128x32xf32> -> vector<128x32xf32>
    %32 = vector.shape_cast %31 : vector<128x32xf32> to vector<2x64x32xf32>
    %33 = vector.shape_cast %12 : vector<1x32xf32> to vector<1x1x32xf32>
    %34 = vector.broadcast %33 : vector<1x1x32xf32> to vector<2x64x32xf32>
    %35 = arith.addf %32, %34 : vector<2x64x32xf32>
    %cst_34 = arith.constant 0.000000e+00 : f32
    %36 = vector.broadcast %cst_34 : f32 to vector<2x64x32xf32>
    %37 = arith.maximumf %35, %36 : vector<2x64x32xf32>
    %38 = vector.extract_strided_slice %37 {offsets = [0, 0, 0], sizes = [2, 4, 32], strides = [1, 1, 1]} : vector<2x64x32xf32> to vector<2x4x32xf32>
    %cst_35 = arith.constant dense<0xFF800000> : vector<2x32xf32>
    %39 = vector.multi_reduction <maximumf>, %38, %cst_35 [1] : vector<2x4x32xf32> to vector<2x32xf32>
    %40 = vector.shape_cast %39 : vector<2x32xf32> to vector<2x1x32xf32>
    %c0_36 = arith.constant 0 : index
    %c0_37 = arith.constant 0 : index
    %c0_38 = arith.constant 0 : index
    %41 = vector.load %arg16[%c0_36, %c0_37, %c0_38] : memref<2x16x32xf32, #tpu.memory_space<vmem>>, vector<2x1x32xf32>
    tpu.vector_store %arg16[%c0_36, %c0_37, %c0_38], %40 {strides = array<i32>} : memref<2x16x32xf32, #tpu.memory_space<vmem>>, vector<2x1x32xf32>,
    %42 = vector.extract_strided_slice %37 {offsets = [0, 4, 0], sizes = [2, 4, 32], strides = [1, 1, 1]} : vector<2x64x32xf32> to vector<2x4x32xf32>
    %cst_39 = arith.constant dense<0xFF800000> : vector<2x32xf32>
    %43 = vector.multi_reduction <maximumf>, %42, %cst_39 [1] : vector<2x4x32xf32> to vector<2x32xf32>
    %44 = vector.shape_cast %43 : vector<2x32xf32> to vector<2x1x32xf32>
    %c0_40 = arith.constant 0 : index
    %c1 = arith.constant 1 : index
    %c0_41 = arith.constant 0 : index
    %45 = vector.load %arg16[%c0_40, %c1, %c0_41] : memref<2x16x32xf32, #tpu.memory_space<vmem>>, vector<2x1x32xf32>
    tpu.vector_store %arg16[%c0_40, %c1, %c0_41], %44 {strides = array<i32>} : memref<2x16x32xf32, #tpu.memory_space<vmem>>, vector<2x1x32xf32>,
    %46 = vector.extract_strided_slice %37 {offsets = [0, 8, 0], sizes = [2, 4, 32], strides = [1, 1, 1]} : vector<2x64x32xf32> to vector<2x4x32xf32>
    %cst_42 = arith.constant dense<0xFF800000> : vector<2x32xf32>
    %47 = vector.multi_reduction <maximumf>, %46, %cst_42 [1] : vector<2x4x32xf32> to vector<2x32xf32>
    %48 = vector.shape_cast %47 : vector<2x32xf32> to vector<2x1x32xf32>
    %c0_43 = arith.constant 0 : index
    %c2 = arith.constant 2 : index
    %c0_44 = arith.constant 0 : index
    %49 = vector.load %arg16[%c0_43, %c2, %c0_44] : memref<2x16x32xf32, #tpu.memory_space<vmem>>, vector<2x1x32xf32>
    tpu.vector_store %arg16[%c0_43, %c2, %c0_44], %48 {strides = array<i32>} : memref<2x16x32xf32, #tpu.memory_space<vmem>>, vector<2x1x32xf32>,
    %50 = vector.extract_strided_slice %37 {offsets = [0, 12, 0], sizes = [2, 4, 32], strides = [1, 1, 1]} : vector<2x64x32xf32> to vector<2x4x32xf32>
    %cst_45 = arith.constant dense<0xFF800000> : vector<2x32xf32>
    %51 = vector.multi_reduction <maximumf>, %50, %cst_45 [1] : vector<2x4x32xf32> to vector<2x32xf32>
    %52 = vector.shape_cast %51 : vector<2x32xf32> to vector<2x1x32xf32>
    %c0_46 = arith.constant 0 : index
    %c3 = arith.constant 3 : index
    %c0_47 = arith.constant 0 : index
    %53 = vector.load %arg16[%c0_46, %c3, %c0_47] : memref<2x16x32xf32, #tpu.memory_space<vmem>>, vector<2x1x32xf32>
    tpu.vector_store %arg16[%c0_46, %c3, %c0_47], %52 {strides = array<i32>} : memref<2x16x32xf32, #tpu.memory_space<vmem>>, vector<2x1x32xf32>,
    %54 = vector.extract_strided_slice %37 {offsets = [0, 16, 0], sizes = [2, 4, 32], strides = [1, 1, 1]} : vector<2x64x32xf32> to vector<2x4x32xf32>
    %cst_48 = arith.constant dense<0xFF800000> : vector<2x32xf32>
    %55 = vector.multi_reduction <maximumf>, %54, %cst_48 [1] : vector<2x4x32xf32> to vector<2x32xf32>
    %56 = vector.shape_cast %55 : vector<2x32xf32> to vector<2x1x32xf32>
    %c0_49 = arith.constant 0 : index
    %c4 = arith.constant 4 : index
    %c0_50 = arith.constant 0 : index
    %57 = vector.load %arg16[%c0_49, %c4, %c0_50] : memref<2x16x32xf32, #tpu.memory_space<vmem>>, vector<2x1x32xf32>
    tpu.vector_store %arg16[%c0_49, %c4, %c0_50], %56 {strides = array<i32>} : memref<2x16x32xf32, #tpu.memory_space<vmem>>, vector<2x1x32xf32>,
    %58 = vector.extract_strided_slice %37 {offsets = [0, 20, 0], sizes = [2, 4, 32], strides = [1, 1, 1]} : vector<2x64x32xf32> to vector<2x4x32xf32>
    %cst_51 = arith.constant dense<0xFF800000> : vector<2x32xf32>
    %59 = vector.multi_reduction <maximumf>, %58, %cst_51 [1] : vector<2x4x32xf32> to vector<2x32xf32>
    %60 = vector.shape_cast %59 : vector<2x32xf32> to vector<2x1x32xf32>
    %c0_52 = arith.constant 0 : index
    %c5 = arith.constant 5 : index
    %c0_53 = arith.constant 0 : index
    %61 = vector.load %arg16[%c0_52, %c5, %c0_53] : memref<2x16x32xf32, #tpu.memory_space<vmem>>, vector<2x1x32xf32>
    tpu.vector_store %arg16[%c0_52, %c5, %c0_53], %60 {strides = array<i32>} : memref<2x16x32xf32, #tpu.memory_space<vmem>>, vector<2x1x32xf32>,
    %62 = vector.extract_strided_slice %37 {offsets = [0, 24, 0], sizes = [2, 4, 32], strides = [1, 1, 1]} : vector<2x64x32xf32> to vector<2x4x32xf32>
    %cst_54 = arith.constant dense<0xFF800000> : vector<2x32xf32>
    %63 = vector.multi_reduction <maximumf>, %62, %cst_54 [1] : vector<2x4x32xf32> to vector<2x32xf32>
    %64 = vector.shape_cast %63 : vector<2x32xf32> to vector<2x1x32xf32>
    %c0_55 = arith.constant 0 : index
    %c6 = arith.constant 6 : index
    %c0_56 = arith.constant 0 : index
    %65 = vector.load %arg16[%c0_55, %c6, %c0_56] : memref<2x16x32xf32, #tpu.memory_space<vmem>>, vector<2x1x32xf32>
    tpu.vector_store %arg16[%c0_55, %c6, %c0_56], %64 {strides = array<i32>} : memref<2x16x32xf32, #tpu.memory_space<vmem>>, vector<2x1x32xf32>,
    %66 = vector.extract_strided_slice %37 {offsets = [0, 28, 0], sizes = [2, 4, 32], strides = [1, 1, 1]} : vector<2x64x32xf32> to vector<2x4x32xf32>
    %cst_57 = arith.constant dense<0xFF800000> : vector<2x32xf32>
    %67 = vector.multi_reduction <maximumf>, %66, %cst_57 [1] : vector<2x4x32xf32> to vector<2x32xf32>
    %68 = vector.shape_cast %67 : vector<2x32xf32> to vector<2x1x32xf32>
    %c0_58 = arith.constant 0 : index
    %c7 = arith.constant 7 : index
    %c0_59 = arith.constant 0 : index
    %69 = vector.load %arg16[%c0_58, %c7, %c0_59] : memref<2x16x32xf32, #tpu.memory_space<vmem>>, vector<2x1x32xf32>
    tpu.vector_store %arg16[%c0_58, %c7, %c0_59], %68 {strides = array<i32>} : memref<2x16x32xf32, #tpu.memory_space<vmem>>, vector<2x1x32xf32>,
    %70 = vector.extract_strided_slice %37 {offsets = [0, 32, 0], sizes = [2, 4, 32], strides = [1, 1, 1]} : vector<2x64x32xf32> to vector<2x4x32xf32>
    %cst_60 = arith.constant dense<0xFF800000> : vector<2x32xf32>
    %71 = vector.multi_reduction <maximumf>, %70, %cst_60 [1] : vector<2x4x32xf32> to vector<2x32xf32>
    %72 = vector.shape_cast %71 : vector<2x32xf32> to vector<2x1x32xf32>
    %c0_61 = arith.constant 0 : index
    %c8 = arith.constant 8 : index
    %c0_62 = arith.constant 0 : index
    %73 = vector.load %arg16[%c0_61, %c8, %c0_62] : memref<2x16x32xf32, #tpu.memory_space<vmem>>, vector<2x1x32xf32>
    tpu.vector_store %arg16[%c0_61, %c8, %c0_62], %72 {strides = array<i32>} : memref<2x16x32xf32, #tpu.memory_space<vmem>>, vector<2x1x32xf32>,
    %74 = vector.extract_strided_slice %37 {offsets = [0, 36, 0], sizes = [2, 4, 32], strides = [1, 1, 1]} : vector<2x64x32xf32> to vector<2x4x32xf32>
    %cst_63 = arith.constant dense<0xFF800000> : vector<2x32xf32>
    %75 = vector.multi_reduction <maximumf>, %74, %cst_63 [1] : vector<2x4x32xf32> to vector<2x32xf32>
    %76 = vector.shape_cast %75 : vector<2x32xf32> to vector<2x1x32xf32>
    %c0_64 = arith.constant 0 : index
    %c9 = arith.constant 9 : index
    %c0_65 = arith.constant 0 : index
    %77 = vector.load %arg16[%c0_64, %c9, %c0_65] : memref<2x16x32xf32, #tpu.memory_space<vmem>>, vector<2x1x32xf32>
    tpu.vector_store %arg16[%c0_64, %c9, %c0_65], %76 {strides = array<i32>} : memref<2x16x32xf32, #tpu.memory_space<vmem>>, vector<2x1x32xf32>,
    %78 = vector.extract_strided_slice %37 {offsets = [0, 40, 0], sizes = [2, 4, 32], strides = [1, 1, 1]} : vector<2x64x32xf32> to vector<2x4x32xf32>
    %cst_66 = arith.constant dense<0xFF800000> : vector<2x32xf32>
    %79 = vector.multi_reduction <maximumf>, %78, %cst_66 [1] : vector<2x4x32xf32> to vector<2x32xf32>
    %80 = vector.shape_cast %79 : vector<2x32xf32> to vector<2x1x32xf32>
    %c0_67 = arith.constant 0 : index
    %c10 = arith.constant 10 : index
    %c0_68 = arith.constant 0 : index
    %81 = vector.load %arg16[%c0_67, %c10, %c0_68] : memref<2x16x32xf32, #tpu.memory_space<vmem>>, vector<2x1x32xf32>
    tpu.vector_store %arg16[%c0_67, %c10, %c0_68], %80 {strides = array<i32>} : memref<2x16x32xf32, #tpu.memory_space<vmem>>, vector<2x1x32xf32>,
    %82 = vector.extract_strided_slice %37 {offsets = [0, 44, 0], sizes = [2, 4, 32], strides = [1, 1, 1]} : vector<2x64x32xf32> to vector<2x4x32xf32>
    %cst_69 = arith.constant dense<0xFF800000> : vector<2x32xf32>
    %83 = vector.multi_reduction <maximumf>, %82, %cst_69 [1] : vector<2x4x32xf32> to vector<2x32xf32>
    %84 = vector.shape_cast %83 : vector<2x32xf32> to vector<2x1x32xf32>
    %c0_70 = arith.constant 0 : index
    %c11 = arith.constant 11 : index
    %c0_71 = arith.constant 0 : index
    %85 = vector.load %arg16[%c0_70, %c11, %c0_71] : memref<2x16x32xf32, #tpu.memory_space<vmem>>, vector<2x1x32xf32>
    tpu.vector_store %arg16[%c0_70, %c11, %c0_71], %84 {strides = array<i32>} : memref<2x16x32xf32, #tpu.memory_space<vmem>>, vector<2x1x32xf32>,
    %86 = vector.extract_strided_slice %37 {offsets = [0, 48, 0], sizes = [2, 4, 32], strides = [1, 1, 1]} : vector<2x64x32xf32> to vector<2x4x32xf32>
    %cst_72 = arith.constant dense<0xFF800000> : vector<2x32xf32>
    %87 = vector.multi_reduction <maximumf>, %86, %cst_72 [1] : vector<2x4x32xf32> to vector<2x32xf32>
    %88 = vector.shape_cast %87 : vector<2x32xf32> to vector<2x1x32xf32>
    %c0_73 = arith.constant 0 : index
    %c12 = arith.constant 12 : index
    %c0_74 = arith.constant 0 : index
    %89 = vector.load %arg16[%c0_73, %c12, %c0_74] : memref<2x16x32xf32, #tpu.memory_space<vmem>>, vector<2x1x32xf32>
    tpu.vector_store %arg16[%c0_73, %c12, %c0_74], %88 {strides = array<i32>} : memref<2x16x32xf32, #tpu.memory_space<vmem>>, vector<2x1x32xf32>,
    %90 = vector.extract_strided_slice %37 {offsets = [0, 52, 0], sizes = [2, 4, 32], strides = [1, 1, 1]} : vector<2x64x32xf32> to vector<2x4x32xf32>
    %cst_75 = arith.constant dense<0xFF800000> : vector<2x32xf32>
    %91 = vector.multi_reduction <maximumf>, %90, %cst_75 [1] : vector<2x4x32xf32> to vector<2x32xf32>
    %92 = vector.shape_cast %91 : vector<2x32xf32> to vector<2x1x32xf32>
    %c0_76 = arith.constant 0 : index
    %c13 = arith.constant 13 : index
    %c0_77 = arith.constant 0 : index
    %93 = vector.load %arg16[%c0_76, %c13, %c0_77] : memref<2x16x32xf32, #tpu.memory_space<vmem>>, vector<2x1x32xf32>
    tpu.vector_store %arg16[%c0_76, %c13, %c0_77], %92 {strides = array<i32>} : memref<2x16x32xf32, #tpu.memory_space<vmem>>, vector<2x1x32xf32>,
    %94 = vector.extract_strided_slice %37 {offsets = [0, 56, 0], sizes = [2, 4, 32], strides = [1, 1, 1]} : vector<2x64x32xf32> to vector<2x4x32xf32>
    %cst_78 = arith.constant dense<0xFF800000> : vector<2x32xf32>
    %95 = vector.multi_reduction <maximumf>, %94, %cst_78 [1] : vector<2x4x32xf32> to vector<2x32xf32>
    %96 = vector.shape_cast %95 : vector<2x32xf32> to vector<2x1x32xf32>
    %c0_79 = arith.constant 0 : index
    %c14 = arith.constant 14 : index
    %c0_80 = arith.constant 0 : index
    %97 = vector.load %arg16[%c0_79, %c14, %c0_80] : memref<2x16x32xf32, #tpu.memory_space<vmem>>, vector<2x1x32xf32>
    tpu.vector_store %arg16[%c0_79, %c14, %c0_80], %96 {strides = array<i32>} : memref<2x16x32xf32, #tpu.memory_space<vmem>>, vector<2x1x32xf32>,
    %98 = vector.extract_strided_slice %37 {offsets = [0, 60, 0], sizes = [2, 4, 32], strides = [1, 1, 1]} : vector<2x64x32xf32> to vector<2x4x32xf32>
    %cst_81 = arith.constant dense<0xFF800000> : vector<2x32xf32>
    %99 = vector.multi_reduction <maximumf>, %98, %cst_81 [1] : vector<2x4x32xf32> to vector<2x32xf32>
    %100 = vector.shape_cast %99 : vector<2x32xf32> to vector<2x1x32xf32>
    %c0_82 = arith.constant 0 : index
    %c15 = arith.constant 15 : index
    %c0_83 = arith.constant 0 : index
    %101 = vector.load %arg16[%c0_82, %c15, %c0_83] : memref<2x16x32xf32, #tpu.memory_space<vmem>>, vector<2x1x32xf32>
    tpu.vector_store %arg16[%c0_82, %c15, %c0_83], %100 {strides = array<i32>} : memref<2x16x32xf32, #tpu.memory_space<vmem>>, vector<2x1x32xf32>,
    %c0_84 = arith.constant 0 : index
    %c0_85 = arith.constant 0 : index
    %c0_86 = arith.constant 0 : index
    %102 = vector.load %arg16[%c0_84, %c0_85, %c0_86] : memref<2x16x32xf32, #tpu.memory_space<vmem>>, vector<2x16x32xf32>
    %103 = arith.addf %1, %102 : vector<2x16x32xf32>
    %cst_87 = arith.constant dense<0.000000e+00> : vector<2x32xf32>
    %104 = vector.multi_reduction <add>, %103, %cst_87 [1] : vector<2x16x32xf32> to vector<2x32xf32>
    %cst_88 = arith.constant 1.600000e+01 : f32
    %105 = vector.broadcast %cst_88 : f32 to vector<2x32xf32>
    %106 = arith.divf %104, %105 : vector<2x32xf32>
    %cst_89 = arith.constant dense<0.000000e+00> : vector<2x32xf32>
    %107 = tpu.matmul %106, %6, %cst_89 {dimension_numbers = #tpu.dot_dimension_numbers<[1], [0], [0], [1], [0, 0, 1, 1], [], []>} : vector<2x32xf32>, vector<32x32xf32>, vector<2x32xf32> -> vector<2x32xf32>
    %108 = arith.negf %107 : vector<2x32xf32>
    %109 = math.exp %108 : vector<2x32xf32>
    %cst_90 = arith.constant 1.000000e+00 : f32
    %110 = vector.broadcast %cst_90 : f32 to vector<2x32xf32>
    %111 = arith.addf %110, %109 : vector<2x32xf32>
    %112 = arith.divf %110, %111 : vector<2x32xf32>
    %cst_91 = arith.constant 1.000000e+00 : f32
    %113 = vector.broadcast %cst_91 : f32 to vector<2x32xf32>
    %114 = arith.addf %113, %112 : vector<2x32xf32>
    %115 = vector.shape_cast %114 : vector<2x32xf32> to vector<2x1x32xf32>
    %116 = vector.broadcast %115 : vector<2x1x32xf32> to vector<2x16x32xf32>
    %117 = arith.mulf %103, %116 : vector<2x16x32xf32>
    %118 = vector.shape_cast %117 : vector<2x16x32xf32> to vector<32x32xf32>
    %119 = arith.truncf %118 : vector<32x32xf32> to vector<32x32xbf16>
    %cst_92 = arith.constant dense<0.000000e+00> : vector<32x64xf32>
    %120 = tpu.matmul %119, %10, %cst_92 {dimension_numbers = #tpu.dot_dimension_numbers<[1], [0], [0], [1], [0, 0, 1, 1], [], []>} : vector<32x32xbf16>, vector<32x64xbf16>, vector<32x64xf32> -> vector<32x64xf32>
    %121 = vector.shape_cast %120 : vector<32x64xf32> to vector<2x16x64xf32>
    %122 = vector.shape_cast %13 : vector<1x64xf32> to vector<1x1x64xf32>
    %123 = vector.broadcast %122 : vector<1x1x64xf32> to vector<2x16x64xf32>
    %124 = arith.addf %121, %123 : vector<2x16x64xf32>
    %cst_93 = arith.constant 0.000000e+00 : f32
    %125 = vector.broadcast %cst_93 : f32 to vector<2x16x64xf32>
    %126 = arith.maximumf %124, %125 : vector<2x16x64xf32>
    %127 = vector.extract_strided_slice %126 {offsets = [0, 0, 0], sizes = [2, 4, 64], strides = [1, 1, 1]} : vector<2x16x64xf32> to vector<2x4x64xf32>
    %cst_94 = arith.constant dense<0xFF800000> : vector<2x64xf32>
    %128 = vector.multi_reduction <maximumf>, %127, %cst_94 [1] : vector<2x4x64xf32> to vector<2x64xf32>
    %129 = vector.shape_cast %128 : vector<2x64xf32> to vector<2x1x64xf32>
    %c0_95 = arith.constant 0 : index
    %c0_96 = arith.constant 0 : index
    %c0_97 = arith.constant 0 : index
    %130 = vector.load %arg17[%c0_95, %c0_96, %c0_97] : memref<2x4x64xf32, #tpu.memory_space<vmem>>, vector<2x1x64xf32>
    tpu.vector_store %arg17[%c0_95, %c0_96, %c0_97], %129 {strides = array<i32>} : memref<2x4x64xf32, #tpu.memory_space<vmem>>, vector<2x1x64xf32>,
    %131 = vector.extract_strided_slice %126 {offsets = [0, 4, 0], sizes = [2, 4, 64], strides = [1, 1, 1]} : vector<2x16x64xf32> to vector<2x4x64xf32>
    %cst_98 = arith.constant dense<0xFF800000> : vector<2x64xf32>
    %132 = vector.multi_reduction <maximumf>, %131, %cst_98 [1] : vector<2x4x64xf32> to vector<2x64xf32>
    %133 = vector.shape_cast %132 : vector<2x64xf32> to vector<2x1x64xf32>
    %c0_99 = arith.constant 0 : index
    %c1_100 = arith.constant 1 : index
    %c0_101 = arith.constant 0 : index
    %134 = vector.load %arg17[%c0_99, %c1_100, %c0_101] : memref<2x4x64xf32, #tpu.memory_space<vmem>>, vector<2x1x64xf32>
    tpu.vector_store %arg17[%c0_99, %c1_100, %c0_101], %133 {strides = array<i32>} : memref<2x4x64xf32, #tpu.memory_space<vmem>>, vector<2x1x64xf32>,
    %135 = vector.extract_strided_slice %126 {offsets = [0, 8, 0], sizes = [2, 4, 64], strides = [1, 1, 1]} : vector<2x16x64xf32> to vector<2x4x64xf32>
    %cst_102 = arith.constant dense<0xFF800000> : vector<2x64xf32>
    %136 = vector.multi_reduction <maximumf>, %135, %cst_102 [1] : vector<2x4x64xf32> to vector<2x64xf32>
    %137 = vector.shape_cast %136 : vector<2x64xf32> to vector<2x1x64xf32>
    %c0_103 = arith.constant 0 : index
    %c2_104 = arith.constant 2 : index
    %c0_105 = arith.constant 0 : index
    %138 = vector.load %arg17[%c0_103, %c2_104, %c0_105] : memref<2x4x64xf32, #tpu.memory_space<vmem>>, vector<2x1x64xf32>
    tpu.vector_store %arg17[%c0_103, %c2_104, %c0_105], %137 {strides = array<i32>} : memref<2x4x64xf32, #tpu.memory_space<vmem>>, vector<2x1x64xf32>,
    %139 = vector.extract_strided_slice %126 {offsets = [0, 12, 0], sizes = [2, 4, 64], strides = [1, 1, 1]} : vector<2x16x64xf32> to vector<2x4x64xf32>
    %cst_106 = arith.constant dense<0xFF800000> : vector<2x64xf32>
    %140 = vector.multi_reduction <maximumf>, %139, %cst_106 [1] : vector<2x4x64xf32> to vector<2x64xf32>
    %141 = vector.shape_cast %140 : vector<2x64xf32> to vector<2x1x64xf32>
    %c0_107 = arith.constant 0 : index
    %c3_108 = arith.constant 3 : index
    %c0_109 = arith.constant 0 : index
    %142 = vector.load %arg17[%c0_107, %c3_108, %c0_109] : memref<2x4x64xf32, #tpu.memory_space<vmem>>, vector<2x1x64xf32>
    tpu.vector_store %arg17[%c0_107, %c3_108, %c0_109], %141 {strides = array<i32>} : memref<2x4x64xf32, #tpu.memory_space<vmem>>, vector<2x1x64xf32>,
    %c0_110 = arith.constant 0 : index
    %c0_111 = arith.constant 0 : index
    %c0_112 = arith.constant 0 : index
    %143 = vector.load %arg17[%c0_110, %c0_111, %c0_112] : memref<2x4x64xf32, #tpu.memory_space<vmem>>, vector<2x4x64xf32>
    %144 = arith.addf %2, %143 : vector<2x4x64xf32>
    %cst_113 = arith.constant dense<0.000000e+00> : vector<2x64xf32>
    %145 = vector.multi_reduction <add>, %144, %cst_113 [1] : vector<2x4x64xf32> to vector<2x64xf32>
    %cst_114 = arith.constant 4.000000e+00 : f32
    %146 = vector.broadcast %cst_114 : f32 to vector<2x64xf32>
    %147 = arith.divf %145, %146 : vector<2x64xf32>
    %cst_115 = arith.constant dense<0.000000e+00> : vector<2x64xf32>
    %148 = tpu.matmul %147, %8, %cst_115 {dimension_numbers = #tpu.dot_dimension_numbers<[1], [0], [0], [1], [0, 0, 1, 1], [], []>} : vector<2x64xf32>, vector<64x64xf32>, vector<2x64xf32> -> vector<2x64xf32>
    %149 = arith.negf %148 : vector<2x64xf32>
    %150 = math.exp %149 : vector<2x64xf32>
    %cst_116 = arith.constant 1.000000e+00 : f32
    %151 = vector.broadcast %cst_116 : f32 to vector<2x64xf32>
    %152 = arith.addf %151, %150 : vector<2x64xf32>
    %153 = arith.divf %151, %152 : vector<2x64xf32>
    %cst_117 = arith.constant 1.000000e+00 : f32
    %154 = vector.broadcast %cst_117 : f32 to vector<2x64xf32>
    %155 = arith.addf %154, %153 : vector<2x64xf32>
    %156 = vector.shape_cast %155 : vector<2x64xf32> to vector<2x1x64xf32>
    %157 = vector.broadcast %156 : vector<2x1x64xf32> to vector<2x4x64xf32>
    %158 = arith.mulf %144, %157 : vector<2x4x64xf32>
    %159 = vector.extract_strided_slice %158 {offsets = [0, 0, 0], sizes = [1, 4, 64], strides = [1, 1, 1]} : vector<2x4x64xf32> to vector<1x4x64xf32>
    %160 = vector.shape_cast %159 : vector<1x4x64xf32> to vector<4x64xf32>
    %161 = arith.truncf %160 : vector<4x64xf32> to vector<4x64xbf16>
    %cst_118 = arith.constant dense<0.000000e+00> : vector<4x128xf32>
    %162 = tpu.matmul %161, %11, %cst_118 {dimension_numbers = #tpu.dot_dimension_numbers<[1], [0], [0], [1], [0, 0, 1, 1], [], []>} : vector<4x64xbf16>, vector<64x128xbf16>, vector<4x128xf32> -> vector<4x128xf32>
    %163 = vector.extract_strided_slice %158 {offsets = [1, 0, 0], sizes = [1, 4, 64], strides = [1, 1, 1]} : vector<2x4x64xf32> to vector<1x4x64xf32>
    %164 = vector.shape_cast %163 : vector<1x4x64xf32> to vector<4x64xf32>
    %165 = arith.truncf %164 : vector<4x64xf32> to vector<4x64xbf16>
    %cst_119 = arith.constant dense<0.000000e+00> : vector<4x128xf32>
    %166 = tpu.matmul %165, %11, %cst_119 {dimension_numbers = #tpu.dot_dimension_numbers<[1], [0], [0], [1], [0, 0, 1, 1], [], []>} : vector<4x64xbf16>, vector<64x128xbf16>, vector<4x128xf32> -> vector<4x128xf32>
    %167 = vector.shape_cast %162 : vector<4x128xf32> to vector<1x4x128xf32>
    %168 = vector.shape_cast %166 : vector<4x128xf32> to vector<1x4x128xf32>
    %169 = tpu.concatenate %167, %168 in 0 : vector<1x4x128xf32>, vector<1x4x128xf32> -> vector<2x4x128xf32>
    %170 = vector.shape_cast %14 : vector<1x128xf32> to vector<1x1x128xf32>
    %171 = vector.broadcast %170 : vector<1x1x128xf32> to vector<2x4x128xf32>
    %172 = arith.addf %169, %171 : vector<2x4x128xf32>
    %cst_120 = arith.constant 0.000000e+00 : f32
    %173 = vector.broadcast %cst_120 : f32 to vector<2x4x128xf32>
    %174 = arith.maximumf %172, %173 : vector<2x4x128xf32>
    %175 = vector.extract_strided_slice %174 {offsets = [0, 0, 0], sizes = [2, 2, 128], strides = [1, 1, 1]} : vector<2x4x128xf32> to vector<2x2x128xf32>
    %cst_121 = arith.constant dense<0xFF800000> : vector<2x128xf32>
    %176 = vector.multi_reduction <maximumf>, %175, %cst_121 [1] : vector<2x2x128xf32> to vector<2x128xf32>
    %177 = vector.shape_cast %176 : vector<2x128xf32> to vector<2x1x128xf32>
    %c0_122 = arith.constant 0 : index
    %c0_123 = arith.constant 0 : index
    %c0_124 = arith.constant 0 : index
    %178 = vector.load %arg18[%c0_122, %c0_123, %c0_124] : memref<2x2x128xf32, #tpu.memory_space<vmem>>, vector<2x1x128xf32>
    tpu.vector_store %arg18[%c0_122, %c0_123, %c0_124], %177 {strides = array<i32>} : memref<2x2x128xf32, #tpu.memory_space<vmem>>, vector<2x1x128xf32>,
    %179 = vector.extract_strided_slice %174 {offsets = [0, 2, 0], sizes = [2, 2, 128], strides = [1, 1, 1]} : vector<2x4x128xf32> to vector<2x2x128xf32>
    %cst_125 = arith.constant dense<0xFF800000> : vector<2x128xf32>
    %180 = vector.multi_reduction <maximumf>, %179, %cst_125 [1] : vector<2x2x128xf32> to vector<2x128xf32>
    %181 = vector.shape_cast %180 : vector<2x128xf32> to vector<2x1x128xf32>
    %c0_126 = arith.constant 0 : index
    %c1_127 = arith.constant 1 : index
    %c0_128 = arith.constant 0 : index
    %182 = vector.load %arg18[%c0_126, %c1_127, %c0_128] : memref<2x2x128xf32, #tpu.memory_space<vmem>>, vector<2x1x128xf32>
    tpu.vector_store %arg18[%c0_126, %c1_127, %c0_128], %181 {strides = array<i32>} : memref<2x2x128xf32, #tpu.memory_space<vmem>>, vector<2x1x128xf32>,
    %c0_129 = arith.constant 0 : index
    %c0_130 = arith.constant 0 : index
    %c0_131 = arith.constant 0 : index
    %183 = vector.load %arg18[%c0_129, %c0_130, %c0_131] : memref<2x2x128xf32, #tpu.memory_space<vmem>>, vector<2x2x128xf32>
    %cst_132 = arith.constant dense<0.000000e+00> : vector<2x128xf32>
    %184 = vector.multi_reduction <add>, %183, %cst_132 [1] : vector<2x2x128xf32> to vector<2x128xf32>
    %cst_133 = arith.constant 2.000000e+00 : f32
    %185 = vector.broadcast %cst_133 : f32 to vector<2x128xf32>
    %186 = arith.divf %184, %185 : vector<2x128xf32>
    %187 = arith.truncf %186 : vector<2x128xf32> to vector<2x128xbf16>
    %c0_134 = arith.constant 0 : index
    %c0_135 = arith.constant 0 : index
    %c0_136 = arith.constant 0 : index
    %188 = vector.load %arg13[%c0_134, %c0_135, %c0_136] : memref<1x128x16xbf16, #tpu.memory_space<vmem>>, vector<1x128x16xbf16>
    %189 = vector.shape_cast %188 : vector<1x128x16xbf16> to vector<128x16xbf16>
    %cst_137 = arith.constant dense<0.000000e+00> : vector<2x16xf32>
    %190 = tpu.matmul %187, %189, %cst_137 {dimension_numbers = #tpu.dot_dimension_numbers<[1], [0], [0], [1], [0, 0, 1, 1], [], []>} : vector<2x128xbf16>, vector<128x16xbf16>, vector<2x16xf32> -> vector<2x16xf32>
    %c0_138 = arith.constant 0 : index
    %c0_139 = arith.constant 0 : index
    %c0_140 = arith.constant 0 : index
    %191 = vector.load %arg14[%c0_138, %c0_139, %c0_140] : memref<1x1x16xf32, #tpu.memory_space<vmem>>, vector<1x1x16xf32>
    %192 = vector.shape_cast %191 : vector<1x1x16xf32> to vector<1x16xf32>
    %193 = vector.broadcast %192 : vector<1x16xf32> to vector<2x16xf32>
    %194 = arith.addf %190, %193 : vector<2x16xf32>
    %c0_141 = arith.constant 0 : index
    %c0_142 = arith.constant 0 : index
    %c0_143 = arith.constant 0 : index
    %195 = vector.load %arg15[%c0_141, %c0_142, %c0_143] : memref<1x2x16xf32, #tpu.memory_space<vmem>>, vector<1x2x16xf32>
    %196 = vector.shape_cast %195 : vector<1x2x16xf32> to vector<2x16xf32>
    %197 = vector.shape_cast %194 : vector<2x16xf32> to vector<1x2x16xf32>
    tpu.vector_store %arg15[%c0_141, %c0_142, %c0_143], %197 {strides = array<i32>} : memref<1x2x16xf32, #tpu.memory_space<vmem>>, vector<1x2x16xf32>,
    return
  }
  func.func @transform_0(%arg0: i32) -> (i32, i32, i32) {
    %c0_i32 = arith.constant 0 : i32
    %c0_i32_0 = arith.constant 0 : i32
    %c0_i32_1 = arith.constant 0 : i32
    %c0_i32_2 = arith.constant 0 : i32
    return %c0_i32, %c0_i32_0, %c0_i32_1 : i32, i32, i32
  }
  func.func @transform_1(%arg0: i32) -> (i32, i32, i32) {
    %c0_i32 = arith.constant 0 : i32
    %c0_i32_0 = arith.constant 0 : i32
    %c0_i32_1 = arith.constant 0 : i32
    %c0_i32_2 = arith.constant 0 : i32
    return %c0_i32, %c0_i32_0, %c0_i32_1 : i32, i32, i32
  }
  func.func @transform_2(%arg0: i32) -> (i32, i32, i32) {
    %c0_i32 = arith.constant 0 : i32
    %c0_i32_0 = arith.constant 0 : i32
    %c0_i32_1 = arith.constant 0 : i32
    %c0_i32_2 = arith.constant 0 : i32
    return %c0_i32, %c0_i32_0, %c0_i32_1 : i32, i32, i32
  }
  func.func @transform_3(%arg0: i32) -> (i32, i32, i32) {
    %c0_i32 = arith.constant 0 : i32
    %c0_i32_0 = arith.constant 0 : i32
    %c0_i32_1 = arith.constant 0 : i32
    return %arg0, %c0_i32, %c0_i32_0 : i32, i32, i32
  }
  func.func @transform_4(%arg0: i32) -> (i32, i32, i32) {
    %c0_i32 = arith.constant 0 : i32
    %c0_i32_0 = arith.constant 0 : i32
    %c0_i32_1 = arith.constant 0 : i32
    return %arg0, %c0_i32, %c0_i32_0 : i32, i32, i32
  }
  func.func @transform_5(%arg0: i32) -> (i32, i32, i32) {
    %c0_i32 = arith.constant 0 : i32
    %c0_i32_0 = arith.constant 0 : i32
    %c0_i32_1 = arith.constant 0 : i32
    return %arg0, %c0_i32, %c0_i32_0 : i32, i32, i32
  }
  func.func @transform_6(%arg0: i32) -> (i32, i32) {
    %c0_i32 = arith.constant 0 : i32
    %c0_i32_0 = arith.constant 0 : i32
    %c0_i32_1 = arith.constant 0 : i32
    return %c0_i32, %c0_i32_0 : i32, i32
  }
  func.func @transform_7(%arg0: i32) -> (i32, i32) {
    %c0_i32 = arith.constant 0 : i32
    %c0_i32_0 = arith.constant 0 : i32
    %c0_i32_1 = arith.constant 0 : i32
    return %c0_i32, %c0_i32_0 : i32, i32
  }
  func.func @transform_8(%arg0: i32) -> (i32, i32) {
    %c0_i32 = arith.constant 0 : i32
    %c0_i32_0 = arith.constant 0 : i32
    %c0_i32_1 = arith.constant 0 : i32
    return %c0_i32, %c0_i32_0 : i32, i32
  }
  func.func @transform_9(%arg0: i32) -> (i32, i32) {
    %c0_i32 = arith.constant 0 : i32
    %c0_i32_0 = arith.constant 0 : i32
    %c0_i32_1 = arith.constant 0 : i32
    return %c0_i32, %c0_i32_0 : i32, i32
  }
  func.func @transform_10(%arg0: i32) -> (i32, i32) {
    %c0_i32 = arith.constant 0 : i32
    %c0_i32_0 = arith.constant 0 : i32
    %c0_i32_1 = arith.constant 0 : i32
    return %c0_i32, %c0_i32_0 : i32, i32
  }
  func.func @transform_11(%arg0: i32) -> (i32, i32) {
    %c0_i32 = arith.constant 0 : i32
    %c0_i32_0 = arith.constant 0 : i32
    %c0_i32_1 = arith.constant 0 : i32
    return %c0_i32, %c0_i32_0 : i32, i32
  }
  func.func @transform_12(%arg0: i32) -> (i32, i32, i32) {
    %c0_i32 = arith.constant 0 : i32
    %c0_i32_0 = arith.constant 0 : i32
    %c0_i32_1 = arith.constant 0 : i32
    return %arg0, %c0_i32, %c0_i32_0 : i32, i32, i32
  }
  func.func @transform_13(%arg0: i32) -> (i32, i32, i32) {
    %c0_i32 = arith.constant 0 : i32
    %c0_i32_0 = arith.constant 0 : i32
    %c0_i32_1 = arith.constant 0 : i32
    return %arg0, %c0_i32, %c0_i32_0 : i32, i32, i32
  }
  func.func @transform_14(%arg0: i32) -> (i32, i32, i32) {
    %c0_i32 = arith.constant 0 : i32
    %c0_i32_0 = arith.constant 0 : i32
    %c0_i32_1 = arith.constant 0 : i32
    return %arg0, %c0_i32, %c0_i32_0 : i32, i32, i32
  }
}

module attributes {stable_mosaic.version = 11 : i64} {
  func.func @_encoder_kernel(%arg0: i32, %arg1: memref<2x64x8xbf16, #tpu.memory_space<vmem>>, %arg2: memref<1x8x16xbf16, #tpu.memory_space<vmem>>, %arg3: memref<1x16xf32, #tpu.memory_space<vmem>>, %arg4: memref<7x16x16xbf16, #tpu.memory_space<vmem>>, %arg5: memref<1x16xf32, #tpu.memory_space<vmem>>, %arg6: memref<5x16x32xbf16, #tpu.memory_space<vmem>>, %arg7: memref<1x32xf32, #tpu.memory_space<vmem>>, %arg8: memref<5x32x32xbf16, #tpu.memory_space<vmem>>, %arg9: memref<1x32xf32, #tpu.memory_space<vmem>>, %arg10: memref<3x32x64xbf16, #tpu.memory_space<vmem>>, %arg11: memref<1x64xf32, #tpu.memory_space<vmem>>, %arg12: memref<3x64x64xbf16, #tpu.memory_space<vmem>>, %arg13: memref<1x64xf32, #tpu.memory_space<vmem>>, %arg14: memref<2x64x16xf32, #tpu.memory_space<vmem>>, %arg15: memref<2x16x32xf32, #tpu.memory_space<vmem>>, %arg16: memref<2x4x64xf32, #tpu.memory_space<vmem>>, %arg17: memref<2x70x16xf32, #tpu.memory_space<vmem>>, %arg18: memref<2x20x16xf32, #tpu.memory_space<vmem>>, %arg19: memref<2x20x32xf32, #tpu.memory_space<vmem>>, %arg20: memref<2x6x32xf32, #tpu.memory_space<vmem>>, %arg21: memref<2x6x64xf32, #tpu.memory_space<vmem>>) attributes {dimension_semantics = [#tpu.dimension_semantics<arbitrary>], iteration_bounds = array<i64: 1>, scalar_prefetch = 0 : i64, scratch_operands = 5 : i64, tpu.core_type = #tpu.core_type<tc>, window_params = [{pipeline_mode = #tpu.pipeline_mode<synchronous>, transform_indices = @transform_0, window_bounds = array<i64: 2, 64, 8>}, {pipeline_mode = #tpu.pipeline_mode<synchronous>, transform_indices = @transform_1, window_bounds = array<i64: 1, 8, 16>}, {pipeline_mode = #tpu.pipeline_mode<synchronous>, transform_indices = @transform_2, window_bounds = array<i64: 1, 16>}, {pipeline_mode = #tpu.pipeline_mode<synchronous>, transform_indices = @transform_3, window_bounds = array<i64: 7, 16, 16>}, {pipeline_mode = #tpu.pipeline_mode<synchronous>, transform_indices = @transform_4, window_bounds = array<i64: 1, 16>}, {pipeline_mode = #tpu.pipeline_mode<synchronous>, transform_indices = @transform_5, window_bounds = array<i64: 5, 16, 32>}, {pipeline_mode = #tpu.pipeline_mode<synchronous>, transform_indices = @transform_6, window_bounds = array<i64: 1, 32>}, {pipeline_mode = #tpu.pipeline_mode<synchronous>, transform_indices = @transform_7, window_bounds = array<i64: 5, 32, 32>}, {pipeline_mode = #tpu.pipeline_mode<synchronous>, transform_indices = @transform_8, window_bounds = array<i64: 1, 32>}, {pipeline_mode = #tpu.pipeline_mode<synchronous>, transform_indices = @transform_9, window_bounds = array<i64: 3, 32, 64>}, {pipeline_mode = #tpu.pipeline_mode<synchronous>, transform_indices = @transform_10, window_bounds = array<i64: 1, 64>}, {pipeline_mode = #tpu.pipeline_mode<synchronous>, transform_indices = @transform_11, window_bounds = array<i64: 3, 64, 64>}, {pipeline_mode = #tpu.pipeline_mode<synchronous>, transform_indices = @transform_12, window_bounds = array<i64: 1, 64>}, {pipeline_mode = #tpu.pipeline_mode<synchronous>, transform_indices = @transform_13, window_bounds = array<i64: 2, 64, 16>}, {pipeline_mode = #tpu.pipeline_mode<synchronous>, transform_indices = @transform_14, window_bounds = array<i64: 2, 16, 32>}, {pipeline_mode = #tpu.pipeline_mode<synchronous>, transform_indices = @transform_15, window_bounds = array<i64: 2, 4, 64>}]} {
    %cst = arith.constant 0.000000e+00 : f32
    %0 = vector.broadcast %cst : f32 to vector<2x70x16xf32>
    %c0 = arith.constant 0 : index
    %c0_0 = arith.constant 0 : index
    %c0_1 = arith.constant 0 : index
    %1 = vector.load %arg17[%c0, %c0_0, %c0_1] : memref<2x70x16xf32, #tpu.memory_space<vmem>>, vector<2x70x16xf32>
    tpu.vector_store %arg17[%c0, %c0_0, %c0_1], %0 {strides = array<i32>} : memref<2x70x16xf32, #tpu.memory_space<vmem>>, vector<2x70x16xf32>,
    %cst_2 = arith.constant 0.000000e+00 : f32
    %2 = vector.broadcast %cst_2 : f32 to vector<2x20x16xf32>
    %c0_3 = arith.constant 0 : index
    %c0_4 = arith.constant 0 : index
    %c0_5 = arith.constant 0 : index
    %3 = vector.load %arg18[%c0_3, %c0_4, %c0_5] : memref<2x20x16xf32, #tpu.memory_space<vmem>>, vector<2x20x16xf32>
    tpu.vector_store %arg18[%c0_3, %c0_4, %c0_5], %2 {strides = array<i32>} : memref<2x20x16xf32, #tpu.memory_space<vmem>>, vector<2x20x16xf32>,
    %cst_6 = arith.constant 0.000000e+00 : f32
    %4 = vector.broadcast %cst_6 : f32 to vector<2x20x32xf32>
    %c0_7 = arith.constant 0 : index
    %c0_8 = arith.constant 0 : index
    %c0_9 = arith.constant 0 : index
    %5 = vector.load %arg19[%c0_7, %c0_8, %c0_9] : memref<2x20x32xf32, #tpu.memory_space<vmem>>, vector<2x20x32xf32>
    tpu.vector_store %arg19[%c0_7, %c0_8, %c0_9], %4 {strides = array<i32>} : memref<2x20x32xf32, #tpu.memory_space<vmem>>, vector<2x20x32xf32>,
    %cst_10 = arith.constant 0.000000e+00 : f32
    %6 = vector.broadcast %cst_10 : f32 to vector<2x6x32xf32>
    %c0_11 = arith.constant 0 : index
    %c0_12 = arith.constant 0 : index
    %c0_13 = arith.constant 0 : index
    %7 = vector.load %arg20[%c0_11, %c0_12, %c0_13] : memref<2x6x32xf32, #tpu.memory_space<vmem>>, vector<2x6x32xf32>
    tpu.vector_store %arg20[%c0_11, %c0_12, %c0_13], %6 {strides = array<i32>} : memref<2x6x32xf32, #tpu.memory_space<vmem>>, vector<2x6x32xf32>,
    %cst_14 = arith.constant 0.000000e+00 : f32
    %8 = vector.broadcast %cst_14 : f32 to vector<2x6x64xf32>
    %c0_15 = arith.constant 0 : index
    %c0_16 = arith.constant 0 : index
    %c0_17 = arith.constant 0 : index
    %9 = vector.load %arg21[%c0_15, %c0_16, %c0_17] : memref<2x6x64xf32, #tpu.memory_space<vmem>>, vector<2x6x64xf32>
    tpu.vector_store %arg21[%c0_15, %c0_16, %c0_17], %8 {strides = array<i32>} : memref<2x6x64xf32, #tpu.memory_space<vmem>>, vector<2x6x64xf32>,
    %c0_18 = arith.constant 0 : index
    %c0_19 = arith.constant 0 : index
    %c0_20 = arith.constant 0 : index
    %10 = vector.load %arg2[%c0_18, %c0_19, %c0_20] : memref<1x8x16xbf16, #tpu.memory_space<vmem>>, vector<1x8x16xbf16>
    %c0_21 = arith.constant 0 : index
    %c0_22 = arith.constant 0 : index
    %11 = vector.load %arg3[%c0_21, %c0_22] : memref<1x16xf32, #tpu.memory_space<vmem>>, vector<1x16xf32>
    %cst_23 = arith.constant 0.000000e+00 : f32
    %12 = vector.broadcast %cst_23 : f32 to vector<128x16xf32>
    %c0_24 = arith.constant 0 : index
    %c0_25 = arith.constant 0 : index
    %c0_26 = arith.constant 0 : index
    %13 = vector.load %arg1[%c0_24, %c0_25, %c0_26] : memref<2x64x8xbf16, #tpu.memory_space<vmem>>, vector<2x64x8xbf16>
    %14 = vector.shape_cast %13 : vector<2x64x8xbf16> to vector<128x8xbf16>
    %15 = vector.shape_cast %10 : vector<1x8x16xbf16> to vector<8x16xbf16>
    %cst_27 = arith.constant dense<0.000000e+00> : vector<128x16xf32>
    %16 = tpu.matmul %14, %15, %cst_27 {dimension_numbers = #tpu.dot_dimension_numbers<[1], [0], [0], [1], [0, 0, 1, 1], [], []>} : vector<128x8xbf16>, vector<8x16xbf16>, vector<128x16xf32> -> vector<128x16xf32>
    %17 = arith.addf %12, %16 : vector<128x16xf32>
    %18 = vector.shape_cast %17 : vector<128x16xf32> to vector<2x64x16xf32>
    %19 = vector.shape_cast %11 : vector<1x16xf32> to vector<1x1x16xf32>
    %20 = vector.broadcast %19 : vector<1x1x16xf32> to vector<2x64x16xf32>
    %21 = arith.addf %18, %20 : vector<2x64x16xf32>
    %cst_28 = arith.constant 0.000000e+00 : f32
    %22 = vector.broadcast %cst_28 : f32 to vector<2x64x16xf32>
    %23 = arith.maximumf %21, %22 : vector<2x64x16xf32>
    %c0_29 = arith.constant 0 : index
    %c3 = arith.constant 3 : index
    %c0_30 = arith.constant 0 : index
    %24 = vector.load %arg17[%c0_29, %c3, %c0_30] : memref<2x70x16xf32, #tpu.memory_space<vmem>>, vector<2x64x16xf32>
    tpu.vector_store %arg17[%c0_29, %c3, %c0_30], %23 {strides = array<i32>} : memref<2x70x16xf32, #tpu.memory_space<vmem>>, vector<2x64x16xf32>,
    %c0_31 = arith.constant 0 : index
    %c0_32 = arith.constant 0 : index
    %c0_33 = arith.constant 0 : index
    %25 = vector.load %arg4[%c0_31, %c0_32, %c0_33] : memref<7x16x16xbf16, #tpu.memory_space<vmem>>, vector<7x16x16xbf16>
    %c0_34 = arith.constant 0 : index
    %c0_35 = arith.constant 0 : index
    %26 = vector.load %arg5[%c0_34, %c0_35] : memref<1x16xf32, #tpu.memory_space<vmem>>, vector<1x16xf32>
    %cst_36 = arith.constant 0.000000e+00 : f32
    %27 = vector.broadcast %cst_36 : f32 to vector<128x16xf32>
    %c0_37 = arith.constant 0 : index
    %c0_38 = arith.constant 0 : index
    %c0_39 = arith.constant 0 : index
    %28 = vector.load %arg17[%c0_37, %c0_38, %c0_39] : memref<2x70x16xf32, #tpu.memory_space<vmem>>, vector<2x64x16xf32>
    %29 = vector.shape_cast %28 : vector<2x64x16xf32> to vector<128x16xf32>
    %30 = arith.truncf %29 : vector<128x16xf32> to vector<128x16xbf16>
    %31 = vector.extract_strided_slice %25 {offsets = [0, 0, 0], sizes = [1, 16, 16], strides = [1, 1, 1]} : vector<7x16x16xbf16> to vector<1x16x16xbf16>
    %32 = vector.shape_cast %31 : vector<1x16x16xbf16> to vector<16x16xbf16>
    %cst_40 = arith.constant dense<0.000000e+00> : vector<128x16xf32>
    %33 = tpu.matmul %30, %32, %cst_40 {dimension_numbers = #tpu.dot_dimension_numbers<[1], [0], [0], [1], [0, 0, 1, 1], [], []>} : vector<128x16xbf16>, vector<16x16xbf16>, vector<128x16xf32> -> vector<128x16xf32>
    %34 = arith.addf %27, %33 : vector<128x16xf32>
    %c0_41 = arith.constant 0 : index
    %c1 = arith.constant 1 : index
    %c0_42 = arith.constant 0 : index
    %35 = vector.load %arg17[%c0_41, %c1, %c0_42] : memref<2x70x16xf32, #tpu.memory_space<vmem>>, vector<2x64x16xf32>
    %36 = vector.shape_cast %35 : vector<2x64x16xf32> to vector<128x16xf32>
    %37 = arith.truncf %36 : vector<128x16xf32> to vector<128x16xbf16>
    %38 = vector.extract_strided_slice %25 {offsets = [1, 0, 0], sizes = [1, 16, 16], strides = [1, 1, 1]} : vector<7x16x16xbf16> to vector<1x16x16xbf16>
    %39 = vector.shape_cast %38 : vector<1x16x16xbf16> to vector<16x16xbf16>
    %cst_43 = arith.constant dense<0.000000e+00> : vector<128x16xf32>
    %40 = tpu.matmul %37, %39, %cst_43 {dimension_numbers = #tpu.dot_dimension_numbers<[1], [0], [0], [1], [0, 0, 1, 1], [], []>} : vector<128x16xbf16>, vector<16x16xbf16>, vector<128x16xf32> -> vector<128x16xf32>
    %41 = arith.addf %34, %40 : vector<128x16xf32>
    %c0_44 = arith.constant 0 : index
    %c2 = arith.constant 2 : index
    %c0_45 = arith.constant 0 : index
    %42 = vector.load %arg17[%c0_44, %c2, %c0_45] : memref<2x70x16xf32, #tpu.memory_space<vmem>>, vector<2x64x16xf32>
    %43 = vector.shape_cast %42 : vector<2x64x16xf32> to vector<128x16xf32>
    %44 = arith.truncf %43 : vector<128x16xf32> to vector<128x16xbf16>
    %45 = vector.extract_strided_slice %25 {offsets = [2, 0, 0], sizes = [1, 16, 16], strides = [1, 1, 1]} : vector<7x16x16xbf16> to vector<1x16x16xbf16>
    %46 = vector.shape_cast %45 : vector<1x16x16xbf16> to vector<16x16xbf16>
    %cst_46 = arith.constant dense<0.000000e+00> : vector<128x16xf32>
    %47 = tpu.matmul %44, %46, %cst_46 {dimension_numbers = #tpu.dot_dimension_numbers<[1], [0], [0], [1], [0, 0, 1, 1], [], []>} : vector<128x16xbf16>, vector<16x16xbf16>, vector<128x16xf32> -> vector<128x16xf32>
    %48 = arith.addf %41, %47 : vector<128x16xf32>
    %c0_47 = arith.constant 0 : index
    %c3_48 = arith.constant 3 : index
    %c0_49 = arith.constant 0 : index
    %49 = vector.load %arg17[%c0_47, %c3_48, %c0_49] : memref<2x70x16xf32, #tpu.memory_space<vmem>>, vector<2x64x16xf32>
    %50 = vector.shape_cast %49 : vector<2x64x16xf32> to vector<128x16xf32>
    %51 = arith.truncf %50 : vector<128x16xf32> to vector<128x16xbf16>
    %52 = vector.extract_strided_slice %25 {offsets = [3, 0, 0], sizes = [1, 16, 16], strides = [1, 1, 1]} : vector<7x16x16xbf16> to vector<1x16x16xbf16>
    %53 = vector.shape_cast %52 : vector<1x16x16xbf16> to vector<16x16xbf16>
    %cst_50 = arith.constant dense<0.000000e+00> : vector<128x16xf32>
    %54 = tpu.matmul %51, %53, %cst_50 {dimension_numbers = #tpu.dot_dimension_numbers<[1], [0], [0], [1], [0, 0, 1, 1], [], []>} : vector<128x16xbf16>, vector<16x16xbf16>, vector<128x16xf32> -> vector<128x16xf32>
    %55 = arith.addf %48, %54 : vector<128x16xf32>
    %c0_51 = arith.constant 0 : index
    %c4 = arith.constant 4 : index
    %c0_52 = arith.constant 0 : index
    %56 = vector.load %arg17[%c0_51, %c4, %c0_52] : memref<2x70x16xf32, #tpu.memory_space<vmem>>, vector<2x64x16xf32>
    %57 = vector.shape_cast %56 : vector<2x64x16xf32> to vector<128x16xf32>
    %58 = arith.truncf %57 : vector<128x16xf32> to vector<128x16xbf16>
    %59 = vector.extract_strided_slice %25 {offsets = [4, 0, 0], sizes = [1, 16, 16], strides = [1, 1, 1]} : vector<7x16x16xbf16> to vector<1x16x16xbf16>
    %60 = vector.shape_cast %59 : vector<1x16x16xbf16> to vector<16x16xbf16>
    %cst_53 = arith.constant dense<0.000000e+00> : vector<128x16xf32>
    %61 = tpu.matmul %58, %60, %cst_53 {dimension_numbers = #tpu.dot_dimension_numbers<[1], [0], [0], [1], [0, 0, 1, 1], [], []>} : vector<128x16xbf16>, vector<16x16xbf16>, vector<128x16xf32> -> vector<128x16xf32>
    %62 = arith.addf %55, %61 : vector<128x16xf32>
    %c0_54 = arith.constant 0 : index
    %c5 = arith.constant 5 : index
    %c0_55 = arith.constant 0 : index
    %63 = vector.load %arg17[%c0_54, %c5, %c0_55] : memref<2x70x16xf32, #tpu.memory_space<vmem>>, vector<2x64x16xf32>
    %64 = vector.shape_cast %63 : vector<2x64x16xf32> to vector<128x16xf32>
    %65 = arith.truncf %64 : vector<128x16xf32> to vector<128x16xbf16>
    %66 = vector.extract_strided_slice %25 {offsets = [5, 0, 0], sizes = [1, 16, 16], strides = [1, 1, 1]} : vector<7x16x16xbf16> to vector<1x16x16xbf16>
    %67 = vector.shape_cast %66 : vector<1x16x16xbf16> to vector<16x16xbf16>
    %cst_56 = arith.constant dense<0.000000e+00> : vector<128x16xf32>
    %68 = tpu.matmul %65, %67, %cst_56 {dimension_numbers = #tpu.dot_dimension_numbers<[1], [0], [0], [1], [0, 0, 1, 1], [], []>} : vector<128x16xbf16>, vector<16x16xbf16>, vector<128x16xf32> -> vector<128x16xf32>
    %69 = arith.addf %62, %68 : vector<128x16xf32>
    %c0_57 = arith.constant 0 : index
    %c6 = arith.constant 6 : index
    %c0_58 = arith.constant 0 : index
    %70 = vector.load %arg17[%c0_57, %c6, %c0_58] : memref<2x70x16xf32, #tpu.memory_space<vmem>>, vector<2x64x16xf32>
    %71 = vector.shape_cast %70 : vector<2x64x16xf32> to vector<128x16xf32>
    %72 = arith.truncf %71 : vector<128x16xf32> to vector<128x16xbf16>
    %73 = vector.extract_strided_slice %25 {offsets = [6, 0, 0], sizes = [1, 16, 16], strides = [1, 1, 1]} : vector<7x16x16xbf16> to vector<1x16x16xbf16>
    %74 = vector.shape_cast %73 : vector<1x16x16xbf16> to vector<16x16xbf16>
    %cst_59 = arith.constant dense<0.000000e+00> : vector<128x16xf32>
    %75 = tpu.matmul %72, %74, %cst_59 {dimension_numbers = #tpu.dot_dimension_numbers<[1], [0], [0], [1], [0, 0, 1, 1], [], []>} : vector<128x16xbf16>, vector<16x16xbf16>, vector<128x16xf32> -> vector<128x16xf32>
    %76 = arith.addf %69, %75 : vector<128x16xf32>
    %77 = vector.shape_cast %76 : vector<128x16xf32> to vector<2x64x16xf32>
    %78 = vector.shape_cast %26 : vector<1x16xf32> to vector<1x1x16xf32>
    %79 = vector.broadcast %78 : vector<1x1x16xf32> to vector<2x64x16xf32>
    %80 = arith.addf %77, %79 : vector<2x64x16xf32>
    %cst_60 = arith.constant 0.000000e+00 : f32
    %81 = vector.broadcast %cst_60 : f32 to vector<2x64x16xf32>
    %82 = arith.maximumf %80, %81 : vector<2x64x16xf32>
    %c0_61 = arith.constant 0 : index
    %c0_62 = arith.constant 0 : index
    %c0_63 = arith.constant 0 : index
    %83 = vector.load %arg14[%c0_61, %c0_62, %c0_63] : memref<2x64x16xf32, #tpu.memory_space<vmem>>, vector<2x64x16xf32>
    tpu.vector_store %arg14[%c0_61, %c0_62, %c0_63], %82 {strides = array<i32>} : memref<2x64x16xf32, #tpu.memory_space<vmem>>, vector<2x64x16xf32>,
    %84 = vector.extract_strided_slice %82 {offsets = [0, 0, 0], sizes = [2, 4, 16], strides = [1, 1, 1]} : vector<2x64x16xf32> to vector<2x4x16xf32>
    %cst_64 = arith.constant dense<0xFF800000> : vector<2x16xf32>
    %85 = vector.multi_reduction <maximumf>, %84, %cst_64 [1] : vector<2x4x16xf32> to vector<2x16xf32>
    %86 = vector.shape_cast %85 : vector<2x16xf32> to vector<2x1x16xf32>
    %c0_65 = arith.constant 0 : index
    %c2_66 = arith.constant 2 : index
    %c0_67 = arith.constant 0 : index
    %87 = vector.load %arg18[%c0_65, %c2_66, %c0_67] : memref<2x20x16xf32, #tpu.memory_space<vmem>>, vector<2x1x16xf32>
    tpu.vector_store %arg18[%c0_65, %c2_66, %c0_67], %86 {strides = array<i32>} : memref<2x20x16xf32, #tpu.memory_space<vmem>>, vector<2x1x16xf32>,
    %88 = vector.extract_strided_slice %82 {offsets = [0, 4, 0], sizes = [2, 4, 16], strides = [1, 1, 1]} : vector<2x64x16xf32> to vector<2x4x16xf32>
    %cst_68 = arith.constant dense<0xFF800000> : vector<2x16xf32>
    %89 = vector.multi_reduction <maximumf>, %88, %cst_68 [1] : vector<2x4x16xf32> to vector<2x16xf32>
    %90 = vector.shape_cast %89 : vector<2x16xf32> to vector<2x1x16xf32>
    %c0_69 = arith.constant 0 : index
    %c3_70 = arith.constant 3 : index
    %c0_71 = arith.constant 0 : index
    %91 = vector.load %arg18[%c0_69, %c3_70, %c0_71] : memref<2x20x16xf32, #tpu.memory_space<vmem>>, vector<2x1x16xf32>
    tpu.vector_store %arg18[%c0_69, %c3_70, %c0_71], %90 {strides = array<i32>} : memref<2x20x16xf32, #tpu.memory_space<vmem>>, vector<2x1x16xf32>,
    %92 = vector.extract_strided_slice %82 {offsets = [0, 8, 0], sizes = [2, 4, 16], strides = [1, 1, 1]} : vector<2x64x16xf32> to vector<2x4x16xf32>
    %cst_72 = arith.constant dense<0xFF800000> : vector<2x16xf32>
    %93 = vector.multi_reduction <maximumf>, %92, %cst_72 [1] : vector<2x4x16xf32> to vector<2x16xf32>
    %94 = vector.shape_cast %93 : vector<2x16xf32> to vector<2x1x16xf32>
    %c0_73 = arith.constant 0 : index
    %c4_74 = arith.constant 4 : index
    %c0_75 = arith.constant 0 : index
    %95 = vector.load %arg18[%c0_73, %c4_74, %c0_75] : memref<2x20x16xf32, #tpu.memory_space<vmem>>, vector<2x1x16xf32>
    tpu.vector_store %arg18[%c0_73, %c4_74, %c0_75], %94 {strides = array<i32>} : memref<2x20x16xf32, #tpu.memory_space<vmem>>, vector<2x1x16xf32>,
    %96 = vector.extract_strided_slice %82 {offsets = [0, 12, 0], sizes = [2, 4, 16], strides = [1, 1, 1]} : vector<2x64x16xf32> to vector<2x4x16xf32>
    %cst_76 = arith.constant dense<0xFF800000> : vector<2x16xf32>
    %97 = vector.multi_reduction <maximumf>, %96, %cst_76 [1] : vector<2x4x16xf32> to vector<2x16xf32>
    %98 = vector.shape_cast %97 : vector<2x16xf32> to vector<2x1x16xf32>
    %c0_77 = arith.constant 0 : index
    %c5_78 = arith.constant 5 : index
    %c0_79 = arith.constant 0 : index
    %99 = vector.load %arg18[%c0_77, %c5_78, %c0_79] : memref<2x20x16xf32, #tpu.memory_space<vmem>>, vector<2x1x16xf32>
    tpu.vector_store %arg18[%c0_77, %c5_78, %c0_79], %98 {strides = array<i32>} : memref<2x20x16xf32, #tpu.memory_space<vmem>>, vector<2x1x16xf32>,
    %100 = vector.extract_strided_slice %82 {offsets = [0, 16, 0], sizes = [2, 4, 16], strides = [1, 1, 1]} : vector<2x64x16xf32> to vector<2x4x16xf32>
    %cst_80 = arith.constant dense<0xFF800000> : vector<2x16xf32>
    %101 = vector.multi_reduction <maximumf>, %100, %cst_80 [1] : vector<2x4x16xf32> to vector<2x16xf32>
    %102 = vector.shape_cast %101 : vector<2x16xf32> to vector<2x1x16xf32>
    %c0_81 = arith.constant 0 : index
    %c6_82 = arith.constant 6 : index
    %c0_83 = arith.constant 0 : index
    %103 = vector.load %arg18[%c0_81, %c6_82, %c0_83] : memref<2x20x16xf32, #tpu.memory_space<vmem>>, vector<2x1x16xf32>
    tpu.vector_store %arg18[%c0_81, %c6_82, %c0_83], %102 {strides = array<i32>} : memref<2x20x16xf32, #tpu.memory_space<vmem>>, vector<2x1x16xf32>,
    %104 = vector.extract_strided_slice %82 {offsets = [0, 20, 0], sizes = [2, 4, 16], strides = [1, 1, 1]} : vector<2x64x16xf32> to vector<2x4x16xf32>
    %cst_84 = arith.constant dense<0xFF800000> : vector<2x16xf32>
    %105 = vector.multi_reduction <maximumf>, %104, %cst_84 [1] : vector<2x4x16xf32> to vector<2x16xf32>
    %106 = vector.shape_cast %105 : vector<2x16xf32> to vector<2x1x16xf32>
    %c0_85 = arith.constant 0 : index
    %c7 = arith.constant 7 : index
    %c0_86 = arith.constant 0 : index
    %107 = vector.load %arg18[%c0_85, %c7, %c0_86] : memref<2x20x16xf32, #tpu.memory_space<vmem>>, vector<2x1x16xf32>
    tpu.vector_store %arg18[%c0_85, %c7, %c0_86], %106 {strides = array<i32>} : memref<2x20x16xf32, #tpu.memory_space<vmem>>, vector<2x1x16xf32>,
    %108 = vector.extract_strided_slice %82 {offsets = [0, 24, 0], sizes = [2, 4, 16], strides = [1, 1, 1]} : vector<2x64x16xf32> to vector<2x4x16xf32>
    %cst_87 = arith.constant dense<0xFF800000> : vector<2x16xf32>
    %109 = vector.multi_reduction <maximumf>, %108, %cst_87 [1] : vector<2x4x16xf32> to vector<2x16xf32>
    %110 = vector.shape_cast %109 : vector<2x16xf32> to vector<2x1x16xf32>
    %c0_88 = arith.constant 0 : index
    %c8 = arith.constant 8 : index
    %c0_89 = arith.constant 0 : index
    %111 = vector.load %arg18[%c0_88, %c8, %c0_89] : memref<2x20x16xf32, #tpu.memory_space<vmem>>, vector<2x1x16xf32>
    tpu.vector_store %arg18[%c0_88, %c8, %c0_89], %110 {strides = array<i32>} : memref<2x20x16xf32, #tpu.memory_space<vmem>>, vector<2x1x16xf32>,
    %112 = vector.extract_strided_slice %82 {offsets = [0, 28, 0], sizes = [2, 4, 16], strides = [1, 1, 1]} : vector<2x64x16xf32> to vector<2x4x16xf32>
    %cst_90 = arith.constant dense<0xFF800000> : vector<2x16xf32>
    %113 = vector.multi_reduction <maximumf>, %112, %cst_90 [1] : vector<2x4x16xf32> to vector<2x16xf32>
    %114 = vector.shape_cast %113 : vector<2x16xf32> to vector<2x1x16xf32>
    %c0_91 = arith.constant 0 : index
    %c9 = arith.constant 9 : index
    %c0_92 = arith.constant 0 : index
    %115 = vector.load %arg18[%c0_91, %c9, %c0_92] : memref<2x20x16xf32, #tpu.memory_space<vmem>>, vector<2x1x16xf32>
    tpu.vector_store %arg18[%c0_91, %c9, %c0_92], %114 {strides = array<i32>} : memref<2x20x16xf32, #tpu.memory_space<vmem>>, vector<2x1x16xf32>,
    %116 = vector.extract_strided_slice %82 {offsets = [0, 32, 0], sizes = [2, 4, 16], strides = [1, 1, 1]} : vector<2x64x16xf32> to vector<2x4x16xf32>
    %cst_93 = arith.constant dense<0xFF800000> : vector<2x16xf32>
    %117 = vector.multi_reduction <maximumf>, %116, %cst_93 [1] : vector<2x4x16xf32> to vector<2x16xf32>
    %118 = vector.shape_cast %117 : vector<2x16xf32> to vector<2x1x16xf32>
    %c0_94 = arith.constant 0 : index
    %c10 = arith.constant 10 : index
    %c0_95 = arith.constant 0 : index
    %119 = vector.load %arg18[%c0_94, %c10, %c0_95] : memref<2x20x16xf32, #tpu.memory_space<vmem>>, vector<2x1x16xf32>
    tpu.vector_store %arg18[%c0_94, %c10, %c0_95], %118 {strides = array<i32>} : memref<2x20x16xf32, #tpu.memory_space<vmem>>, vector<2x1x16xf32>,
    %120 = vector.extract_strided_slice %82 {offsets = [0, 36, 0], sizes = [2, 4, 16], strides = [1, 1, 1]} : vector<2x64x16xf32> to vector<2x4x16xf32>
    %cst_96 = arith.constant dense<0xFF800000> : vector<2x16xf32>
    %121 = vector.multi_reduction <maximumf>, %120, %cst_96 [1] : vector<2x4x16xf32> to vector<2x16xf32>
    %122 = vector.shape_cast %121 : vector<2x16xf32> to vector<2x1x16xf32>
    %c0_97 = arith.constant 0 : index
    %c11 = arith.constant 11 : index
    %c0_98 = arith.constant 0 : index
    %123 = vector.load %arg18[%c0_97, %c11, %c0_98] : memref<2x20x16xf32, #tpu.memory_space<vmem>>, vector<2x1x16xf32>
    tpu.vector_store %arg18[%c0_97, %c11, %c0_98], %122 {strides = array<i32>} : memref<2x20x16xf32, #tpu.memory_space<vmem>>, vector<2x1x16xf32>,
    %124 = vector.extract_strided_slice %82 {offsets = [0, 40, 0], sizes = [2, 4, 16], strides = [1, 1, 1]} : vector<2x64x16xf32> to vector<2x4x16xf32>
    %cst_99 = arith.constant dense<0xFF800000> : vector<2x16xf32>
    %125 = vector.multi_reduction <maximumf>, %124, %cst_99 [1] : vector<2x4x16xf32> to vector<2x16xf32>
    %126 = vector.shape_cast %125 : vector<2x16xf32> to vector<2x1x16xf32>
    %c0_100 = arith.constant 0 : index
    %c12 = arith.constant 12 : index
    %c0_101 = arith.constant 0 : index
    %127 = vector.load %arg18[%c0_100, %c12, %c0_101] : memref<2x20x16xf32, #tpu.memory_space<vmem>>, vector<2x1x16xf32>
    tpu.vector_store %arg18[%c0_100, %c12, %c0_101], %126 {strides = array<i32>} : memref<2x20x16xf32, #tpu.memory_space<vmem>>, vector<2x1x16xf32>,
    %128 = vector.extract_strided_slice %82 {offsets = [0, 44, 0], sizes = [2, 4, 16], strides = [1, 1, 1]} : vector<2x64x16xf32> to vector<2x4x16xf32>
    %cst_102 = arith.constant dense<0xFF800000> : vector<2x16xf32>
    %129 = vector.multi_reduction <maximumf>, %128, %cst_102 [1] : vector<2x4x16xf32> to vector<2x16xf32>
    %130 = vector.shape_cast %129 : vector<2x16xf32> to vector<2x1x16xf32>
    %c0_103 = arith.constant 0 : index
    %c13 = arith.constant 13 : index
    %c0_104 = arith.constant 0 : index
    %131 = vector.load %arg18[%c0_103, %c13, %c0_104] : memref<2x20x16xf32, #tpu.memory_space<vmem>>, vector<2x1x16xf32>
    tpu.vector_store %arg18[%c0_103, %c13, %c0_104], %130 {strides = array<i32>} : memref<2x20x16xf32, #tpu.memory_space<vmem>>, vector<2x1x16xf32>,
    %132 = vector.extract_strided_slice %82 {offsets = [0, 48, 0], sizes = [2, 4, 16], strides = [1, 1, 1]} : vector<2x64x16xf32> to vector<2x4x16xf32>
    %cst_105 = arith.constant dense<0xFF800000> : vector<2x16xf32>
    %133 = vector.multi_reduction <maximumf>, %132, %cst_105 [1] : vector<2x4x16xf32> to vector<2x16xf32>
    %134 = vector.shape_cast %133 : vector<2x16xf32> to vector<2x1x16xf32>
    %c0_106 = arith.constant 0 : index
    %c14 = arith.constant 14 : index
    %c0_107 = arith.constant 0 : index
    %135 = vector.load %arg18[%c0_106, %c14, %c0_107] : memref<2x20x16xf32, #tpu.memory_space<vmem>>, vector<2x1x16xf32>
    tpu.vector_store %arg18[%c0_106, %c14, %c0_107], %134 {strides = array<i32>} : memref<2x20x16xf32, #tpu.memory_space<vmem>>, vector<2x1x16xf32>,
    %136 = vector.extract_strided_slice %82 {offsets = [0, 52, 0], sizes = [2, 4, 16], strides = [1, 1, 1]} : vector<2x64x16xf32> to vector<2x4x16xf32>
    %cst_108 = arith.constant dense<0xFF800000> : vector<2x16xf32>
    %137 = vector.multi_reduction <maximumf>, %136, %cst_108 [1] : vector<2x4x16xf32> to vector<2x16xf32>
    %138 = vector.shape_cast %137 : vector<2x16xf32> to vector<2x1x16xf32>
    %c0_109 = arith.constant 0 : index
    %c15 = arith.constant 15 : index
    %c0_110 = arith.constant 0 : index
    %139 = vector.load %arg18[%c0_109, %c15, %c0_110] : memref<2x20x16xf32, #tpu.memory_space<vmem>>, vector<2x1x16xf32>
    tpu.vector_store %arg18[%c0_109, %c15, %c0_110], %138 {strides = array<i32>} : memref<2x20x16xf32, #tpu.memory_space<vmem>>, vector<2x1x16xf32>,
    %140 = vector.extract_strided_slice %82 {offsets = [0, 56, 0], sizes = [2, 4, 16], strides = [1, 1, 1]} : vector<2x64x16xf32> to vector<2x4x16xf32>
    %cst_111 = arith.constant dense<0xFF800000> : vector<2x16xf32>
    %141 = vector.multi_reduction <maximumf>, %140, %cst_111 [1] : vector<2x4x16xf32> to vector<2x16xf32>
    %142 = vector.shape_cast %141 : vector<2x16xf32> to vector<2x1x16xf32>
    %c0_112 = arith.constant 0 : index
    %c16 = arith.constant 16 : index
    %c0_113 = arith.constant 0 : index
    %143 = vector.load %arg18[%c0_112, %c16, %c0_113] : memref<2x20x16xf32, #tpu.memory_space<vmem>>, vector<2x1x16xf32>
    tpu.vector_store %arg18[%c0_112, %c16, %c0_113], %142 {strides = array<i32>} : memref<2x20x16xf32, #tpu.memory_space<vmem>>, vector<2x1x16xf32>,
    %144 = vector.extract_strided_slice %82 {offsets = [0, 60, 0], sizes = [2, 4, 16], strides = [1, 1, 1]} : vector<2x64x16xf32> to vector<2x4x16xf32>
    %cst_114 = arith.constant dense<0xFF800000> : vector<2x16xf32>
    %145 = vector.multi_reduction <maximumf>, %144, %cst_114 [1] : vector<2x4x16xf32> to vector<2x16xf32>
    %146 = vector.shape_cast %145 : vector<2x16xf32> to vector<2x1x16xf32>
    %c0_115 = arith.constant 0 : index
    %c17 = arith.constant 17 : index
    %c0_116 = arith.constant 0 : index
    %147 = vector.load %arg18[%c0_115, %c17, %c0_116] : memref<2x20x16xf32, #tpu.memory_space<vmem>>, vector<2x1x16xf32>
    tpu.vector_store %arg18[%c0_115, %c17, %c0_116], %146 {strides = array<i32>} : memref<2x20x16xf32, #tpu.memory_space<vmem>>, vector<2x1x16xf32>,
    %c0_117 = arith.constant 0 : index
    %c0_118 = arith.constant 0 : index
    %c0_119 = arith.constant 0 : index
    %148 = vector.load %arg6[%c0_117, %c0_118, %c0_119] : memref<5x16x32xbf16, #tpu.memory_space<vmem>>, vector<5x16x32xbf16>
    %c0_120 = arith.constant 0 : index
    %c0_121 = arith.constant 0 : index
    %149 = vector.load %arg7[%c0_120, %c0_121] : memref<1x32xf32, #tpu.memory_space<vmem>>, vector<1x32xf32>
    %cst_122 = arith.constant 0.000000e+00 : f32
    %150 = vector.broadcast %cst_122 : f32 to vector<32x32xf32>
    %c0_123 = arith.constant 0 : index
    %c0_124 = arith.constant 0 : index
    %c0_125 = arith.constant 0 : index
    %151 = vector.load %arg18[%c0_123, %c0_124, %c0_125] : memref<2x20x16xf32, #tpu.memory_space<vmem>>, vector<2x16x16xf32>
    %152 = vector.shape_cast %151 : vector<2x16x16xf32> to vector<32x16xf32>
    %153 = arith.truncf %152 : vector<32x16xf32> to vector<32x16xbf16>
    %154 = vector.extract_strided_slice %148 {offsets = [0, 0, 0], sizes = [1, 16, 32], strides = [1, 1, 1]} : vector<5x16x32xbf16> to vector<1x16x32xbf16>
    %155 = vector.shape_cast %154 : vector<1x16x32xbf16> to vector<16x32xbf16>
    %cst_126 = arith.constant dense<0.000000e+00> : vector<32x32xf32>
    %156 = tpu.matmul %153, %155, %cst_126 {dimension_numbers = #tpu.dot_dimension_numbers<[1], [0], [0], [1], [0, 0, 1, 1], [], []>} : vector<32x16xbf16>, vector<16x32xbf16>, vector<32x32xf32> -> vector<32x32xf32>
    %157 = arith.addf %150, %156 : vector<32x32xf32>
    %c0_127 = arith.constant 0 : index
    %c1_128 = arith.constant 1 : index
    %c0_129 = arith.constant 0 : index
    %158 = vector.load %arg18[%c0_127, %c1_128, %c0_129] : memref<2x20x16xf32, #tpu.memory_space<vmem>>, vector<2x16x16xf32>
    %159 = vector.shape_cast %158 : vector<2x16x16xf32> to vector<32x16xf32>
    %160 = arith.truncf %159 : vector<32x16xf32> to vector<32x16xbf16>
    %161 = vector.extract_strided_slice %148 {offsets = [1, 0, 0], sizes = [1, 16, 32], strides = [1, 1, 1]} : vector<5x16x32xbf16> to vector<1x16x32xbf16>
    %162 = vector.shape_cast %161 : vector<1x16x32xbf16> to vector<16x32xbf16>
    %cst_130 = arith.constant dense<0.000000e+00> : vector<32x32xf32>
    %163 = tpu.matmul %160, %162, %cst_130 {dimension_numbers = #tpu.dot_dimension_numbers<[1], [0], [0], [1], [0, 0, 1, 1], [], []>} : vector<32x16xbf16>, vector<16x32xbf16>, vector<32x32xf32> -> vector<32x32xf32>
    %164 = arith.addf %157, %163 : vector<32x32xf32>
    %c0_131 = arith.constant 0 : index
    %c2_132 = arith.constant 2 : index
    %c0_133 = arith.constant 0 : index
    %165 = vector.load %arg18[%c0_131, %c2_132, %c0_133] : memref<2x20x16xf32, #tpu.memory_space<vmem>>, vector<2x16x16xf32>
    %166 = vector.shape_cast %165 : vector<2x16x16xf32> to vector<32x16xf32>
    %167 = arith.truncf %166 : vector<32x16xf32> to vector<32x16xbf16>
    %168 = vector.extract_strided_slice %148 {offsets = [2, 0, 0], sizes = [1, 16, 32], strides = [1, 1, 1]} : vector<5x16x32xbf16> to vector<1x16x32xbf16>
    %169 = vector.shape_cast %168 : vector<1x16x32xbf16> to vector<16x32xbf16>
    %cst_134 = arith.constant dense<0.000000e+00> : vector<32x32xf32>
    %170 = tpu.matmul %167, %169, %cst_134 {dimension_numbers = #tpu.dot_dimension_numbers<[1], [0], [0], [1], [0, 0, 1, 1], [], []>} : vector<32x16xbf16>, vector<16x32xbf16>, vector<32x32xf32> -> vector<32x32xf32>
    %171 = arith.addf %164, %170 : vector<32x32xf32>
    %c0_135 = arith.constant 0 : index
    %c3_136 = arith.constant 3 : index
    %c0_137 = arith.constant 0 : index
    %172 = vector.load %arg18[%c0_135, %c3_136, %c0_137] : memref<2x20x16xf32, #tpu.memory_space<vmem>>, vector<2x16x16xf32>
    %173 = vector.shape_cast %172 : vector<2x16x16xf32> to vector<32x16xf32>
    %174 = arith.truncf %173 : vector<32x16xf32> to vector<32x16xbf16>
    %175 = vector.extract_strided_slice %148 {offsets = [3, 0, 0], sizes = [1, 16, 32], strides = [1, 1, 1]} : vector<5x16x32xbf16> to vector<1x16x32xbf16>
    %176 = vector.shape_cast %175 : vector<1x16x32xbf16> to vector<16x32xbf16>
    %cst_138 = arith.constant dense<0.000000e+00> : vector<32x32xf32>
    %177 = tpu.matmul %174, %176, %cst_138 {dimension_numbers = #tpu.dot_dimension_numbers<[1], [0], [0], [1], [0, 0, 1, 1], [], []>} : vector<32x16xbf16>, vector<16x32xbf16>, vector<32x32xf32> -> vector<32x32xf32>
    %178 = arith.addf %171, %177 : vector<32x32xf32>
    %c0_139 = arith.constant 0 : index
    %c4_140 = arith.constant 4 : index
    %c0_141 = arith.constant 0 : index
    %179 = vector.load %arg18[%c0_139, %c4_140, %c0_141] : memref<2x20x16xf32, #tpu.memory_space<vmem>>, vector<2x16x16xf32>
    %180 = vector.shape_cast %179 : vector<2x16x16xf32> to vector<32x16xf32>
    %181 = arith.truncf %180 : vector<32x16xf32> to vector<32x16xbf16>
    %182 = vector.extract_strided_slice %148 {offsets = [4, 0, 0], sizes = [1, 16, 32], strides = [1, 1, 1]} : vector<5x16x32xbf16> to vector<1x16x32xbf16>
    %183 = vector.shape_cast %182 : vector<1x16x32xbf16> to vector<16x32xbf16>
    %cst_142 = arith.constant dense<0.000000e+00> : vector<32x32xf32>
    %184 = tpu.matmul %181, %183, %cst_142 {dimension_numbers = #tpu.dot_dimension_numbers<[1], [0], [0], [1], [0, 0, 1, 1], [], []>} : vector<32x16xbf16>, vector<16x32xbf16>, vector<32x32xf32> -> vector<32x32xf32>
    %185 = arith.addf %178, %184 : vector<32x32xf32>
    %186 = vector.shape_cast %185 : vector<32x32xf32> to vector<2x16x32xf32>
    %187 = vector.shape_cast %149 : vector<1x32xf32> to vector<1x1x32xf32>
    %188 = vector.broadcast %187 : vector<1x1x32xf32> to vector<2x16x32xf32>
    %189 = arith.addf %186, %188 : vector<2x16x32xf32>
    %cst_143 = arith.constant 0.000000e+00 : f32
    %190 = vector.broadcast %cst_143 : f32 to vector<2x16x32xf32>
    %191 = arith.maximumf %189, %190 : vector<2x16x32xf32>
    %c0_144 = arith.constant 0 : index
    %c2_145 = arith.constant 2 : index
    %c0_146 = arith.constant 0 : index
    %192 = vector.load %arg19[%c0_144, %c2_145, %c0_146] : memref<2x20x32xf32, #tpu.memory_space<vmem>>, vector<2x16x32xf32>
    tpu.vector_store %arg19[%c0_144, %c2_145, %c0_146], %191 {strides = array<i32>} : memref<2x20x32xf32, #tpu.memory_space<vmem>>, vector<2x16x32xf32>,
    %c0_147 = arith.constant 0 : index
    %c0_148 = arith.constant 0 : index
    %c0_149 = arith.constant 0 : index
    %193 = vector.load %arg8[%c0_147, %c0_148, %c0_149] : memref<5x32x32xbf16, #tpu.memory_space<vmem>>, vector<5x32x32xbf16>
    %c0_150 = arith.constant 0 : index
    %c0_151 = arith.constant 0 : index
    %194 = vector.load %arg9[%c0_150, %c0_151] : memref<1x32xf32, #tpu.memory_space<vmem>>, vector<1x32xf32>
    %cst_152 = arith.constant 0.000000e+00 : f32
    %195 = vector.broadcast %cst_152 : f32 to vector<32x32xf32>
    %c0_153 = arith.constant 0 : index
    %c0_154 = arith.constant 0 : index
    %c0_155 = arith.constant 0 : index
    %196 = vector.load %arg19[%c0_153, %c0_154, %c0_155] : memref<2x20x32xf32, #tpu.memory_space<vmem>>, vector<2x16x32xf32>
    %197 = vector.shape_cast %196 : vector<2x16x32xf32> to vector<32x32xf32>
    %198 = arith.truncf %197 : vector<32x32xf32> to vector<32x32xbf16>
    %199 = vector.extract_strided_slice %193 {offsets = [0, 0, 0], sizes = [1, 32, 32], strides = [1, 1, 1]} : vector<5x32x32xbf16> to vector<1x32x32xbf16>
    %200 = vector.shape_cast %199 : vector<1x32x32xbf16> to vector<32x32xbf16>
    %cst_156 = arith.constant dense<0.000000e+00> : vector<32x32xf32>
    %201 = tpu.matmul %198, %200, %cst_156 {dimension_numbers = #tpu.dot_dimension_numbers<[1], [0], [0], [1], [0, 0, 1, 1], [], []>} : vector<32x32xbf16>, vector<32x32xbf16>, vector<32x32xf32> -> vector<32x32xf32>
    %202 = arith.addf %195, %201 : vector<32x32xf32>
    %c0_157 = arith.constant 0 : index
    %c1_158 = arith.constant 1 : index
    %c0_159 = arith.constant 0 : index
    %203 = vector.load %arg19[%c0_157, %c1_158, %c0_159] : memref<2x20x32xf32, #tpu.memory_space<vmem>>, vector<2x16x32xf32>
    %204 = vector.shape_cast %203 : vector<2x16x32xf32> to vector<32x32xf32>
    %205 = arith.truncf %204 : vector<32x32xf32> to vector<32x32xbf16>
    %206 = vector.extract_strided_slice %193 {offsets = [1, 0, 0], sizes = [1, 32, 32], strides = [1, 1, 1]} : vector<5x32x32xbf16> to vector<1x32x32xbf16>
    %207 = vector.shape_cast %206 : vector<1x32x32xbf16> to vector<32x32xbf16>
    %cst_160 = arith.constant dense<0.000000e+00> : vector<32x32xf32>
    %208 = tpu.matmul %205, %207, %cst_160 {dimension_numbers = #tpu.dot_dimension_numbers<[1], [0], [0], [1], [0, 0, 1, 1], [], []>} : vector<32x32xbf16>, vector<32x32xbf16>, vector<32x32xf32> -> vector<32x32xf32>
    %209 = arith.addf %202, %208 : vector<32x32xf32>
    %c0_161 = arith.constant 0 : index
    %c2_162 = arith.constant 2 : index
    %c0_163 = arith.constant 0 : index
    %210 = vector.load %arg19[%c0_161, %c2_162, %c0_163] : memref<2x20x32xf32, #tpu.memory_space<vmem>>, vector<2x16x32xf32>
    %211 = vector.shape_cast %210 : vector<2x16x32xf32> to vector<32x32xf32>
    %212 = arith.truncf %211 : vector<32x32xf32> to vector<32x32xbf16>
    %213 = vector.extract_strided_slice %193 {offsets = [2, 0, 0], sizes = [1, 32, 32], strides = [1, 1, 1]} : vector<5x32x32xbf16> to vector<1x32x32xbf16>
    %214 = vector.shape_cast %213 : vector<1x32x32xbf16> to vector<32x32xbf16>
    %cst_164 = arith.constant dense<0.000000e+00> : vector<32x32xf32>
    %215 = tpu.matmul %212, %214, %cst_164 {dimension_numbers = #tpu.dot_dimension_numbers<[1], [0], [0], [1], [0, 0, 1, 1], [], []>} : vector<32x32xbf16>, vector<32x32xbf16>, vector<32x32xf32> -> vector<32x32xf32>
    %216 = arith.addf %209, %215 : vector<32x32xf32>
    %c0_165 = arith.constant 0 : index
    %c3_166 = arith.constant 3 : index
    %c0_167 = arith.constant 0 : index
    %217 = vector.load %arg19[%c0_165, %c3_166, %c0_167] : memref<2x20x32xf32, #tpu.memory_space<vmem>>, vector<2x16x32xf32>
    %218 = vector.shape_cast %217 : vector<2x16x32xf32> to vector<32x32xf32>
    %219 = arith.truncf %218 : vector<32x32xf32> to vector<32x32xbf16>
    %220 = vector.extract_strided_slice %193 {offsets = [3, 0, 0], sizes = [1, 32, 32], strides = [1, 1, 1]} : vector<5x32x32xbf16> to vector<1x32x32xbf16>
    %221 = vector.shape_cast %220 : vector<1x32x32xbf16> to vector<32x32xbf16>
    %cst_168 = arith.constant dense<0.000000e+00> : vector<32x32xf32>
    %222 = tpu.matmul %219, %221, %cst_168 {dimension_numbers = #tpu.dot_dimension_numbers<[1], [0], [0], [1], [0, 0, 1, 1], [], []>} : vector<32x32xbf16>, vector<32x32xbf16>, vector<32x32xf32> -> vector<32x32xf32>
    %223 = arith.addf %216, %222 : vector<32x32xf32>
    %c0_169 = arith.constant 0 : index
    %c4_170 = arith.constant 4 : index
    %c0_171 = arith.constant 0 : index
    %224 = vector.load %arg19[%c0_169, %c4_170, %c0_171] : memref<2x20x32xf32, #tpu.memory_space<vmem>>, vector<2x16x32xf32>
    %225 = vector.shape_cast %224 : vector<2x16x32xf32> to vector<32x32xf32>
    %226 = arith.truncf %225 : vector<32x32xf32> to vector<32x32xbf16>
    %227 = vector.extract_strided_slice %193 {offsets = [4, 0, 0], sizes = [1, 32, 32], strides = [1, 1, 1]} : vector<5x32x32xbf16> to vector<1x32x32xbf16>
    %228 = vector.shape_cast %227 : vector<1x32x32xbf16> to vector<32x32xbf16>
    %cst_172 = arith.constant dense<0.000000e+00> : vector<32x32xf32>
    %229 = tpu.matmul %226, %228, %cst_172 {dimension_numbers = #tpu.dot_dimension_numbers<[1], [0], [0], [1], [0, 0, 1, 1], [], []>} : vector<32x32xbf16>, vector<32x32xbf16>, vector<32x32xf32> -> vector<32x32xf32>
    %230 = arith.addf %223, %229 : vector<32x32xf32>
    %231 = vector.shape_cast %230 : vector<32x32xf32> to vector<2x16x32xf32>
    %232 = vector.shape_cast %194 : vector<1x32xf32> to vector<1x1x32xf32>
    %233 = vector.broadcast %232 : vector<1x1x32xf32> to vector<2x16x32xf32>
    %234 = arith.addf %231, %233 : vector<2x16x32xf32>
    %cst_173 = arith.constant 0.000000e+00 : f32
    %235 = vector.broadcast %cst_173 : f32 to vector<2x16x32xf32>
    %236 = arith.maximumf %234, %235 : vector<2x16x32xf32>
    %c0_174 = arith.constant 0 : index
    %c0_175 = arith.constant 0 : index
    %c0_176 = arith.constant 0 : index
    %237 = vector.load %arg15[%c0_174, %c0_175, %c0_176] : memref<2x16x32xf32, #tpu.memory_space<vmem>>, vector<2x16x32xf32>
    tpu.vector_store %arg15[%c0_174, %c0_175, %c0_176], %236 {strides = array<i32>} : memref<2x16x32xf32, #tpu.memory_space<vmem>>, vector<2x16x32xf32>,
    %238 = vector.extract_strided_slice %236 {offsets = [0, 0, 0], sizes = [2, 4, 32], strides = [1, 1, 1]} : vector<2x16x32xf32> to vector<2x4x32xf32>
    %cst_177 = arith.constant dense<0xFF800000> : vector<2x32xf32>
    %239 = vector.multi_reduction <maximumf>, %238, %cst_177 [1] : vector<2x4x32xf32> to vector<2x32xf32>
    %240 = vector.shape_cast %239 : vector<2x32xf32> to vector<2x1x32xf32>
    %c0_178 = arith.constant 0 : index
    %c1_179 = arith.constant 1 : index
    %c0_180 = arith.constant 0 : index
    %241 = vector.load %arg20[%c0_178, %c1_179, %c0_180] : memref<2x6x32xf32, #tpu.memory_space<vmem>>, vector<2x1x32xf32>
    tpu.vector_store %arg20[%c0_178, %c1_179, %c0_180], %240 {strides = array<i32>} : memref<2x6x32xf32, #tpu.memory_space<vmem>>, vector<2x1x32xf32>,
    %242 = vector.extract_strided_slice %236 {offsets = [0, 4, 0], sizes = [2, 4, 32], strides = [1, 1, 1]} : vector<2x16x32xf32> to vector<2x4x32xf32>
    %cst_181 = arith.constant dense<0xFF800000> : vector<2x32xf32>
    %243 = vector.multi_reduction <maximumf>, %242, %cst_181 [1] : vector<2x4x32xf32> to vector<2x32xf32>
    %244 = vector.shape_cast %243 : vector<2x32xf32> to vector<2x1x32xf32>
    %c0_182 = arith.constant 0 : index
    %c2_183 = arith.constant 2 : index
    %c0_184 = arith.constant 0 : index
    %245 = vector.load %arg20[%c0_182, %c2_183, %c0_184] : memref<2x6x32xf32, #tpu.memory_space<vmem>>, vector<2x1x32xf32>
    tpu.vector_store %arg20[%c0_182, %c2_183, %c0_184], %244 {strides = array<i32>} : memref<2x6x32xf32, #tpu.memory_space<vmem>>, vector<2x1x32xf32>,
    %246 = vector.extract_strided_slice %236 {offsets = [0, 8, 0], sizes = [2, 4, 32], strides = [1, 1, 1]} : vector<2x16x32xf32> to vector<2x4x32xf32>
    %cst_185 = arith.constant dense<0xFF800000> : vector<2x32xf32>
    %247 = vector.multi_reduction <maximumf>, %246, %cst_185 [1] : vector<2x4x32xf32> to vector<2x32xf32>
    %248 = vector.shape_cast %247 : vector<2x32xf32> to vector<2x1x32xf32>
    %c0_186 = arith.constant 0 : index
    %c3_187 = arith.constant 3 : index
    %c0_188 = arith.constant 0 : index
    %249 = vector.load %arg20[%c0_186, %c3_187, %c0_188] : memref<2x6x32xf32, #tpu.memory_space<vmem>>, vector<2x1x32xf32>
    tpu.vector_store %arg20[%c0_186, %c3_187, %c0_188], %248 {strides = array<i32>} : memref<2x6x32xf32, #tpu.memory_space<vmem>>, vector<2x1x32xf32>,
    %250 = vector.extract_strided_slice %236 {offsets = [0, 12, 0], sizes = [2, 4, 32], strides = [1, 1, 1]} : vector<2x16x32xf32> to vector<2x4x32xf32>
    %cst_189 = arith.constant dense<0xFF800000> : vector<2x32xf32>
    %251 = vector.multi_reduction <maximumf>, %250, %cst_189 [1] : vector<2x4x32xf32> to vector<2x32xf32>
    %252 = vector.shape_cast %251 : vector<2x32xf32> to vector<2x1x32xf32>
    %c0_190 = arith.constant 0 : index
    %c4_191 = arith.constant 4 : index
    %c0_192 = arith.constant 0 : index
    %253 = vector.load %arg20[%c0_190, %c4_191, %c0_192] : memref<2x6x32xf32, #tpu.memory_space<vmem>>, vector<2x1x32xf32>
    tpu.vector_store %arg20[%c0_190, %c4_191, %c0_192], %252 {strides = array<i32>} : memref<2x6x32xf32, #tpu.memory_space<vmem>>, vector<2x1x32xf32>,
    %c0_193 = arith.constant 0 : index
    %c0_194 = arith.constant 0 : index
    %c0_195 = arith.constant 0 : index
    %254 = vector.load %arg10[%c0_193, %c0_194, %c0_195] : memref<3x32x64xbf16, #tpu.memory_space<vmem>>, vector<3x32x64xbf16>
    %c0_196 = arith.constant 0 : index
    %c0_197 = arith.constant 0 : index
    %255 = vector.load %arg11[%c0_196, %c0_197] : memref<1x64xf32, #tpu.memory_space<vmem>>, vector<1x64xf32>
    %cst_198 = arith.constant 0.000000e+00 : f32
    %256 = vector.broadcast %cst_198 : f32 to vector<4x64xf32>
    %c0_199 = arith.constant 0 : index
    %c0_200 = arith.constant 0 : index
    %c0_201 = arith.constant 0 : index
    %257 = vector.load %arg20[%c0_199, %c0_200, %c0_201] : memref<2x6x32xf32, #tpu.memory_space<vmem>>, vector<1x4x32xf32>
    %258 = vector.shape_cast %257 : vector<1x4x32xf32> to vector<4x32xf32>
    %259 = arith.truncf %258 : vector<4x32xf32> to vector<4x32xbf16>
    %260 = vector.extract_strided_slice %254 {offsets = [0, 0, 0], sizes = [1, 32, 64], strides = [1, 1, 1]} : vector<3x32x64xbf16> to vector<1x32x64xbf16>
    %261 = vector.shape_cast %260 : vector<1x32x64xbf16> to vector<32x64xbf16>
    %cst_202 = arith.constant dense<0.000000e+00> : vector<4x64xf32>
    %262 = tpu.matmul %259, %261, %cst_202 {dimension_numbers = #tpu.dot_dimension_numbers<[1], [0], [0], [1], [0, 0, 1, 1], [], []>} : vector<4x32xbf16>, vector<32x64xbf16>, vector<4x64xf32> -> vector<4x64xf32>
    %263 = arith.addf %256, %262 : vector<4x64xf32>
    %c0_203 = arith.constant 0 : index
    %c1_204 = arith.constant 1 : index
    %c0_205 = arith.constant 0 : index
    %264 = vector.load %arg20[%c0_203, %c1_204, %c0_205] : memref<2x6x32xf32, #tpu.memory_space<vmem>>, vector<1x4x32xf32>
    %265 = vector.shape_cast %264 : vector<1x4x32xf32> to vector<4x32xf32>
    %266 = arith.truncf %265 : vector<4x32xf32> to vector<4x32xbf16>
    %267 = vector.extract_strided_slice %254 {offsets = [1, 0, 0], sizes = [1, 32, 64], strides = [1, 1, 1]} : vector<3x32x64xbf16> to vector<1x32x64xbf16>
    %268 = vector.shape_cast %267 : vector<1x32x64xbf16> to vector<32x64xbf16>
    %cst_206 = arith.constant dense<0.000000e+00> : vector<4x64xf32>
    %269 = tpu.matmul %266, %268, %cst_206 {dimension_numbers = #tpu.dot_dimension_numbers<[1], [0], [0], [1], [0, 0, 1, 1], [], []>} : vector<4x32xbf16>, vector<32x64xbf16>, vector<4x64xf32> -> vector<4x64xf32>
    %270 = arith.addf %263, %269 : vector<4x64xf32>
    %c0_207 = arith.constant 0 : index
    %c2_208 = arith.constant 2 : index
    %c0_209 = arith.constant 0 : index
    %271 = vector.load %arg20[%c0_207, %c2_208, %c0_209] : memref<2x6x32xf32, #tpu.memory_space<vmem>>, vector<1x4x32xf32>
    %272 = vector.shape_cast %271 : vector<1x4x32xf32> to vector<4x32xf32>
    %273 = arith.truncf %272 : vector<4x32xf32> to vector<4x32xbf16>
    %274 = vector.extract_strided_slice %254 {offsets = [2, 0, 0], sizes = [1, 32, 64], strides = [1, 1, 1]} : vector<3x32x64xbf16> to vector<1x32x64xbf16>
    %275 = vector.shape_cast %274 : vector<1x32x64xbf16> to vector<32x64xbf16>
    %cst_210 = arith.constant dense<0.000000e+00> : vector<4x64xf32>
    %276 = tpu.matmul %273, %275, %cst_210 {dimension_numbers = #tpu.dot_dimension_numbers<[1], [0], [0], [1], [0, 0, 1, 1], [], []>} : vector<4x32xbf16>, vector<32x64xbf16>, vector<4x64xf32> -> vector<4x64xf32>
    %277 = arith.addf %270, %276 : vector<4x64xf32>
    %cst_211 = arith.constant 0.000000e+00 : f32
    %278 = vector.broadcast %cst_211 : f32 to vector<4x64xf32>
    %c1_212 = arith.constant 1 : index
    %c0_213 = arith.constant 0 : index
    %c0_214 = arith.constant 0 : index
    %279 = vector.load %arg20[%c1_212, %c0_213, %c0_214] : memref<2x6x32xf32, #tpu.memory_space<vmem>>, vector<1x4x32xf32>
    %280 = vector.shape_cast %279 : vector<1x4x32xf32> to vector<4x32xf32>
    %281 = arith.truncf %280 : vector<4x32xf32> to vector<4x32xbf16>
    %282 = vector.extract_strided_slice %254 {offsets = [0, 0, 0], sizes = [1, 32, 64], strides = [1, 1, 1]} : vector<3x32x64xbf16> to vector<1x32x64xbf16>
    %283 = vector.shape_cast %282 : vector<1x32x64xbf16> to vector<32x64xbf16>
    %cst_215 = arith.constant dense<0.000000e+00> : vector<4x64xf32>
    %284 = tpu.matmul %281, %283, %cst_215 {dimension_numbers = #tpu.dot_dimension_numbers<[1], [0], [0], [1], [0, 0, 1, 1], [], []>} : vector<4x32xbf16>, vector<32x64xbf16>, vector<4x64xf32> -> vector<4x64xf32>
    %285 = arith.addf %278, %284 : vector<4x64xf32>
    %c1_216 = arith.constant 1 : index
    %c1_217 = arith.constant 1 : index
    %c0_218 = arith.constant 0 : index
    %286 = vector.load %arg20[%c1_216, %c1_217, %c0_218] : memref<2x6x32xf32, #tpu.memory_space<vmem>>, vector<1x4x32xf32>
    %287 = vector.shape_cast %286 : vector<1x4x32xf32> to vector<4x32xf32>
    %288 = arith.truncf %287 : vector<4x32xf32> to vector<4x32xbf16>
    %289 = vector.extract_strided_slice %254 {offsets = [1, 0, 0], sizes = [1, 32, 64], strides = [1, 1, 1]} : vector<3x32x64xbf16> to vector<1x32x64xbf16>
    %290 = vector.shape_cast %289 : vector<1x32x64xbf16> to vector<32x64xbf16>
    %cst_219 = arith.constant dense<0.000000e+00> : vector<4x64xf32>
    %291 = tpu.matmul %288, %290, %cst_219 {dimension_numbers = #tpu.dot_dimension_numbers<[1], [0], [0], [1], [0, 0, 1, 1], [], []>} : vector<4x32xbf16>, vector<32x64xbf16>, vector<4x64xf32> -> vector<4x64xf32>
    %292 = arith.addf %285, %291 : vector<4x64xf32>
    %c1_220 = arith.constant 1 : index
    %c2_221 = arith.constant 2 : index
    %c0_222 = arith.constant 0 : index
    %293 = vector.load %arg20[%c1_220, %c2_221, %c0_222] : memref<2x6x32xf32, #tpu.memory_space<vmem>>, vector<1x4x32xf32>
    %294 = vector.shape_cast %293 : vector<1x4x32xf32> to vector<4x32xf32>
    %295 = arith.truncf %294 : vector<4x32xf32> to vector<4x32xbf16>
    %296 = vector.extract_strided_slice %254 {offsets = [2, 0, 0], sizes = [1, 32, 64], strides = [1, 1, 1]} : vector<3x32x64xbf16> to vector<1x32x64xbf16>
    %297 = vector.shape_cast %296 : vector<1x32x64xbf16> to vector<32x64xbf16>
    %cst_223 = arith.constant dense<0.000000e+00> : vector<4x64xf32>
    %298 = tpu.matmul %295, %297, %cst_223 {dimension_numbers = #tpu.dot_dimension_numbers<[1], [0], [0], [1], [0, 0, 1, 1], [], []>} : vector<4x32xbf16>, vector<32x64xbf16>, vector<4x64xf32> -> vector<4x64xf32>
    %299 = arith.addf %292, %298 : vector<4x64xf32>
    %300 = vector.shape_cast %277 : vector<4x64xf32> to vector<1x4x64xf32>
    %301 = vector.shape_cast %299 : vector<4x64xf32> to vector<1x4x64xf32>
    %302 = tpu.concatenate %300, %301 in 0 : vector<1x4x64xf32>, vector<1x4x64xf32> -> vector<2x4x64xf32>
    %303 = vector.shape_cast %255 : vector<1x64xf32> to vector<1x1x64xf32>
    %304 = vector.broadcast %303 : vector<1x1x64xf32> to vector<2x4x64xf32>
    %305 = arith.addf %302, %304 : vector<2x4x64xf32>
    %cst_224 = arith.constant 0.000000e+00 : f32
    %306 = vector.broadcast %cst_224 : f32 to vector<2x4x64xf32>
    %307 = arith.maximumf %305, %306 : vector<2x4x64xf32>
    %c0_225 = arith.constant 0 : index
    %c1_226 = arith.constant 1 : index
    %c0_227 = arith.constant 0 : index
    %308 = vector.load %arg21[%c0_225, %c1_226, %c0_227] : memref<2x6x64xf32, #tpu.memory_space<vmem>>, vector<2x4x64xf32>
    tpu.vector_store %arg21[%c0_225, %c1_226, %c0_227], %307 {strides = array<i32>} : memref<2x6x64xf32, #tpu.memory_space<vmem>>, vector<2x4x64xf32>,
    %c0_228 = arith.constant 0 : index
    %c0_229 = arith.constant 0 : index
    %c0_230 = arith.constant 0 : index
    %309 = vector.load %arg12[%c0_228, %c0_229, %c0_230] : memref<3x64x64xbf16, #tpu.memory_space<vmem>>, vector<3x64x64xbf16>
    %c0_231 = arith.constant 0 : index
    %c0_232 = arith.constant 0 : index
    %310 = vector.load %arg13[%c0_231, %c0_232] : memref<1x64xf32, #tpu.memory_space<vmem>>, vector<1x64xf32>
    %cst_233 = arith.constant 0.000000e+00 : f32
    %311 = vector.broadcast %cst_233 : f32 to vector<4x64xf32>
    %c0_234 = arith.constant 0 : index
    %c0_235 = arith.constant 0 : index
    %c0_236 = arith.constant 0 : index
    %312 = vector.load %arg21[%c0_234, %c0_235, %c0_236] : memref<2x6x64xf32, #tpu.memory_space<vmem>>, vector<1x4x64xf32>
    %313 = vector.shape_cast %312 : vector<1x4x64xf32> to vector<4x64xf32>
    %314 = arith.truncf %313 : vector<4x64xf32> to vector<4x64xbf16>
    %315 = vector.extract_strided_slice %309 {offsets = [0, 0, 0], sizes = [1, 64, 64], strides = [1, 1, 1]} : vector<3x64x64xbf16> to vector<1x64x64xbf16>
    %316 = vector.shape_cast %315 : vector<1x64x64xbf16> to vector<64x64xbf16>
    %cst_237 = arith.constant dense<0.000000e+00> : vector<4x64xf32>
    %317 = tpu.matmul %314, %316, %cst_237 {dimension_numbers = #tpu.dot_dimension_numbers<[1], [0], [0], [1], [0, 0, 1, 1], [], []>} : vector<4x64xbf16>, vector<64x64xbf16>, vector<4x64xf32> -> vector<4x64xf32>
    %318 = arith.addf %311, %317 : vector<4x64xf32>
    %c0_238 = arith.constant 0 : index
    %c1_239 = arith.constant 1 : index
    %c0_240 = arith.constant 0 : index
    %319 = vector.load %arg21[%c0_238, %c1_239, %c0_240] : memref<2x6x64xf32, #tpu.memory_space<vmem>>, vector<1x4x64xf32>
    %320 = vector.shape_cast %319 : vector<1x4x64xf32> to vector<4x64xf32>
    %321 = arith.truncf %320 : vector<4x64xf32> to vector<4x64xbf16>
    %322 = vector.extract_strided_slice %309 {offsets = [1, 0, 0], sizes = [1, 64, 64], strides = [1, 1, 1]} : vector<3x64x64xbf16> to vector<1x64x64xbf16>
    %323 = vector.shape_cast %322 : vector<1x64x64xbf16> to vector<64x64xbf16>
    %cst_241 = arith.constant dense<0.000000e+00> : vector<4x64xf32>
    %324 = tpu.matmul %321, %323, %cst_241 {dimension_numbers = #tpu.dot_dimension_numbers<[1], [0], [0], [1], [0, 0, 1, 1], [], []>} : vector<4x64xbf16>, vector<64x64xbf16>, vector<4x64xf32> -> vector<4x64xf32>
    %325 = arith.addf %318, %324 : vector<4x64xf32>
    %c0_242 = arith.constant 0 : index
    %c2_243 = arith.constant 2 : index
    %c0_244 = arith.constant 0 : index
    %326 = vector.load %arg21[%c0_242, %c2_243, %c0_244] : memref<2x6x64xf32, #tpu.memory_space<vmem>>, vector<1x4x64xf32>
    %327 = vector.shape_cast %326 : vector<1x4x64xf32> to vector<4x64xf32>
    %328 = arith.truncf %327 : vector<4x64xf32> to vector<4x64xbf16>
    %329 = vector.extract_strided_slice %309 {offsets = [2, 0, 0], sizes = [1, 64, 64], strides = [1, 1, 1]} : vector<3x64x64xbf16> to vector<1x64x64xbf16>
    %330 = vector.shape_cast %329 : vector<1x64x64xbf16> to vector<64x64xbf16>
    %cst_245 = arith.constant dense<0.000000e+00> : vector<4x64xf32>
    %331 = tpu.matmul %328, %330, %cst_245 {dimension_numbers = #tpu.dot_dimension_numbers<[1], [0], [0], [1], [0, 0, 1, 1], [], []>} : vector<4x64xbf16>, vector<64x64xbf16>, vector<4x64xf32> -> vector<4x64xf32>
    %332 = arith.addf %325, %331 : vector<4x64xf32>
    %cst_246 = arith.constant 0.000000e+00 : f32
    %333 = vector.broadcast %cst_246 : f32 to vector<4x64xf32>
    %c1_247 = arith.constant 1 : index
    %c0_248 = arith.constant 0 : index
    %c0_249 = arith.constant 0 : index
    %334 = vector.load %arg21[%c1_247, %c0_248, %c0_249] : memref<2x6x64xf32, #tpu.memory_space<vmem>>, vector<1x4x64xf32>
    %335 = vector.shape_cast %334 : vector<1x4x64xf32> to vector<4x64xf32>
    %336 = arith.truncf %335 : vector<4x64xf32> to vector<4x64xbf16>
    %337 = vector.extract_strided_slice %309 {offsets = [0, 0, 0], sizes = [1, 64, 64], strides = [1, 1, 1]} : vector<3x64x64xbf16> to vector<1x64x64xbf16>
    %338 = vector.shape_cast %337 : vector<1x64x64xbf16> to vector<64x64xbf16>
    %cst_250 = arith.constant dense<0.000000e+00> : vector<4x64xf32>
    %339 = tpu.matmul %336, %338, %cst_250 {dimension_numbers = #tpu.dot_dimension_numbers<[1], [0], [0], [1], [0, 0, 1, 1], [], []>} : vector<4x64xbf16>, vector<64x64xbf16>, vector<4x64xf32> -> vector<4x64xf32>
    %340 = arith.addf %333, %339 : vector<4x64xf32>
    %c1_251 = arith.constant 1 : index
    %c1_252 = arith.constant 1 : index
    %c0_253 = arith.constant 0 : index
    %341 = vector.load %arg21[%c1_251, %c1_252, %c0_253] : memref<2x6x64xf32, #tpu.memory_space<vmem>>, vector<1x4x64xf32>
    %342 = vector.shape_cast %341 : vector<1x4x64xf32> to vector<4x64xf32>
    %343 = arith.truncf %342 : vector<4x64xf32> to vector<4x64xbf16>
    %344 = vector.extract_strided_slice %309 {offsets = [1, 0, 0], sizes = [1, 64, 64], strides = [1, 1, 1]} : vector<3x64x64xbf16> to vector<1x64x64xbf16>
    %345 = vector.shape_cast %344 : vector<1x64x64xbf16> to vector<64x64xbf16>
    %cst_254 = arith.constant dense<0.000000e+00> : vector<4x64xf32>
    %346 = tpu.matmul %343, %345, %cst_254 {dimension_numbers = #tpu.dot_dimension_numbers<[1], [0], [0], [1], [0, 0, 1, 1], [], []>} : vector<4x64xbf16>, vector<64x64xbf16>, vector<4x64xf32> -> vector<4x64xf32>
    %347 = arith.addf %340, %346 : vector<4x64xf32>
    %c1_255 = arith.constant 1 : index
    %c2_256 = arith.constant 2 : index
    %c0_257 = arith.constant 0 : index
    %348 = vector.load %arg21[%c1_255, %c2_256, %c0_257] : memref<2x6x64xf32, #tpu.memory_space<vmem>>, vector<1x4x64xf32>
    %349 = vector.shape_cast %348 : vector<1x4x64xf32> to vector<4x64xf32>
    %350 = arith.truncf %349 : vector<4x64xf32> to vector<4x64xbf16>
    %351 = vector.extract_strided_slice %309 {offsets = [2, 0, 0], sizes = [1, 64, 64], strides = [1, 1, 1]} : vector<3x64x64xbf16> to vector<1x64x64xbf16>
    %352 = vector.shape_cast %351 : vector<1x64x64xbf16> to vector<64x64xbf16>
    %cst_258 = arith.constant dense<0.000000e+00> : vector<4x64xf32>
    %353 = tpu.matmul %350, %352, %cst_258 {dimension_numbers = #tpu.dot_dimension_numbers<[1], [0], [0], [1], [0, 0, 1, 1], [], []>} : vector<4x64xbf16>, vector<64x64xbf16>, vector<4x64xf32> -> vector<4x64xf32>
    %354 = arith.addf %347, %353 : vector<4x64xf32>
    %355 = vector.shape_cast %332 : vector<4x64xf32> to vector<1x4x64xf32>
    %356 = vector.shape_cast %354 : vector<4x64xf32> to vector<1x4x64xf32>
    %357 = tpu.concatenate %355, %356 in 0 : vector<1x4x64xf32>, vector<1x4x64xf32> -> vector<2x4x64xf32>
    %358 = vector.shape_cast %310 : vector<1x64xf32> to vector<1x1x64xf32>
    %359 = vector.broadcast %358 : vector<1x1x64xf32> to vector<2x4x64xf32>
    %360 = arith.addf %357, %359 : vector<2x4x64xf32>
    %cst_259 = arith.constant 0.000000e+00 : f32
    %361 = vector.broadcast %cst_259 : f32 to vector<2x4x64xf32>
    %362 = arith.maximumf %360, %361 : vector<2x4x64xf32>
    %c0_260 = arith.constant 0 : index
    %c0_261 = arith.constant 0 : index
    %c0_262 = arith.constant 0 : index
    %363 = vector.load %arg16[%c0_260, %c0_261, %c0_262] : memref<2x4x64xf32, #tpu.memory_space<vmem>>, vector<2x4x64xf32>
    tpu.vector_store %arg16[%c0_260, %c0_261, %c0_262], %362 {strides = array<i32>} : memref<2x4x64xf32, #tpu.memory_space<vmem>>, vector<2x4x64xf32>,
    return
  }
  func.func @transform_0(%arg0: i32) -> (i32, i32, i32) {
    %c0_i32 = arith.constant 0 : i32
    %c0_i32_0 = arith.constant 0 : i32
    %c0_i32_1 = arith.constant 0 : i32
    %c0_i32_2 = arith.constant 0 : i32
    return %c0_i32, %c0_i32_0, %c0_i32_1 : i32, i32, i32
  }
  func.func @transform_1(%arg0: i32) -> (i32, i32, i32) {
    %c0_i32 = arith.constant 0 : i32
    %c0_i32_0 = arith.constant 0 : i32
    %c0_i32_1 = arith.constant 0 : i32
    %c0_i32_2 = arith.constant 0 : i32
    return %c0_i32, %c0_i32_0, %c0_i32_1 : i32, i32, i32
  }
  func.func @transform_2(%arg0: i32) -> (i32, i32) {
    %c0_i32 = arith.constant 0 : i32
    %c0_i32_0 = arith.constant 0 : i32
    %c0_i32_1 = arith.constant 0 : i32
    return %c0_i32, %c0_i32_0 : i32, i32
  }
  func.func @transform_3(%arg0: i32) -> (i32, i32, i32) {
    %c0_i32 = arith.constant 0 : i32
    %c0_i32_0 = arith.constant 0 : i32
    %c0_i32_1 = arith.constant 0 : i32
    %c0_i32_2 = arith.constant 0 : i32
    return %c0_i32, %c0_i32_0, %c0_i32_1 : i32, i32, i32
  }
  func.func @transform_4(%arg0: i32) -> (i32, i32) {
    %c0_i32 = arith.constant 0 : i32
    %c0_i32_0 = arith.constant 0 : i32
    %c0_i32_1 = arith.constant 0 : i32
    return %c0_i32, %c0_i32_0 : i32, i32
  }
  func.func @transform_5(%arg0: i32) -> (i32, i32, i32) {
    %c0_i32 = arith.constant 0 : i32
    %c0_i32_0 = arith.constant 0 : i32
    %c0_i32_1 = arith.constant 0 : i32
    %c0_i32_2 = arith.constant 0 : i32
    return %c0_i32, %c0_i32_0, %c0_i32_1 : i32, i32, i32
  }
  func.func @transform_6(%arg0: i32) -> (i32, i32) {
    %c0_i32 = arith.constant 0 : i32
    %c0_i32_0 = arith.constant 0 : i32
    %c0_i32_1 = arith.constant 0 : i32
    return %c0_i32, %c0_i32_0 : i32, i32
  }
  func.func @transform_7(%arg0: i32) -> (i32, i32, i32) {
    %c0_i32 = arith.constant 0 : i32
    %c0_i32_0 = arith.constant 0 : i32
    %c0_i32_1 = arith.constant 0 : i32
    %c0_i32_2 = arith.constant 0 : i32
    return %c0_i32, %c0_i32_0, %c0_i32_1 : i32, i32, i32
  }
  func.func @transform_8(%arg0: i32) -> (i32, i32) {
    %c0_i32 = arith.constant 0 : i32
    %c0_i32_0 = arith.constant 0 : i32
    %c0_i32_1 = arith.constant 0 : i32
    return %c0_i32, %c0_i32_0 : i32, i32
  }
  func.func @transform_9(%arg0: i32) -> (i32, i32, i32) {
    %c0_i32 = arith.constant 0 : i32
    %c0_i32_0 = arith.constant 0 : i32
    %c0_i32_1 = arith.constant 0 : i32
    %c0_i32_2 = arith.constant 0 : i32
    return %c0_i32, %c0_i32_0, %c0_i32_1 : i32, i32, i32
  }
  func.func @transform_10(%arg0: i32) -> (i32, i32) {
    %c0_i32 = arith.constant 0 : i32
    %c0_i32_0 = arith.constant 0 : i32
    %c0_i32_1 = arith.constant 0 : i32
    return %c0_i32, %c0_i32_0 : i32, i32
  }
  func.func @transform_11(%arg0: i32) -> (i32, i32, i32) {
    %c0_i32 = arith.constant 0 : i32
    %c0_i32_0 = arith.constant 0 : i32
    %c0_i32_1 = arith.constant 0 : i32
    %c0_i32_2 = arith.constant 0 : i32
    return %c0_i32, %c0_i32_0, %c0_i32_1 : i32, i32, i32
  }
  func.func @transform_12(%arg0: i32) -> (i32, i32) {
    %c0_i32 = arith.constant 0 : i32
    %c0_i32_0 = arith.constant 0 : i32
    %c0_i32_1 = arith.constant 0 : i32
    return %c0_i32, %c0_i32_0 : i32, i32
  }
  func.func @transform_13(%arg0: i32) -> (i32, i32, i32) {
    %c0_i32 = arith.constant 0 : i32
    %c0_i32_0 = arith.constant 0 : i32
    %c0_i32_1 = arith.constant 0 : i32
    %c0_i32_2 = arith.constant 0 : i32
    return %c0_i32, %c0_i32_0, %c0_i32_1 : i32, i32, i32
  }
  func.func @transform_14(%arg0: i32) -> (i32, i32, i32) {
    %c0_i32 = arith.constant 0 : i32
    %c0_i32_0 = arith.constant 0 : i32
    %c0_i32_1 = arith.constant 0 : i32
    %c0_i32_2 = arith.constant 0 : i32
    return %c0_i32, %c0_i32_0, %c0_i32_1 : i32, i32, i32
  }
  func.func @transform_15(%arg0: i32) -> (i32, i32, i32) {
    %c0_i32 = arith.constant 0 : i32
    %c0_i32_0 = arith.constant 0 : i32
    %c0_i32_1 = arith.constant 0 : i32
    %c0_i32_2 = arith.constant 0 : i32
    return %c0_i32, %c0_i32_0, %c0_i32_1 : i32, i32, i32
  }
}

</mosaic_0001>

<llo_original>
// kernel: mtagn_forward.3
$region0: #{mtagn_forward.3}
  #allocation0 [shape = 'u32[]', space=smem, size = 0x4, offset = 0x4, fixed_abs, tag = 'smem constant byte address 0x4 - core index']
  #allocation1 [shape = 'u32[144,128]{1,0:T(1,128)}', space=vmem, size = 0x12000, scoped, tag = 'internal scratch']
  #allocation2 [shape = 'f32[2,16,32]{2,1,0:T(8,128)}', space=vmem, size = 0x4000, scoped, tag = 'scratch operand']
  #allocation3 [shape = 'f32[2,4,64]{2,1,0:T(4,128)}', space=vmem, size = 0x1000, scoped, tag = 'scratch operand']
  #allocation4 [shape = 'f32[2,2,128]{2,1,0:T(2,128)}', space=vmem, size = 0x800, scoped, tag = 'scratch operand']
  %s0 = inlined_call_operand.vmem [shape: f32[2,64,16], index: 0, kind: input, shape index: {}]
  %s1 = inlined_call_operand.vmem [shape: f32[2,16,32], index: 1, kind: input, shape index: {}]
  %s2 = inlined_call_operand.vmem [shape: f32[2,4,64], index: 2, kind: input, shape index: {}]
  %s3 = inlined_call_operand.vmem [shape: f32[2,16,16], index: 3, kind: input, shape index: {}]
  %s4 = inlined_call_operand.vmem [shape: f32[2,32,32], index: 4, kind: input, shape index: {}]
  %s5 = inlined_call_operand.vmem [shape: f32[2,64,64], index: 5, kind: input, shape index: {}]
  %s6 = inlined_call_operand.vmem [shape: bf16[16,32], index: 6, kind: input, shape index: {}]
  %s7 = inlined_call_operand.vmem [shape: f32[1,32], index: 7, kind: input, shape index: {}]
  %s8 = inlined_call_operand.vmem [shape: bf16[32,64], index: 8, kind: input, shape index: {}]
  %s9 = inlined_call_operand.vmem [shape: f32[1,64], index: 9, kind: input, shape index: {}]
  %s10 = inlined_call_operand.vmem [shape: bf16[64,128], index: 10, kind: input, shape index: {}]
  %s11 = inlined_call_operand.vmem [shape: f32[1,128], index: 11, kind: input, shape index: {}]
  %s12 = inlined_call_operand.vmem [shape: bf16[2,128,16], index: 12, kind: input, shape index: {}]
  %s13 = inlined_call_operand.vmem [shape: f32[2,1,16], index: 13, kind: input, shape index: {}]
  %s14 = inlined_call_operand.vmem [shape: f32[2,2,16], index: 14, kind: output, shape index: {}]
  %s15 = sld [smem:[#allocation0]]
  $region89: #{mtagn_forward.3} parent=0
    _
  %s17 = ssub.s32 1, %s15
  %s18 = scalar_select 0, %s17, %s15
  loop: start=0, step=1, limit=4
  $region2: #{mtagn_forward.3} parent=0 // loop_pre_header
    _
  $region3: #{mtagn_forward.3} parent=0 // loop_header
    %s20 = sphi 0, %s24
    %p21 = scmp.ge.s32.totalorder %s20, 4
    %s28 = sphi 0, %s28
    %s30 = sphi 0, %s28
    %s31 = sphi 0, %s30
    %s45 = sphi 0, %s31
    %s49 = sphi 0, %s49
    %s51 = sphi 0, %s49
    %s52 = sphi 0, %s51
    %s66 = sphi 0, %s52
    %s70 = sphi 0, %s70
    %s72 = sphi 0, %s70
    %s73 = sphi 0, %s72
    %s87 = sphi 0, %s73
    %s93 = sphi 0, %s95
    %s96 = sphi 0, %s93
    %s97 = sphi 0, %s96
    %s113 = sphi 0, %s97
    %s119 = sphi 0, %s121
    %s122 = sphi 0, %s119
    %s123 = sphi 0, %s122
    %s139 = sphi 0, %s123
    %s145 = sphi 0, %s147
    %s148 = sphi 0, %s145
    %s149 = sphi 0, %s148
    %s165 = sphi 0, %s149
    %s169 = sphi 0, %s169
    %s171 = sphi 0, %s169
    %s172 = sphi 0, %s171
    %s186 = sphi 0, %s172
    %s190 = sphi 0, %s190
    %s192 = sphi 0, %s190
    %s193 = sphi 0, %s192
    %s207 = sphi 0, %s193
    %s211 = sphi 0, %s211
    %s213 = sphi 0, %s211
    %s214 = sphi 0, %s213
    %s228 = sphi 0, %s214
    %s232 = sphi 0, %s232
    %s234 = sphi 0, %s232
    %s235 = sphi 0, %s234
    %s249 = sphi 0, %s235
    %s253 = sphi 0, %s253
    %s255 = sphi 0, %s253
    %s256 = sphi 0, %s255
    %s270 = sphi 0, %s256
    %s274 = sphi 0, %s274
    %s276 = sphi 0, %s274
    %s277 = sphi 0, %s276
    %s291 = sphi 0, %s277
    %s297 = sphi 0, %s299
    %s300 = sphi 0, %s297
    %s301 = sphi 0, %s300
    %s317 = sphi 0, %s301
    %s323 = sphi 0, %s325
    %s326 = sphi 0, %s323
    %s327 = sphi 0, %s326
    %s343 = sphi 0, %s327
    %s349 = sphi 0, %s351
    %s352 = sphi 0, %s349
    %s353 = sphi 0, %s352
    %s369 = sphi 0, %s353
  $region4: #{mtagn_forward.3} parent=0 // loop_header_branch
    %23 = sbr.rel (%p21) target = $region8
  $region5: #{mtagn_forward.3} parent=0 // loop_body
    %s25 = ssub.s32 %s20, 1
    %s26 = ssub.s32 %s20, 2
    %s27 = sadd.s32 %s20, 1
    %s29 = sadd.s32 %s28, 1
    %p32 = scmp.eq.s32.totalorder %s20, 1
    %p33 = scmp.ne.s32.totalorder %s28, %s30
    %p34 = scmp.eq.s32.totalorder %s20, 0
    %p35 = por %p33, %p34
    %p36 = scmp.ne.s32.totalorder %s28, %s30
    %p37 = scmp.eq.s32.totalorder %s25, 1
    %p38 = por %p36, %p37
    %p39 = scmp.ne.s32.totalorder %s30, %s31
    %p40 = scmp.eq.s32.totalorder %s25, 0
    %p41 = por %p39, %p40
    %p42 = scmp.ne.s32.totalorder %s30, %s31
    %p43 = scmp.eq.s32.totalorder %s26, 1
    %p44 = por %p42, %p43
    %p46 = scmp.ne.s32.totalorder %s31, %s45
    %p47 = scmp.eq.s32.totalorder %s26, 0
    %p48 = por %p46, %p47
    %s50 = sadd.s32 %s49, 1
    %p53 = scmp.eq.s32.totalorder %s20, 1
    %p54 = scmp.ne.s32.totalorder %s49, %s51
    %p55 = scmp.eq.s32.totalorder %s20, 0
    %p56 = por %p54, %p55
    %p57 = scmp.ne.s32.totalorder %s49, %s51
    %p58 = scmp.eq.s32.totalorder %s25, 1
    %p59 = por %p57, %p58
    %p60 = scmp.ne.s32.totalorder %s51, %s52
    %p61 = scmp.eq.s32.totalorder %s25, 0
    %p62 = por %p60, %p61
    %p63 = scmp.ne.s32.totalorder %s51, %s52
    %p64 = scmp.eq.s32.totalorder %s26, 1
    %p65 = por %p63, %p64
    %p67 = scmp.ne.s32.totalorder %s52, %s66
    %p68 = scmp.eq.s32.totalorder %s26, 0
    %p69 = por %p67, %p68
    %s71 = sadd.s32 %s70, 1
    %p74 = scmp.eq.s32.totalorder %s20, 1
    %p75 = scmp.ne.s32.totalorder %s70, %s72
    %p76 = scmp.eq.s32.totalorder %s20, 0
    %p77 = por %p75, %p76
    %p78 = scmp.ne.s32.totalorder %s70, %s72
    %p79 = scmp.eq.s32.totalorder %s25, 1
    %p80 = por %p78, %p79
    %p81 = scmp.ne.s32.totalorder %s72, %s73
    %p82 = scmp.eq.s32.totalorder %s25, 0
    %p83 = por %p81, %p82
    %p84 = scmp.ne.s32.totalorder %s72, %s73
    %p85 = scmp.eq.s32.totalorder %s26, 1
    %p86 = por %p84, %p85
    %p88 = scmp.ne.s32.totalorder %s73, %s87
    %p89 = scmp.eq.s32.totalorder %s26, 0
    %p90 = por %p88, %p89
    %s91 = ssub.s32 %s20, %s27
    %p92 = scmp.eq.s32.totalorder %s91, 0
    %s94 = sadd.s32 %s93, 1
    %s95 = scalar_select %p92, %s93, %s94
    %p98 = pneg %p92
    %p99 = scmp.eq.s32.totalorder %s20, 1
    %p100 = por %p98, %p99
    %p101 = scmp.ne.s32.totalorder %s93, %s96
    %p102 = scmp.eq.s32.totalorder %s20, 0
    %p103 = por %p101, %p102
    %p104 = scmp.ne.s32.totalorder %s93, %s96
    %p105 = scmp.eq.s32.totalorder %s25, 1
    %p106 = por %p104, %p105
    %p107 = scmp.ne.s32.totalorder %s96, %s97
    %p108 = scmp.eq.s32.totalorder %s25, 0
    %p109 = por %p107, %p108
    %p110 = scmp.ne.s32.totalorder %s96, %s97
    %p111 = scmp.eq.s32.totalorder %s26, 1
    %p112 = por %p110, %p111
    %p114 = scmp.ne.s32.totalorder %s97, %s113
    %p115 = scmp.eq.s32.totalorder %s26, 0
    %p116 = por %p114, %p115
    %s117 = ssub.s32 %s20, %s27
    %p118 = scmp.eq.s32.totalorder %s117, 0
    %s120 = sadd.s32 %s119, 1
    %s121 = scalar_select %p118, %s119, %s120
    %p124 = pneg %p118
    %p125 = scmp.eq.s32.totalorder %s20, 1
    %p126 = por %p124, %p125
    %p127 = scmp.ne.s32.totalorder %s119, %s122
    %p128 = scmp.eq.s32.totalorder %s20, 0
    %p129 = por %p127, %p128
    %p130 = scmp.ne.s32.totalorder %s119, %s122
    %p131 = scmp.eq.s32.totalorder %s25, 1
    %p132 = por %p130, %p131
    %p133 = scmp.ne.s32.totalorder %s122, %s123
    %p134 = scmp.eq.s32.totalorder %s25, 0
    %p135 = por %p133, %p134
    %p136 = scmp.ne.s32.totalorder %s122, %s123
    %p137 = scmp.eq.s32.totalorder %s26, 1
    %p138 = por %p136, %p137
    %p140 = scmp.ne.s32.totalorder %s123, %s139
    %p141 = scmp.eq.s32.totalorder %s26, 0
    %p142 = por %p140, %p141
    %s143 = ssub.s32 %s20, %s27
    %p144 = scmp.eq.s32.totalorder %s143, 0
    %s146 = sadd.s32 %s145, 1
    %s147 = scalar_select %p144, %s145, %s146
    %p150 = pneg %p144
    %p151 = scmp.eq.s32.totalorder %s20, 1
    %p152 = por %p150, %p151
    %p153 = scmp.ne.s32.totalorder %s145, %s148
    %p154 = scmp.eq.s32.totalorder %s20, 0
    %p155 = por %p153, %p154
    %p156 = scmp.ne.s32.totalorder %s145, %s148
    %p157 = scmp.eq.s32.totalorder %s25, 1
    %p158 = por %p156, %p157
    %p159 = scmp.ne.s32.totalorder %s148, %s149
    %p160 = scmp.eq.s32.totalorder %s25, 0
    %p161 = por %p159, %p160
    %p162 = scmp.ne.s32.totalorder %s148, %s149
    %p163 = scmp.eq.s32.totalorder %s26, 1
    %p164 = por %p162, %p163
    %p166 = scmp.ne.s32.totalorder %s149, %s165
    %p167 = scmp.eq.s32.totalorder %s26, 0
    %p168 = por %p166, %p167
    %s170 = sadd.s32 %s169, 1
    %p173 = scmp.eq.s32.totalorder %s20, 1
    %p174 = scmp.ne.s32.totalorder %s169, %s171
    %p175 = scmp.eq.s32.totalorder %s20, 0
    %p176 = por %p174, %p175
    %p177 = scmp.ne.s32.totalorder %s169, %s171
    %p178 = scmp.eq.s32.totalorder %s25, 1
    %p179 = por %p177, %p178
    %p180 = scmp.ne.s32.totalorder %s171, %s172
    %p181 = scmp.eq.s32.totalorder %s25, 0
    %p182 = por %p180, %p181
    %p183 = scmp.ne.s32.totalorder %s171, %s172
    %p184 = scmp.eq.s32.totalorder %s26, 1
    %p185 = por %p183, %p184
    %p187 = scmp.ne.s32.totalorder %s172, %s186
    %p188 = scmp.eq.s32.totalorder %s26, 0
    %p189 = por %p187, %p188
    %s191 = sadd.s32 %s190, 1
    %p194 = scmp.eq.s32.totalorder %s20, 1
    %p195 = scmp.ne.s32.totalorder %s190, %s192
    %p196 = scmp.eq.s32.totalorder %s20, 0
    %p197 = por %p195, %p196
    %p198 = scmp.ne.s32.totalorder %s190, %s192
    %p199 = scmp.eq.s32.totalorder %s25, 1
    %p200 = por %p198, %p199
    %p201 = scmp.ne.s32.totalorder %s192, %s193
    %p202 = scmp.eq.s32.totalorder %s25, 0
    %p203 = por %p201, %p202
    %p204 = scmp.ne.s32.totalorder %s192, %s193
    %p205 = scmp.eq.s32.totalorder %s26, 1
    %p206 = por %p204, %p205
    %p208 = scmp.ne.s32.totalorder %s193, %s207
    %p209 = scmp.eq.s32.totalorder %s26, 0
    %p210 = por %p208, %p209
    %s212 = sadd.s32 %s211, 1
    %p215 = scmp.eq.s32.totalorder %s20, 1
    %p216 = scmp.ne.s32.totalorder %s211, %s213
    %p217 = scmp.eq.s32.totalorder %s20, 0
    %p218 = por %p216, %p217
    %p219 = scmp.ne.s32.totalorder %s211, %s213
    %p220 = scmp.eq.s32.totalorder %s25, 1
    %p221 = por %p219, %p220
    %p222 = scmp.ne.s32.totalorder %s213, %s214
    %p223 = scmp.eq.s32.totalorder %s25, 0
    %p224 = por %p222, %p223
    %p225 = scmp.ne.s32.totalorder %s213, %s214
    %p226 = scmp.eq.s32.totalorder %s26, 1
    %p227 = por %p225, %p226
    %p229 = scmp.ne.s32.totalorder %s214, %s228
    %p230 = scmp.eq.s32.totalorder %s26, 0
    %p231 = por %p229, %p230
    %s233 = sadd.s32 %s232, 1
    %p236 = scmp.eq.s32.totalorder %s20, 1
    %p237 = scmp.ne.s32.totalorder %s232, %s234
    %p238 = scmp.eq.s32.totalorder %s20, 0
    %p239 = por %p237, %p238
    %p240 = scmp.ne.s32.totalorder %s232, %s234
    %p241 = scmp.eq.s32.totalorder %s25, 1
    %p242 = por %p240, %p241
    %p243 = scmp.ne.s32.totalorder %s234, %s235
    %p244 = scmp.eq.s32.totalorder %s25, 0
    %p245 = por %p243, %p244
    %p246 = scmp.ne.s32.totalorder %s234, %s235
    %p247 = scmp.eq.s32.totalorder %s26, 1
    %p248 = por %p246, %p247
    %p250 = scmp.ne.s32.totalorder %s235, %s249
    %p251 = scmp.eq.s32.totalorder %s26, 0
    %p252 = por %p250, %p251
    %s254 = sadd.s32 %s253, 1
    %p257 = scmp.eq.s32.totalorder %s20, 1
    %p258 = scmp.ne.s32.totalorder %s253, %s255
    %p259 = scmp.eq.s32.totalorder %s20, 0
    %p260 = por %p258, %p259
    %p261 = scmp.ne.s32.totalorder %s253, %s255
    %p262 = scmp.eq.s32.totalorder %s25, 1
    %p263 = por %p261, %p262
    %p264 = scmp.ne.s32.totalorder %s255, %s256
    %p265 = scmp.eq.s32.totalorder %s25, 0
    %p266 = por %p264, %p265
    %p267 = scmp.ne.s32.totalorder %s255, %s256
    %p268 = scmp.eq.s32.totalorder %s26, 1
    %p269 = por %p267, %p268
    %p271 = scmp.ne.s32.totalorder %s256, %s270
    %p272 = scmp.eq.s32.totalorder %s26, 0
    %p273 = por %p271, %p272
    %s275 = sadd.s32 %s274, 1
    %p278 = scmp.eq.s32.totalorder %s20, 1
    %p279 = scmp.ne.s32.totalorder %s274, %s276
    %p280 = scmp.eq.s32.totalorder %s20, 0
    %p281 = por %p279, %p280
    %p282 = scmp.ne.s32.totalorder %s274, %s276
    %p283 = scmp.eq.s32.totalorder %s25, 1
    %p284 = por %p282, %p283
    %p285 = scmp.ne.s32.totalorder %s276, %s277
    %p286 = scmp.eq.s32.totalorder %s25, 0
    %p287 = por %p285, %p286
    %p288 = scmp.ne.s32.totalorder %s276, %s277
    %p289 = scmp.eq.s32.totalorder %s26, 1
    %p290 = por %p288, %p289
    %p292 = scmp.ne.s32.totalorder %s277, %s291
    %p293 = scmp.eq.s32.totalorder %s26, 0
    %p294 = por %p292, %p293
    %s295 = ssub.s32 %s20, %s27
    %p296 = scmp.eq.s32.totalorder %s295, 0
    %s298 = sadd.s32 %s297, 1
    %s299 = scalar_select %p296, %s297, %s298
    %p302 = pneg %p296
    %p303 = scmp.eq.s32.totalorder %s20, 1
    %p304 = por %p302, %p303
    %p305 = scmp.ne.s32.totalorder %s297, %s300
    %p306 = scmp.eq.s32.totalorder %s20, 0
    %p307 = por %p305, %p306
    %p308 = scmp.ne.s32.totalorder %s297, %s300
    %p309 = scmp.eq.s32.totalorder %s25, 1
    %p310 = por %p308, %p309
    %p311 = scmp.ne.s32.totalorder %s300, %s301
    %p312 = scmp.eq.s32.totalorder %s25, 0
    %p313 = por %p311, %p312
    %p314 = scmp.ne.s32.totalorder %s300, %s301
    %p315 = scmp.eq.s32.totalorder %s26, 1
    %p316 = por %p314, %p315
    %p318 = scmp.ne.s32.totalorder %s301, %s317
    %p319 = scmp.eq.s32.totalorder %s26, 0
    %p320 = por %p318, %p319
    %s321 = ssub.s32 %s20, %s27
    %p322 = scmp.eq.s32.totalorder %s321, 0
    %s324 = sadd.s32 %s323, 1
    %s325 = scalar_select %p322, %s323, %s324
    %p328 = pneg %p322
    %p329 = scmp.eq.s32.totalorder %s20, 1
    %p330 = por %p328, %p329
    %p331 = scmp.ne.s32.totalorder %s323, %s326
    %p332 = scmp.eq.s32.totalorder %s20, 0
    %p333 = por %p331, %p332
    %p334 = scmp.ne.s32.totalorder %s323, %s326
    %p335 = scmp.eq.s32.totalorder %s25, 1
    %p336 = por %p334, %p335
    %p337 = scmp.ne.s32.totalorder %s326, %s327
    %p338 = scmp.eq.s32.totalorder %s25, 0
    %p339 = por %p337, %p338
    %p340 = scmp.ne.s32.totalorder %s326, %s327
    %p341 = scmp.eq.s32.totalorder %s26, 1
    %p342 = por %p340, %p341
    %p344 = scmp.ne.s32.totalorder %s327, %s343
    %p345 = scmp.eq.s32.totalorder %s26, 0
    %p346 = por %p344, %p345
    %s347 = ssub.s32 %s20, %s27
    %p348 = scmp.eq.s32.totalorder %s347, 0
    %s350 = sadd.s32 %s349, 1
    %s351 = scalar_select %p348, %s349, %s350
    %p354 = pneg %p348
    %p355 = scmp.eq.s32.totalorder %s20, 1
    %p356 = por %p354, %p355
    %p357 = scmp.ne.s32.totalorder %s349, %s352
    %p358 = scmp.eq.s32.totalorder %s20, 0
    %p359 = por %p357, %p358
    %p360 = scmp.ne.s32.totalorder %s349, %s352
    %p361 = scmp.eq.s32.totalorder %s25, 1
    %p362 = por %p360, %p361
    %p363 = scmp.ne.s32.totalorder %s352, %s353
    %p364 = scmp.eq.s32.totalorder %s25, 0
    %p365 = por %p363, %p364
    %p366 = scmp.ne.s32.totalorder %s352, %s353
    %p367 = scmp.eq.s32.totalorder %s26, 1
    %p368 = por %p366, %p367
    %p370 = scmp.ne.s32.totalorder %s353, %s369
    %p371 = scmp.eq.s32.totalorder %s26, 0
    %p372 = por %p370, %p371
    %p373 = scmp.le.s32.totalorder 1, %s20
    %p374 = scmp.lt.s32.totalorder %s20, 3
    %p375 = pnand %p373, %p374
    %p376 = pneg %p375
    // Predicated region
    $region9: #{mtagn_forward.3} parent=5 // pred_check
      _
    $region10: #{mtagn_forward.3} parent=5 // pred_check_branch
      %378 = sbr.rel (%p375) target = $region12
    $region11: #{mtagn_forward.3} parent=5 // pred_region
      %s379 = ssub.s32 %s20, 1
      // Predicated region
      $region13: #{mtagn_forward.3} parent=11 // pred_check
        %p380 = pneg %p41
      $region14: #{mtagn_forward.3} parent=11 // pred_check_branch
        %382 = sbr.rel (%p380) target = $region16
      $region15: #{mtagn_forward.3} parent=11 // pred_region
        _
      $region16: #{mtagn_forward.3} parent=11 // pred_fallthru
        _
      // Predicated region
      $region17: #{mtagn_forward.3} parent=11 // pred_check
        %p383 = pneg %p62
      $region18: #{mtagn_forward.3} parent=11 // pred_check_branch
        %385 = sbr.rel (%p383) target = $region20
      $region19: #{mtagn_forward.3} parent=11 // pred_region
        _
      $region20: #{mtagn_forward.3} parent=11 // pred_fallthru
        _
      // Predicated region
      $region21: #{mtagn_forward.3} parent=11 // pred_check
        %p386 = pneg %p83
      $region22: #{mtagn_forward.3} parent=11 // pred_check_branch
        %388 = sbr.rel (%p386) target = $region24
      $region23: #{mtagn_forward.3} parent=11 // pred_region
        _
      $region24: #{mtagn_forward.3} parent=11 // pred_fallthru
        _
      // Predicated region
      $region25: #{mtagn_forward.3} parent=11 // pred_check
        %p389 = pneg %p182
      $region26: #{mtagn_forward.3} parent=11 // pred_check_branch
        %391 = sbr.rel (%p389) target = $region28
      $region27: #{mtagn_forward.3} parent=11 // pred_region
        _
      $region28: #{mtagn_forward.3} parent=11 // pred_fallthru
        _
      // Predicated region
      $region29: #{mtagn_forward.3} parent=11 // pred_check
        %p392 = pneg %p203
      $region30: #{mtagn_forward.3} parent=11 // pred_check_branch
        %394 = sbr.rel (%p392) target = $region32
      $region31: #{mtagn_forward.3} parent=11 // pred_region
        _
      $region32: #{mtagn_forward.3} parent=11 // pred_fallthru
        _
      // Predicated region
      $region33: #{mtagn_forward.3} parent=11 // pred_check
        %p395 = pneg %p224
      $region34: #{mtagn_forward.3} parent=11 // pred_check_branch
        %397 = sbr.rel (%p395) target = $region36
      $region35: #{mtagn_forward.3} parent=11 // pred_region
        _
      $region36: #{mtagn_forward.3} parent=11 // pred_fallthru
        _
      // Predicated region
      $region37: #{mtagn_forward.3} parent=11 // pred_check
        %p398 = pneg %p245
      $region38: #{mtagn_forward.3} parent=11 // pred_check_branch
        %400 = sbr.rel (%p398) target = $region40
      $region39: #{mtagn_forward.3} parent=11 // pred_region
        _
      $region40: #{mtagn_forward.3} parent=11 // pred_fallthru
        _
      // Predicated region
      $region41: #{mtagn_forward.3} parent=11 // pred_check
        %p401 = pneg %p266
      $region42: #{mtagn_forward.3} parent=11 // pred_check_branch
        %403 = sbr.rel (%p401) target = $region44
      $region43: #{mtagn_forward.3} parent=11 // pred_region
        _
      $region44: #{mtagn_forward.3} parent=11 // pred_fallthru
        _
      // Predicated region
      $region45: #{mtagn_forward.3} parent=11 // pred_check
        %p404 = pneg %p287
      $region46: #{mtagn_forward.3} parent=11 // pred_check_branch
        %406 = sbr.rel (%p404) target = $region48
      $region47: #{mtagn_forward.3} parent=11 // pred_region
        _
      $region48: #{mtagn_forward.3} parent=11 // pred_fallthru
        _
    $region12: #{mtagn_forward.3} parent=5 // pred_fallthru
      _
    %p407 = scmp.lt.s32.totalorder %s20, 2
    // Predicated region
    $region49: #{mtagn_forward.3} parent=5 // pred_check
      %p408 = pneg %p407
    $region50: #{mtagn_forward.3} parent=5 // pred_check_branch
      %410 = sbr.rel (%p408) target = $region52
    $region51: #{mtagn_forward.3} parent=5 // pred_region
      // Predicated region
      $region53: #{mtagn_forward.3} parent=51 // pred_check
        %p411 = pneg %p103
      $region54: #{mtagn_forward.3} parent=51 // pred_check_branch
        %413 = sbr.rel (%p411) target = $region56
      $region55: #{mtagn_forward.3} parent=51 // pred_region
        %p414 = scmp.lt.s32.totalorder %s20, 1
        %s415 = scalar_select %p414, %s20, 1
        %s416 = smul.addr %s415, 2
        %s417 = smul.addr %s416, 8
        %s418 = scalar_lea.vmem %s3, %s417
      $region56: #{mtagn_forward.3} parent=51 // pred_fallthru
        _
      // Predicated region
      $region57: #{mtagn_forward.3} parent=51 // pred_check
        %p419 = pneg %p129
      $region58: #{mtagn_forward.3} parent=51 // pred_check_branch
        %421 = sbr.rel (%p419) target = $region60
      $region59: #{mtagn_forward.3} parent=51 // pred_region
        %p422 = scmp.lt.s32.totalorder %s20, 1
        %s423 = scalar_select %p422, %s20, 1
        %s424 = smul.addr %s423, 4
        %s425 = smul.addr %s424, 8
        %s426 = scalar_lea.vmem %s4, %s425
      $region60: #{mtagn_forward.3} parent=51 // pred_fallthru
        _
      // Predicated region
      $region61: #{mtagn_forward.3} parent=51 // pred_check
        %p427 = pneg %p155
      $region62: #{mtagn_forward.3} parent=51 // pred_check_branch
        %429 = sbr.rel (%p427) target = $region64
      $region63: #{mtagn_forward.3} parent=51 // pred_region
        %p430 = scmp.lt.s32.totalorder %s20, 1
        %s431 = scalar_select %p430, %s20, 1
        %s432 = smul.addr %s431, 8
        %s433 = smul.addr %s432, 8
        %s434 = scalar_lea.vmem %s5, %s433
      $region64: #{mtagn_forward.3} parent=51 // pred_fallthru
        _
      // Predicated region
      $region65: #{mtagn_forward.3} parent=51 // pred_check
        %p435 = pneg %p307
      $region66: #{mtagn_forward.3} parent=51 // pred_check_branch
        %437 = sbr.rel (%p435) target = $region68
      $region67: #{mtagn_forward.3} parent=51 // pred_region
        %p438 = scmp.lt.s32.totalorder %s20, 1
        %s439 = scalar_select %p438, %s20, 1
        %s440 = smul.addr %s439, 16
        %s441 = smul.addr %s440, 4
        %s442 = scalar_lea.vmem %s12, %s441
      $region68: #{mtagn_forward.3} parent=51 // pred_fallthru
        _
      // Predicated region
      $region69: #{mtagn_forward.3} parent=51 // pred_check
        %p443 = pneg %p333
      $region70: #{mtagn_forward.3} parent=51 // pred_check_branch
        %445 = sbr.rel (%p443) target = $region72
      $region71: #{mtagn_forward.3} parent=51 // pred_region
        %p446 = scmp.lt.s32.totalorder %s20, 1
        %s447 = scalar_select %p446, %s20, 1
        %s448 = scalar_lea.vmem %s13, %s447
      $region72: #{mtagn_forward.3} parent=51 // pred_fallthru
        _
    $region52: #{mtagn_forward.3} parent=5 // pred_fallthru
      _
    %p449 = scmp.le.s32.totalorder 1, %s20
    %p450 = scmp.lt.s32.totalorder %s20, 3
    %p451 = pnand %p449, %p450
    %p452 = pneg %p451
    // Predicated region
    $region73: #{mtagn_forward.3} parent=5 // pred_check
      _
    $region74: #{mtagn_forward.3} parent=5 // pred_check_branch
      %454 = sbr.rel (%p451) target = $region76
    $region75: #{mtagn_forward.3} parent=5 // pred_region
      %s455 = ssub.s32 %s20, 1
      %p456 = pneg %p41
      %p457 = pneg %p38
      %p458 = pneg %p62
      %p459 = pneg %p59
      %p460 = pneg %p83
      %p461 = pneg %p80
      %p462 = scmp.lt.s32.totalorder %s25, 1
      %s463 = scalar_select %p462, %s25, 1
      %s464 = smul.addr %s463, 2
      %s465 = smul.addr %s464, 8
      %s466 = scalar_lea.vmem %s3, %s465
      %p467 = pneg %p109
      %p468 = pneg %p106
      %p469 = scmp.lt.s32.totalorder %s25, 1
      %s470 = scalar_select %p469, %s25, 1
      %s471 = smul.addr %s470, 4
      %s472 = smul.addr %s471, 8
      %s473 = scalar_lea.vmem %s4, %s472
      %p474 = pneg %p135
      %p475 = pneg %p132
      %p476 = scmp.lt.s32.totalorder %s25, 1
      %s477 = scalar_select %p476, %s25, 1
      %s478 = smul.addr %s477, 8
      %s479 = smul.addr %s478, 8
      %s480 = scalar_lea.vmem %s5, %s479
      %p481 = pneg %p161
      %p482 = pneg %p158
      %p483 = pneg %p182
      %p484 = pneg %p179
      %p485 = pneg %p203
      %p486 = pneg %p200
      %p487 = pneg %p224
      %p488 = pneg %p221
      %p489 = pneg %p245
      %p490 = pneg %p242
      %p491 = pneg %p266
      %p492 = pneg %p263
      %p493 = pneg %p287
      %p494 = pneg %p284
      %p495 = scmp.lt.s32.totalorder %s25, 1
      %s496 = scalar_select %p495, %s25, 1
      %s497 = smul.addr %s496, 16
      %s498 = smul.addr %s497, 4
      %s499 = scalar_lea.vmem %s12, %s498
      %p500 = pneg %p313
      %p501 = pneg %p310
      %p502 = scmp.lt.s32.totalorder %s25, 1
      %s503 = scalar_select %p502, %s25, 1
      %s504 = scalar_lea.vmem %s13, %s503
      %p505 = pneg %p339
      %p506 = pneg %p336
      %p507 = pneg %p365
      %p508 = pneg %p362
      %p509 = scmp.lt.s32.totalorder %s25, 1
      %s510 = scalar_select %p509, %s25, 1
      %s511 = smul.addr %s510, 2
      %s512 = scalar_lea.vmem %s14, %s511
      %p513 = scmp.lt.s32.totalorder %s25, 1
      %s514 = scalar_select %p513, %s25, 1
      %s515 = smul.addr %s514, 2
      %s516 = smul.addr %s515, 8
      %s517 = scalar_lea.vmem %s3, %s516
      %p518 = scmp.lt.s32.totalorder %s25, 1
      %s519 = scalar_select %p518, %s25, 1
      %s520 = smul.addr %s519, 4
      %s521 = smul.addr %s520, 8
      %s522 = scalar_lea.vmem %s4, %s521
      %p523 = scmp.lt.s32.totalorder %s25, 1
      %s524 = scalar_select %p523, %s25, 1
      %s525 = smul.addr %s524, 8
      %s526 = smul.addr %s525, 8
      %s527 = scalar_lea.vmem %s5, %s526
      %p528 = scmp.lt.s32.totalorder %s25, 1
      %s529 = scalar_select %p528, %s25, 1
      %s530 = smul.addr %s529, 16
      %s531 = smul.addr %s530, 4
      %s532 = scalar_lea.vmem %s12, %s531
      %p533 = scmp.lt.s32.totalorder %s25, 1
      %s534 = scalar_select %p533, %s25, 1
      %s535 = scalar_lea.vmem %s13, %s534
      %p536 = scmp.lt.s32.totalorder %s25, 1
      %s537 = scalar_select %p536, %s25, 1
      %s538 = smul.addr %s537, 2
      %s539 = scalar_lea.vmem %s14, %s538
      %v541 = vld [vmem:[%s0] sm:$0xff]
      %v542 = vld [vmem:[%s0 + $0x8] sm:$0xff]
      %v543 = vld [vmem:[%s0 + $0x10] sm:$0xff]
      %v544 = vld [vmem:[%s0 + $0x18] sm:$0xff]
      %v545 = vld [vmem:[%s0 + $0x20] sm:$0xff]
      %v546 = vld [vmem:[%s0 + $0x28] sm:$0xff]
      %v547 = vld [vmem:[%s0 + $0x30] sm:$0xff]
      %v548 = vld [vmem:[%s0 + $0x38] sm:$0xff]
      %v549 = vld [vmem:[%s0 + $0x40] sm:$0xff]
      %v550 = vld [vmem:[%s0 + $0x48] sm:$0xff]
      %v551 = vld [vmem:[%s0 + $0x50] sm:$0xff]
      %v552 = vld [vmem:[%s0 + $0x58] sm:$0xff]
      %v553 = vld [vmem:[%s0 + $0x60] sm:$0xff]
      %v554 = vld [vmem:[%s0 + $0x68] sm:$0xff]
      %v555 = vld [vmem:[%s0 + $0x70] sm:$0xff]
      %v556 = vld [vmem:[%s0 + $0x78] sm:$0xff]
      %v557 = vld [vmem:[%s1] sm:$0xff]
      %v558 = vld [vmem:[%s1 + $0x8] sm:$0xff]
      %v559 = vld [vmem:[%s1 + $0x10] sm:$0xff]
      %v560 = vld [vmem:[%s1 + $0x18] sm:$0xff]
      %v561 = vld [vmem:[%s2] sm:$0xf]
      %v562 = vld [vmem:[%s2 + $0x4] sm:$0xf]
      %v563 = vld [vmem:[%s517] sm:$0xff]
      %v564 = vld [vmem:[%s517 + $0x8] sm:$0xff]
      %v565 = vld [vmem:[%s522] sm:$0xff]
      %v566 = vld [vmem:[%s522 + $0x8] sm:$0xff]
      %v567 = vld [vmem:[%s522 + $0x10] sm:$0xff]
      %v568 = vld [vmem:[%s522 + $0x18] sm:$0xff]
      %v569 = vld [vmem:[%s527] sm:$0xff]
      %v570 = vld [vmem:[%s527 + $0x8] sm:$0xff]
      %v571 = vld [vmem:[%s527 + $0x10] sm:$0xff]
      %v572 = vld [vmem:[%s527 + $0x18] sm:$0xff]
      %v573 = vld [vmem:[%s527 + $0x20] sm:$0xff]
      %v574 = vld [vmem:[%s527 + $0x28] sm:$0xff]
      %v575 = vld [vmem:[%s527 + $0x30] sm:$0xff]
      %v576 = vld [vmem:[%s527 + $0x38] sm:$0xff]
      %v577 = vld [vmem:[%s6] sm:$0xf]
      %v578 = vld [vmem:[%s6 + $0x4] sm:$0xf]
      %v579 = vld [vmem:[%s8] sm:$0xf]
      %v580 = vld [vmem:[%s8 + $0x4] sm:$0xf]
      %v581 = vld [vmem:[%s8 + $0x8] sm:$0xf]
      %v582 = vld [vmem:[%s8 + $0xc] sm:$0xf]
      %v583 = vld [vmem:[%s10] sm:$0xf]
      %v584 = vld [vmem:[%s10 + $0x4] sm:$0xf]
      %v585 = vld [vmem:[%s10 + $0x8] sm:$0xf]
      %v586 = vld [vmem:[%s10 + $0xc] sm:$0xf]
      %v587 = vld [vmem:[%s10 + $0x10] sm:$0xf]
      %v588 = vld [vmem:[%s10 + $0x14] sm:$0xf]
      %v589 = vld [vmem:[%s10 + $0x18] sm:$0xf]
      %v590 = vld [vmem:[%s10 + $0x1c] sm:$0xf]
      %v591 = vld [vmem:[%s7] sm:$0x1]
      %v592 = vld [vmem:[%s9] sm:$0x1]
      %v593 = vld [vmem:[%s11] sm:$0x1]
      %vm594 = vcmask 130048
      %v595 = vsel %vm594, %v541, 0.0
      %v596 = vsel %vm594, %v542, 0.0
      %v597 = vadd.f32 %v595, %v596
      %v598 = vsel %vm594, %v543, 0.0
      %v599 = vadd.f32 %v597, %v598
      %v600 = vsel %vm594, %v544, 0.0
      %v601 = vadd.f32 %v599, %v600
      %v602 = vsel %vm594, %v545, 0.0
      %v603 = vadd.f32 %v601, %v602
      %v604 = vsel %vm594, %v546, 0.0
      %v605 = vadd.f32 %v603, %v604
      %v606 = vsel %vm594, %v547, 0.0
      %v607 = vadd.f32 %v605, %v606
      %v608 = vsel %vm594, %v548, 0.0
      %v609 = vadd.f32 %v607, %v608
      %v610 = vrot.slane %v609, 4
      %v611 = vadd.f32 %v609, %v610
      %v612 = vrot.slane %v611, 2
      %v613 = vadd.f32 %v611, %v612
      %v614 = vrot.slane %v613, 1
      %v615 = vadd.f32 %v613, %v614
      %v616 = vsel %vm594, %v549, 0.0
      %v617 = vsel %vm594, %v550, 0.0
      %v618 = vadd.f32 %v616, %v617
      %v619 = vsel %vm594, %v551, 0.0
      %v620 = vadd.f32 %v618, %v619
      %v621 = vsel %vm594, %v552, 0.0
      %v622 = vadd.f32 %v620, %v621
      %v623 = vsel %vm594, %v553, 0.0
      %v624 = vadd.f32 %v622, %v623
      %v625 = vsel %vm594, %v554, 0.0
      %v626 = vadd.f32 %v624, %v625
      %v627 = vsel %vm594, %v555, 0.0
      %v628 = vadd.f32 %v626, %v627
      %v629 = vsel %vm594, %v556, 0.0
      %v630 = vadd.f32 %v628, %v629
      %v631 = vrot.slane %v630, 4
      %v632 = vadd.f32 %v630, %v631
      %v633 = vrot.slane %v632, 2
      %v634 = vadd.f32 %v632, %v633
      %v635 = vrot.slane %v634, 1
      %v636 = vadd.f32 %v634, %v635
      %v637 = vrcp.pop 64.0
      %v638 = vmul.f32 %v615, %v637
      %v639 = vmul.f32 %v636, %v637
      %vm642 = vcmask 1041409
      %v643 = vsel %vm642, %v639, %v638
      %v644 = vsel %vm594, %v643, 0
      %646 = vmatprep.subr.mxu0 0.0
      %647 = vmatpush1.msra.mxu0 %v563
      %648 = vmatprep.subr.mxu0 0.0
      %649 = vmatpush1.msra.mxu0 %v564
      %650 = vmatprep.subr.mxu0 0.0
      %651 = vmatpush1.msra.mxu0 0.0
      %652 = vmatprep.subr.mxu0 0.0
      %653 = vmatpush1.msra.mxu0 0.0
      %654 = vmatprep.subr.mxu0 0.0
      %655 = vmatpush1.msra.mxu0 0.0
      %656 = vmatprep.subr.mxu0 0.0
      %657 = vmatpush1.msra.mxu0 0.0
      %658 = vmatprep.subr.mxu0 0.0
      %659 = vmatpush1.msra.mxu0 0.0
      %660 = vmatprep.subr.mxu0 0.0
      %661 = vmatpush1.msra.mxu0 0.0
      %662 = vmatprep.subr.mxu0 0.0
      %663 = vmatpush1.msra.mxu0 0.0
      %664 = vmatprep.subr.mxu0 0.0
      %665 = vmatpush1.msra.mxu0 0.0
      %666 = vmatprep.subr.mxu0 0.0
      %667 = vmatpush1.msra.mxu0 0.0
      %668 = vmatprep.subr.mxu0 0.0
      %669 = vmatpush1.msra.mxu0 0.0
      %670 = vmatprep.subr.mxu0 0.0
      %671 = vmatpush1.msra.mxu0 0.0
      %672 = vmatprep.subr.mxu0 0.0
      %673 = vmatpush1.msra.mxu0 0.0
      %674 = vmatprep.subr.mxu0 0.0
      %675 = vmatpush1.msra.mxu0 0.0
      %676 = vmatprep.subr.mxu0 0.0
      %677 = vmatpush1.msra.mxu0 0.0
      %678 = vmatprep.subr.mxu0 0.0
      %679 = vmatpush1.msra.mxu0 0.0
      %680 = vmatprep.subr.mxu0 0.0
      %681 = vmatpush1.msra.mxu0 0.0
      %682 = vmatprep.subr.mxu0 0.0
      %683 = vmatpush1.msra.mxu0 0.0
      %684 = vmatprep.subr.mxu0 0.0
      %685 = vmatpush1.msra.mxu0 0.0
      %686 = vmatprep.subr.mxu0 0.0
      %687 = vmatpush1.msra.mxu0 0.0
      %688 = vmatprep.subr.mxu0 0.0
      %689 = vmatpush1.msra.mxu0 0.0
      %690 = vmatprep.subr.mxu0 0.0
      %691 = vmatpush1.msra.mxu0 0.0
      %692 = vmatprep.subr.mxu0 0.0
      %693 = vmatpush1.msra.mxu0 0.0
      %694 = vmatprep.subr.mxu0 0.0
      %695 = vmatpush1.msra.mxu0 0.0
      %696 = vmatprep.subr.mxu0 0.0
      %697 = vmatpush1.msra.mxu0 0.0
      %698 = vmatprep.subr.mxu0 0.0
      %699 = vmatpush1.msra.mxu0 0.0
      %700 = vmatprep.subr.mxu0 0.0
      %701 = vmatpush1.msra.mxu0 0.0
      %702 = vmatprep.subr.mxu0 0.0
      %703 = vmatpush1.msra.mxu0 0.0
      %704 = vmatprep.subr.mxu0 0.0
      %705 = vmatpush1.msra.mxu0 0.0
      %706 = vmatprep.subr.mxu0 0.0
      %707 = vmatpush1.msra.mxu0 0.0
      %708 = vmatprep.subr.mxu0 0.0
      %709 = vmatpush1.msra.mxu0 0.0
      %710 = vmatprep.mubr.f32.mxu0 0.0
      %711 = vmatmul.mubr.f32.gmra.mrb[0].mxu0 %v644
      %v712 = vpop.f32.mrb[0].mxu0
      %v713 = vadd.f32 0.0, %v712
      %v714 = vpop.f32.mrb[0].mxu0
      %715 = vdwg.mxu0
      %v716 = vxor.u32 %v713, 2147483648
      %v717 = vmul.f32 %v716, 1.442695
      %v718 = vpow.pop %v717
      %v719 = vadd.f32 %v718, 1.0
      %v720 = vrcp.pop %v719
      %v721 = vmul.f32 1.0, %v720
      %v722 = vadd.f32 %v721, 1.0
      %v725 = vunpack.c.l.s4 1966171168
      %v726 = vunpack.c.0.s8 %v725
      %v727 = vlaneseq
      %v728 = vshrl.u32 %v727, 7
      %v729 = vsub.s32 %v726, %v728
      %v730 = vrot.slane %v722, %v729
      %v731 = vcombine.high %v730, %v730
      %v733 = vunpack.c.l.s4 1966171168
      %v734 = vunpack.c.0.s8 %v733
      %v735 = vlaneseq
      %v736 = vshrl.u32 %v735, 7
      %v737 = vsub.s32 %v734, %v736
      %v738 = vrot.slane %v730, %v737
      %v740 = vunpack.c.l.s4 1966171168
      %v741 = vunpack.c.0.s8 %v740
      %v742 = vlaneseq
      %v743 = vshrl.u32 %v742, 7
      %v744 = vsub.s32 %v741, %v743
      %v745 = vrot.slane %v731, %v744
      %v746 = vlaneseq
      %v747 = vshrl.u32 %v746, 7
      %v748 = vsub.s32 0, %v747
      %v749 = vrot.slane %v738, %v748
      %v750 = vlaneseq
      %v751 = vshrl.u32 %v750, 7
      %v752 = vsub.s32 0, %v751
      %v753 = vrot.slane %v745, %v752
      %v756 = vmul.f32 %v541, %v749
      %v757 = vmul.f32 %v542, %v749
      %v758 = vmul.f32 %v543, %v749
      %v759 = vmul.f32 %v544, %v749
      %v760 = vmul.f32 %v545, %v749
      %v761 = vmul.f32 %v546, %v749
      %v762 = vmul.f32 %v547, %v749
      %v763 = vmul.f32 %v548, %v749
      %v764 = vmul.f32 %v549, %v753
      %v765 = vmul.f32 %v550, %v753
      %v766 = vmul.f32 %v551, %v753
      %v767 = vmul.f32 %v552, %v753
      %v768 = vmul.f32 %v553, %v753
      %v769 = vmul.f32 %v554, %v753
      %v770 = vmul.f32 %v555, %v753
      %v771 = vmul.f32 %v556, %v753
      %v772 = vpack.c.bf16 %v757, %v756
      %v773 = vpack.c.bf16 %v759, %v758
      %v774 = vpack.c.bf16 %v761, %v760
      %v775 = vpack.c.bf16 %v763, %v762
      %v776 = vpack.c.bf16 %v765, %v764
      %v777 = vpack.c.bf16 %v767, %v766
      %v778 = vpack.c.bf16 %v769, %v768
      %v779 = vpack.c.bf16 %v771, %v770
      %v782 = vunpack.c.l.b16 %v577
      %v783 = vunpack.c.l.b16 %v578
      %v784 = vpack.c.b16 %v783, %v782
      %v787 = vsel %vm594, %v772, 0
      %v790 = vsel %vm594, %v773, 0
      %v793 = vsel %vm594, %v774, 0
      %v796 = vsel %vm594, %v775, 0
      %v799 = vsel %vm594, %v776, 0
      %v802 = vsel %vm594, %v777, 0
      %v805 = vsel %vm594, %v778, 0
      %v808 = vsel %vm594, %v779, 0
      %810 = vmatprep.subr.bf16.mxu0 0
      %811 = vmatpush1.bf16.msra.mxu0 %v784
      %812 = vmatprep.subr.bf16.mxu0 0
      %813 = vmatpush1.bf16.msra.mxu0 0
      %814 = vmatprep.subr.bf16.mxu0 0
      %815 = vmatpush1.bf16.msra.mxu0 0
      %816 = vmatprep.subr.bf16.mxu0 0
      %817 = vmatpush1.bf16.msra.mxu0 0
      %818 = vmatprep.subr.bf16.mxu0 0
      %819 = vmatpush1.bf16.msra.mxu0 0
      %820 = vmatprep.subr.bf16.mxu0 0
      %821 = vmatpush1.bf16.msra.mxu0 0
      %822 = vmatprep.subr.bf16.mxu0 0
      %823 = vmatpush1.bf16.msra.mxu0 0
      %824 = vmatprep.subr.bf16.mxu0 0
      %825 = vmatpush1.bf16.msra.mxu0 0
      %826 = vmatprep.subr.bf16.mxu0 0
      %827 = vmatpush1.bf16.msra.mxu0 0
      %828 = vmatprep.subr.bf16.mxu0 0
      %829 = vmatpush1.bf16.msra.mxu0 0
      %830 = vmatprep.subr.bf16.mxu0 0
      %831 = vmatpush1.bf16.msra.mxu0 0
      %832 = vmatprep.subr.bf16.mxu0 0
      %833 = vmatpush1.bf16.msra.mxu0 0
      %834 = vmatprep.subr.bf16.mxu0 0
      %835 = vmatpush1.bf16.msra.mxu0 0
      %836 = vmatprep.subr.bf16.mxu0 0
      %837 = vmatpush1.bf16.msra.mxu0 0
      %838 = vmatprep.subr.bf16.mxu0 0
      %839 = vmatpush1.bf16.msra.mxu0 0
      %840 = vmatprep.subr.bf16.mxu0 0
      %841 = vmatpush1.bf16.msra.mxu0 0
      %842 = vmatprep.mubr.bf16.mxu0 0
      %843 = vmatmul.mubr.bf16.gmra.mrb[0].mxu0 %v787
      %v844 = vpop.f32.mrb[0].mxu0
      %v845 = vadd.f32 0.0, %v844
      %v846 = vpop.f32.mrb[0].mxu0
      %v847 = vpop.f32.mrb[0].mxu0
      %v848 = vadd.f32 0.0, %v847
      %v849 = vpop.f32.mrb[0].mxu0
      %850 = vmatprep.mubr.bf16.mxu0 0
      %851 = vmatmul.mubr.bf16.gmra.mrb[0].mxu0 %v790
      %v852 = vpop.f32.mrb[0].mxu0
      %v853 = vadd.f32 0.0, %v852
      %v854 = vpop.f32.mrb[0].mxu0
      %v855 = vpop.f32.mrb[0].mxu0
      %v856 = vadd.f32 0.0, %v855
      %v857 = vpop.f32.mrb[0].mxu0
      %858 = vmatprep.mubr.bf16.mxu0 0
      %859 = vmatmul.mubr.bf16.gmra.mrb[0].mxu0 %v793
      %v860 = vpop.f32.mrb[0].mxu0
      %v861 = vadd.f32 0.0, %v860
      %v862 = vpop.f32.mrb[0].mxu0
      %v863 = vpop.f32.mrb[0].mxu0
      %v864 = vadd.f32 0.0, %v863
      %v865 = vpop.f32.mrb[0].mxu0
      %866 = vmatprep.mubr.bf16.mxu0 0
      %867 = vmatmul.mubr.bf16.gmra.mrb[0].mxu0 %v796
      %v868 = vpop.f32.mrb[0].mxu0
      %v869 = vadd.f32 0.0, %v868
      %v870 = vpop.f32.mrb[0].mxu0
      %v871 = vpop.f32.mrb[0].mxu0
      %v872 = vadd.f32 0.0, %v871
      %v873 = vpop.f32.mrb[0].mxu0
      %874 = vmatprep.mubr.bf16.mxu0 0
      %875 = vmatmul.mubr.bf16.gmra.mrb[0].mxu0 %v799
      %v876 = vpop.f32.mrb[0].mxu0
      %v877 = vadd.f32 0.0, %v876
      %v878 = vpop.f32.mrb[0].mxu0
      %v879 = vpop.f32.mrb[0].mxu0
      %v880 = vadd.f32 0.0, %v879
      %v881 = vpop.f32.mrb[0].mxu0
      %882 = vmatprep.mubr.bf16.mxu0 0
      %883 = vmatmul.mubr.bf16.gmra.mrb[0].mxu0 %v802
      %v884 = vpop.f32.mrb[0].mxu0
      %v885 = vadd.f32 0.0, %v884
      %v886 = vpop.f32.mrb[0].mxu0
      %v887 = vpop.f32.mrb[0].mxu0
      %v888 = vadd.f32 0.0, %v887
      %v889 = vpop.f32.mrb[0].mxu0
      %890 = vmatprep.mubr.bf16.mxu0 0
      %891 = vmatmul.mubr.bf16.gmra.mrb[0].mxu0 %v805
      %v892 = vpop.f32.mrb[0].mxu0
      %v893 = vadd.f32 0.0, %v892
      %v894 = vpop.f32.mrb[0].mxu0
      %v895 = vpop.f32.mrb[0].mxu0
      %v896 = vadd.f32 0.0, %v895
      %v897 = vpop.f32.mrb[0].mxu0
      %898 = vmatprep.mubr.bf16.mxu0 0
      %899 = vmatmul.mubr.bf16.gmra.mrb[0].mxu0 %v808
      %v900 = vpop.f32.mrb[0].mxu0
      %v901 = vadd.f32 0.0, %v900
      %v902 = vpop.f32.mrb[0].mxu0
      %v903 = vpop.f32.mrb[0].mxu0
      %v904 = vadd.f32 0.0, %v903
      %v905 = vpop.f32.mrb[0].mxu0
      %906 = vdwg.mxu0
      %v908 = vlaneseq
      %v909 = vshrl.u32 %v908, 7
      %v910 = vsub.s32 0, %v909
      %v911 = vrot.slane %v591, %v910
      %v913 = vadd.f32 %v845, %v911
      %v914 = vadd.f32 %v848, %v911
      %v915 = vadd.f32 %v853, %v911
      %v916 = vadd.f32 %v856, %v911
      %v917 = vadd.f32 %v861, %v911
      %v918 = vadd.f32 %v864, %v911
      %v919 = vadd.f32 %v869, %v911
      %v920 = vadd.f32 %v872, %v911
      %v921 = vadd.f32 %v877, %v911
      %v922 = vadd.f32 %v880, %v911
      %v923 = vadd.f32 %v885, %v911
      %v924 = vadd.f32 %v888, %v911
      %v925 = vadd.f32 %v893, %v911
      %v926 = vadd.f32 %v896, %v911
      %v927 = vadd.f32 %v901, %v911
      %v928 = vadd.f32 %v904, %v911
      %v929 = vmax.f32 %v913, 0.0
      %v930 = vmax.f32 %v914, 0.0
      %v931 = vmax.f32 %v915, 0.0
      %v932 = vmax.f32 %v916, 0.0
      %v933 = vmax.f32 %v917, 0.0
      %v934 = vmax.f32 %v918, 0.0
      %v935 = vmax.f32 %v919, 0.0
      %v936 = vmax.f32 %v920, 0.0
      %v937 = vmax.f32 %v921, 0.0
      %v938 = vmax.f32 %v922, 0.0
      %v939 = vmax.f32 %v923, 0.0
      %v940 = vmax.f32 %v924, 0.0
      %v941 = vmax.f32 %v925, 0.0
      %v942 = vmax.f32 %v926, 0.0
      %v943 = vmax.f32 %v927, 0.0
      %v944 = vmax.f32 %v928, 0.0
      %vm945 = vcmask 257024
      %v946 = vsel %vm945, %v929, -inf
      %v947 = vrot.slane %v946, 4
      %v948 = vmax.f32 %v946, %v947
      %v949 = vrot.slane %v948, 2
      %v950 = vmax.f32 %v948, %v949
      %v951 = vrot.slane %v950, 1
      %v952 = vmax.f32 %v950, %v951
      %v953 = vsel %vm945, %v937, -inf
      %v954 = vrot.slane %v953, 4
      %v955 = vmax.f32 %v953, %v954
      %v956 = vrot.slane %v955, 2
      %v957 = vmax.f32 %v955, %v956
      %v958 = vrot.slane %v957, 1
      %v959 = vmax.f32 %v957, %v958
      %vm960 = vcmask 253952
      %961 = vst.msk [vmem:[#allocation2] sm:$0x1] %vm960, %v952
      %962 = vst.msk [vmem:[#allocation2 + $0x10] sm:$0x1] %vm960, %v959
      %vm963 = vcmask 261124
      %v964 = vsel %vm963, %v929, -inf
      %v965 = vrot.slane %v964, 4
      %v966 = vmax.f32 %v964, %v965
      %v967 = vrot.slane %v966, 2
      %v968 = vmax.f32 %v966, %v967
      %v969 = vrot.slane %v968, 1
      %v970 = vmax.f32 %v968, %v969
      %v971 = vsel %vm963, %v937, -inf
      %v972 = vrot.slane %v971, 4
      %v973 = vmax.f32 %v971, %v972
      %v974 = vrot.slane %v973, 2
      %v975 = vmax.f32 %v973, %v974
      %v976 = vrot.slane %v975, 1
      %v977 = vmax.f32 %v975, %v976
      %978 = vst.msk [vmem:[#allocation2 + $0x1] sm:$0x1] %vm960, %v970
      %979 = vst.msk [vmem:[#allocation2 + $0x11] sm:$0x1] %vm960, %v977
      %v980 = vsel %vm945, %v930, -inf
      %v981 = vrot.slane %v980, 4
      %v982 = vmax.f32 %v980, %v981
      %v983 = vrot.slane %v982, 2
      %v984 = vmax.f32 %v982, %v983
      %v985 = vrot.slane %v984, 1
      %v986 = vmax.f32 %v984, %v985
      %v987 = vsel %vm945, %v938, -inf
      %v988 = vrot.slane %v987, 4
      %v989 = vmax.f32 %v987, %v988
      %v990 = vrot.slane %v989, 2
      %v991 = vmax.f32 %v989, %v990
      %v992 = vrot.slane %v991, 1
      %v993 = vmax.f32 %v991, %v992
      %994 = vst.msk [vmem:[#allocation2 + $0x2] sm:$0x1] %vm960, %v986
      %995 = vst.msk [vmem:[#allocation2 + $0x12] sm:$0x1] %vm960, %v993
      %v996 = vsel %vm963, %v930, -inf
      %v997 = vrot.slane %v996, 4
      %v998 = vmax.f32 %v996, %v997
      %v999 = vrot.slane %v998, 2
      %v1000 = vmax.f32 %v998, %v999
      %v1001 = vrot.slane %v1000, 1
      %v1002 = vmax.f32 %v1000, %v1001
      %v1003 = vsel %vm963, %v938, -inf
      %v1004 = vrot.slane %v1003, 4
      %v1005 = vmax.f32 %v1003, %v1004
      %v1006 = vrot.slane %v1005, 2
      %v1007 = vmax.f32 %v1005, %v1006
      %v1008 = vrot.slane %v1007, 1
      %v1009 = vmax.f32 %v1007, %v1008
      %1010 = vst.msk [vmem:[#allocation2 + $0x3] sm:$0x1] %vm960, %v1002
      %1011 = vst.msk [vmem:[#allocation2 + $0x13] sm:$0x1] %vm960, %v1009
      %v1012 = vsel %vm945, %v931, -inf
      %v1013 = vrot.slane %v1012, 4
      %v1014 = vmax.f32 %v1012, %v1013
      %v1015 = vrot.slane %v1014, 2
      %v1016 = vmax.f32 %v1014, %v1015
      %v1017 = vrot.slane %v1016, 1
      %v1018 = vmax.f32 %v1016, %v1017
      %v1019 = vsel %vm945, %v939, -inf
      %v1020 = vrot.slane %v1019, 4
      %v1021 = vmax.f32 %v1019, %v1020
      %v1022 = vrot.slane %v1021, 2
      %v1023 = vmax.f32 %v1021, %v1022
      %v1024 = vrot.slane %v1023, 1
      %v1025 = vmax.f32 %v1023, %v1024
      %1026 = vst.msk [vmem:[#allocation2 + $0x4] sm:$0x1] %vm960, %v1018
      %1027 = vst.msk [vmem:[#allocation2 + $0x14] sm:$0x1] %vm960, %v1025
      %v1028 = vsel %vm963, %v931, -inf
      %v1029 = vrot.slane %v1028, 4
      %v1030 = vmax.f32 %v1028, %v1029
      %v1031 = vrot.slane %v1030, 2
      %v1032 = vmax.f32 %v1030, %v1031
      %v1033 = vrot.slane %v1032, 1
      %v1034 = vmax.f32 %v1032, %v1033
      %v1035 = vsel %vm963, %v939, -inf
      %v1036 = vrot.slane %v1035, 4
      %v1037 = vmax.f32 %v1035, %v1036
      %v1038 = vrot.slane %v1037, 2
      %v1039 = vmax.f32 %v1037, %v1038
      %v1040 = vrot.slane %v1039, 1
      %v1041 = vmax.f32 %v1039, %v1040
      %1042 = vst.msk [vmem:[#allocation2 + $0x5] sm:$0x1] %vm960, %v1034
      %1043 = vst.msk [vmem:[#allocation2 + $0x15] sm:$0x1] %vm960, %v1041
      %v1044 = vsel %vm945, %v932, -inf
      %v1045 = vrot.slane %v1044, 4
      %v1046 = vmax.f32 %v1044, %v1045
      %v1047 = vrot.slane %v1046, 2
      %v1048 = vmax.f32 %v1046, %v1047
      %v1049 = vrot.slane %v1048, 1
      %v1050 = vmax.f32 %v1048, %v1049
      %v1051 = vsel %vm945, %v940, -inf
      %v1052 = vrot.slane %v1051, 4
      %v1053 = vmax.f32 %v1051, %v1052
      %v1054 = vrot.slane %v1053, 2
      %v1055 = vmax.f32 %v1053, %v1054
      %v1056 = vrot.slane %v1055, 1
      %v1057 = vmax.f32 %v1055, %v1056
      %1058 = vst.msk [vmem:[#allocation2 + $0x6] sm:$0x1] %vm960, %v1050
      %1059 = vst.msk [vmem:[#allocation2 + $0x16] sm:$0x1] %vm960, %v1057
      %v1060 = vsel %vm963, %v932, -inf
      %v1061 = vrot.slane %v1060, 4
      %v1062 = vmax.f32 %v1060, %v1061
      %v1063 = vrot.slane %v1062, 2
      %v1064 = vmax.f32 %v1062, %v1063
      %v1065 = vrot.slane %v1064, 1
      %v1066 = vmax.f32 %v1064, %v1065
      %v1067 = vsel %vm963, %v940, -inf
      %v1068 = vrot.slane %v1067, 4
      %v1069 = vmax.f32 %v1067, %v1068
      %v1070 = vrot.slane %v1069, 2
      %v1071 = vmax.f32 %v1069, %v1070
      %v1072 = vrot.slane %v1071, 1
      %v1073 = vmax.f32 %v1071, %v1072
      %1074 = vst.msk [vmem:[#allocation2 + $0x7] sm:$0x1] %vm960, %v1066
      %1075 = vst.msk [vmem:[#allocation2 + $0x17] sm:$0x1] %vm960, %v1073
      %v1076 = vsel %vm945, %v933, -inf
      %v1077 = vrot.slane %v1076, 4
      %v1078 = vmax.f32 %v1076, %v1077
      %v1079 = vrot.slane %v1078, 2
      %v1080 = vmax.f32 %v1078, %v1079
      %v1081 = vrot.slane %v1080, 1
      %v1082 = vmax.f32 %v1080, %v1081
      %v1083 = vsel %vm945, %v941, -inf
      %v1084 = vrot.slane %v1083, 4
      %v1085 = vmax.f32 %v1083, %v1084
      %v1086 = vrot.slane %v1085, 2
      %v1087 = vmax.f32 %v1085, %v1086
      %v1088 = vrot.slane %v1087, 1
      %v1089 = vmax.f32 %v1087, %v1088
      %1090 = vst.msk [vmem:[#allocation2 + $0x8] sm:$0x1] %vm960, %v1082
      %1091 = vst.msk [vmem:[#allocation2 + $0x18] sm:$0x1] %vm960, %v1089
      %v1092 = vsel %vm963, %v933, -inf
      %v1093 = vrot.slane %v1092, 4
      %v1094 = vmax.f32 %v1092, %v1093
      %v1095 = vrot.slane %v1094, 2
      %v1096 = vmax.f32 %v1094, %v1095
      %v1097 = vrot.slane %v1096, 1
      %v1098 = vmax.f32 %v1096, %v1097
      %v1099 = vsel %vm963, %v941, -inf
      %v1100 = vrot.slane %v1099, 4
      %v1101 = vmax.f32 %v1099, %v1100
      %v1102 = vrot.slane %v1101, 2
      %v1103 = vmax.f32 %v1101, %v1102
      %v1104 = vrot.slane %v1103, 1
      %v1105 = vmax.f32 %v1103, %v1104
      %1106 = vst.msk [vmem:[#allocation2 + $0x9] sm:$0x1] %vm960, %v1098
      %1107 = vst.msk [vmem:[#allocation2 + $0x19] sm:$0x1] %vm960, %v1105
      %v1108 = vsel %vm945, %v934, -inf
      %v1109 = vrot.slane %v1108, 4
      %v1110 = vmax.f32 %v1108, %v1109
      %v1111 = vrot.slane %v1110, 2
      %v1112 = vmax.f32 %v1110, %v1111
      %v1113 = vrot.slane %v1112, 1
      %v1114 = vmax.f32 %v1112, %v1113
      %v1115 = vsel %vm945, %v942, -inf
      %v1116 = vrot.slane %v1115, 4
      %v1117 = vmax.f32 %v1115, %v1116
      %v1118 = vrot.slane %v1117, 2
      %v1119 = vmax.f32 %v1117, %v1118
      %v1120 = vrot.slane %v1119, 1
      %v1121 = vmax.f32 %v1119, %v1120
      %1122 = vst.msk [vmem:[#allocation2 + $0xa] sm:$0x1] %vm960, %v1114
      %1123 = vst.msk [vmem:[#allocation2 + $0x1a] sm:$0x1] %vm960, %v1121
      %v1124 = vsel %vm963, %v934, -inf
      %v1125 = vrot.slane %v1124, 4
      %v1126 = vmax.f32 %v1124, %v1125
      %v1127 = vrot.slane %v1126, 2
      %v1128 = vmax.f32 %v1126, %v1127
      %v1129 = vrot.slane %v1128, 1
      %v1130 = vmax.f32 %v1128, %v1129
      %v1131 = vsel %vm963, %v942, -inf
      %v1132 = vrot.slane %v1131, 4
      %v1133 = vmax.f32 %v1131, %v1132
      %v1134 = vrot.slane %v1133, 2
      %v1135 = vmax.f32 %v1133, %v1134
      %v1136 = vrot.slane %v1135, 1
      %v1137 = vmax.f32 %v1135, %v1136
      %1138 = vst.msk [vmem:[#allocation2 + $0xb] sm:$0x1] %vm960, %v1130
      %1139 = vst.msk [vmem:[#allocation2 + $0x1b] sm:$0x1] %vm960, %v1137
      %v1140 = vsel %vm945, %v935, -inf
      %v1141 = vrot.slane %v1140, 4
      %v1142 = vmax.f32 %v1140, %v1141
      %v1143 = vrot.slane %v1142, 2
      %v1144 = vmax.f32 %v1142, %v1143
      %v1145 = vrot.slane %v1144, 1
      %v1146 = vmax.f32 %v1144, %v1145
      %v1147 = vsel %vm945, %v943, -inf
      %v1148 = vrot.slane %v1147, 4
      %v1149 = vmax.f32 %v1147, %v1148
      %v1150 = vrot.slane %v1149, 2
      %v1151 = vmax.f32 %v1149, %v1150
      %v1152 = vrot.slane %v1151, 1
      %v1153 = vmax.f32 %v1151, %v1152
      %1154 = vst.msk [vmem:[#allocation2 + $0xc] sm:$0x1] %vm960, %v1146
      %1155 = vst.msk [vmem:[#allocation2 + $0x1c] sm:$0x1] %vm960, %v1153
      %v1156 = vsel %vm963, %v935, -inf
      %v1157 = vrot.slane %v1156, 4
      %v1158 = vmax.f32 %v1156, %v1157
      %v1159 = vrot.slane %v1158, 2
      %v1160 = vmax.f32 %v1158, %v1159
      %v1161 = vrot.slane %v1160, 1
      %v1162 = vmax.f32 %v1160, %v1161
      %v1163 = vsel %vm963, %v943, -inf
      %v1164 = vrot.slane %v1163, 4
      %v1165 = vmax.f32 %v1163, %v1164
      %v1166 = vrot.slane %v1165, 2
      %v1167 = vmax.f32 %v1165, %v1166
      %v1168 = vrot.slane %v1167, 1
      %v1169 = vmax.f32 %v1167, %v1168
      %1170 = vst.msk [vmem:[#allocation2 + $0xd] sm:$0x1] %vm960, %v1162
      %1171 = vst.msk [vmem:[#allocation2 + $0x1d] sm:$0x1] %vm960, %v1169
      %v1172 = vsel %vm945, %v936, -inf
      %v1173 = vrot.slane %v1172, 4
      %v1174 = vmax.f32 %v1172, %v1173
      %v1175 = vrot.slane %v1174, 2
      %v1176 = vmax.f32 %v1174, %v1175
      %v1177 = vrot.slane %v1176, 1
      %v1178 = vmax.f32 %v1176, %v1177
      %v1179 = vsel %vm945, %v944, -inf
      %v1180 = vrot.slane %v1179, 4
      %v1181 = vmax.f32 %v1179, %v1180
      %v1182 = vrot.slane %v1181, 2
      %v1183 = vmax.f32 %v1181, %v1182
      %v1184 = vrot.slane %v1183, 1
      %v1185 = vmax.f32 %v1183, %v1184
      %1186 = vst.msk [vmem:[#allocation2 + $0xe] sm:$0x1] %vm960, %v1178
      %1187 = vst.msk [vmem:[#allocation2 + $0x1e] sm:$0x1] %vm960, %v1185
      %v1188 = vsel %vm963, %v936, -inf
      %v1189 = vrot.slane %v1188, 4
      %v1190 = vmax.f32 %v1188, %v1189
      %v1191 = vrot.slane %v1190, 2
      %v1192 = vmax.f32 %v1190, %v1191
      %v1193 = vrot.slane %v1192, 1
      %v1194 = vmax.f32 %v1192, %v1193
      %v1195 = vsel %vm963, %v944, -inf
      %v1196 = vrot.slane %v1195, 4
      %v1197 = vmax.f32 %v1195, %v1196
      %v1198 = vrot.slane %v1197, 2
      %v1199 = vmax.f32 %v1197, %v1198
      %v1200 = vrot.slane %v1199, 1
      %v1201 = vmax.f32 %v1199, %v1200
      %1202 = vst.msk [vmem:[#allocation2 + $0xf] sm:$0x1] %vm960, %v1194
      %1203 = vst.msk [vmem:[#allocation2 + $0x1f] sm:$0x1] %vm960, %v1201
      %v1204 = vld [vmem:[#allocation2] sm:$0xff]
      %v1205 = vld [vmem:[#allocation2 + $0x8] sm:$0xff]
      %v1206 = vld [vmem:[#allocation2 + $0x10] sm:$0xff]
      %v1207 = vld [vmem:[#allocation2 + $0x18] sm:$0xff]
      %v1208 = vadd.f32 %v557, %v1204
      %v1209 = vadd.f32 %v558, %v1205
      %v1210 = vadd.f32 %v559, %v1206
      %v1211 = vadd.f32 %v560, %v1207
      %vm1212 = vcmask 261120
      %v1213 = vsel %vm1212, %v1208, 0.0
      %v1214 = vsel %vm1212, %v1209, 0.0
      %v1215 = vadd.f32 %v1213, %v1214
      %v1216 = vrot.slane %v1215, 4
      %v1217 = vadd.f32 %v1215, %v1216
      %v1218 = vrot.slane %v1217, 2
      %v1219 = vadd.f32 %v1217, %v1218
      %v1220 = vrot.slane %v1219, 1
      %v1221 = vadd.f32 %v1219, %v1220
      %v1222 = vsel %vm1212, %v1210, 0.0
      %v1223 = vsel %vm1212, %v1211, 0.0
      %v1224 = vadd.f32 %v1222, %v1223
      %v1225 = vrot.slane %v1224, 4
      %v1226 = vadd.f32 %v1224, %v1225
      %v1227 = vrot.slane %v1226, 2
      %v1228 = vadd.f32 %v1226, %v1227
      %v1229 = vrot.slane %v1228, 1
      %v1230 = vadd.f32 %v1228, %v1229
      %v1231 = vrcp.pop 16.0
      %v1232 = vmul.f32 %v1221, %v1231
      %v1233 = vmul.f32 %v1230, %v1231
      %v1236 = vsel %vm642, %v1233, %v1232
      %v1237 = vsel %vm1212, %v1236, 0
      %1239 = vmatprep.subr.mxu0 0.0
      %1240 = vmatpush1.msra.mxu0 %v565
      %1241 = vmatprep.subr.mxu0 0.0
      %1242 = vmatpush1.msra.mxu0 %v566
      %1243 = vmatprep.subr.mxu0 0.0
      %1244 = vmatpush1.msra.mxu0 %v567
      %1245 = vmatprep.subr.mxu0 0.0
      %1246 = vmatpush1.msra.mxu0 %v568
      %1247 = vmatprep.subr.mxu0 0.0
      %1248 = vmatpush1.msra.mxu0 0.0
      %1249 = vmatprep.subr.mxu0 0.0
      %1250 = vmatpush1.msra.mxu0 0.0
      %1251 = vmatprep.subr.mxu0 0.0
      %1252 = vmatpush1.msra.mxu0 0.0
      %1253 = vmatprep.subr.mxu0 0.0
      %1254 = vmatpush1.msra.mxu0 0.0
      %1255 = vmatprep.subr.mxu0 0.0
      %1256 = vmatpush1.msra.mxu0 0.0
      %1257 = vmatprep.subr.mxu0 0.0
      %1258 = vmatpush1.msra.mxu0 0.0
      %1259 = vmatprep.subr.mxu0 0.0
      %1260 = vmatpush1.msra.mxu0 0.0
      %1261 = vmatprep.subr.mxu0 0.0
      %1262 = vmatpush1.msra.mxu0 0.0
      %1263 = vmatprep.subr.mxu0 0.0
      %1264 = vmatpush1.msra.mxu0 0.0
      %1265 = vmatprep.subr.mxu0 0.0
      %1266 = vmatpush1.msra.mxu0 0.0
      %1267 = vmatprep.subr.mxu0 0.0
      %1268 = vmatpush1.msra.mxu0 0.0
      %1269 = vmatprep.subr.mxu0 0.0
      %1270 = vmatpush1.msra.mxu0 0.0
      %1271 = vmatprep.subr.mxu0 0.0
      %1272 = vmatpush1.msra.mxu0 0.0
      %1273 = vmatprep.subr.mxu0 0.0
      %1274 = vmatpush1.msra.mxu0 0.0
      %1275 = vmatprep.subr.mxu0 0.0
      %1276 = vmatpush1.msra.mxu0 0.0
      %1277 = vmatprep.subr.mxu0 0.0
      %1278 = vmatpush1.msra.mxu0 0.0
      %1279 = vmatprep.subr.mxu0 0.0
      %1280 = vmatpush1.msra.mxu0 0.0
      %1281 = vmatprep.subr.mxu0 0.0
      %1282 = vmatpush1.msra.mxu0 0.0
      %1283 = vmatprep.subr.mxu0 0.0
      %1284 = vmatpush1.msra.mxu0 0.0
      %1285 = vmatprep.subr.mxu0 0.0
      %1286 = vmatpush1.msra.mxu0 0.0
      %1287 = vmatprep.subr.mxu0 0.0
      %1288 = vmatpush1.msra.mxu0 0.0
      %1289 = vmatprep.subr.mxu0 0.0
      %1290 = vmatpush1.msra.mxu0 0.0
      %1291 = vmatprep.subr.mxu0 0.0
      %1292 = vmatpush1.msra.mxu0 0.0
      %1293 = vmatprep.subr.mxu0 0.0
      %1294 = vmatpush1.msra.mxu0 0.0
      %1295 = vmatprep.subr.mxu0 0.0
      %1296 = vmatpush1.msra.mxu0 0.0
      %1297 = vmatprep.subr.mxu0 0.0
      %1298 = vmatpush1.msra.mxu0 0.0
      %1299 = vmatprep.subr.mxu0 0.0
      %1300 = vmatpush1.msra.mxu0 0.0
      %1301 = vmatprep.subr.mxu0 0.0
      %1302 = vmatpush1.msra.mxu0 0.0
      %1303 = vmatprep.mubr.f32.mxu0 0.0
      %1304 = vmatmul.mubr.f32.gmra.mrb[0].mxu0 %v1237
      %v1305 = vpop.f32.mrb[0].mxu0
      %v1306 = vadd.f32 0.0, %v1305
      %v1307 = vpop.f32.mrb[0].mxu0
      %1308 = vdwg.mxu0
      %v1309 = vxor.u32 %v1306, 2147483648
      %v1310 = vmul.f32 %v1309, 1.442695
      %v1311 = vpow.pop %v1310
      %v1312 = vadd.f32 %v1311, 1.0
      %v1313 = vrcp.pop %v1312
      %v1314 = vmul.f32 1.0, %v1313
      %v1315 = vadd.f32 %v1314, 1.0
      %v1318 = vunpack.c.l.s4 1966171168
      %v1319 = vunpack.c.0.s8 %v1318
      %v1320 = vlaneseq
      %v1321 = vshrl.u32 %v1320, 7
      %v1322 = vsub.s32 %v1319, %v1321
      %v1323 = vrot.slane %v1315, %v1322
      %v1324 = vcombine.high %v1323, %v1323
      %v1326 = vunpack.c.l.s4 1966171168
      %v1327 = vunpack.c.0.s8 %v1326
      %v1328 = vlaneseq
      %v1329 = vshrl.u32 %v1328, 7
      %v1330 = vsub.s32 %v1327, %v1329
      %v1331 = vrot.slane %v1323, %v1330
      %v1333 = vunpack.c.l.s4 1966171168
      %v1334 = vunpack.c.0.s8 %v1333
      %v1335 = vlaneseq
      %v1336 = vshrl.u32 %v1335, 7
      %v1337 = vsub.s32 %v1334, %v1336
      %v1338 = vrot.slane %v1324, %v1337
      %v1339 = vlaneseq
      %v1340 = vshrl.u32 %v1339, 7
      %v1341 = vsub.s32 0, %v1340
      %v1342 = vrot.slane %v1331, %v1341
      %v1343 = vlaneseq
      %v1344 = vshrl.u32 %v1343, 7
      %v1345 = vsub.s32 0, %v1344
      %v1346 = vrot.slane %v1338, %v1345
      %v1349 = vmul.f32 %v1208, %v1342
      %v1350 = vmul.f32 %v1209, %v1342
      %v1351 = vmul.f32 %v1210, %v1346
      %v1352 = vmul.f32 %v1211, %v1346
      %v1353 = vpack.c.bf16 %v1350, %v1349
      %v1354 = vpack.c.bf16 %v1352, %v1351
      %v1359 = vunpack.c.l.b16 %v579
      %v1360 = vunpack.c.l.b16 %v580
      %v1361 = vunpack.c.l.b16 %v581
      %v1362 = vunpack.c.l.b16 %v582
      %v1363 = vpack.c.b16 %v1360, %v1359
      %v1364 = vpack.c.b16 %v1362, %v1361
      %v1368 = vsel %vm1212, %v1353, 0
      %v1371 = vsel %vm1212, %v1354, 0
      %1373 = vmatprep.subr.bf16.mxu0 0
      %1374 = vmatpush1.bf16.msra.mxu0 %v1363
      %1375 = vmatprep.subr.bf16.mxu0 0
      %1376 = vmatpush1.bf16.msra.mxu0 %v1364
      %1377 = vmatprep.subr.bf16.mxu0 0
      %1378 = vmatpush1.bf16.msra.mxu0 0
      %1379 = vmatprep.subr.bf16.mxu0 0
      %1380 = vmatpush1.bf16.msra.mxu0 0
      %1381 = vmatprep.subr.bf16.mxu0 0
      %1382 = vmatpush1.bf16.msra.mxu0 0
      %1383 = vmatprep.subr.bf16.mxu0 0
      %1384 = vmatpush1.bf16.msra.mxu0 0
      %1385 = vmatprep.subr.bf16.mxu0 0
      %1386 = vmatpush1.bf16.msra.mxu0 0
      %1387 = vmatprep.subr.bf16.mxu0 0
      %1388 = vmatpush1.bf16.msra.mxu0 0
      %1389 = vmatprep.subr.bf16.mxu0 0
      %1390 = vmatpush1.bf16.msra.mxu0 0
      %1391 = vmatprep.subr.bf16.mxu0 0
      %1392 = vmatpush1.bf16.msra.mxu0 0
      %1393 = vmatprep.subr.bf16.mxu0 0
      %1394 = vmatpush1.bf16.msra.mxu0 0
      %1395 = vmatprep.subr.bf16.mxu0 0
      %1396 = vmatpush1.bf16.msra.mxu0 0
      %1397 = vmatprep.subr.bf16.mxu0 0
      %1398 = vmatpush1.bf16.msra.mxu0 0
      %1399 = vmatprep.subr.bf16.mxu0 0
      %1400 = vmatpush1.bf16.msra.mxu0 0
      %1401 = vmatprep.subr.bf16.mxu0 0
      %1402 = vmatpush1.bf16.msra.mxu0 0
      %1403 = vmatprep.subr.bf16.mxu0 0
      %1404 = vmatpush1.bf16.msra.mxu0 0
      %1405 = vmatprep.mubr.bf16.mxu0 0
      %1406 = vmatmul.mubr.bf16.gmra.mrb[0].mxu0 %v1368
      %v1407 = vpop.f32.mrb[0].mxu0
      %v1408 = vadd.f32 0.0, %v1407
      %v1409 = vpop.f32.mrb[0].mxu0
      %v1410 = vpop.f32.mrb[0].mxu0
      %v1411 = vadd.f32 0.0, %v1410
      %v1412 = vpop.f32.mrb[0].mxu0
      %1413 = vmatprep.mubr.bf16.mxu0 0
      %1414 = vmatmul.mubr.bf16.gmra.mrb[0].mxu0 %v1371
      %v1415 = vpop.f32.mrb[0].mxu0
      %v1416 = vadd.f32 0.0, %v1415
      %v1417 = vpop.f32.mrb[0].mxu0
      %v1418 = vpop.f32.mrb[0].mxu0
      %v1419 = vadd.f32 0.0, %v1418
      %v1420 = vpop.f32.mrb[0].mxu0
      %1421 = vdwg.mxu0
      %v1423 = vlaneseq
      %v1424 = vshrl.u32 %v1423, 7
      %v1425 = vsub.s32 0, %v1424
      %v1426 = vrot.slane %v592, %v1425
      %v1428 = vadd.f32 %v1408, %v1426
      %v1429 = vadd.f32 %v1411, %v1426
      %v1430 = vadd.f32 %v1416, %v1426
      %v1431 = vadd.f32 %v1419, %v1426
      %v1432 = vmax.f32 %v1428, 0.0
      %v1433 = vmax.f32 %v1429, 0.0
      %v1434 = vmax.f32 %v1430, 0.0
      %v1435 = vmax.f32 %v1431, 0.0
      %vm1436 = vcmask 519168
      %v1437 = vsel %vm1436, %v1432, -inf
      %v1438 = vrot.slane %v1437, 4
      %v1439 = vmax.f32 %v1437, %v1438
      %v1440 = vrot.slane %v1439, 2
      %v1441 = vmax.f32 %v1439, %v1440
      %v1442 = vrot.slane %v1441, 1
      %v1443 = vmax.f32 %v1441, %v1442
      %v1444 = vsel %vm1436, %v1434, -inf
      %v1445 = vrot.slane %v1444, 4
      %v1446 = vmax.f32 %v1444, %v1445
      %v1447 = vrot.slane %v1446, 2
      %v1448 = vmax.f32 %v1446, %v1447
      %v1449 = vrot.slane %v1448, 1
      %v1450 = vmax.f32 %v1448, %v1449
      %vm1451 = vcmask 516096
      %1452 = vst.msk [vmem:[#allocation3] sm:$0x1] %vm1451, %v1443
      %1453 = vst.msk [vmem:[#allocation3 + $0x4] sm:$0x1] %vm1451, %v1450
      %vm1454 = vcmask 523268
      %v1455 = vsel %vm1454, %v1432, -inf
      %v1456 = vrot.slane %v1455, 4
      %v1457 = vmax.f32 %v1455, %v1456
      %v1458 = vrot.slane %v1457, 2
      %v1459 = vmax.f32 %v1457, %v1458
      %v1460 = vrot.slane %v1459, 1
      %v1461 = vmax.f32 %v1459, %v1460
      %v1462 = vsel %vm1454, %v1434, -inf
      %v1463 = vrot.slane %v1462, 4
      %v1464 = vmax.f32 %v1462, %v1463
      %v1465 = vrot.slane %v1464, 2
      %v1466 = vmax.f32 %v1464, %v1465
      %v1467 = vrot.slane %v1466, 1
      %v1468 = vmax.f32 %v1466, %v1467
      %1469 = vst.msk [vmem:[#allocation3 + $0x1] sm:$0x1] %vm1451, %v1461
      %1470 = vst.msk [vmem:[#allocation3 + $0x5] sm:$0x1] %vm1451, %v1468
      %v1471 = vsel %vm1436, %v1433, -inf
      %v1472 = vrot.slane %v1471, 4
      %v1473 = vmax.f32 %v1471, %v1472
      %v1474 = vrot.slane %v1473, 2
      %v1475 = vmax.f32 %v1473, %v1474
      %v1476 = vrot.slane %v1475, 1
      %v1477 = vmax.f32 %v1475, %v1476
      %v1478 = vsel %vm1436, %v1435, -inf
      %v1479 = vrot.slane %v1478, 4
      %v1480 = vmax.f32 %v1478, %v1479
      %v1481 = vrot.slane %v1480, 2
      %v1482 = vmax.f32 %v1480, %v1481
      %v1483 = vrot.slane %v1482, 1
      %v1484 = vmax.f32 %v1482, %v1483
      %1485 = vst.msk [vmem:[#allocation3 + $0x2] sm:$0x1] %vm1451, %v1477
      %1486 = vst.msk [vmem:[#allocation3 + $0x6] sm:$0x1] %vm1451, %v1484
      %v1487 = vsel %vm1454, %v1433, -inf
      %v1488 = vrot.slane %v1487, 4
      %v1489 = vmax.f32 %v1487, %v1488
      %v1490 = vrot.slane %v1489, 2
      %v1491 = vmax.f32 %v1489, %v1490
      %v1492 = vrot.slane %v1491, 1
      %v1493 = vmax.f32 %v1491, %v1492
      %v1494 = vsel %vm1454, %v1435, -inf
      %v1495 = vrot.slane %v1494, 4
      %v1496 = vmax.f32 %v1494, %v1495
      %v1497 = vrot.slane %v1496, 2
      %v1498 = vmax.f32 %v1496, %v1497
      %v1499 = vrot.slane %v1498, 1
      %v1500 = vmax.f32 %v1498, %v1499
      %1501 = vst.msk [vmem:[#allocation3 + $0x3] sm:$0x1] %vm1451, %v1493
      %1502 = vst.msk [vmem:[#allocation3 + $0x7] sm:$0x1] %vm1451, %v1500
      %v1503 = vld [vmem:[#allocation3] sm:$0xf]
      %v1504 = vld [vmem:[#allocation3 + $0x4] sm:$0xf]
      %v1505 = vadd.f32 %v561, %v1503
      %v1506 = vadd.f32 %v562, %v1504
      %v1507 = vsel %vm1436, %v1505, 0.0
      %v1508 = vrot.slane %v1507, 4
      %v1509 = vadd.f32 %v1507, %v1508
      %v1510 = vrot.slane %v1509, 2
      %v1511 = vadd.f32 %v1509, %v1510
      %v1512 = vrot.slane %v1511, 1
      %v1513 = vadd.f32 %v1511, %v1512
      %v1514 = vsel %vm1436, %v1506, 0.0
      %v1515 = vrot.slane %v1514, 4
      %v1516 = vadd.f32 %v1514, %v1515
      %v1517 = vrot.slane %v1516, 2
      %v1518 = vadd.f32 %v1516, %v1517
      %v1519 = vrot.slane %v1518, 1
      %v1520 = vadd.f32 %v1518, %v1519
      %v1521 = vrcp.pop 4.0
      %v1522 = vmul.f32 %v1513, %v1521
      %v1523 = vmul.f32 %v1520, %v1521
      %v1526 = vsel %vm642, %v1523, %v1522
      %vm1527 = vcmask 523264
      %v1528 = vsel %vm1527, %v1526, 0
      %1530 = vmatprep.subr.mxu0 0.0
      %1531 = vmatpush1.msra.mxu0 %v569
      %1532 = vmatprep.subr.mxu0 0.0
      %1533 = vmatpush1.msra.mxu0 %v570
      %1534 = vmatprep.subr.mxu0 0.0
      %1535 = vmatpush1.msra.mxu0 %v571
      %1536 = vmatprep.subr.mxu0 0.0
      %1537 = vmatpush1.msra.mxu0 %v572
      %1538 = vmatprep.subr.mxu0 0.0
      %1539 = vmatpush1.msra.mxu0 %v573
      %1540 = vmatprep.subr.mxu0 0.0
      %1541 = vmatpush1.msra.mxu0 %v574
      %1542 = vmatprep.subr.mxu0 0.0
      %1543 = vmatpush1.msra.mxu0 %v575
      %1544 = vmatprep.subr.mxu0 0.0
      %1545 = vmatpush1.msra.mxu0 %v576
      %1546 = vmatprep.subr.mxu0 0.0
      %1547 = vmatpush1.msra.mxu0 0.0
      %1548 = vmatprep.subr.mxu0 0.0
      %1549 = vmatpush1.msra.mxu0 0.0
      %1550 = vmatprep.subr.mxu0 0.0
      %1551 = vmatpush1.msra.mxu0 0.0
      %1552 = vmatprep.subr.mxu0 0.0
      %1553 = vmatpush1.msra.mxu0 0.0
      %1554 = vmatprep.subr.mxu0 0.0
      %1555 = vmatpush1.msra.mxu0 0.0
      %1556 = vmatprep.subr.mxu0 0.0
      %1557 = vmatpush1.msra.mxu0 0.0
      %1558 = vmatprep.subr.mxu0 0.0
      %1559 = vmatpush1.msra.mxu0 0.0
      %1560 = vmatprep.subr.mxu0 0.0
      %1561 = vmatpush1.msra.mxu0 0.0
      %1562 = vmatprep.subr.mxu0 0.0
      %1563 = vmatpush1.msra.mxu0 0.0
      %1564 = vmatprep.subr.mxu0 0.0
      %1565 = vmatpush1.msra.mxu0 0.0
      %1566 = vmatprep.subr.mxu0 0.0
      %1567 = vmatpush1.msra.mxu0 0.0
      %1568 = vmatprep.subr.mxu0 0.0
      %1569 = vmatpush1.msra.mxu0 0.0
      %1570 = vmatprep.subr.mxu0 0.0
      %1571 = vmatpush1.msra.mxu0 0.0
      %1572 = vmatprep.subr.mxu0 0.0
      %1573 = vmatpush1.msra.mxu0 0.0
      %1574 = vmatprep.subr.mxu0 0.0
      %1575 = vmatpush1.msra.mxu0 0.0
      %1576 = vmatprep.subr.mxu0 0.0
      %1577 = vmatpush1.msra.mxu0 0.0
      %1578 = vmatprep.subr.mxu0 0.0
      %1579 = vmatpush1.msra.mxu0 0.0
      %1580 = vmatprep.subr.mxu0 0.0
      %1581 = vmatpush1.msra.mxu0 0.0
      %1582 = vmatprep.subr.mxu0 0.0
      %1583 = vmatpush1.msra.mxu0 0.0
      %1584 = vmatprep.subr.mxu0 0.0
      %1585 = vmatpush1.msra.mxu0 0.0
      %1586 = vmatprep.subr.mxu0 0.0
      %1587 = vmatpush1.msra.mxu0 0.0
      %1588 = vmatprep.subr.mxu0 0.0
      %1589 = vmatpush1.msra.mxu0 0.0
      %1590 = vmatprep.subr.mxu0 0.0
      %1591 = vmatpush1.msra.mxu0 0.0
      %1592 = vmatprep.subr.mxu0 0.0
      %1593 = vmatpush1.msra.mxu0 0.0
      %1594 = vmatprep.mubr.f32.mxu0 0.0
      %1595 = vmatmul.mubr.f32.gmra.mrb[0].mxu0 %v1528
      %v1596 = vpop.f32.mrb[0].mxu0
      %v1597 = vadd.f32 0.0, %v1596
      %v1598 = vpop.f32.mrb[0].mxu0
      %1599 = vdwg.mxu0
      %v1600 = vxor.u32 %v1597, 2147483648
      %v1601 = vmul.f32 %v1600, 1.442695
      %v1602 = vpow.pop %v1601
      %v1603 = vadd.f32 %v1602, 1.0
      %v1604 = vrcp.pop %v1603
      %v1605 = vmul.f32 1.0, %v1604
      %v1606 = vadd.f32 %v1605, 1.0
      %v1609 = vunpack.c.l.s4 1966171168
      %v1610 = vunpack.c.0.s8 %v1609
      %v1611 = vlaneseq
      %v1612 = vshrl.u32 %v1611, 7
      %v1613 = vsub.s32 %v1610, %v1612
      %v1614 = vrot.slane %v1606, %v1613
      %v1615 = vcombine.high %v1614, %v1614
      %v1617 = vunpack.c.l.s4 1966171168
      %v1618 = vunpack.c.0.s8 %v1617
      %v1619 = vlaneseq
      %v1620 = vshrl.u32 %v1619, 7
      %v1621 = vsub.s32 %v1618, %v1620
      %v1622 = vrot.slane %v1614, %v1621
      %v1624 = vunpack.c.l.s4 1966171168
      %v1625 = vunpack.c.0.s8 %v1624
      %v1626 = vlaneseq
      %v1627 = vshrl.u32 %v1626, 7
      %v1628 = vsub.s32 %v1625, %v1627
      %v1629 = vrot.slane %v1615, %v1628
      %v1630 = vlaneseq
      %v1631 = vshrl.u32 %v1630, 7
      %v1632 = vsub.s32 0, %v1631
      %v1633 = vrot.slane %v1622, %v1632
      %v1634 = vlaneseq
      %v1635 = vshrl.u32 %v1634, 7
      %v1636 = vsub.s32 0, %v1635
      %v1637 = vrot.slane %v1629, %v1636
      %v1640 = vmul.f32 %v1505, %v1633
      %v1641 = vmul.f32 %v1506, %v1637
      %v1642 = vpack.c.bf16 %v1640, %v1640
      %v1651 = vunpack.c.l.b16 %v583
      %v1652 = vunpack.c.l.b16 %v584
      %v1653 = vunpack.c.l.b16 %v585
      %v1654 = vunpack.c.l.b16 %v586
      %v1655 = vunpack.c.l.b16 %v587
      %v1656 = vunpack.c.l.b16 %v588
      %v1657 = vunpack.c.l.b16 %v589
      %v1658 = vunpack.c.l.b16 %v590
      %v1659 = vpack.c.b16 %v1652, %v1651
      %v1660 = vpack.c.b16 %v1654, %v1653
      %v1661 = vpack.c.b16 %v1656, %v1655
      %v1662 = vpack.c.b16 %v1658, %v1657
      %v1668 = vsel %vm1527, %v1642, 0
      %1670 = vmatprep.subr.bf16.mxu0 0
      %1671 = vmatpush1.bf16.msra.mxu0 %v1659
      %1672 = vmatprep.subr.bf16.mxu0 0
      %1673 = vmatpush1.bf16.msra.mxu0 %v1660
      %1674 = vmatprep.subr.bf16.mxu0 0
      %1675 = vmatpush1.bf16.msra.mxu0 %v1661
      %1676 = vmatprep.subr.bf16.mxu0 0
      %1677 = vmatpush1.bf16.msra.mxu0 %v1662
      %1678 = vmatprep.subr.bf16.mxu0 0
      %1679 = vmatpush1.bf16.msra.mxu0 0
      %1680 = vmatprep.subr.bf16.mxu0 0
      %1681 = vmatpush1.bf16.msra.mxu0 0
      %1682 = vmatprep.subr.bf16.mxu0 0
      %1683 = vmatpush1.bf16.msra.mxu0 0
      %1684 = vmatprep.subr.bf16.mxu0 0
      %1685 = vmatpush1.bf16.msra.mxu0 0
      %1686 = vmatprep.subr.bf16.mxu0 0
      %1687 = vmatpush1.bf16.msra.mxu0 0
      %1688 = vmatprep.subr.bf16.mxu0 0
      %1689 = vmatpush1.bf16.msra.mxu0 0
      %1690 = vmatprep.subr.bf16.mxu0 0
      %1691 = vmatpush1.bf16.msra.mxu0 0
      %1692 = vmatprep.subr.bf16.mxu0 0
      %1693 = vmatpush1.bf16.msra.mxu0 0
      %1694 = vmatprep.subr.bf16.mxu0 0
      %1695 = vmatpush1.bf16.msra.mxu0 0
      %1696 = vmatprep.subr.bf16.mxu0 0
      %1697 = vmatpush1.bf16.msra.mxu0 0
      %1698 = vmatprep.subr.bf16.mxu0 0
      %1699 = vmatpush1.bf16.msra.mxu0 0
      %1700 = vmatprep.subr.bf16.mxu0 0
      %1701 = vmatpush1.bf16.msra.mxu0 0
      %1702 = vmatprep.mubr.bf16.mxu0 0
      %1703 = vmatmul.mubr.bf16.gmra.mrb[0].mxu0 %v1668
      %v1704 = vpop.f32.mrb[0].mxu0
      %v1705 = vadd.f32 0.0, %v1704
      %v1706 = vpop.f32.mrb[0].mxu0
      %v1707 = vpop.f32.mrb[0].mxu0
      %v1708 = vpop.f32.mrb[0].mxu0
      %1709 = vdwg.mxu0
      %v1710 = vpack.c.bf16 %v1641, %v1641
      %v1712 = vsel %vm1527, %v1710, 0
      %1714 = vmatprep.subr.bf16.mxu0 0
      %1715 = vmatpush1.bf16.msra.mxu0 %v1659
      %1716 = vmatprep.subr.bf16.mxu0 0
      %1717 = vmatpush1.bf16.msra.mxu0 %v1660
      %1718 = vmatprep.subr.bf16.mxu0 0
      %1719 = vmatpush1.bf16.msra.mxu0 %v1661
      %1720 = vmatprep.subr.bf16.mxu0 0
      %1721 = vmatpush1.bf16.msra.mxu0 %v1662
      %1722 = vmatprep.subr.bf16.mxu0 0
      %1723 = vmatpush1.bf16.msra.mxu0 0
      %1724 = vmatprep.subr.bf16.mxu0 0
      %1725 = vmatpush1.bf16.msra.mxu0 0
      %1726 = vmatprep.subr.bf16.mxu0 0
      %1727 = vmatpush1.bf16.msra.mxu0 0
      %1728 = vmatprep.subr.bf16.mxu0 0
      %1729 = vmatpush1.bf16.msra.mxu0 0
      %1730 = vmatprep.subr.bf16.mxu0 0
      %1731 = vmatpush1.bf16.msra.mxu0 0
      %1732 = vmatprep.subr.bf16.mxu0 0
      %1733 = vmatpush1.bf16.msra.mxu0 0
      %1734 = vmatprep.subr.bf16.mxu0 0
      %1735 = vmatpush1.bf16.msra.mxu0 0
      %1736 = vmatprep.subr.bf16.mxu0 0
      %1737 = vmatpush1.bf16.msra.mxu0 0
      %1738 = vmatprep.subr.bf16.mxu0 0
      %1739 = vmatpush1.bf16.msra.mxu0 0
      %1740 = vmatprep.subr.bf16.mxu0 0
      %1741 = vmatpush1.bf16.msra.mxu0 0
      %1742 = vmatprep.subr.bf16.mxu0 0
      %1743 = vmatpush1.bf16.msra.mxu0 0
      %1744 = vmatprep.subr.bf16.mxu0 0
      %1745 = vmatpush1.bf16.msra.mxu0 0
      %1746 = vmatprep.mubr.bf16.mxu0 0
      %1747 = vmatmul.mubr.bf16.gmra.mrb[0].mxu0 %v1712
      %v1748 = vpop.f32.mrb[0].mxu0
      %v1749 = vadd.f32 0.0, %v1748
      %v1750 = vpop.f32.mrb[0].mxu0
      %v1751 = vpop.f32.mrb[0].mxu0
      %v1752 = vpop.f32.mrb[0].mxu0
      %1753 = vdwg.mxu0
      %v1755 = vlaneseq
      %v1756 = vshrl.u32 %v1755, 7
      %v1757 = vsub.s32 0, %v1756
      %v1758 = vrot.slane %v593, %v1757
      %v1760 = vadd.f32 %v1705, %v1758
      %v1761 = vadd.f32 %v1749, %v1758
      %v1762 = vmax.f32 %v1760, 0.0
      %v1763 = vmax.f32 %v1761, 0.0
      %vm1764 = vcmask 1041408
      %v1765 = vsel %vm1764, %v1762, -inf
      %v1766 = vrot.slane %v1765, 4
      %v1767 = vmax.f32 %v1765, %v1766
      %v1768 = vrot.slane %v1767, 2
      %v1769 = vmax.f32 %v1767, %v1768
      %v1770 = vrot.slane %v1769, 1
      %v1771 = vmax.f32 %v1769, %v1770
      %v1772 = vsel %vm1764, %v1763, -inf
      %v1773 = vrot.slane %v1772, 4
      %v1774 = vmax.f32 %v1772, %v1773
      %v1775 = vrot.slane %v1774, 2
      %v1776 = vmax.f32 %v1774, %v1775
      %v1777 = vrot.slane %v1776, 1
      %v1778 = vmax.f32 %v1776, %v1777
      %1779 = vst [vmem:[#allocation4] sm:$0x1] %v1771
      %1780 = vst [vmem:[#allocation4 + $0x2] sm:$0x1] %v1778
      %vm1781 = vcmask 1043458
      %v1782 = vsel %vm1781, %v1762, -inf
      %v1783 = vrot.slane %v1782, 4
      %v1784 = vmax.f32 %v1782, %v1783
      %v1785 = vrot.slane %v1784, 2
      %v1786 = vmax.f32 %v1784, %v1785
      %v1787 = vrot.slane %v1786, 1
      %v1788 = vmax.f32 %v1786, %v1787
      %v1789 = vsel %vm1781, %v1763, -inf
      %v1790 = vrot.slane %v1789, 4
      %v1791 = vmax.f32 %v1789, %v1790
      %v1792 = vrot.slane %v1791, 2
      %v1793 = vmax.f32 %v1791, %v1792
      %v1794 = vrot.slane %v1793, 1
      %v1795 = vmax.f32 %v1793, %v1794
      %1796 = vst [vmem:[#allocation4 + $0x1] sm:$0x1] %v1788
      %1797 = vst [vmem:[#allocation4 + $0x3] sm:$0x1] %v1795
      %v1798 = vld [vmem:[#allocation4] sm:$0x3]
      %v1799 = vld [vmem:[#allocation4 + $0x2] sm:$0x3]
      %v1800 = vsel %vm1764, %v1798, 0.0
      %v1801 = vrot.slane %v1800, 4
      %v1802 = vadd.f32 %v1800, %v1801
      %v1803 = vrot.slane %v1802, 2
      %v1804 = vadd.f32 %v1802, %v1803
      %v1805 = vrot.slane %v1804, 1
      %v1806 = vadd.f32 %v1804, %v1805
      %v1807 = vsel %vm1764, %v1799, 0.0
      %v1808 = vrot.slane %v1807, 4
      %v1809 = vadd.f32 %v1807, %v1808
      %v1810 = vrot.slane %v1809, 2
      %v1811 = vadd.f32 %v1809, %v1810
      %v1812 = vrot.slane %v1811, 1
      %v1813 = vadd.f32 %v1811, %v1812
      %v1814 = vrcp.pop 2.0
      %v1815 = vmul.f32 %v1806, %v1814
      %v1816 = vmul.f32 %v1813, %v1814
      %v1817 = vpack.c.bf16 %v1815, %v1815
      %v1818 = vpack.c.bf16 %v1816, %v1816
      %v1819 = vld [vmem:[%s532] sm:$0xf]
      %v1820 = vld [vmem:[%s532 + $0x4] sm:$0xf]
      %v1821 = vld [vmem:[%s532 + $0x8] sm:$0xf]
      %v1822 = vld [vmem:[%s532 + $0xc] sm:$0xf]
      %v1823 = vld [vmem:[%s532 + $0x10] sm:$0xf]
      %v1824 = vld [vmem:[%s532 + $0x14] sm:$0xf]
      %v1825 = vld [vmem:[%s532 + $0x18] sm:$0xf]
      %v1826 = vld [vmem:[%s532 + $0x1c] sm:$0xf]
      %v1827 = vld [vmem:[%s532 + $0x20] sm:$0xf]
      %v1828 = vld [vmem:[%s532 + $0x24] sm:$0xf]
      %v1829 = vld [vmem:[%s532 + $0x28] sm:$0xf]
      %v1830 = vld [vmem:[%s532 + $0x2c] sm:$0xf]
      %v1831 = vld [vmem:[%s532 + $0x30] sm:$0xf]
      %v1832 = vld [vmem:[%s532 + $0x34] sm:$0xf]
      %v1833 = vld [vmem:[%s532 + $0x38] sm:$0xf]
      %v1834 = vld [vmem:[%s532 + $0x3c] sm:$0xf]
      %v1835 = vld [vmem:[%s535] sm:$0x1]
      %v1837 = vlaneseq
      %v1838 = vshrl.u32 %v1837, 7
      %v1839 = vsub.s32 0, %v1838
      %v1840 = vrot.slane %v1835, %v1839
      %v1844 = vunpack.c.l.b16 %v1817
      %v1845 = vunpack.c.l.b16 %v1818
      %v1846 = vsel %vm642, %v1845, %v1844
      %v1847 = vpack.c.b16 %v1846, %v1846
      %v1865 = vunpack.c.l.b16 %v1819
      %v1866 = vunpack.c.l.b16 %v1820
      %v1867 = vunpack.c.l.b16 %v1821
      %v1868 = vunpack.c.l.b16 %v1822
      %v1869 = vunpack.c.l.b16 %v1823
      %v1870 = vunpack.c.l.b16 %v1824
      %v1871 = vunpack.c.l.b16 %v1825
      %v1872 = vunpack.c.l.b16 %v1826
      %v1873 = vunpack.c.l.b16 %v1827
      %v1874 = vunpack.c.l.b16 %v1828
      %v1875 = vunpack.c.l.b16 %v1829
      %v1876 = vunpack.c.l.b16 %v1830
      %v1877 = vunpack.c.l.b16 %v1831
      %v1878 = vunpack.c.l.b16 %v1832
      %v1879 = vunpack.c.l.b16 %v1833
      %v1880 = vunpack.c.l.b16 %v1834
      %v1881 = vpack.c.b16 %v1866, %v1865
      %v1882 = vpack.c.b16 %v1868, %v1867
      %v1883 = vpack.c.b16 %v1870, %v1869
      %v1884 = vpack.c.b16 %v1872, %v1871
      %v1885 = vpack.c.b16 %v1874, %v1873
      %v1886 = vpack.c.b16 %v1876, %v1875
      %v1887 = vpack.c.b16 %v1878, %v1877
      %v1888 = vpack.c.b16 %v1880, %v1879
      %1897 = vmatprep.subr.bf16.mxu0 0
      %1898 = vmatpush1.bf16.msra.mxu0 %v1881
      %1899 = vmatprep.subr.bf16.mxu0 0
      %1900 = vmatpush1.bf16.msra.mxu0 %v1882
      %1901 = vmatprep.subr.bf16.mxu0 0
      %1902 = vmatpush1.bf16.msra.mxu0 %v1883
      %1903 = vmatprep.subr.bf16.mxu0 0
      %1904 = vmatpush1.bf16.msra.mxu0 %v1884
      %1905 = vmatprep.subr.bf16.mxu0 0
      %1906 = vmatpush1.bf16.msra.mxu0 %v1885
      %1907 = vmatprep.subr.bf16.mxu0 0
      %1908 = vmatpush1.bf16.msra.mxu0 %v1886
      %1909 = vmatprep.subr.bf16.mxu0 0
      %1910 = vmatpush1.bf16.msra.mxu0 %v1887
      %1911 = vmatprep.subr.bf16.mxu0 0
      %1912 = vmatpush1.bf16.msra.mxu0 %v1888
      %1913 = vmatprep.subr.bf16.mxu0 0
      %1914 = vmatpush1.bf16.msra.mxu0 0
      %1915 = vmatprep.subr.bf16.mxu0 0
      %1916 = vmatpush1.bf16.msra.mxu0 0
      %1917 = vmatprep.subr.bf16.mxu0 0
      %1918 = vmatpush1.bf16.msra.mxu0 0
      %1919 = vmatprep.subr.bf16.mxu0 0
      %1920 = vmatpush1.bf16.msra.mxu0 0
      %1921 = vmatprep.subr.bf16.mxu0 0
      %1922 = vmatpush1.bf16.msra.mxu0 0
      %1923 = vmatprep.subr.bf16.mxu0 0
      %1924 = vmatpush1.bf16.msra.mxu0 0
      %1925 = vmatprep.subr.bf16.mxu0 0
      %1926 = vmatpush1.bf16.msra.mxu0 0
      %1927 = vmatprep.subr.bf16.mxu0 0
      %1928 = vmatpush1.bf16.msra.mxu0 0
      %1929 = vmatprep.mubr.bf16.mxu0 0
      %1930 = vmatmul.mubr.bf16.gmra.mrb[0].mxu0 %v1847
      %v1931 = vpop.f32.mrb[0].mxu0
      %v1932 = vadd.f32 %v1840, %v1931
      %v1933 = vpop.f32.mrb[0].mxu0
      %v1934 = vpop.f32.mrb[0].mxu0
      %v1935 = vpop.f32.mrb[0].mxu0
      %1936 = vdwg.mxu0
      %vm1937 = vcmask 123904
      %1938 = vst.msk [vmem:[%s539] sm:$0x3] %vm1937, %v1932
      %p1939 = scmp.lt.s32.totalorder %s25, 1
      %s1940 = scalar_select %p1939, %s25, 1
      %s1941 = smul.addr %s1940, 2
      %s1942 = scalar_lea.vmem %s14, %s1941
      // Predicated region
      $region77: #{mtagn_forward.3} parent=75 // pred_check
        %p1943 = pneg %p362
      $region78: #{mtagn_forward.3} parent=75 // pred_check_branch
        %1945 = sbr.rel (%p1943) target = $region80
      $region79: #{mtagn_forward.3} parent=75 // pred_region
        _
      $region80: #{mtagn_forward.3} parent=75 // pred_fallthru
        _
    $region76: #{mtagn_forward.3} parent=5 // pred_fallthru
      _
    %p1946 = scmp.le.s32.totalorder 2, %s20
    // Predicated region
    $region81: #{mtagn_forward.3} parent=5 // pred_check
      %p1947 = pneg %p1946
    $region82: #{mtagn_forward.3} parent=5 // pred_check_branch
      %1949 = sbr.rel (%p1947) target = $region84
    $region83: #{mtagn_forward.3} parent=5 // pred_region
      %s1950 = ssub.s32 %s20, 2
      // Predicated region
      $region85: #{mtagn_forward.3} parent=83 // pred_check
        %p1951 = pneg %p368
      $region86: #{mtagn_forward.3} parent=83 // pred_check_branch
        %1953 = sbr.rel (%p1951) target = $region88
      $region87: #{mtagn_forward.3} parent=83 // pred_region
        %p1954 = scmp.lt.s32.totalorder %s26, 1
        %s1955 = scalar_select %p1954, %s26, 1
        %s1956 = smul.addr %s1955, 2
        %s1957 = scalar_lea.vmem %s14, %s1956
      $region88: #{mtagn_forward.3} parent=83 // pred_fallthru
        _
    $region84: #{mtagn_forward.3} parent=5 // pred_fallthru
      _
  $region6: #{mtagn_forward.3} parent=0 // loop_footer
    %s24 = sadd.s32 1, %s20
  $region7: #{mtagn_forward.3} parent=0 // loop_footer_branch
    %19 = sbr.rel target = $region3
  $region8: #{mtagn_forward.3} parent=0 // loop_exit
    _

// kernel: mtagn_forward.2
$region0: #{mtagn_forward.2}
  #allocation0 [shape = 'u32[]', space=smem, size = 0x4, offset = 0x4, fixed_abs, tag = 'smem constant byte address 0x4 - core index']
  #allocation1 [shape = 'u32[144,128]{1,0:T(1,128)}', space=vmem, size = 0x12000, scoped, tag = 'internal scratch']
  #allocation2 [shape = 'f32[2,70,16]{2,1,0:T(8,128)}', space=vmem, size = 0x12000, scoped, tag = 'scratch operand']
  #allocation3 [shape = 'f32[2,20,16]{2,1,0:T(8,128)}', space=vmem, size = 0x6000, scoped, tag = 'scratch operand']
  #allocation4 [shape = 'f32[2,20,32]{2,1,0:T(8,128)}', space=vmem, size = 0x6000, scoped, tag = 'scratch operand']
  #allocation5 [shape = 'f32[2,6,32]{2,1,0:T(8,128)}', space=vmem, size = 0x2000, scoped, tag = 'scratch operand']
  #allocation6 [shape = 'f32[2,6,64]{2,1,0:T(8,128)}', space=vmem, size = 0x2000, scoped, tag = 'scratch operand']
  %s0 = inlined_call_operand.vmem [shape: bf16[2,64,8], index: 0, kind: input, shape index: {}]
  %s1 = inlined_call_operand.vmem [shape: bf16[1,8,16], index: 1, kind: input, shape index: {}]
  %s2 = inlined_call_operand.vmem [shape: f32[1,16], index: 2, kind: input, shape index: {}]
  %s3 = inlined_call_operand.vmem [shape: bf16[7,16,16], index: 3, kind: input, shape index: {}]
  %s4 = inlined_call_operand.vmem [shape: f32[1,16], index: 4, kind: input, shape index: {}]
  %s5 = inlined_call_operand.vmem [shape: bf16[5,16,32], index: 5, kind: input, shape index: {}]
  %s6 = inlined_call_operand.vmem [shape: f32[1,32], index: 6, kind: input, shape index: {}]
  %s7 = inlined_call_operand.vmem [shape: bf16[5,32,32], index: 7, kind: input, shape index: {}]
  %s8 = inlined_call_operand.vmem [shape: f32[1,32], index: 8, kind: input, shape index: {}]
  %s9 = inlined_call_operand.vmem [shape: bf16[3,32,64], index: 9, kind: input, shape index: {}]
  %s10 = inlined_call_operand.vmem [shape: f32[1,64], index: 10, kind: input, shape index: {}]
  %s11 = inlined_call_operand.vmem [shape: bf16[3,64,64], index: 11, kind: input, shape index: {}]
  %s12 = inlined_call_operand.vmem [shape: f32[1,64], index: 12, kind: input, shape index: {}]
  %s13 = inlined_call_operand.vmem [shape: f32[2,64,16], index: 13, kind: output, shape index: {0}]
  %s14 = inlined_call_operand.vmem [shape: f32[2,16,32], index: 14, kind: output, shape index: {1}]
  %s15 = inlined_call_operand.vmem [shape: f32[2,4,64], index: 15, kind: output, shape index: {2}]
  %16 = xla_tuple %s13, %s14, %s15
  %s17 = sld [smem:[#allocation0]]
  $region78: #{mtagn_forward.2} parent=0
    _
  %s19 = ssub.s32 1, %s17
  %s20 = scalar_select 0, %s19, %s17
  // Predicated region
  $region2: #{mtagn_forward.2} parent=0 // pred_check
    _
  $region3: #{mtagn_forward.2} parent=0 // pred_check_branch
    %22 = sbr.rel (0) target = $region5
  $region4: #{mtagn_forward.2} parent=0 // pred_region
    _
  $region5: #{mtagn_forward.2} parent=0 // pred_fallthru
    _
  // Predicated region
  $region6: #{mtagn_forward.2} parent=0 // pred_check
    _
  $region7: #{mtagn_forward.2} parent=0 // pred_check_branch
    %24 = sbr.rel (0) target = $region9
  $region8: #{mtagn_forward.2} parent=0 // pred_region
    _
  $region9: #{mtagn_forward.2} parent=0 // pred_fallthru
    _
  // Predicated region
  $region10: #{mtagn_forward.2} parent=0 // pred_check
    _
  $region11: #{mtagn_forward.2} parent=0 // pred_check_branch
    %26 = sbr.rel (0) target = $region13
  $region12: #{mtagn_forward.2} parent=0 // pred_region
    _
  $region13: #{mtagn_forward.2} parent=0 // pred_fallthru
    _
  // Predicated region
  $region14: #{mtagn_forward.2} parent=0 // pred_check
    _
  $region15: #{mtagn_forward.2} parent=0 // pred_check_branch
    %28 = sbr.rel (0) target = $region17
  $region16: #{mtagn_forward.2} parent=0 // pred_region
    _
  $region17: #{mtagn_forward.2} parent=0 // pred_fallthru
    _
  // Predicated region
  $region18: #{mtagn_forward.2} parent=0 // pred_check
    _
  $region19: #{mtagn_forward.2} parent=0 // pred_check_branch
    %30 = sbr.rel (0) target = $region21
  $region20: #{mtagn_forward.2} parent=0 // pred_region
    _
  $region21: #{mtagn_forward.2} parent=0 // pred_fallthru
    _
  // Predicated region
  $region22: #{mtagn_forward.2} parent=0 // pred_check
    _
  $region23: #{mtagn_forward.2} parent=0 // pred_check_branch
    %32 = sbr.rel (0) target = $region25
  $region24: #{mtagn_forward.2} parent=0 // pred_region
    _
  $region25: #{mtagn_forward.2} parent=0 // pred_fallthru
    _
  // Predicated region
  $region26: #{mtagn_forward.2} parent=0 // pred_check
    _
  $region27: #{mtagn_forward.2} parent=0 // pred_check_branch
    %34 = sbr.rel (0) target = $region29
  $region28: #{mtagn_forward.2} parent=0 // pred_region
    _
  $region29: #{mtagn_forward.2} parent=0 // pred_fallthru
    _
  // Predicated region
  $region30: #{mtagn_forward.2} parent=0 // pred_check
    _
  $region31: #{mtagn_forward.2} parent=0 // pred_check_branch
    %36 = sbr.rel (0) target = $region33
  $region32: #{mtagn_forward.2} parent=0 // pred_region
    _
  $region33: #{mtagn_forward.2} parent=0 // pred_fallthru
    _
  // Predicated region
  $region34: #{mtagn_forward.2} parent=0 // pred_check
    _
  $region35: #{mtagn_forward.2} parent=0 // pred_check_branch
    %38 = sbr.rel (0) target = $region37
  $region36: #{mtagn_forward.2} parent=0 // pred_region
    _
  $region37: #{mtagn_forward.2} parent=0 // pred_fallthru
    _
  // Predicated region
  $region38: #{mtagn_forward.2} parent=0 // pred_check
    _
  $region39: #{mtagn_forward.2} parent=0 // pred_check_branch
    %40 = sbr.rel (0) target = $region41
  $region40: #{mtagn_forward.2} parent=0 // pred_region
    _
  $region41: #{mtagn_forward.2} parent=0 // pred_fallthru
    _
  // Predicated region
  $region42: #{mtagn_forward.2} parent=0 // pred_check
    _
  $region43: #{mtagn_forward.2} parent=0 // pred_check_branch
    %42 = sbr.rel (0) target = $region45
  $region44: #{mtagn_forward.2} parent=0 // pred_region
    _
  $region45: #{mtagn_forward.2} parent=0 // pred_fallthru
    _
  // Predicated region
  $region46: #{mtagn_forward.2} parent=0 // pred_check
    _
  $region47: #{mtagn_forward.2} parent=0 // pred_check_branch
    %44 = sbr.rel (0) target = $region49
  $region48: #{mtagn_forward.2} parent=0 // pred_region
    _
  $region49: #{mtagn_forward.2} parent=0 // pred_fallthru
    _
  // Predicated region
  $region50: #{mtagn_forward.2} parent=0 // pred_check
    _
  $region51: #{mtagn_forward.2} parent=0 // pred_check_branch
    %46 = sbr.rel (0) target = $region53
  $region52: #{mtagn_forward.2} parent=0 // pred_region
    _
  $region53: #{mtagn_forward.2} parent=0 // pred_fallthru
    _
  %vm48 = vcmask 130048
  %49 = vst.msk [vmem:[#allocation2] sm:$0xff] %vm48, 0.0
  %50 = vst.msk [vmem:[#allocation2 + $0x8] sm:$0xff] %vm48, 0.0
  %51 = vst.msk [vmem:[#allocation2 + $0x10] sm:$0xff] %vm48, 0.0
  %52 = vst.msk [vmem:[#allocation2 + $0x18] sm:$0xff] %vm48, 0.0
  %53 = vst.msk [vmem:[#allocation2 + $0x20] sm:$0xff] %vm48, 0.0
  %54 = vst.msk [vmem:[#allocation2 + $0x28] sm:$0xff] %vm48, 0.0
  %55 = vst.msk [vmem:[#allocation2 + $0x30] sm:$0xff] %vm48, 0.0
  %56 = vst.msk [vmem:[#allocation2 + $0x38] sm:$0xff] %vm48, 0.0
  %vm57 = vcmask 128000
  %58 = vst.msk [vmem:[#allocation2 + $0x40] sm:$0x3f] %vm57, 0.0
  %59 = vst.msk [vmem:[#allocation2 + $0x48] sm:$0xff] %vm48, 0.0
  %60 = vst.msk [vmem:[#allocation2 + $0x50] sm:$0xff] %vm48, 0.0
  %61 = vst.msk [vmem:[#allocation2 + $0x58] sm:$0xff] %vm48, 0.0
  %62 = vst.msk [vmem:[#allocation2 + $0x60] sm:$0xff] %vm48, 0.0
  %63 = vst.msk [vmem:[#allocation2 + $0x68] sm:$0xff] %vm48, 0.0
  %64 = vst.msk [vmem:[#allocation2 + $0x70] sm:$0xff] %vm48, 0.0
  %65 = vst.msk [vmem:[#allocation2 + $0x78] sm:$0xff] %vm48, 0.0
  %66 = vst.msk [vmem:[#allocation2 + $0x80] sm:$0xff] %vm48, 0.0
  %67 = vst.msk [vmem:[#allocation2 + $0x88] sm:$0x3f] %vm57, 0.0
  %68 = vst.msk [vmem:[#allocation3] sm:$0xff] %vm48, 0.0
  %69 = vst.msk [vmem:[#allocation3 + $0x8] sm:$0xff] %vm48, 0.0
  %vm70 = vcmask 125952
  %71 = vst.msk [vmem:[#allocation3 + $0x10] sm:$0xf] %vm70, 0.0
  %72 = vst.msk [vmem:[#allocation3 + $0x18] sm:$0xff] %vm48, 0.0
  %73 = vst.msk [vmem:[#allocation3 + $0x20] sm:$0xff] %vm48, 0.0
  %74 = vst.msk [vmem:[#allocation3 + $0x28] sm:$0xf] %vm70, 0.0
  %vm75 = vcmask 261120
  %76 = vst.msk [vmem:[#allocation4] sm:$0xff] %vm75, 0.0
  %77 = vst.msk [vmem:[#allocation4 + $0x8] sm:$0xff] %vm75, 0.0
  %vm78 = vcmask 257024
  %79 = vst.msk [vmem:[#allocation4 + $0x10] sm:$0xf] %vm78, 0.0
  %80 = vst.msk [vmem:[#allocation4 + $0x18] sm:$0xff] %vm75, 0.0
  %81 = vst.msk [vmem:[#allocation4 + $0x20] sm:$0xff] %vm75, 0.0
  %82 = vst.msk [vmem:[#allocation4 + $0x28] sm:$0xf] %vm78, 0.0
  %vm83 = vcmask 259072
  %84 = vst.msk [vmem:[#allocation5] sm:$0x3f] %vm83, 0.0
  %85 = vst.msk [vmem:[#allocation5 + $0x8] sm:$0x3f] %vm83, 0.0
  %vm86 = vcmask 521216
  %87 = vst.msk [vmem:[#allocation6] sm:$0x3f] %vm86, 0.0
  %88 = vst.msk [vmem:[#allocation6 + $0x8] sm:$0x3f] %vm86, 0.0
  %v89 = vld [vmem:[%s1] sm:$0xf]
  %v90 = vld [vmem:[%s2] sm:$0x1]
  %v91 = vld [vmem:[%s0] sm:$0xf]
  %v92 = vld [vmem:[%s0 + $0x4] sm:$0xf]
  %v93 = vld [vmem:[%s0 + $0x8] sm:$0xf]
  %v94 = vld [vmem:[%s0 + $0xc] sm:$0xf]
  %v95 = vld [vmem:[%s0 + $0x10] sm:$0xf]
  %v96 = vld [vmem:[%s0 + $0x14] sm:$0xf]
  %v97 = vld [vmem:[%s0 + $0x18] sm:$0xf]
  %v98 = vld [vmem:[%s0 + $0x1c] sm:$0xf]
  %v99 = vld [vmem:[%s0 + $0x20] sm:$0xf]
  %v100 = vld [vmem:[%s0 + $0x24] sm:$0xf]
  %v101 = vld [vmem:[%s0 + $0x28] sm:$0xf]
  %v102 = vld [vmem:[%s0 + $0x2c] sm:$0xf]
  %v103 = vld [vmem:[%s0 + $0x30] sm:$0xf]
  %v104 = vld [vmem:[%s0 + $0x34] sm:$0xf]
  %v105 = vld [vmem:[%s0 + $0x38] sm:$0xf]
  %v106 = vld [vmem:[%s0 + $0x3c] sm:$0xf]
  %v123 = vunpack.c.l.b16 %v91
  %v124 = vunpack.c.l.b16 %v92
  %v125 = vunpack.c.l.b16 %v93
  %v126 = vunpack.c.l.b16 %v94
  %v127 = vunpack.c.l.b16 %v95
  %v128 = vunpack.c.l.b16 %v96
  %v129 = vunpack.c.l.b16 %v97
  %v130 = vunpack.c.l.b16 %v98
  %v131 = vunpack.c.l.b16 %v99
  %v132 = vunpack.c.l.b16 %v100
  %v133 = vunpack.c.l.b16 %v101
  %v134 = vunpack.c.l.b16 %v102
  %v135 = vunpack.c.l.b16 %v103
  %v136 = vunpack.c.l.b16 %v104
  %v137 = vunpack.c.l.b16 %v105
  %v138 = vunpack.c.l.b16 %v106
  %v139 = vpack.c.b16 %v124, %v123
  %v140 = vpack.c.b16 %v126, %v125
  %v141 = vpack.c.b16 %v128, %v127
  %v142 = vpack.c.b16 %v130, %v129
  %v143 = vpack.c.b16 %v132, %v131
  %v144 = vpack.c.b16 %v134, %v133
  %v145 = vpack.c.b16 %v136, %v135
  %v146 = vpack.c.b16 %v138, %v137
  %vm147 = vcmask 64512
  %v149 = vsel %vm147, %v139, 0
  %v152 = vsel %vm147, %v140, 0
  %v155 = vsel %vm147, %v141, 0
  %v158 = vsel %vm147, %v142, 0
  %v161 = vsel %vm147, %v143, 0
  %v164 = vsel %vm147, %v144, 0
  %v167 = vsel %vm147, %v145, 0
  %v170 = vsel %vm147, %v146, 0
  %vm172 = vcmask 1043456
  %v174 = vsel %vm172, %v89, 0
  %176 = vmatprep.subr.bf16.mxu0 0
  %177 = vmatpush1.bf16.msra.mxu0 %v174
  %178 = vmatprep.subr.bf16.mxu0 0
  %179 = vmatpush1.bf16.msra.mxu0 0
  %180 = vmatprep.subr.bf16.mxu0 0
  %181 = vmatpush1.bf16.msra.mxu0 0
  %182 = vmatprep.subr.bf16.mxu0 0
  %183 = vmatpush1.bf16.msra.mxu0 0
  %184 = vmatprep.subr.bf16.mxu0 0
  %185 = vmatpush1.bf16.msra.mxu0 0
  %186 = vmatprep.subr.bf16.mxu0 0
  %187 = vmatpush1.bf16.msra.mxu0 0
  %188 = vmatprep.subr.bf16.mxu0 0
  %189 = vmatpush1.bf16.msra.mxu0 0
  %190 = vmatprep.subr.bf16.mxu0 0
  %191 = vmatpush1.bf16.msra.mxu0 0
  %192 = vmatprep.subr.bf16.mxu0 0
  %193 = vmatpush1.bf16.msra.mxu0 0
  %194 = vmatprep.subr.bf16.mxu0 0
  %195 = vmatpush1.bf16.msra.mxu0 0
  %196 = vmatprep.subr.bf16.mxu0 0
  %197 = vmatpush1.bf16.msra.mxu0 0
  %198 = vmatprep.subr.bf16.mxu0 0
  %199 = vmatpush1.bf16.msra.mxu0 0
  %200 = vmatprep.subr.bf16.mxu0 0
  %201 = vmatpush1.bf16.msra.mxu0 0
  %202 = vmatprep.subr.bf16.mxu0 0
  %203 = vmatpush1.bf16.msra.mxu0 0
  %204 = vmatprep.subr.bf16.mxu0 0
  %205 = vmatpush1.bf16.msra.mxu0 0
  %206 = vmatprep.subr.bf16.mxu0 0
  %207 = vmatpush1.bf16.msra.mxu0 0
  %208 = vmatprep.mubr.bf16.mxu0 0
  %209 = vmatmul.mubr.bf16.gmra.mrb[0].mxu0 %v149
  %v210 = vpop.f32.mrb[0].mxu0
  %v211 = vadd.f32 0.0, %v210
  %v212 = vpop.f32.mrb[0].mxu0
  %v213 = vpop.f32.mrb[0].mxu0
  %v214 = vadd.f32 0.0, %v213
  %v215 = vpop.f32.mrb[0].mxu0
  %216 = vmatprep.mubr.bf16.mxu0 0
  %217 = vmatmul.mubr.bf16.gmra.mrb[0].mxu0 %v152
  %v218 = vpop.f32.mrb[0].mxu0
  %v219 = vadd.f32 0.0, %v218
  %v220 = vpop.f32.mrb[0].mxu0
  %v221 = vpop.f32.mrb[0].mxu0
  %v222 = vadd.f32 0.0, %v221
  %v223 = vpop.f32.mrb[0].mxu0
  %224 = vmatprep.mubr.bf16.mxu0 0
  %225 = vmatmul.mubr.bf16.gmra.mrb[0].mxu0 %v155
  %v226 = vpop.f32.mrb[0].mxu0
  %v227 = vadd.f32 0.0, %v226
  %v228 = vpop.f32.mrb[0].mxu0
  %v229 = vpop.f32.mrb[0].mxu0
  %v230 = vadd.f32 0.0, %v229
  %v231 = vpop.f32.mrb[0].mxu0
  %232 = vmatprep.mubr.bf16.mxu0 0
  %233 = vmatmul.mubr.bf16.gmra.mrb[0].mxu0 %v158
  %v234 = vpop.f32.mrb[0].mxu0
  %v235 = vadd.f32 0.0, %v234
  %v236 = vpop.f32.mrb[0].mxu0
  %v237 = vpop.f32.mrb[0].mxu0
  %v238 = vadd.f32 0.0, %v237
  %v239 = vpop.f32.mrb[0].mxu0
  %240 = vmatprep.mubr.bf16.mxu0 0
  %241 = vmatmul.mubr.bf16.gmra.mrb[0].mxu0 %v161
  %v242 = vpop.f32.mrb[0].mxu0
  %v243 = vadd.f32 0.0, %v242
  %v244 = vpop.f32.mrb[0].mxu0
  %v245 = vpop.f32.mrb[0].mxu0
  %v246 = vadd.f32 0.0, %v245
  %v247 = vpop.f32.mrb[0].mxu0
  %248 = vmatprep.mubr.bf16.mxu0 0
  %249 = vmatmul.mubr.bf16.gmra.mrb[0].mxu0 %v164
  %v250 = vpop.f32.mrb[0].mxu0
  %v251 = vadd.f32 0.0, %v250
  %v252 = vpop.f32.mrb[0].mxu0
  %v253 = vpop.f32.mrb[0].mxu0
  %v254 = vadd.f32 0.0, %v253
  %v255 = vpop.f32.mrb[0].mxu0
  %256 = vmatprep.mubr.bf16.mxu0 0
  %257 = vmatmul.mubr.bf16.gmra.mrb[0].mxu0 %v167
  %v258 = vpop.f32.mrb[0].mxu0
  %v259 = vadd.f32 0.0, %v258
  %v260 = vpop.f32.mrb[0].mxu0
  %v261 = vpop.f32.mrb[0].mxu0
  %v262 = vadd.f32 0.0, %v261
  %v263 = vpop.f32.mrb[0].mxu0
  %264 = vmatprep.mubr.bf16.mxu0 0
  %265 = vmatmul.mubr.bf16.gmra.mrb[0].mxu0 %v170
  %v266 = vpop.f32.mrb[0].mxu0
  %v267 = vadd.f32 0.0, %v266
  %v268 = vpop.f32.mrb[0].mxu0
  %v269 = vpop.f32.mrb[0].mxu0
  %v270 = vadd.f32 0.0, %v269
  %v271 = vpop.f32.mrb[0].mxu0
  %272 = vdwg.mxu0
  %v274 = vlaneseq
  %v275 = vshrl.u32 %v274, 7
  %v276 = vsub.s32 0, %v275
  %v277 = vrot.slane %v90, %v276
  %v279 = vadd.f32 %v211, %v277
  %v280 = vadd.f32 %v214, %v277
  %v281 = vadd.f32 %v219, %v277
  %v282 = vadd.f32 %v222, %v277
  %v283 = vadd.f32 %v227, %v277
  %v284 = vadd.f32 %v230, %v277
  %v285 = vadd.f32 %v235, %v277
  %v286 = vadd.f32 %v238, %v277
  %v287 = vadd.f32 %v243, %v277
  %v288 = vadd.f32 %v246, %v277
  %v289 = vadd.f32 %v251, %v277
  %v290 = vadd.f32 %v254, %v277
  %v291 = vadd.f32 %v259, %v277
  %v292 = vadd.f32 %v262, %v277
  %v293 = vadd.f32 %v267, %v277
  %v294 = vadd.f32 %v270, %v277
  %v295 = vmax.f32 %v279, 0.0
  %v296 = vmax.f32 %v280, 0.0
  %v297 = vmax.f32 %v281, 0.0
  %v298 = vmax.f32 %v282, 0.0
  %v299 = vmax.f32 %v283, 0.0
  %v300 = vmax.f32 %v284, 0.0
  %v301 = vmax.f32 %v285, 0.0
  %v302 = vmax.f32 %v286, 0.0
  %v303 = vmax.f32 %v287, 0.0
  %v304 = vmax.f32 %v288, 0.0
  %v305 = vmax.f32 %v289, 0.0
  %v306 = vmax.f32 %v290, 0.0
  %v307 = vmax.f32 %v291, 0.0
  %v308 = vmax.f32 %v292, 0.0
  %v309 = vmax.f32 %v293, 0.0
  %v310 = vmax.f32 %v294, 0.0
  %311 = vst.msk [vmem:[#allocation2 + $0x3] sm:$0xff] %vm48, %v295
  %312 = vst.msk [vmem:[#allocation2 + $0xb] sm:$0xff] %vm48, %v296
  %313 = vst.msk [vmem:[#allocation2 + $0x13] sm:$0xff] %vm48, %v297
  %314 = vst.msk [vmem:[#allocation2 + $0x1b] sm:$0xff] %vm48, %v298
  %315 = vst.msk [vmem:[#allocation2 + $0x23] sm:$0xff] %vm48, %v299
  %316 = vst.msk [vmem:[#allocation2 + $0x2b] sm:$0xff] %vm48, %v300
  %317 = vst.msk [vmem:[#allocation2 + $0x33] sm:$0xff] %vm48, %v301
  %318 = vst.msk [vmem:[#allocation2 + $0x3b] sm:$0xff] %vm48, %v302
  %319 = vst.msk [vmem:[#allocation2 + $0x4b] sm:$0xff] %vm48, %v303
  %320 = vst.msk [vmem:[#allocation2 + $0x53] sm:$0xff] %vm48, %v304
  %321 = vst.msk [vmem:[#allocation2 + $0x5b] sm:$0xff] %vm48, %v305
  %322 = vst.msk [vmem:[#allocation2 + $0x63] sm:$0xff] %vm48, %v306
  %323 = vst.msk [vmem:[#allocation2 + $0x6b] sm:$0xff] %vm48, %v307
  %324 = vst.msk [vmem:[#allocation2 + $0x73] sm:$0xff] %vm48, %v308
  %325 = vst.msk [vmem:[#allocation2 + $0x7b] sm:$0xff] %vm48, %v309
  %326 = vst.msk [vmem:[#allocation2 + $0x83] sm:$0xff] %vm48, %v310
  %v327 = vld [vmem:[%s3] sm:$0xf]
  %v328 = vld [vmem:[%s3 + $0x4] sm:$0xf]
  %v329 = vld [vmem:[%s3 + $0x8] sm:$0xf]
  %v330 = vld [vmem:[%s3 + $0xc] sm:$0xf]
  %v331 = vld [vmem:[%s3 + $0x10] sm:$0xf]
  %v332 = vld [vmem:[%s3 + $0x14] sm:$0xf]
  %v333 = vld [vmem:[%s3 + $0x18] sm:$0xf]
  %v334 = vld [vmem:[%s3 + $0x1c] sm:$0xf]
  %v335 = vld [vmem:[%s3 + $0x20] sm:$0xf]
  %v336 = vld [vmem:[%s3 + $0x24] sm:$0xf]
  %v337 = vld [vmem:[%s3 + $0x28] sm:$0xf]
  %v338 = vld [vmem:[%s3 + $0x2c] sm:$0xf]
  %v339 = vld [vmem:[%s3 + $0x30] sm:$0xf]
  %v340 = vld [vmem:[%s3 + $0x34] sm:$0xf]
  %v341 = vld [vmem:[%s4] sm:$0x1]
  %v342 = vld [vmem:[#allocation2] sm:$0xff]
  %v343 = vld [vmem:[#allocation2 + $0x8] sm:$0xff]
  %v344 = vld [vmem:[#allocation2 + $0x10] sm:$0xff]
  %v345 = vld [vmem:[#allocation2 + $0x18] sm:$0xff]
  %v346 = vld [vmem:[#allocation2 + $0x20] sm:$0xff]
  %v347 = vld [vmem:[#allocation2 + $0x28] sm:$0xff]
  %v348 = vld [vmem:[#allocation2 + $0x30] sm:$0xff]
  %v349 = vld [vmem:[#allocation2 + $0x38] sm:$0xff]
  %v350 = vld [vmem:[#allocation2 + $0x48] sm:$0xff]
  %v351 = vld [vmem:[#allocation2 + $0x50] sm:$0xff]
  %v352 = vld [vmem:[#allocation2 + $0x58] sm:$0xff]
  %v353 = vld [vmem:[#allocation2 + $0x60] sm:$0xff]
  %v354 = vld [vmem:[#allocation2 + $0x68] sm:$0xff]
  %v355 = vld [vmem:[#allocation2 + $0x70] sm:$0xff]
  %v356 = vld [vmem:[#allocation2 + $0x78] sm:$0xff]
  %v357 = vld [vmem:[#allocation2 + $0x80] sm:$0xff]
  %v358 = vpack.c.bf16 %v343, %v342
  %v359 = vpack.c.bf16 %v345, %v344
  %v360 = vpack.c.bf16 %v347, %v346
  %v361 = vpack.c.bf16 %v349, %v348
  %v362 = vpack.c.bf16 %v351, %v350
  %v363 = vpack.c.bf16 %v353, %v352
  %v364 = vpack.c.bf16 %v355, %v354
  %v365 = vpack.c.bf16 %v357, %v356
  %v366 = vld [vmem:[#allocation2 + $0x1] sm:$0xff]
  %v367 = vld [vmem:[#allocation2 + $0x9] sm:$0xff]
  %v368 = vld [vmem:[#allocation2 + $0x11] sm:$0xff]
  %v369 = vld [vmem:[#allocation2 + $0x19] sm:$0xff]
  %v370 = vld [vmem:[#allocation2 + $0x21] sm:$0xff]
  %v371 = vld [vmem:[#allocation2 + $0x29] sm:$0xff]
  %v372 = vld [vmem:[#allocation2 + $0x31] sm:$0xff]
  %v373 = vld [vmem:[#allocation2 + $0x39] sm:$0xff]
  %v374 = vld [vmem:[#allocation2 + $0x49] sm:$0xff]
  %v375 = vld [vmem:[#allocation2 + $0x51] sm:$0xff]
  %v376 = vld [vmem:[#allocation2 + $0x59] sm:$0xff]
  %v377 = vld [vmem:[#allocation2 + $0x61] sm:$0xff]
  %v378 = vld [vmem:[#allocation2 + $0x69] sm:$0xff]
  %v379 = vld [vmem:[#allocation2 + $0x71] sm:$0xff]
  %v380 = vld [vmem:[#allocation2 + $0x79] sm:$0xff]
  %v381 = vld [vmem:[#allocation2 + $0x81] sm:$0xff]
  %v382 = vpack.c.bf16 %v367, %v366
  %v383 = vpack.c.bf16 %v369, %v368
  %v384 = vpack.c.bf16 %v371, %v370
  %v385 = vpack.c.bf16 %v373, %v372
  %v386 = vpack.c.bf16 %v375, %v374
  %v387 = vpack.c.bf16 %v377, %v376
  %v388 = vpack.c.bf16 %v379, %v378
  %v389 = vpack.c.bf16 %v381, %v380
  %v392 = vunpack.c.l.b16 %v329
  %v393 = vunpack.c.l.b16 %v330
  %v394 = vpack.c.b16 %v393, %v392
  %v397 = vsel %vm48, %v382, 0
  %v400 = vsel %vm48, %v383, 0
  %v403 = vsel %vm48, %v384, 0
  %v406 = vsel %vm48, %v385, 0
  %v409 = vsel %vm48, %v386, 0
  %v412 = vsel %vm48, %v387, 0
  %v415 = vsel %vm48, %v388, 0
  %v418 = vsel %vm48, %v389, 0
  %420 = vmatprep.subr.bf16.mxu0 0
  %421 = vmatpush1.bf16.msra.mxu0 %v394
  %422 = vmatprep.subr.bf16.mxu0 0
  %423 = vmatpush1.bf16.msra.mxu0 0
  %424 = vmatprep.subr.bf16.mxu0 0
  %425 = vmatpush1.bf16.msra.mxu0 0
  %426 = vmatprep.subr.bf16.mxu0 0
  %427 = vmatpush1.bf16.msra.mxu0 0
  %428 = vmatprep.subr.bf16.mxu0 0
  %429 = vmatpush1.bf16.msra.mxu0 0
  %430 = vmatprep.subr.bf16.mxu0 0
  %431 = vmatpush1.bf16.msra.mxu0 0
  %432 = vmatprep.subr.bf16.mxu0 0
  %433 = vmatpush1.bf16.msra.mxu0 0
  %434 = vmatprep.subr.bf16.mxu0 0
  %435 = vmatpush1.bf16.msra.mxu0 0
  %436 = vmatprep.subr.bf16.mxu0 0
  %437 = vmatpush1.bf16.msra.mxu0 0
  %438 = vmatprep.subr.bf16.mxu0 0
  %439 = vmatpush1.bf16.msra.mxu0 0
  %440 = vmatprep.subr.bf16.mxu0 0
  %441 = vmatpush1.bf16.msra.mxu0 0
  %442 = vmatprep.subr.bf16.mxu0 0
  %443 = vmatpush1.bf16.msra.mxu0 0
  %444 = vmatprep.subr.bf16.mxu0 0
  %445 = vmatpush1.bf16.msra.mxu0 0
  %446 = vmatprep.subr.bf16.mxu0 0
  %447 = vmatpush1.bf16.msra.mxu0 0
  %448 = vmatprep.subr.bf16.mxu0 0
  %449 = vmatpush1.bf16.msra.mxu0 0
  %450 = vmatprep.subr.bf16.mxu0 0
  %451 = vmatpush1.bf16.msra.mxu0 0
  %452 = vmatprep.mubr.bf16.mxu0 0
  %453 = vmatmul.mubr.bf16.gmra.mrb[0].mxu0 %v397
  %v454 = vpop.f32.mrb[0].mxu0
  %v455 = vadd.f32 0.0, %v454
  %v456 = vpop.f32.mrb[0].mxu0
  %v457 = vpop.f32.mrb[0].mxu0
  %v458 = vadd.f32 0.0, %v457
  %v459 = vpop.f32.mrb[0].mxu0
  %460 = vmatprep.mubr.bf16.mxu0 0
  %461 = vmatmul.mubr.bf16.gmra.mrb[0].mxu0 %v400
  %v462 = vpop.f32.mrb[0].mxu0
  %v463 = vadd.f32 0.0, %v462
  %v464 = vpop.f32.mrb[0].mxu0
  %v465 = vpop.f32.mrb[0].mxu0
  %v466 = vadd.f32 0.0, %v465
  %v467 = vpop.f32.mrb[0].mxu0
  %468 = vmatprep.mubr.bf16.mxu0 0
  %469 = vmatmul.mubr.bf16.gmra.mrb[0].mxu0 %v403
  %v470 = vpop.f32.mrb[0].mxu0
  %v471 = vadd.f32 0.0, %v470
  %v472 = vpop.f32.mrb[0].mxu0
  %v473 = vpop.f32.mrb[0].mxu0
  %v474 = vadd.f32 0.0, %v473
  %v475 = vpop.f32.mrb[0].mxu0
  %476 = vmatprep.mubr.bf16.mxu0 0
  %477 = vmatmul.mubr.bf16.gmra.mrb[0].mxu0 %v406
  %v478 = vpop.f32.mrb[0].mxu0
  %v479 = vadd.f32 0.0, %v478
  %v480 = vpop.f32.mrb[0].mxu0
  %v481 = vpop.f32.mrb[0].mxu0
  %v482 = vadd.f32 0.0, %v481
  %v483 = vpop.f32.mrb[0].mxu0
  %484 = vmatprep.mubr.bf16.mxu0 0
  %485 = vmatmul.mubr.bf16.gmra.mrb[0].mxu0 %v409
  %v486 = vpop.f32.mrb[0].mxu0
  %v487 = vadd.f32 0.0, %v486
  %v488 = vpop.f32.mrb[0].mxu0
  %v489 = vpop.f32.mrb[0].mxu0
  %v490 = vadd.f32 0.0, %v489
  %v491 = vpop.f32.mrb[0].mxu0
  %492 = vmatprep.mubr.bf16.mxu0 0
  %493 = vmatmul.mubr.bf16.gmra.mrb[0].mxu0 %v412
  %v494 = vpop.f32.mrb[0].mxu0
  %v495 = vadd.f32 0.0, %v494
  %v496 = vpop.f32.mrb[0].mxu0
  %v497 = vpop.f32.mrb[0].mxu0
  %v498 = vadd.f32 0.0, %v497
  %v499 = vpop.f32.mrb[0].mxu0
  %500 = vmatprep.mubr.bf16.mxu0 0
  %501 = vmatmul.mubr.bf16.gmra.mrb[0].mxu0 %v415
  %v502 = vpop.f32.mrb[0].mxu0
  %v503 = vadd.f32 0.0, %v502
  %v504 = vpop.f32.mrb[0].mxu0
  %v505 = vpop.f32.mrb[0].mxu0
  %v506 = vadd.f32 0.0, %v505
  %v507 = vpop.f32.mrb[0].mxu0
  %508 = vmatprep.mubr.bf16.mxu0 0
  %509 = vmatmul.mubr.bf16.gmra.mrb[0].mxu0 %v418
  %v510 = vpop.f32.mrb[0].mxu0
  %v511 = vadd.f32 0.0, %v510
  %v512 = vpop.f32.mrb[0].mxu0
  %v513 = vpop.f32.mrb[0].mxu0
  %v514 = vadd.f32 0.0, %v513
  %v515 = vpop.f32.mrb[0].mxu0
  %516 = vdwg.mxu0
  %v519 = vunpack.c.l.b16 %v327
  %v520 = vunpack.c.l.b16 %v328
  %v521 = vpack.c.b16 %v520, %v519
  %v524 = vsel %vm48, %v358, 0
  %v527 = vsel %vm48, %v359, 0
  %v530 = vsel %vm48, %v360, 0
  %v533 = vsel %vm48, %v361, 0
  %v536 = vsel %vm48, %v362, 0
  %v539 = vsel %vm48, %v363, 0
  %v542 = vsel %vm48, %v364, 0
  %v545 = vsel %vm48, %v365, 0
  %547 = vmatprep.subr.bf16.mxu0 0
  %548 = vmatpush1.bf16.msra.mxu0 %v521
  %549 = vmatprep.subr.bf16.mxu0 0
  %550 = vmatpush1.bf16.msra.mxu0 0
  %551 = vmatprep.subr.bf16.mxu0 0
  %552 = vmatpush1.bf16.msra.mxu0 0
  %553 = vmatprep.subr.bf16.mxu0 0
  %554 = vmatpush1.bf16.msra.mxu0 0
  %555 = vmatprep.subr.bf16.mxu0 0
  %556 = vmatpush1.bf16.msra.mxu0 0
  %557 = vmatprep.subr.bf16.mxu0 0
  %558 = vmatpush1.bf16.msra.mxu0 0
  %559 = vmatprep.subr.bf16.mxu0 0
  %560 = vmatpush1.bf16.msra.mxu0 0
  %561 = vmatprep.subr.bf16.mxu0 0
  %562 = vmatpush1.bf16.msra.mxu0 0
  %563 = vmatprep.subr.bf16.mxu0 0
  %564 = vmatpush1.bf16.msra.mxu0 0
  %565 = vmatprep.subr.bf16.mxu0 0
  %566 = vmatpush1.bf16.msra.mxu0 0
  %567 = vmatprep.subr.bf16.mxu0 0
  %568 = vmatpush1.bf16.msra.mxu0 0
  %569 = vmatprep.subr.bf16.mxu0 0
  %570 = vmatpush1.bf16.msra.mxu0 0
  %571 = vmatprep.subr.bf16.mxu0 0
  %572 = vmatpush1.bf16.msra.mxu0 0
  %573 = vmatprep.subr.bf16.mxu0 0
  %574 = vmatpush1.bf16.msra.mxu0 0
  %575 = vmatprep.subr.bf16.mxu0 0
  %576 = vmatpush1.bf16.msra.mxu0 0
  %577 = vmatprep.subr.bf16.mxu0 0
  %578 = vmatpush1.bf16.msra.mxu0 0
  %579 = vmatprep.mubr.bf16.mxu0 0
  %580 = vmatmul.mubr.bf16.gmra.mrb[0].mxu0 %v524
  %v581 = vpop.f32.mrb[0].mxu0
  %v582 = vadd.f32 %v455, %v581
  %v583 = vpop.f32.mrb[0].mxu0
  %v584 = vpop.f32.mrb[0].mxu0
  %v585 = vadd.f32 %v458, %v584
  %v586 = vpop.f32.mrb[0].mxu0
  %587 = vmatprep.mubr.bf16.mxu0 0
  %588 = vmatmul.mubr.bf16.gmra.mrb[0].mxu0 %v527
  %v589 = vpop.f32.mrb[0].mxu0
  %v590 = vadd.f32 %v463, %v589
  %v591 = vpop.f32.mrb[0].mxu0
  %v592 = vpop.f32.mrb[0].mxu0
  %v593 = vadd.f32 %v466, %v592
  %v594 = vpop.f32.mrb[0].mxu0
  %595 = vmatprep.mubr.bf16.mxu0 0
  %596 = vmatmul.mubr.bf16.gmra.mrb[0].mxu0 %v530
  %v597 = vpop.f32.mrb[0].mxu0
  %v598 = vadd.f32 %v471, %v597
  %v599 = vpop.f32.mrb[0].mxu0
  %v600 = vpop.f32.mrb[0].mxu0
  %v601 = vadd.f32 %v474, %v600
  %v602 = vpop.f32.mrb[0].mxu0
  %603 = vmatprep.mubr.bf16.mxu0 0
  %604 = vmatmul.mubr.bf16.gmra.mrb[0].mxu0 %v533
  %v605 = vpop.f32.mrb[0].mxu0
  %v606 = vadd.f32 %v479, %v605
  %v607 = vpop.f32.mrb[0].mxu0
  %v608 = vpop.f32.mrb[0].mxu0
  %v609 = vadd.f32 %v482, %v608
  %v610 = vpop.f32.mrb[0].mxu0
  %611 = vmatprep.mubr.bf16.mxu0 0
  %612 = vmatmul.mubr.bf16.gmra.mrb[0].mxu0 %v536
  %v613 = vpop.f32.mrb[0].mxu0
  %v614 = vadd.f32 %v487, %v613
  %v615 = vpop.f32.mrb[0].mxu0
  %v616 = vpop.f32.mrb[0].mxu0
  %v617 = vadd.f32 %v490, %v616
  %v618 = vpop.f32.mrb[0].mxu0
  %619 = vmatprep.mubr.bf16.mxu0 0
  %620 = vmatmul.mubr.bf16.gmra.mrb[0].mxu0 %v539
  %v621 = vpop.f32.mrb[0].mxu0
  %v622 = vadd.f32 %v495, %v621
  %v623 = vpop.f32.mrb[0].mxu0
  %v624 = vpop.f32.mrb[0].mxu0
  %v625 = vadd.f32 %v498, %v624
  %v626 = vpop.f32.mrb[0].mxu0
  %627 = vmatprep.mubr.bf16.mxu0 0
  %628 = vmatmul.mubr.bf16.gmra.mrb[0].mxu0 %v542
  %v629 = vpop.f32.mrb[0].mxu0
  %v630 = vadd.f32 %v503, %v629
  %v631 = vpop.f32.mrb[0].mxu0
  %v632 = vpop.f32.mrb[0].mxu0
  %v633 = vadd.f32 %v506, %v632
  %v634 = vpop.f32.mrb[0].mxu0
  %635 = vmatprep.mubr.bf16.mxu0 0
  %636 = vmatmul.mubr.bf16.gmra.mrb[0].mxu0 %v545
  %v637 = vpop.f32.mrb[0].mxu0
  %v638 = vadd.f32 %v511, %v637
  %v639 = vpop.f32.mrb[0].mxu0
  %v640 = vpop.f32.mrb[0].mxu0
  %v641 = vadd.f32 %v514, %v640
  %v642 = vpop.f32.mrb[0].mxu0
  %643 = vdwg.mxu0
  %v644 = vld [vmem:[#allocation2 + $0x2] sm:$0xff]
  %v645 = vld [vmem:[#allocation2 + $0xa] sm:$0xff]
  %v646 = vld [vmem:[#allocation2 + $0x12] sm:$0xff]
  %v647 = vld [vmem:[#allocation2 + $0x1a] sm:$0xff]
  %v648 = vld [vmem:[#allocation2 + $0x22] sm:$0xff]
  %v649 = vld [vmem:[#allocation2 + $0x2a] sm:$0xff]
  %v650 = vld [vmem:[#allocation2 + $0x32] sm:$0xff]
  %v651 = vld [vmem:[#allocation2 + $0x3a] sm:$0xff]
  %v652 = vld [vmem:[#allocation2 + $0x4a] sm:$0xff]
  %v653 = vld [vmem:[#allocation2 + $0x52] sm:$0xff]
  %v654 = vld [vmem:[#allocation2 + $0x5a] sm:$0xff]
  %v655 = vld [vmem:[#allocation2 + $0x62] sm:$0xff]
  %v656 = vld [vmem:[#allocation2 + $0x6a] sm:$0xff]
  %v657 = vld [vmem:[#allocation2 + $0x72] sm:$0xff]
  %v658 = vld [vmem:[#allocation2 + $0x7a] sm:$0xff]
  %v659 = vld [vmem:[#allocation2 + $0x82] sm:$0xff]
  %v660 = vpack.c.bf16 %v645, %v644
  %v661 = vpack.c.bf16 %v647, %v646
  %v662 = vpack.c.bf16 %v649, %v648
  %v663 = vpack.c.bf16 %v651, %v650
  %v664 = vpack.c.bf16 %v653, %v652
  %v665 = vpack.c.bf16 %v655, %v654
  %v666 = vpack.c.bf16 %v657, %v656
  %v667 = vpack.c.bf16 %v659, %v658
  %v670 = vunpack.c.l.b16 %v331
  %v671 = vunpack.c.l.b16 %v332
  %v672 = vpack.c.b16 %v671, %v670
  %v675 = vsel %vm48, %v660, 0
  %v678 = vsel %vm48, %v661, 0
  %v681 = vsel %vm48, %v662, 0
  %v684 = vsel %vm48, %v663, 0
  %v687 = vsel %vm48, %v664, 0
  %v690 = vsel %vm48, %v665, 0
  %v693 = vsel %vm48, %v666, 0
  %v696 = vsel %vm48, %v667, 0
  %698 = vmatprep.subr.bf16.mxu0 0
  %699 = vmatpush1.bf16.msra.mxu0 %v672
  %700 = vmatprep.subr.bf16.mxu0 0
  %701 = vmatpush1.bf16.msra.mxu0 0
  %702 = vmatprep.subr.bf16.mxu0 0
  %703 = vmatpush1.bf16.msra.mxu0 0
  %704 = vmatprep.subr.bf16.mxu0 0
  %705 = vmatpush1.bf16.msra.mxu0 0
  %706 = vmatprep.subr.bf16.mxu0 0
  %707 = vmatpush1.bf16.msra.mxu0 0
  %708 = vmatprep.subr.bf16.mxu0 0
  %709 = vmatpush1.bf16.msra.mxu0 0
  %710 = vmatprep.subr.bf16.mxu0 0
  %711 = vmatpush1.bf16.msra.mxu0 0
  %712 = vmatprep.subr.bf16.mxu0 0
  %713 = vmatpush1.bf16.msra.mxu0 0
  %714 = vmatprep.subr.bf16.mxu0 0
  %715 = vmatpush1.bf16.msra.mxu0 0
  %716 = vmatprep.subr.bf16.mxu0 0
  %717 = vmatpush1.bf16.msra.mxu0 0
  %718 = vmatprep.subr.bf16.mxu0 0
  %719 = vmatpush1.bf16.msra.mxu0 0
  %720 = vmatprep.subr.bf16.mxu0 0
  %721 = vmatpush1.bf16.msra.mxu0 0
  %722 = vmatprep.subr.bf16.mxu0 0
  %723 = vmatpush1.bf16.msra.mxu0 0
  %724 = vmatprep.subr.bf16.mxu0 0
  %725 = vmatpush1.bf16.msra.mxu0 0
  %726 = vmatprep.subr.bf16.mxu0 0
  %727 = vmatpush1.bf16.msra.mxu0 0
  %728 = vmatprep.subr.bf16.mxu0 0
  %729 = vmatpush1.bf16.msra.mxu0 0
  %730 = vmatprep.mubr.bf16.mxu0 0
  %731 = vmatmul.mubr.bf16.gmra.mrb[0].mxu0 %v675
  %v732 = vpop.f32.mrb[0].mxu0
  %v733 = vadd.f32 0.0, %v732
  %v734 = vpop.f32.mrb[0].mxu0
  %v735 = vpop.f32.mrb[0].mxu0
  %v736 = vadd.f32 0.0, %v735
  %v737 = vpop.f32.mrb[0].mxu0
  %738 = vmatprep.mubr.bf16.mxu0 0
  %739 = vmatmul.mubr.bf16.gmra.mrb[0].mxu0 %v678
  %v740 = vpop.f32.mrb[0].mxu0
  %v741 = vadd.f32 0.0, %v740
  %v742 = vpop.f32.mrb[0].mxu0
  %v743 = vpop.f32.mrb[0].mxu0
  %v744 = vadd.f32 0.0, %v743
  %v745 = vpop.f32.mrb[0].mxu0
  %746 = vmatprep.mubr.bf16.mxu0 0
  %747 = vmatmul.mubr.bf16.gmra.mrb[0].mxu0 %v681
  %v748 = vpop.f32.mrb[0].mxu0
  %v749 = vadd.f32 0.0, %v748
  %v750 = vpop.f32.mrb[0].mxu0
  %v751 = vpop.f32.mrb[0].mxu0
  %v752 = vadd.f32 0.0, %v751
  %v753 = vpop.f32.mrb[0].mxu0
  %754 = vmatprep.mubr.bf16.mxu0 0
  %755 = vmatmul.mubr.bf16.gmra.mrb[0].mxu0 %v684
  %v756 = vpop.f32.mrb[0].mxu0
  %v757 = vadd.f32 0.0, %v756
  %v758 = vpop.f32.mrb[0].mxu0
  %v759 = vpop.f32.mrb[0].mxu0
  %v760 = vadd.f32 0.0, %v759
  %v761 = vpop.f32.mrb[0].mxu0
  %762 = vmatprep.mubr.bf16.mxu0 0
  %763 = vmatmul.mubr.bf16.gmra.mrb[0].mxu0 %v687
  %v764 = vpop.f32.mrb[0].mxu0
  %v765 = vadd.f32 0.0, %v764
  %v766 = vpop.f32.mrb[0].mxu0
  %v767 = vpop.f32.mrb[0].mxu0
  %v768 = vadd.f32 0.0, %v767
  %v769 = vpop.f32.mrb[0].mxu0
  %770 = vmatprep.mubr.bf16.mxu0 0
  %771 = vmatmul.mubr.bf16.gmra.mrb[0].mxu0 %v690
  %v772 = vpop.f32.mrb[0].mxu0
  %v773 = vadd.f32 0.0, %v772
  %v774 = vpop.f32.mrb[0].mxu0
  %v775 = vpop.f32.mrb[0].mxu0
  %v776 = vadd.f32 0.0, %v775
  %v777 = vpop.f32.mrb[0].mxu0
  %778 = vmatprep.mubr.bf16.mxu0 0
  %779 = vmatmul.mubr.bf16.gmra.mrb[0].mxu0 %v693
  %v780 = vpop.f32.mrb[0].mxu0
  %v781 = vadd.f32 0.0, %v780
  %v782 = vpop.f32.mrb[0].mxu0
  %v783 = vpop.f32.mrb[0].mxu0
  %v784 = vadd.f32 0.0, %v783
  %v785 = vpop.f32.mrb[0].mxu0
  %786 = vmatprep.mubr.bf16.mxu0 0
  %787 = vmatmul.mubr.bf16.gmra.mrb[0].mxu0 %v696
  %v788 = vpop.f32.mrb[0].mxu0
  %v789 = vadd.f32 0.0, %v788
  %v790 = vpop.f32.mrb[0].mxu0
  %v791 = vpop.f32.mrb[0].mxu0
  %v792 = vadd.f32 0.0, %v791
  %v793 = vpop.f32.mrb[0].mxu0
  %794 = vdwg.mxu0
  %v795 = vadd.f32 %v582, %v733
  %v796 = vadd.f32 %v585, %v736
  %v797 = vadd.f32 %v590, %v741
  %v798 = vadd.f32 %v593, %v744
  %v799 = vadd.f32 %v598, %v749
  %v800 = vadd.f32 %v601, %v752
  %v801 = vadd.f32 %v606, %v757
  %v802 = vadd.f32 %v609, %v760
  %v803 = vadd.f32 %v614, %v765
  %v804 = vadd.f32 %v617, %v768
  %v805 = vadd.f32 %v622, %v773
  %v806 = vadd.f32 %v625, %v776
  %v807 = vadd.f32 %v630, %v781
  %v808 = vadd.f32 %v633, %v784
  %v809 = vadd.f32 %v638, %v789
  %v810 = vadd.f32 %v641, %v792
  %v811 = vld [vmem:[#allocation2 + $0x3] sm:$0xff]
  %v812 = vld [vmem:[#allocation2 + $0xb] sm:$0xff]
  %v813 = vld [vmem:[#allocation2 + $0x13] sm:$0xff]
  %v814 = vld [vmem:[#allocation2 + $0x1b] sm:$0xff]
  %v815 = vld [vmem:[#allocation2 + $0x23] sm:$0xff]
  %v816 = vld [vmem:[#allocation2 + $0x2b] sm:$0xff]
  %v817 = vld [vmem:[#allocation2 + $0x33] sm:$0xff]
  %v818 = vld [vmem:[#allocation2 + $0x3b] sm:$0xff]
  %v819 = vld [vmem:[#allocation2 + $0x4b] sm:$0xff]
  %v820 = vld [vmem:[#allocation2 + $0x53] sm:$0xff]
  %v821 = vld [vmem:[#allocation2 + $0x5b] sm:$0xff]
  %v822 = vld [vmem:[#allocation2 + $0x63] sm:$0xff]
  %v823 = vld [vmem:[#allocation2 + $0x6b] sm:$0xff]
  %v824 = vld [vmem:[#allocation2 + $0x73] sm:$0xff]
  %v825 = vld [vmem:[#allocation2 + $0x7b] sm:$0xff]
  %v826 = vld [vmem:[#allocation2 + $0x83] sm:$0xff]
  %v827 = vpack.c.bf16 %v812, %v811
  %v828 = vpack.c.bf16 %v814, %v813
  %v829 = vpack.c.bf16 %v816, %v815
  %v830 = vpack.c.bf16 %v818, %v817
  %v831 = vpack.c.bf16 %v820, %v819
  %v832 = vpack.c.bf16 %v822, %v821
  %v833 = vpack.c.bf16 %v824, %v823
  %v834 = vpack.c.bf16 %v826, %v825
  %v837 = vunpack.c.l.b16 %v333
  %v838 = vunpack.c.l.b16 %v334
  %v839 = vpack.c.b16 %v838, %v837
  %v842 = vsel %vm48, %v827, 0
  %v845 = vsel %vm48, %v828, 0
  %v848 = vsel %vm48, %v829, 0
  %v851 = vsel %vm48, %v830, 0
  %v854 = vsel %vm48, %v831, 0
  %v857 = vsel %vm48, %v832, 0
  %v860 = vsel %vm48, %v833, 0
  %v863 = vsel %vm48, %v834, 0
  %865 = vmatprep.subr.bf16.mxu0 0
  %866 = vmatpush1.bf16.msra.mxu0 %v839
  %867 = vmatprep.subr.bf16.mxu0 0
  %868 = vmatpush1.bf16.msra.mxu0 0
  %869 = vmatprep.subr.bf16.mxu0 0
  %870 = vmatpush1.bf16.msra.mxu0 0
  %871 = vmatprep.subr.bf16.mxu0 0
  %872 = vmatpush1.bf16.msra.mxu0 0
  %873 = vmatprep.subr.bf16.mxu0 0
  %874 = vmatpush1.bf16.msra.mxu0 0
  %875 = vmatprep.subr.bf16.mxu0 0
  %876 = vmatpush1.bf16.msra.mxu0 0
  %877 = vmatprep.subr.bf16.mxu0 0
  %878 = vmatpush1.bf16.msra.mxu0 0
  %879 = vmatprep.subr.bf16.mxu0 0
  %880 = vmatpush1.bf16.msra.mxu0 0
  %881 = vmatprep.subr.bf16.mxu0 0
  %882 = vmatpush1.bf16.msra.mxu0 0
  %883 = vmatprep.subr.bf16.mxu0 0
  %884 = vmatpush1.bf16.msra.mxu0 0
  %885 = vmatprep.subr.bf16.mxu0 0
  %886 = vmatpush1.bf16.msra.mxu0 0
  %887 = vmatprep.subr.bf16.mxu0 0
  %888 = vmatpush1.bf16.msra.mxu0 0
  %889 = vmatprep.subr.bf16.mxu0 0
  %890 = vmatpush1.bf16.msra.mxu0 0
  %891 = vmatprep.subr.bf16.mxu0 0
  %892 = vmatpush1.bf16.msra.mxu0 0
  %893 = vmatprep.subr.bf16.mxu0 0
  %894 = vmatpush1.bf16.msra.mxu0 0
  %895 = vmatprep.subr.bf16.mxu0 0
  %896 = vmatpush1.bf16.msra.mxu0 0
  %897 = vmatprep.mubr.bf16.mxu0 0
  %898 = vmatmul.mubr.bf16.gmra.mrb[0].mxu0 %v842
  %v899 = vpop.f32.mrb[0].mxu0
  %v900 = vadd.f32 0.0, %v899
  %v901 = vpop.f32.mrb[0].mxu0
  %v902 = vpop.f32.mrb[0].mxu0
  %v903 = vadd.f32 0.0, %v902
  %v904 = vpop.f32.mrb[0].mxu0
  %905 = vmatprep.mubr.bf16.mxu0 0
  %906 = vmatmul.mubr.bf16.gmra.mrb[0].mxu0 %v845
  %v907 = vpop.f32.mrb[0].mxu0
  %v908 = vadd.f32 0.0, %v907
  %v909 = vpop.f32.mrb[0].mxu0
  %v910 = vpop.f32.mrb[0].mxu0
  %v911 = vadd.f32 0.0, %v910
  %v912 = vpop.f32.mrb[0].mxu0
  %913 = vmatprep.mubr.bf16.mxu0 0
  %914 = vmatmul.mubr.bf16.gmra.mrb[0].mxu0 %v848
  %v915 = vpop.f32.mrb[0].mxu0
  %v916 = vadd.f32 0.0, %v915
  %v917 = vpop.f32.mrb[0].mxu0
  %v918 = vpop.f32.mrb[0].mxu0
  %v919 = vadd.f32 0.0, %v918
  %v920 = vpop.f32.mrb[0].mxu0
  %921 = vmatprep.mubr.bf16.mxu0 0
  %922 = vmatmul.mubr.bf16.gmra.mrb[0].mxu0 %v851
  %v923 = vpop.f32.mrb[0].mxu0
  %v924 = vadd.f32 0.0, %v923
  %v925 = vpop.f32.mrb[0].mxu0
  %v926 = vpop.f32.mrb[0].mxu0
  %v927 = vadd.f32 0.0, %v926
  %v928 = vpop.f32.mrb[0].mxu0
  %929 = vmatprep.mubr.bf16.mxu0 0
  %930 = vmatmul.mubr.bf16.gmra.mrb[0].mxu0 %v854
  %v931 = vpop.f32.mrb[0].mxu0
  %v932 = vadd.f32 0.0, %v931
  %v933 = vpop.f32.mrb[0].mxu0
  %v934 = vpop.f32.mrb[0].mxu0
  %v935 = vadd.f32 0.0, %v934
  %v936 = vpop.f32.mrb[0].mxu0
  %937 = vmatprep.mubr.bf16.mxu0 0
  %938 = vmatmul.mubr.bf16.gmra.mrb[0].mxu0 %v857
  %v939 = vpop.f32.mrb[0].mxu0
  %v940 = vadd.f32 0.0, %v939
  %v941 = vpop.f32.mrb[0].mxu0
  %v942 = vpop.f32.mrb[0].mxu0
  %v943 = vadd.f32 0.0, %v942
  %v944 = vpop.f32.mrb[0].mxu0
  %945 = vmatprep.mubr.bf16.mxu0 0
  %946 = vmatmul.mubr.bf16.gmra.mrb[0].mxu0 %v860
  %v947 = vpop.f32.mrb[0].mxu0
  %v948 = vadd.f32 0.0, %v947
  %v949 = vpop.f32.mrb[0].mxu0
  %v950 = vpop.f32.mrb[0].mxu0
  %v951 = vadd.f32 0.0, %v950
  %v952 = vpop.f32.mrb[0].mxu0
  %953 = vmatprep.mubr.bf16.mxu0 0
  %954 = vmatmul.mubr.bf16.gmra.mrb[0].mxu0 %v863
  %v955 = vpop.f32.mrb[0].mxu0
  %v956 = vadd.f32 0.0, %v955
  %v957 = vpop.f32.mrb[0].mxu0
  %v958 = vpop.f32.mrb[0].mxu0
  %v959 = vadd.f32 0.0, %v958
  %v960 = vpop.f32.mrb[0].mxu0
  %961 = vdwg.mxu0
  %v962 = vadd.f32 %v795, %v900
  %v963 = vadd.f32 %v796, %v903
  %v964 = vadd.f32 %v797, %v908
  %v965 = vadd.f32 %v798, %v911
  %v966 = vadd.f32 %v799, %v916
  %v967 = vadd.f32 %v800, %v919
  %v968 = vadd.f32 %v801, %v924
  %v969 = vadd.f32 %v802, %v927
  %v970 = vadd.f32 %v803, %v932
  %v971 = vadd.f32 %v804, %v935
  %v972 = vadd.f32 %v805, %v940
  %v973 = vadd.f32 %v806, %v943
  %v974 = vadd.f32 %v807, %v948
  %v975 = vadd.f32 %v808, %v951
  %v976 = vadd.f32 %v809, %v956
  %v977 = vadd.f32 %v810, %v959
  %v978 = vld [vmem:[#allocation2 + $0x4] sm:$0xff]
  %v979 = vld [vmem:[#allocation2 + $0xc] sm:$0xff]
  %v980 = vld [vmem:[#allocation2 + $0x14] sm:$0xff]
  %v981 = vld [vmem:[#allocation2 + $0x1c] sm:$0xff]
  %v982 = vld [vmem:[#allocation2 + $0x24] sm:$0xff]
  %v983 = vld [vmem:[#allocation2 + $0x2c] sm:$0xff]
  %v984 = vld [vmem:[#allocation2 + $0x34] sm:$0xff]
  %v985 = vld [vmem:[#allocation2 + $0x3c] sm:$0xff]
  %v986 = vld [vmem:[#allocation2 + $0x4c] sm:$0xff]
  %v987 = vld [vmem:[#allocation2 + $0x54] sm:$0xff]
  %v988 = vld [vmem:[#allocation2 + $0x5c] sm:$0xff]
  %v989 = vld [vmem:[#allocation2 + $0x64] sm:$0xff]
  %v990 = vld [vmem:[#allocation2 + $0x6c] sm:$0xff]
  %v991 = vld [vmem:[#allocation2 + $0x74] sm:$0xff]
  %v992 = vld [vmem:[#allocation2 + $0x7c] sm:$0xff]
  %v993 = vld [vmem:[#allocation2 + $0x84] sm:$0xff]
  %v994 = vpack.c.bf16 %v979, %v978
  %v995 = vpack.c.bf16 %v981, %v980
  %v996 = vpack.c.bf16 %v983, %v982
  %v997 = vpack.c.bf16 %v985, %v984
  %v998 = vpack.c.bf16 %v987, %v986
  %v999 = vpack.c.bf16 %v989, %v988
  %v1000 = vpack.c.bf16 %v991, %v990
  %v1001 = vpack.c.bf16 %v993, %v992
  %v1004 = vunpack.c.l.b16 %v335
  %v1005 = vunpack.c.l.b16 %v336
  %v1006 = vpack.c.b16 %v1005, %v1004
  %v1009 = vsel %vm48, %v994, 0
  %v1012 = vsel %vm48, %v995, 0
  %v1015 = vsel %vm48, %v996, 0
  %v1018 = vsel %vm48, %v997, 0
  %v1021 = vsel %vm48, %v998, 0
  %v1024 = vsel %vm48, %v999, 0
  %v1027 = vsel %vm48, %v1000, 0
  %v1030 = vsel %vm48, %v1001, 0
  %1032 = vmatprep.subr.bf16.mxu0 0
  %1033 = vmatpush1.bf16.msra.mxu0 %v1006
  %1034 = vmatprep.subr.bf16.mxu0 0
  %1035 = vmatpush1.bf16.msra.mxu0 0
  %1036 = vmatprep.subr.bf16.mxu0 0
  %1037 = vmatpush1.bf16.msra.mxu0 0
  %1038 = vmatprep.subr.bf16.mxu0 0
  %1039 = vmatpush1.bf16.msra.mxu0 0
  %1040 = vmatprep.subr.bf16.mxu0 0
  %1041 = vmatpush1.bf16.msra.mxu0 0
  %1042 = vmatprep.subr.bf16.mxu0 0
  %1043 = vmatpush1.bf16.msra.mxu0 0
  %1044 = vmatprep.subr.bf16.mxu0 0
  %1045 = vmatpush1.bf16.msra.mxu0 0
  %1046 = vmatprep.subr.bf16.mxu0 0
  %1047 = vmatpush1.bf16.msra.mxu0 0
  %1048 = vmatprep.subr.bf16.mxu0 0
  %1049 = vmatpush1.bf16.msra.mxu0 0
  %1050 = vmatprep.subr.bf16.mxu0 0
  %1051 = vmatpush1.bf16.msra.mxu0 0
  %1052 = vmatprep.subr.bf16.mxu0 0
  %1053 = vmatpush1.bf16.msra.mxu0 0
  %1054 = vmatprep.subr.bf16.mxu0 0
  %1055 = vmatpush1.bf16.msra.mxu0 0
  %1056 = vmatprep.subr.bf16.mxu0 0
  %1057 = vmatpush1.bf16.msra.mxu0 0
  %1058 = vmatprep.subr.bf16.mxu0 0
  %1059 = vmatpush1.bf16.msra.mxu0 0
  %1060 = vmatprep.subr.bf16.mxu0 0
  %1061 = vmatpush1.bf16.msra.mxu0 0
  %1062 = vmatprep.subr.bf16.mxu0 0
  %1063 = vmatpush1.bf16.msra.mxu0 0
  %1064 = vmatprep.mubr.bf16.mxu0 0
  %1065 = vmatmul.mubr.bf16.gmra.mrb[0].mxu0 %v1009
  %v1066 = vpop.f32.mrb[0].mxu0
  %v1067 = vadd.f32 0.0, %v1066
  %v1068 = vpop.f32.mrb[0].mxu0
  %v1069 = vpop.f32.mrb[0].mxu0
  %v1070 = vadd.f32 0.0, %v1069
  %v1071 = vpop.f32.mrb[0].mxu0
  %1072 = vmatprep.mubr.bf16.mxu0 0
  %1073 = vmatmul.mubr.bf16.gmra.mrb[0].mxu0 %v1012
  %v1074 = vpop.f32.mrb[0].mxu0
  %v1075 = vadd.f32 0.0, %v1074
  %v1076 = vpop.f32.mrb[0].mxu0
  %v1077 = vpop.f32.mrb[0].mxu0
  %v1078 = vadd.f32 0.0, %v1077
  %v1079 = vpop.f32.mrb[0].mxu0
  %1080 = vmatprep.mubr.bf16.mxu0 0
  %1081 = vmatmul.mubr.bf16.gmra.mrb[0].mxu0 %v1015
  %v1082 = vpop.f32.mrb[0].mxu0
  %v1083 = vadd.f32 0.0, %v1082
  %v1084 = vpop.f32.mrb[0].mxu0
  %v1085 = vpop.f32.mrb[0].mxu0
  %v1086 = vadd.f32 0.0, %v1085
  %v1087 = vpop.f32.mrb[0].mxu0
  %1088 = vmatprep.mubr.bf16.mxu0 0
  %1089 = vmatmul.mubr.bf16.gmra.mrb[0].mxu0 %v1018
  %v1090 = vpop.f32.mrb[0].mxu0
  %v1091 = vadd.f32 0.0, %v1090
  %v1092 = vpop.f32.mrb[0].mxu0
  %v1093 = vpop.f32.mrb[0].mxu0
  %v1094 = vadd.f32 0.0, %v1093
  %v1095 = vpop.f32.mrb[0].mxu0
  %1096 = vmatprep.mubr.bf16.mxu0 0
  %1097 = vmatmul.mubr.bf16.gmra.mrb[0].mxu0 %v1021
  %v1098 = vpop.f32.mrb[0].mxu0
  %v1099 = vadd.f32 0.0, %v1098
  %v1100 = vpop.f32.mrb[0].mxu0
  %v1101 = vpop.f32.mrb[0].mxu0
  %v1102 = vadd.f32 0.0, %v1101
  %v1103 = vpop.f32.mrb[0].mxu0
  %1104 = vmatprep.mubr.bf16.mxu0 0
  %1105 = vmatmul.mubr.bf16.gmra.mrb[0].mxu0 %v1024
  %v1106 = vpop.f32.mrb[0].mxu0
  %v1107 = vadd.f32 0.0, %v1106
  %v1108 = vpop.f32.mrb[0].mxu0
  %v1109 = vpop.f32.mrb[0].mxu0
  %v1110 = vadd.f32 0.0, %v1109
  %v1111 = vpop.f32.mrb[0].mxu0
  %1112 = vmatprep.mubr.bf16.mxu0 0
  %1113 = vmatmul.mubr.bf16.gmra.mrb[0].mxu0 %v1027
  %v1114 = vpop.f32.mrb[0].mxu0
  %v1115 = vadd.f32 0.0, %v1114
  %v1116 = vpop.f32.mrb[0].mxu0
  %v1117 = vpop.f32.mrb[0].mxu0
  %v1118 = vadd.f32 0.0, %v1117
  %v1119 = vpop.f32.mrb[0].mxu0
  %1120 = vmatprep.mubr.bf16.mxu0 0
  %1121 = vmatmul.mubr.bf16.gmra.mrb[0].mxu0 %v1030
  %v1122 = vpop.f32.mrb[0].mxu0
  %v1123 = vadd.f32 0.0, %v1122
  %v1124 = vpop.f32.mrb[0].mxu0
  %v1125 = vpop.f32.mrb[0].mxu0
  %v1126 = vadd.f32 0.0, %v1125
  %v1127 = vpop.f32.mrb[0].mxu0
  %1128 = vdwg.mxu0
  %v1129 = vadd.f32 %v962, %v1067
  %v1130 = vadd.f32 %v963, %v1070
  %v1131 = vadd.f32 %v964, %v1075
  %v1132 = vadd.f32 %v965, %v1078
  %v1133 = vadd.f32 %v966, %v1083
  %v1134 = vadd.f32 %v967, %v1086
  %v1135 = vadd.f32 %v968, %v1091
  %v1136 = vadd.f32 %v969, %v1094
  %v1137 = vadd.f32 %v970, %v1099
  %v1138 = vadd.f32 %v971, %v1102
  %v1139 = vadd.f32 %v972, %v1107
  %v1140 = vadd.f32 %v973, %v1110
  %v1141 = vadd.f32 %v974, %v1115
  %v1142 = vadd.f32 %v975, %v1118
  %v1143 = vadd.f32 %v976, %v1123
  %v1144 = vadd.f32 %v977, %v1126
  %v1145 = vld [vmem:[#allocation2 + $0x5] sm:$0xff]
  %v1146 = vld [vmem:[#allocation2 + $0xd] sm:$0xff]
  %v1147 = vld [vmem:[#allocation2 + $0x15] sm:$0xff]
  %v1148 = vld [vmem:[#allocation2 + $0x1d] sm:$0xff]
  %v1149 = vld [vmem:[#allocation2 + $0x25] sm:$0xff]
  %v1150 = vld [vmem:[#allocation2 + $0x2d] sm:$0xff]
  %v1151 = vld [vmem:[#allocation2 + $0x35] sm:$0xff]
  %v1152 = vld [vmem:[#allocation2 + $0x3d] sm:$0xff]
  %v1153 = vld [vmem:[#allocation2 + $0x4d] sm:$0xff]
  %v1154 = vld [vmem:[#allocation2 + $0x55] sm:$0xff]
  %v1155 = vld [vmem:[#allocation2 + $0x5d] sm:$0xff]
  %v1156 = vld [vmem:[#allocation2 + $0x65] sm:$0xff]
  %v1157 = vld [vmem:[#allocation2 + $0x6d] sm:$0xff]
  %v1158 = vld [vmem:[#allocation2 + $0x75] sm:$0xff]
  %v1159 = vld [vmem:[#allocation2 + $0x7d] sm:$0xff]
  %v1160 = vld [vmem:[#allocation2 + $0x85] sm:$0xff]
  %v1161 = vpack.c.bf16 %v1146, %v1145
  %v1162 = vpack.c.bf16 %v1148, %v1147
  %v1163 = vpack.c.bf16 %v1150, %v1149
  %v1164 = vpack.c.bf16 %v1152, %v1151
  %v1165 = vpack.c.bf16 %v1154, %v1153
  %v1166 = vpack.c.bf16 %v1156, %v1155
  %v1167 = vpack.c.bf16 %v1158, %v1157
  %v1168 = vpack.c.bf16 %v1160, %v1159
  %v1171 = vunpack.c.l.b16 %v337
  %v1172 = vunpack.c.l.b16 %v338
  %v1173 = vpack.c.b16 %v1172, %v1171
  %v1176 = vsel %vm48, %v1161, 0
  %v1179 = vsel %vm48, %v1162, 0
  %v1182 = vsel %vm48, %v1163, 0
  %v1185 = vsel %vm48, %v1164, 0
  %v1188 = vsel %vm48, %v1165, 0
  %v1191 = vsel %vm48, %v1166, 0
  %v1194 = vsel %vm48, %v1167, 0
  %v1197 = vsel %vm48, %v1168, 0
  %1199 = vmatprep.subr.bf16.mxu0 0
  %1200 = vmatpush1.bf16.msra.mxu0 %v1173
  %1201 = vmatprep.subr.bf16.mxu0 0
  %1202 = vmatpush1.bf16.msra.mxu0 0
  %1203 = vmatprep.subr.bf16.mxu0 0
  %1204 = vmatpush1.bf16.msra.mxu0 0
  %1205 = vmatprep.subr.bf16.mxu0 0
  %1206 = vmatpush1.bf16.msra.mxu0 0
  %1207 = vmatprep.subr.bf16.mxu0 0
  %1208 = vmatpush1.bf16.msra.mxu0 0
  %1209 = vmatprep.subr.bf16.mxu0 0
  %1210 = vmatpush1.bf16.msra.mxu0 0
  %1211 = vmatprep.subr.bf16.mxu0 0
  %1212 = vmatpush1.bf16.msra.mxu0 0
  %1213 = vmatprep.subr.bf16.mxu0 0
  %1214 = vmatpush1.bf16.msra.mxu0 0
  %1215 = vmatprep.subr.bf16.mxu0 0
  %1216 = vmatpush1.bf16.msra.mxu0 0
  %1217 = vmatprep.subr.bf16.mxu0 0
  %1218 = vmatpush1.bf16.msra.mxu0 0
  %1219 = vmatprep.subr.bf16.mxu0 0
  %1220 = vmatpush1.bf16.msra.mxu0 0
  %1221 = vmatprep.subr.bf16.mxu0 0
  %1222 = vmatpush1.bf16.msra.mxu0 0
  %1223 = vmatprep.subr.bf16.mxu0 0
  %1224 = vmatpush1.bf16.msra.mxu0 0
  %1225 = vmatprep.subr.bf16.mxu0 0
  %1226 = vmatpush1.bf16.msra.mxu0 0
  %1227 = vmatprep.subr.bf16.mxu0 0
  %1228 = vmatpush1.bf16.msra.mxu0 0
  %1229 = vmatprep.subr.bf16.mxu0 0
  %1230 = vmatpush1.bf16.msra.mxu0 0
  %1231 = vmatprep.mubr.bf16.mxu0 0
  %1232 = vmatmul.mubr.bf16.gmra.mrb[0].mxu0 %v1176
  %v1233 = vpop.f32.mrb[0].mxu0
  %v1234 = vadd.f32 0.0, %v1233
  %v1235 = vpop.f32.mrb[0].mxu0
  %v1236 = vpop.f32.mrb[0].mxu0
  %v1237 = vadd.f32 0.0, %v1236
  %v1238 = vpop.f32.mrb[0].mxu0
  %1239 = vmatprep.mubr.bf16.mxu0 0
  %1240 = vmatmul.mubr.bf16.gmra.mrb[0].mxu0 %v1179
  %v1241 = vpop.f32.mrb[0].mxu0
  %v1242 = vadd.f32 0.0, %v1241
  %v1243 = vpop.f32.mrb[0].mxu0
  %v1244 = vpop.f32.mrb[0].mxu0
  %v1245 = vadd.f32 0.0, %v1244
  %v1246 = vpop.f32.mrb[0].mxu0
  %1247 = vmatprep.mubr.bf16.mxu0 0
  %1248 = vmatmul.mubr.bf16.gmra.mrb[0].mxu0 %v1182
  %v1249 = vpop.f32.mrb[0].mxu0
  %v1250 = vadd.f32 0.0, %v1249
  %v1251 = vpop.f32.mrb[0].mxu0
  %v1252 = vpop.f32.mrb[0].mxu0
  %v1253 = vadd.f32 0.0, %v1252
  %v1254 = vpop.f32.mrb[0].mxu0
  %1255 = vmatprep.mubr.bf16.mxu0 0
  %1256 = vmatmul.mubr.bf16.gmra.mrb[0].mxu0 %v1185
  %v1257 = vpop.f32.mrb[0].mxu0
  %v1258 = vadd.f32 0.0, %v1257
  %v1259 = vpop.f32.mrb[0].mxu0
  %v1260 = vpop.f32.mrb[0].mxu0
  %v1261 = vadd.f32 0.0, %v1260
  %v1262 = vpop.f32.mrb[0].mxu0
  %1263 = vmatprep.mubr.bf16.mxu0 0
  %1264 = vmatmul.mubr.bf16.gmra.mrb[0].mxu0 %v1188
  %v1265 = vpop.f32.mrb[0].mxu0
  %v1266 = vadd.f32 0.0, %v1265
  %v1267 = vpop.f32.mrb[0].mxu0
  %v1268 = vpop.f32.mrb[0].mxu0
  %v1269 = vadd.f32 0.0, %v1268
  %v1270 = vpop.f32.mrb[0].mxu0
  %1271 = vmatprep.mubr.bf16.mxu0 0
  %1272 = vmatmul.mubr.bf16.gmra.mrb[0].mxu0 %v1191
  %v1273 = vpop.f32.mrb[0].mxu0
  %v1274 = vadd.f32 0.0, %v1273
  %v1275 = vpop.f32.mrb[0].mxu0
  %v1276 = vpop.f32.mrb[0].mxu0
  %v1277 = vadd.f32 0.0, %v1276
  %v1278 = vpop.f32.mrb[0].mxu0
  %1279 = vmatprep.mubr.bf16.mxu0 0
  %1280 = vmatmul.mubr.bf16.gmra.mrb[0].mxu0 %v1194
  %v1281 = vpop.f32.mrb[0].mxu0
  %v1282 = vadd.f32 0.0, %v1281
  %v1283 = vpop.f32.mrb[0].mxu0
  %v1284 = vpop.f32.mrb[0].mxu0
  %v1285 = vadd.f32 0.0, %v1284
  %v1286 = vpop.f32.mrb[0].mxu0
  %1287 = vmatprep.mubr.bf16.mxu0 0
  %1288 = vmatmul.mubr.bf16.gmra.mrb[0].mxu0 %v1197
  %v1289 = vpop.f32.mrb[0].mxu0
  %v1290 = vadd.f32 0.0, %v1289
  %v1291 = vpop.f32.mrb[0].mxu0
  %v1292 = vpop.f32.mrb[0].mxu0
  %v1293 = vadd.f32 0.0, %v1292
  %v1294 = vpop.f32.mrb[0].mxu0
  %1295 = vdwg.mxu0
  %v1296 = vadd.f32 %v1129, %v1234
  %v1297 = vadd.f32 %v1130, %v1237
  %v1298 = vadd.f32 %v1131, %v1242
  %v1299 = vadd.f32 %v1132, %v1245
  %v1300 = vadd.f32 %v1133, %v1250
  %v1301 = vadd.f32 %v1134, %v1253
  %v1302 = vadd.f32 %v1135, %v1258
  %v1303 = vadd.f32 %v1136, %v1261
  %v1304 = vadd.f32 %v1137, %v1266
  %v1305 = vadd.f32 %v1138, %v1269
  %v1306 = vadd.f32 %v1139, %v1274
  %v1307 = vadd.f32 %v1140, %v1277
  %v1308 = vadd.f32 %v1141, %v1282
  %v1309 = vadd.f32 %v1142, %v1285
  %v1310 = vadd.f32 %v1143, %v1290
  %v1311 = vadd.f32 %v1144, %v1293
  %v1312 = vld [vmem:[#allocation2 + $0x6] sm:$0xff]
  %v1313 = vld [vmem:[#allocation2 + $0xe] sm:$0xff]
  %v1314 = vld [vmem:[#allocation2 + $0x16] sm:$0xff]
  %v1315 = vld [vmem:[#allocation2 + $0x1e] sm:$0xff]
  %v1316 = vld [vmem:[#allocation2 + $0x26] sm:$0xff]
  %v1317 = vld [vmem:[#allocation2 + $0x2e] sm:$0xff]
  %v1318 = vld [vmem:[#allocation2 + $0x36] sm:$0xff]
  %v1319 = vld [vmem:[#allocation2 + $0x3e] sm:$0xff]
  %v1320 = vld [vmem:[#allocation2 + $0x4e] sm:$0xff]
  %v1321 = vld [vmem:[#allocation2 + $0x56] sm:$0xff]
  %v1322 = vld [vmem:[#allocation2 + $0x5e] sm:$0xff]
  %v1323 = vld [vmem:[#allocation2 + $0x66] sm:$0xff]
  %v1324 = vld [vmem:[#allocation2 + $0x6e] sm:$0xff]
  %v1325 = vld [vmem:[#allocation2 + $0x76] sm:$0xff]
  %v1326 = vld [vmem:[#allocation2 + $0x7e] sm:$0xff]
  %v1327 = vld [vmem:[#allocation2 + $0x86] sm:$0xff]
  %v1328 = vpack.c.bf16 %v1313, %v1312
  %v1329 = vpack.c.bf16 %v1315, %v1314
  %v1330 = vpack.c.bf16 %v1317, %v1316
  %v1331 = vpack.c.bf16 %v1319, %v1318
  %v1332 = vpack.c.bf16 %v1321, %v1320
  %v1333 = vpack.c.bf16 %v1323, %v1322
  %v1334 = vpack.c.bf16 %v1325, %v1324
  %v1335 = vpack.c.bf16 %v1327, %v1326
  %v1338 = vunpack.c.l.b16 %v339
  %v1339 = vunpack.c.l.b16 %v340
  %v1340 = vpack.c.b16 %v1339, %v1338
  %v1343 = vsel %vm48, %v1328, 0
  %v1346 = vsel %vm48, %v1329, 0
  %v1349 = vsel %vm48, %v1330, 0
  %v1352 = vsel %vm48, %v1331, 0
  %v1355 = vsel %vm48, %v1332, 0
  %v1358 = vsel %vm48, %v1333, 0
  %v1361 = vsel %vm48, %v1334, 0
  %v1364 = vsel %vm48, %v1335, 0
  %1366 = vmatprep.subr.bf16.mxu0 0
  %1367 = vmatpush1.bf16.msra.mxu0 %v1340
  %1368 = vmatprep.subr.bf16.mxu0 0
  %1369 = vmatpush1.bf16.msra.mxu0 0
  %1370 = vmatprep.subr.bf16.mxu0 0
  %1371 = vmatpush1.bf16.msra.mxu0 0
  %1372 = vmatprep.subr.bf16.mxu0 0
  %1373 = vmatpush1.bf16.msra.mxu0 0
  %1374 = vmatprep.subr.bf16.mxu0 0
  %1375 = vmatpush1.bf16.msra.mxu0 0
  %1376 = vmatprep.subr.bf16.mxu0 0
  %1377 = vmatpush1.bf16.msra.mxu0 0
  %1378 = vmatprep.subr.bf16.mxu0 0
  %1379 = vmatpush1.bf16.msra.mxu0 0
  %1380 = vmatprep.subr.bf16.mxu0 0
  %1381 = vmatpush1.bf16.msra.mxu0 0
  %1382 = vmatprep.subr.bf16.mxu0 0
  %1383 = vmatpush1.bf16.msra.mxu0 0
  %1384 = vmatprep.subr.bf16.mxu0 0
  %1385 = vmatpush1.bf16.msra.mxu0 0
  %1386 = vmatprep.subr.bf16.mxu0 0
  %1387 = vmatpush1.bf16.msra.mxu0 0
  %1388 = vmatprep.subr.bf16.mxu0 0
  %1389 = vmatpush1.bf16.msra.mxu0 0
  %1390 = vmatprep.subr.bf16.mxu0 0
  %1391 = vmatpush1.bf16.msra.mxu0 0
  %1392 = vmatprep.subr.bf16.mxu0 0
  %1393 = vmatpush1.bf16.msra.mxu0 0
  %1394 = vmatprep.subr.bf16.mxu0 0
  %1395 = vmatpush1.bf16.msra.mxu0 0
  %1396 = vmatprep.subr.bf16.mxu0 0
  %1397 = vmatpush1.bf16.msra.mxu0 0
  %1398 = vmatprep.mubr.bf16.mxu0 0
  %1399 = vmatmul.mubr.bf16.gmra.mrb[0].mxu0 %v1343
  %v1400 = vpop.f32.mrb[0].mxu0
  %v1401 = vadd.f32 0.0, %v1400
  %v1402 = vpop.f32.mrb[0].mxu0
  %v1403 = vpop.f32.mrb[0].mxu0
  %v1404 = vadd.f32 0.0, %v1403
  %v1405 = vpop.f32.mrb[0].mxu0
  %1406 = vmatprep.mubr.bf16.mxu0 0
  %1407 = vmatmul.mubr.bf16.gmra.mrb[0].mxu0 %v1346
  %v1408 = vpop.f32.mrb[0].mxu0
  %v1409 = vadd.f32 0.0, %v1408
  %v1410 = vpop.f32.mrb[0].mxu0
  %v1411 = vpop.f32.mrb[0].mxu0
  %v1412 = vadd.f32 0.0, %v1411
  %v1413 = vpop.f32.mrb[0].mxu0
  %1414 = vmatprep.mubr.bf16.mxu0 0
  %1415 = vmatmul.mubr.bf16.gmra.mrb[0].mxu0 %v1349
  %v1416 = vpop.f32.mrb[0].mxu0
  %v1417 = vadd.f32 0.0, %v1416
  %v1418 = vpop.f32.mrb[0].mxu0
  %v1419 = vpop.f32.mrb[0].mxu0
  %v1420 = vadd.f32 0.0, %v1419
  %v1421 = vpop.f32.mrb[0].mxu0
  %1422 = vmatprep.mubr.bf16.mxu0 0
  %1423 = vmatmul.mubr.bf16.gmra.mrb[0].mxu0 %v1352
  %v1424 = vpop.f32.mrb[0].mxu0
  %v1425 = vadd.f32 0.0, %v1424
  %v1426 = vpop.f32.mrb[0].mxu0
  %v1427 = vpop.f32.mrb[0].mxu0
  %v1428 = vadd.f32 0.0, %v1427
  %v1429 = vpop.f32.mrb[0].mxu0
  %1430 = vmatprep.mubr.bf16.mxu0 0
  %1431 = vmatmul.mubr.bf16.gmra.mrb[0].mxu0 %v1355
  %v1432 = vpop.f32.mrb[0].mxu0
  %v1433 = vadd.f32 0.0, %v1432
  %v1434 = vpop.f32.mrb[0].mxu0
  %v1435 = vpop.f32.mrb[0].mxu0
  %v1436 = vadd.f32 0.0, %v1435
  %v1437 = vpop.f32.mrb[0].mxu0
  %1438 = vmatprep.mubr.bf16.mxu0 0
  %1439 = vmatmul.mubr.bf16.gmra.mrb[0].mxu0 %v1358
  %v1440 = vpop.f32.mrb[0].mxu0
  %v1441 = vadd.f32 0.0, %v1440
  %v1442 = vpop.f32.mrb[0].mxu0
  %v1443 = vpop.f32.mrb[0].mxu0
  %v1444 = vadd.f32 0.0, %v1443
  %v1445 = vpop.f32.mrb[0].mxu0
  %1446 = vmatprep.mubr.bf16.mxu0 0
  %1447 = vmatmul.mubr.bf16.gmra.mrb[0].mxu0 %v1361
  %v1448 = vpop.f32.mrb[0].mxu0
  %v1449 = vadd.f32 0.0, %v1448
  %v1450 = vpop.f32.mrb[0].mxu0
  %v1451 = vpop.f32.mrb[0].mxu0
  %v1452 = vadd.f32 0.0, %v1451
  %v1453 = vpop.f32.mrb[0].mxu0
  %1454 = vmatprep.mubr.bf16.mxu0 0
  %1455 = vmatmul.mubr.bf16.gmra.mrb[0].mxu0 %v1364
  %v1456 = vpop.f32.mrb[0].mxu0
  %v1457 = vadd.f32 0.0, %v1456
  %v1458 = vpop.f32.mrb[0].mxu0
  %v1459 = vpop.f32.mrb[0].mxu0
  %v1460 = vadd.f32 0.0, %v1459
  %v1461 = vpop.f32.mrb[0].mxu0
  %1462 = vdwg.mxu0
  %v1463 = vadd.f32 %v1296, %v1401
  %v1464 = vadd.f32 %v1297, %v1404
  %v1465 = vadd.f32 %v1298, %v1409
  %v1466 = vadd.f32 %v1299, %v1412
  %v1467 = vadd.f32 %v1300, %v1417
  %v1468 = vadd.f32 %v1301, %v1420
  %v1469 = vadd.f32 %v1302, %v1425
  %v1470 = vadd.f32 %v1303, %v1428
  %v1471 = vadd.f32 %v1304, %v1433
  %v1472 = vadd.f32 %v1305, %v1436
  %v1473 = vadd.f32 %v1306, %v1441
  %v1474 = vadd.f32 %v1307, %v1444
  %v1475 = vadd.f32 %v1308, %v1449
  %v1476 = vadd.f32 %v1309, %v1452
  %v1477 = vadd.f32 %v1310, %v1457
  %v1478 = vadd.f32 %v1311, %v1460
  %v1480 = vlaneseq
  %v1481 = vshrl.u32 %v1480, 7
  %v1482 = vsub.s32 0, %v1481
  %v1483 = vrot.slane %v341, %v1482
  %v1485 = vadd.f32 %v1463, %v1483
  %v1486 = vadd.f32 %v1464, %v1483
  %v1487 = vadd.f32 %v1465, %v1483
  %v1488 = vadd.f32 %v1466, %v1483
  %v1489 = vadd.f32 %v1467, %v1483
  %v1490 = vadd.f32 %v1468, %v1483
  %v1491 = vadd.f32 %v1469, %v1483
  %v1492 = vadd.f32 %v1470, %v1483
  %v1493 = vadd.f32 %v1471, %v1483
  %v1494 = vadd.f32 %v1472, %v1483
  %v1495 = vadd.f32 %v1473, %v1483
  %v1496 = vadd.f32 %v1474, %v1483
  %v1497 = vadd.f32 %v1475, %v1483
  %v1498 = vadd.f32 %v1476, %v1483
  %v1499 = vadd.f32 %v1477, %v1483
  %v1500 = vadd.f32 %v1478, %v1483
  %v1501 = vmax.f32 %v1485, 0.0
  %v1502 = vmax.f32 %v1486, 0.0
  %v1503 = vmax.f32 %v1487, 0.0
  %v1504 = vmax.f32 %v1488, 0.0
  %v1505 = vmax.f32 %v1489, 0.0
  %v1506 = vmax.f32 %v1490, 0.0
  %v1507 = vmax.f32 %v1491, 0.0
  %v1508 = vmax.f32 %v1492, 0.0
  %v1509 = vmax.f32 %v1493, 0.0
  %v1510 = vmax.f32 %v1494, 0.0
  %v1511 = vmax.f32 %v1495, 0.0
  %v1512 = vmax.f32 %v1496, 0.0
  %v1513 = vmax.f32 %v1497, 0.0
  %v1514 = vmax.f32 %v1498, 0.0
  %v1515 = vmax.f32 %v1499, 0.0
  %v1516 = vmax.f32 %v1500, 0.0
  %1517 = vst.msk [vmem:[%s13] sm:$0xff] %vm48, %v1501
  %1518 = vst.msk [vmem:[%s13 + $0x8] sm:$0xff] %vm48, %v1502
  %1519 = vst.msk [vmem:[%s13 + $0x10] sm:$0xff] %vm48, %v1503
  %1520 = vst.msk [vmem:[%s13 + $0x18] sm:$0xff] %vm48, %v1504
  %1521 = vst.msk [vmem:[%s13 + $0x20] sm:$0xff] %vm48, %v1505
  %1522 = vst.msk [vmem:[%s13 + $0x28] sm:$0xff] %vm48, %v1506
  %1523 = vst.msk [vmem:[%s13 + $0x30] sm:$0xff] %vm48, %v1507
  %1524 = vst.msk [vmem:[%s13 + $0x38] sm:$0xff] %vm48, %v1508
  %1525 = vst.msk [vmem:[%s13 + $0x40] sm:$0xff] %vm48, %v1509
  %1526 = vst.msk [vmem:[%s13 + $0x48] sm:$0xff] %vm48, %v1510
  %1527 = vst.msk [vmem:[%s13 + $0x50] sm:$0xff] %vm48, %v1511
  %1528 = vst.msk [vmem:[%s13 + $0x58] sm:$0xff] %vm48, %v1512
  %1529 = vst.msk [vmem:[%s13 + $0x60] sm:$0xff] %vm48, %v1513
  %1530 = vst.msk [vmem:[%s13 + $0x68] sm:$0xff] %vm48, %v1514
  %1531 = vst.msk [vmem:[%s13 + $0x70] sm:$0xff] %vm48, %v1515
  %1532 = vst.msk [vmem:[%s13 + $0x78] sm:$0xff] %vm48, %v1516
  %v1533 = vsel %vm70, %v1501, -inf
  %v1534 = vrot.slane %v1533, 4
  %v1535 = vmax.f32 %v1533, %v1534
  %v1536 = vrot.slane %v1535, 2
  %v1537 = vmax.f32 %v1535, %v1536
  %v1538 = vrot.slane %v1537, 1
  %v1539 = vmax.f32 %v1537, %v1538
  %v1540 = vsel %vm70, %v1509, -inf
  %v1541 = vrot.slane %v1540, 4
  %v1542 = vmax.f32 %v1540, %v1541
  %v1543 = vrot.slane %v1542, 2
  %v1544 = vmax.f32 %v1542, %v1543
  %v1545 = vrot.slane %v1544, 1
  %v1546 = vmax.f32 %v1544, %v1545
  %vm1547 = vcmask 122880
  %1548 = vst.msk [vmem:[#allocation3 + $0x2] sm:$0x1] %vm1547, %v1539
  %1549 = vst.msk [vmem:[#allocation3 + $0x1a] sm:$0x1] %vm1547, %v1546
  %vm1550 = vcmask 130052
  %v1551 = vsel %vm1550, %v1501, -inf
  %v1552 = vrot.slane %v1551, 4
  %v1553 = vmax.f32 %v1551, %v1552
  %v1554 = vrot.slane %v1553, 2
  %v1555 = vmax.f32 %v1553, %v1554
  %v1556 = vrot.slane %v1555, 1
  %v1557 = vmax.f32 %v1555, %v1556
  %v1558 = vsel %vm1550, %v1509, -inf
  %v1559 = vrot.slane %v1558, 4
  %v1560 = vmax.f32 %v1558, %v1559
  %v1561 = vrot.slane %v1560, 2
  %v1562 = vmax.f32 %v1560, %v1561
  %v1563 = vrot.slane %v1562, 1
  %v1564 = vmax.f32 %v1562, %v1563
  %1565 = vst.msk [vmem:[#allocation3 + $0x3] sm:$0x1] %vm1547, %v1557
  %1566 = vst.msk [vmem:[#allocation3 + $0x1b] sm:$0x1] %vm1547, %v1564
  %v1567 = vsel %vm70, %v1502, -inf
  %v1568 = vrot.slane %v1567, 4
  %v1569 = vmax.f32 %v1567, %v1568
  %v1570 = vrot.slane %v1569, 2
  %v1571 = vmax.f32 %v1569, %v1570
  %v1572 = vrot.slane %v1571, 1
  %v1573 = vmax.f32 %v1571, %v1572
  %v1574 = vsel %vm70, %v1510, -inf
  %v1575 = vrot.slane %v1574, 4
  %v1576 = vmax.f32 %v1574, %v1575
  %v1577 = vrot.slane %v1576, 2
  %v1578 = vmax.f32 %v1576, %v1577
  %v1579 = vrot.slane %v1578, 1
  %v1580 = vmax.f32 %v1578, %v1579
  %1581 = vst.msk [vmem:[#allocation3 + $0x4] sm:$0x1] %vm1547, %v1573
  %1582 = vst.msk [vmem:[#allocation3 + $0x1c] sm:$0x1] %vm1547, %v1580
  %v1583 = vsel %vm1550, %v1502, -inf
  %v1584 = vrot.slane %v1583, 4
  %v1585 = vmax.f32 %v1583, %v1584
  %v1586 = vrot.slane %v1585, 2
  %v1587 = vmax.f32 %v1585, %v1586
  %v1588 = vrot.slane %v1587, 1
  %v1589 = vmax.f32 %v1587, %v1588
  %v1590 = vsel %vm1550, %v1510, -inf
  %v1591 = vrot.slane %v1590, 4
  %v1592 = vmax.f32 %v1590, %v1591
  %v1593 = vrot.slane %v1592, 2
  %v1594 = vmax.f32 %v1592, %v1593
  %v1595 = vrot.slane %v1594, 1
  %v1596 = vmax.f32 %v1594, %v1595
  %1597 = vst.msk [vmem:[#allocation3 + $0x5] sm:$0x1] %vm1547, %v1589
  %1598 = vst.msk [vmem:[#allocation3 + $0x1d] sm:$0x1] %vm1547, %v1596
  %v1599 = vsel %vm70, %v1503, -inf
  %v1600 = vrot.slane %v1599, 4
  %v1601 = vmax.f32 %v1599, %v1600
  %v1602 = vrot.slane %v1601, 2
  %v1603 = vmax.f32 %v1601, %v1602
  %v1604 = vrot.slane %v1603, 1
  %v1605 = vmax.f32 %v1603, %v1604
  %v1606 = vsel %vm70, %v1511, -inf
  %v1607 = vrot.slane %v1606, 4
  %v1608 = vmax.f32 %v1606, %v1607
  %v1609 = vrot.slane %v1608, 2
  %v1610 = vmax.f32 %v1608, %v1609
  %v1611 = vrot.slane %v1610, 1
  %v1612 = vmax.f32 %v1610, %v1611
  %1613 = vst.msk [vmem:[#allocation3 + $0x6] sm:$0x1] %vm1547, %v1605
  %1614 = vst.msk [vmem:[#allocation3 + $0x1e] sm:$0x1] %vm1547, %v1612
  %v1615 = vsel %vm1550, %v1503, -inf
  %v1616 = vrot.slane %v1615, 4
  %v1617 = vmax.f32 %v1615, %v1616
  %v1618 = vrot.slane %v1617, 2
  %v1619 = vmax.f32 %v1617, %v1618
  %v1620 = vrot.slane %v1619, 1
  %v1621 = vmax.f32 %v1619, %v1620
  %v1622 = vsel %vm1550, %v1511, -inf
  %v1623 = vrot.slane %v1622, 4
  %v1624 = vmax.f32 %v1622, %v1623
  %v1625 = vrot.slane %v1624, 2
  %v1626 = vmax.f32 %v1624, %v1625
  %v1627 = vrot.slane %v1626, 1
  %v1628 = vmax.f32 %v1626, %v1627
  %1629 = vst.msk [vmem:[#allocation3 + $0x7] sm:$0x1] %vm1547, %v1621
  %1630 = vst.msk [vmem:[#allocation3 + $0x1f] sm:$0x1] %vm1547, %v1628
  %v1631 = vsel %vm70, %v1504, -inf
  %v1632 = vrot.slane %v1631, 4
  %v1633 = vmax.f32 %v1631, %v1632
  %v1634 = vrot.slane %v1633, 2
  %v1635 = vmax.f32 %v1633, %v1634
  %v1636 = vrot.slane %v1635, 1
  %v1637 = vmax.f32 %v1635, %v1636
  %v1638 = vsel %vm70, %v1512, -inf
  %v1639 = vrot.slane %v1638, 4
  %v1640 = vmax.f32 %v1638, %v1639
  %v1641 = vrot.slane %v1640, 2
  %v1642 = vmax.f32 %v1640, %v1641
  %v1643 = vrot.slane %v1642, 1
  %v1644 = vmax.f32 %v1642, %v1643
  %1645 = vst.msk [vmem:[#allocation3 + $0x8] sm:$0x1] %vm1547, %v1637
  %1646 = vst.msk [vmem:[#allocation3 + $0x20] sm:$0x1] %vm1547, %v1644
  %v1647 = vsel %vm1550, %v1504, -inf
  %v1648 = vrot.slane %v1647, 4
  %v1649 = vmax.f32 %v1647, %v1648
  %v1650 = vrot.slane %v1649, 2
  %v1651 = vmax.f32 %v1649, %v1650
  %v1652 = vrot.slane %v1651, 1
  %v1653 = vmax.f32 %v1651, %v1652
  %v1654 = vsel %vm1550, %v1512, -inf
  %v1655 = vrot.slane %v1654, 4
  %v1656 = vmax.f32 %v1654, %v1655
  %v1657 = vrot.slane %v1656, 2
  %v1658 = vmax.f32 %v1656, %v1657
  %v1659 = vrot.slane %v1658, 1
  %v1660 = vmax.f32 %v1658, %v1659
  %1661 = vst.msk [vmem:[#allocation3 + $0x9] sm:$0x1] %vm1547, %v1653
  %1662 = vst.msk [vmem:[#allocation3 + $0x21] sm:$0x1] %vm1547, %v1660
  %v1663 = vsel %vm70, %v1505, -inf
  %v1664 = vrot.slane %v1663, 4
  %v1665 = vmax.f32 %v1663, %v1664
  %v1666 = vrot.slane %v1665, 2
  %v1667 = vmax.f32 %v1665, %v1666
  %v1668 = vrot.slane %v1667, 1
  %v1669 = vmax.f32 %v1667, %v1668
  %v1670 = vsel %vm70, %v1513, -inf
  %v1671 = vrot.slane %v1670, 4
  %v1672 = vmax.f32 %v1670, %v1671
  %v1673 = vrot.slane %v1672, 2
  %v1674 = vmax.f32 %v1672, %v1673
  %v1675 = vrot.slane %v1674, 1
  %v1676 = vmax.f32 %v1674, %v1675
  %1677 = vst.msk [vmem:[#allocation3 + $0xa] sm:$0x1] %vm1547, %v1669
  %1678 = vst.msk [vmem:[#allocation3 + $0x22] sm:$0x1] %vm1547, %v1676
  %v1679 = vsel %vm1550, %v1505, -inf
  %v1680 = vrot.slane %v1679, 4
  %v1681 = vmax.f32 %v1679, %v1680
  %v1682 = vrot.slane %v1681, 2
  %v1683 = vmax.f32 %v1681, %v1682
  %v1684 = vrot.slane %v1683, 1
  %v1685 = vmax.f32 %v1683, %v1684
  %v1686 = vsel %vm1550, %v1513, -inf
  %v1687 = vrot.slane %v1686, 4
  %v1688 = vmax.f32 %v1686, %v1687
  %v1689 = vrot.slane %v1688, 2
  %v1690 = vmax.f32 %v1688, %v1689
  %v1691 = vrot.slane %v1690, 1
  %v1692 = vmax.f32 %v1690, %v1691
  %1693 = vst.msk [vmem:[#allocation3 + $0xb] sm:$0x1] %vm1547, %v1685
  %1694 = vst.msk [vmem:[#allocation3 + $0x23] sm:$0x1] %vm1547, %v1692
  %v1695 = vsel %vm70, %v1506, -inf
  %v1696 = vrot.slane %v1695, 4
  %v1697 = vmax.f32 %v1695, %v1696
  %v1698 = vrot.slane %v1697, 2
  %v1699 = vmax.f32 %v1697, %v1698
  %v1700 = vrot.slane %v1699, 1
  %v1701 = vmax.f32 %v1699, %v1700
  %v1702 = vsel %vm70, %v1514, -inf
  %v1703 = vrot.slane %v1702, 4
  %v1704 = vmax.f32 %v1702, %v1703
  %v1705 = vrot.slane %v1704, 2
  %v1706 = vmax.f32 %v1704, %v1705
  %v1707 = vrot.slane %v1706, 1
  %v1708 = vmax.f32 %v1706, %v1707
  %1709 = vst.msk [vmem:[#allocation3 + $0xc] sm:$0x1] %vm1547, %v1701
  %1710 = vst.msk [vmem:[#allocation3 + $0x24] sm:$0x1] %vm1547, %v1708
  %v1711 = vsel %vm1550, %v1506, -inf
  %v1712 = vrot.slane %v1711, 4
  %v1713 = vmax.f32 %v1711, %v1712
  %v1714 = vrot.slane %v1713, 2
  %v1715 = vmax.f32 %v1713, %v1714
  %v1716 = vrot.slane %v1715, 1
  %v1717 = vmax.f32 %v1715, %v1716
  %v1718 = vsel %vm1550, %v1514, -inf
  %v1719 = vrot.slane %v1718, 4
  %v1720 = vmax.f32 %v1718, %v1719
  %v1721 = vrot.slane %v1720, 2
  %v1722 = vmax.f32 %v1720, %v1721
  %v1723 = vrot.slane %v1722, 1
  %v1724 = vmax.f32 %v1722, %v1723
  %1725 = vst.msk [vmem:[#allocation3 + $0xd] sm:$0x1] %vm1547, %v1717
  %1726 = vst.msk [vmem:[#allocation3 + $0x25] sm:$0x1] %vm1547, %v1724
  %v1727 = vsel %vm70, %v1507, -inf
  %v1728 = vrot.slane %v1727, 4
  %v1729 = vmax.f32 %v1727, %v1728
  %v1730 = vrot.slane %v1729, 2
  %v1731 = vmax.f32 %v1729, %v1730
  %v1732 = vrot.slane %v1731, 1
  %v1733 = vmax.f32 %v1731, %v1732
  %v1734 = vsel %vm70, %v1515, -inf
  %v1735 = vrot.slane %v1734, 4
  %v1736 = vmax.f32 %v1734, %v1735
  %v1737 = vrot.slane %v1736, 2
  %v1738 = vmax.f32 %v1736, %v1737
  %v1739 = vrot.slane %v1738, 1
  %v1740 = vmax.f32 %v1738, %v1739
  %1741 = vst.msk [vmem:[#allocation3 + $0xe] sm:$0x1] %vm1547, %v1733
  %1742 = vst.msk [vmem:[#allocation3 + $0x26] sm:$0x1] %vm1547, %v1740
  %v1743 = vsel %vm1550, %v1507, -inf
  %v1744 = vrot.slane %v1743, 4
  %v1745 = vmax.f32 %v1743, %v1744
  %v1746 = vrot.slane %v1745, 2
  %v1747 = vmax.f32 %v1745, %v1746
  %v1748 = vrot.slane %v1747, 1
  %v1749 = vmax.f32 %v1747, %v1748
  %v1750 = vsel %vm1550, %v1515, -inf
  %v1751 = vrot.slane %v1750, 4
  %v1752 = vmax.f32 %v1750, %v1751
  %v1753 = vrot.slane %v1752, 2
  %v1754 = vmax.f32 %v1752, %v1753
  %v1755 = vrot.slane %v1754, 1
  %v1756 = vmax.f32 %v1754, %v1755
  %1757 = vst.msk [vmem:[#allocation3 + $0xf] sm:$0x1] %vm1547, %v1749
  %1758 = vst.msk [vmem:[#allocation3 + $0x27] sm:$0x1] %vm1547, %v1756
  %v1759 = vsel %vm70, %v1508, -inf
  %v1760 = vrot.slane %v1759, 4
  %v1761 = vmax.f32 %v1759, %v1760
  %v1762 = vrot.slane %v1761, 2
  %v1763 = vmax.f32 %v1761, %v1762
  %v1764 = vrot.slane %v1763, 1
  %v1765 = vmax.f32 %v1763, %v1764
  %v1766 = vsel %vm70, %v1516, -inf
  %v1767 = vrot.slane %v1766, 4
  %v1768 = vmax.f32 %v1766, %v1767
  %v1769 = vrot.slane %v1768, 2
  %v1770 = vmax.f32 %v1768, %v1769
  %v1771 = vrot.slane %v1770, 1
  %v1772 = vmax.f32 %v1770, %v1771
  %1773 = vst.msk [vmem:[#allocation3 + $0x10] sm:$0x1] %vm1547, %v1765
  %1774 = vst.msk [vmem:[#allocation3 + $0x28] sm:$0x1] %vm1547, %v1772
  %v1775 = vsel %vm1550, %v1508, -inf
  %v1776 = vrot.slane %v1775, 4
  %v1777 = vmax.f32 %v1775, %v1776
  %v1778 = vrot.slane %v1777, 2
  %v1779 = vmax.f32 %v1777, %v1778
  %v1780 = vrot.slane %v1779, 1
  %v1781 = vmax.f32 %v1779, %v1780
  %v1782 = vsel %vm1550, %v1516, -inf
  %v1783 = vrot.slane %v1782, 4
  %v1784 = vmax.f32 %v1782, %v1783
  %v1785 = vrot.slane %v1784, 2
  %v1786 = vmax.f32 %v1784, %v1785
  %v1787 = vrot.slane %v1786, 1
  %v1788 = vmax.f32 %v1786, %v1787
  %1789 = vst.msk [vmem:[#allocation3 + $0x11] sm:$0x1] %vm1547, %v1781
  %1790 = vst.msk [vmem:[#allocation3 + $0x29] sm:$0x1] %vm1547, %v1788
  %v1791 = vld [vmem:[%s5] sm:$0xf]
  %v1792 = vld [vmem:[%s5 + $0x4] sm:$0xf]
  %v1793 = vld [vmem:[%s5 + $0x8] sm:$0xf]
  %v1794 = vld [vmem:[%s5 + $0xc] sm:$0xf]
  %v1795 = vld [vmem:[%s5 + $0x10] sm:$0xf]
  %v1796 = vld [vmem:[%s5 + $0x14] sm:$0xf]
  %v1797 = vld [vmem:[%s5 + $0x18] sm:$0xf]
  %v1798 = vld [vmem:[%s5 + $0x1c] sm:$0xf]
  %v1799 = vld [vmem:[%s5 + $0x20] sm:$0xf]
  %v1800 = vld [vmem:[%s5 + $0x24] sm:$0xf]
  %v1801 = vld [vmem:[%s6] sm:$0x1]
  %v1802 = vld [vmem:[#allocation3] sm:$0xff]
  %v1803 = vld [vmem:[#allocation3 + $0x8] sm:$0xff]
  %v1804 = vld [vmem:[#allocation3 + $0x18] sm:$0xff]
  %v1805 = vld [vmem:[#allocation3 + $0x20] sm:$0xff]
  %v1806 = vpack.c.bf16 %v1803, %v1802
  %v1807 = vpack.c.bf16 %v1805, %v1804
  %v1808 = vld [vmem:[#allocation3 + $0x1] sm:$0xff]
  %v1809 = vld [vmem:[#allocation3 + $0x9] sm:$0xff]
  %v1810 = vld [vmem:[#allocation3 + $0x19] sm:$0xff]
  %v1811 = vld [vmem:[#allocation3 + $0x21] sm:$0xff]
  %v1812 = vpack.c.bf16 %v1809, %v1808
  %v1813 = vpack.c.bf16 %v1811, %v1810
  %v1816 = vunpack.c.l.b16 %v1793
  %v1817 = vunpack.c.l.b16 %v1794
  %v1818 = vpack.c.b16 %v1817, %v1816
  %v1821 = vsel %vm48, %v1812, 0
  %v1824 = vsel %vm48, %v1813, 0
  %1826 = vmatprep.subr.bf16.mxu0 0
  %1827 = vmatpush1.bf16.msra.mxu0 %v1818
  %1828 = vmatprep.subr.bf16.mxu0 0
  %1829 = vmatpush1.bf16.msra.mxu0 0
  %1830 = vmatprep.subr.bf16.mxu0 0
  %1831 = vmatpush1.bf16.msra.mxu0 0
  %1832 = vmatprep.subr.bf16.mxu0 0
  %1833 = vmatpush1.bf16.msra.mxu0 0
  %1834 = vmatprep.subr.bf16.mxu0 0
  %1835 = vmatpush1.bf16.msra.mxu0 0
  %1836 = vmatprep.subr.bf16.mxu0 0
  %1837 = vmatpush1.bf16.msra.mxu0 0
  %1838 = vmatprep.subr.bf16.mxu0 0
  %1839 = vmatpush1.bf16.msra.mxu0 0
  %1840 = vmatprep.subr.bf16.mxu0 0
  %1841 = vmatpush1.bf16.msra.mxu0 0
  %1842 = vmatprep.subr.bf16.mxu0 0
  %1843 = vmatpush1.bf16.msra.mxu0 0
  %1844 = vmatprep.subr.bf16.mxu0 0
  %1845 = vmatpush1.bf16.msra.mxu0 0
  %1846 = vmatprep.subr.bf16.mxu0 0
  %1847 = vmatpush1.bf16.msra.mxu0 0
  %1848 = vmatprep.subr.bf16.mxu0 0
  %1849 = vmatpush1.bf16.msra.mxu0 0
  %1850 = vmatprep.subr.bf16.mxu0 0
  %1851 = vmatpush1.bf16.msra.mxu0 0
  %1852 = vmatprep.subr.bf16.mxu0 0
  %1853 = vmatpush1.bf16.msra.mxu0 0
  %1854 = vmatprep.subr.bf16.mxu0 0
  %1855 = vmatpush1.bf16.msra.mxu0 0
  %1856 = vmatprep.subr.bf16.mxu0 0
  %1857 = vmatpush1.bf16.msra.mxu0 0
  %1858 = vmatprep.mubr.bf16.mxu0 0
  %1859 = vmatmul.mubr.bf16.gmra.mrb[0].mxu0 %v1821
  %v1860 = vpop.f32.mrb[0].mxu0
  %v1861 = vadd.f32 0.0, %v1860
  %v1862 = vpop.f32.mrb[0].mxu0
  %v1863 = vpop.f32.mrb[0].mxu0
  %v1864 = vadd.f32 0.0, %v1863
  %v1865 = vpop.f32.mrb[0].mxu0
  %1866 = vmatprep.mubr.bf16.mxu0 0
  %1867 = vmatmul.mubr.bf16.gmra.mrb[0].mxu0 %v1824
  %v1868 = vpop.f32.mrb[0].mxu0
  %v1869 = vadd.f32 0.0, %v1868
  %v1870 = vpop.f32.mrb[0].mxu0
  %v1871 = vpop.f32.mrb[0].mxu0
  %v1872 = vadd.f32 0.0, %v1871
  %v1873 = vpop.f32.mrb[0].mxu0
  %1874 = vdwg.mxu0
  %v1877 = vunpack.c.l.b16 %v1791
  %v1878 = vunpack.c.l.b16 %v1792
  %v1879 = vpack.c.b16 %v1878, %v1877
  %v1882 = vsel %vm48, %v1806, 0
  %v1885 = vsel %vm48, %v1807, 0
  %1887 = vmatprep.subr.bf16.mxu0 0
  %1888 = vmatpush1.bf16.msra.mxu0 %v1879
  %1889 = vmatprep.subr.bf16.mxu0 0
  %1890 = vmatpush1.bf16.msra.mxu0 0
  %1891 = vmatprep.subr.bf16.mxu0 0
  %1892 = vmatpush1.bf16.msra.mxu0 0
  %1893 = vmatprep.subr.bf16.mxu0 0
  %1894 = vmatpush1.bf16.msra.mxu0 0
  %1895 = vmatprep.subr.bf16.mxu0 0
  %1896 = vmatpush1.bf16.msra.mxu0 0
  %1897 = vmatprep.subr.bf16.mxu0 0
  %1898 = vmatpush1.bf16.msra.mxu0 0
  %1899 = vmatprep.subr.bf16.mxu0 0
  %1900 = vmatpush1.bf16.msra.mxu0 0
  %1901 = vmatprep.subr.bf16.mxu0 0
  %1902 = vmatpush1.bf16.msra.mxu0 0
  %1903 = vmatprep.subr.bf16.mxu0 0
  %1904 = vmatpush1.bf16.msra.mxu0 0
  %1905 = vmatprep.subr.bf16.mxu0 0
  %1906 = vmatpush1.bf16.msra.mxu0 0
  %1907 = vmatprep.subr.bf16.mxu0 0
  %1908 = vmatpush1.bf16.msra.mxu0 0
  %1909 = vmatprep.subr.bf16.mxu0 0
  %1910 = vmatpush1.bf16.msra.mxu0 0
  %1911 = vmatprep.subr.bf16.mxu0 0
  %1912 = vmatpush1.bf16.msra.mxu0 0
  %1913 = vmatprep.subr.bf16.mxu0 0
  %1914 = vmatpush1.bf16.msra.mxu0 0
  %1915 = vmatprep.subr.bf16.mxu0 0
  %1916 = vmatpush1.bf16.msra.mxu0 0
  %1917 = vmatprep.subr.bf16.mxu0 0
  %1918 = vmatpush1.bf16.msra.mxu0 0
  %1919 = vmatprep.mubr.bf16.mxu0 0
  %1920 = vmatmul.mubr.bf16.gmra.mrb[0].mxu0 %v1882
  %v1921 = vpop.f32.mrb[0].mxu0
  %v1922 = vadd.f32 %v1861, %v1921
  %v1923 = vpop.f32.mrb[0].mxu0
  %v1924 = vpop.f32.mrb[0].mxu0
  %v1925 = vadd.f32 %v1864, %v1924
  %v1926 = vpop.f32.mrb[0].mxu0
  %1927 = vmatprep.mubr.bf16.mxu0 0
  %1928 = vmatmul.mubr.bf16.gmra.mrb[0].mxu0 %v1885
  %v1929 = vpop.f32.mrb[0].mxu0
  %v1930 = vadd.f32 %v1869, %v1929
  %v1931 = vpop.f32.mrb[0].mxu0
  %v1932 = vpop.f32.mrb[0].mxu0
  %v1933 = vadd.f32 %v1872, %v1932
  %v1934 = vpop.f32.mrb[0].mxu0
  %1935 = vdwg.mxu0
  %v1936 = vld [vmem:[#allocation3 + $0x2] sm:$0xff]
  %v1937 = vld [vmem:[#allocation3 + $0xa] sm:$0xff]
  %v1938 = vld [vmem:[#allocation3 + $0x1a] sm:$0xff]
  %v1939 = vld [vmem:[#allocation3 + $0x22] sm:$0xff]
  %v1940 = vpack.c.bf16 %v1937, %v1936
  %v1941 = vpack.c.bf16 %v1939, %v1938
  %v1944 = vunpack.c.l.b16 %v1795
  %v1945 = vunpack.c.l.b16 %v1796
  %v1946 = vpack.c.b16 %v1945, %v1944
  %v1949 = vsel %vm48, %v1940, 0
  %v1952 = vsel %vm48, %v1941, 0
  %1954 = vmatprep.subr.bf16.mxu0 0
  %1955 = vmatpush1.bf16.msra.mxu0 %v1946
  %1956 = vmatprep.subr.bf16.mxu0 0
  %1957 = vmatpush1.bf16.msra.mxu0 0
  %1958 = vmatprep.subr.bf16.mxu0 0
  %1959 = vmatpush1.bf16.msra.mxu0 0
  %1960 = vmatprep.subr.bf16.mxu0 0
  %1961 = vmatpush1.bf16.msra.mxu0 0
  %1962 = vmatprep.subr.bf16.mxu0 0
  %1963 = vmatpush1.bf16.msra.mxu0 0
  %1964 = vmatprep.subr.bf16.mxu0 0
  %1965 = vmatpush1.bf16.msra.mxu0 0
  %1966 = vmatprep.subr.bf16.mxu0 0
  %1967 = vmatpush1.bf16.msra.mxu0 0
  %1968 = vmatprep.subr.bf16.mxu0 0
  %1969 = vmatpush1.bf16.msra.mxu0 0
  %1970 = vmatprep.subr.bf16.mxu0 0
  %1971 = vmatpush1.bf16.msra.mxu0 0
  %1972 = vmatprep.subr.bf16.mxu0 0
  %1973 = vmatpush1.bf16.msra.mxu0 0
  %1974 = vmatprep.subr.bf16.mxu0 0
  %1975 = vmatpush1.bf16.msra.mxu0 0
  %1976 = vmatprep.subr.bf16.mxu0 0
  %1977 = vmatpush1.bf16.msra.mxu0 0
  %1978 = vmatprep.subr.bf16.mxu0 0
  %1979 = vmatpush1.bf16.msra.mxu0 0
  %1980 = vmatprep.subr.bf16.mxu0 0
  %1981 = vmatpush1.bf16.msra.mxu0 0
  %1982 = vmatprep.subr.bf16.mxu0 0
  %1983 = vmatpush1.bf16.msra.mxu0 0
  %1984 = vmatprep.subr.bf16.mxu0 0
  %1985 = vmatpush1.bf16.msra.mxu0 0
  %1986 = vmatprep.mubr.bf16.mxu0 0
  %1987 = vmatmul.mubr.bf16.gmra.mrb[0].mxu0 %v1949
  %v1988 = vpop.f32.mrb[0].mxu0
  %v1989 = vadd.f32 0.0, %v1988
  %v1990 = vpop.f32.mrb[0].mxu0
  %v1991 = vpop.f32.mrb[0].mxu0
  %v1992 = vadd.f32 0.0, %v1991
  %v1993 = vpop.f32.mrb[0].mxu0
  %1994 = vmatprep.mubr.bf16.mxu0 0
  %1995 = vmatmul.mubr.bf16.gmra.mrb[0].mxu0 %v1952
  %v1996 = vpop.f32.mrb[0].mxu0
  %v1997 = vadd.f32 0.0, %v1996
  %v1998 = vpop.f32.mrb[0].mxu0
  %v1999 = vpop.f32.mrb[0].mxu0
  %v2000 = vadd.f32 0.0, %v1999
  %v2001 = vpop.f32.mrb[0].mxu0
  %2002 = vdwg.mxu0
  %v2003 = vadd.f32 %v1922, %v1989
  %v2004 = vadd.f32 %v1925, %v1992
  %v2005 = vadd.f32 %v1930, %v1997
  %v2006 = vadd.f32 %v1933, %v2000
  %v2007 = vld [vmem:[#allocation3 + $0x3] sm:$0xff]
  %v2008 = vld [vmem:[#allocation3 + $0xb] sm:$0xff]
  %v2009 = vld [vmem:[#allocation3 + $0x1b] sm:$0xff]
  %v2010 = vld [vmem:[#allocation3 + $0x23] sm:$0xff]
  %v2011 = vpack.c.bf16 %v2008, %v2007
  %v2012 = vpack.c.bf16 %v2010, %v2009
  %v2015 = vunpack.c.l.b16 %v1797
  %v2016 = vunpack.c.l.b16 %v1798
  %v2017 = vpack.c.b16 %v2016, %v2015
  %v2020 = vsel %vm48, %v2011, 0
  %v2023 = vsel %vm48, %v2012, 0
  %2025 = vmatprep.subr.bf16.mxu0 0
  %2026 = vmatpush1.bf16.msra.mxu0 %v2017
  %2027 = vmatprep.subr.bf16.mxu0 0
  %2028 = vmatpush1.bf16.msra.mxu0 0
  %2029 = vmatprep.subr.bf16.mxu0 0
  %2030 = vmatpush1.bf16.msra.mxu0 0
  %2031 = vmatprep.subr.bf16.mxu0 0
  %2032 = vmatpush1.bf16.msra.mxu0 0
  %2033 = vmatprep.subr.bf16.mxu0 0
  %2034 = vmatpush1.bf16.msra.mxu0 0
  %2035 = vmatprep.subr.bf16.mxu0 0
  %2036 = vmatpush1.bf16.msra.mxu0 0
  %2037 = vmatprep.subr.bf16.mxu0 0
  %2038 = vmatpush1.bf16.msra.mxu0 0
  %2039 = vmatprep.subr.bf16.mxu0 0
  %2040 = vmatpush1.bf16.msra.mxu0 0
  %2041 = vmatprep.subr.bf16.mxu0 0
  %2042 = vmatpush1.bf16.msra.mxu0 0
  %2043 = vmatprep.subr.bf16.mxu0 0
  %2044 = vmatpush1.bf16.msra.mxu0 0
  %2045 = vmatprep.subr.bf16.mxu0 0
  %2046 = vmatpush1.bf16.msra.mxu0 0
  %2047 = vmatprep.subr.bf16.mxu0 0
  %2048 = vmatpush1.bf16.msra.mxu0 0
  %2049 = vmatprep.subr.bf16.mxu0 0
  %2050 = vmatpush1.bf16.msra.mxu0 0
  %2051 = vmatprep.subr.bf16.mxu0 0
  %2052 = vmatpush1.bf16.msra.mxu0 0
  %2053 = vmatprep.subr.bf16.mxu0 0
  %2054 = vmatpush1.bf16.msra.mxu0 0
  %2055 = vmatprep.subr.bf16.mxu0 0
  %2056 = vmatpush1.bf16.msra.mxu0 0
  %2057 = vmatprep.mubr.bf16.mxu0 0
  %2058 = vmatmul.mubr.bf16.gmra.mrb[0].mxu0 %v2020
  %v2059 = vpop.f32.mrb[0].mxu0
  %v2060 = vadd.f32 0.0, %v2059
  %v2061 = vpop.f32.mrb[0].mxu0
  %v2062 = vpop.f32.mrb[0].mxu0
  %v2063 = vadd.f32 0.0, %v2062
  %v2064 = vpop.f32.mrb[0].mxu0
  %2065 = vmatprep.mubr.bf16.mxu0 0
  %2066 = vmatmul.mubr.bf16.gmra.mrb[0].mxu0 %v2023
  %v2067 = vpop.f32.mrb[0].mxu0
  %v2068 = vadd.f32 0.0, %v2067
  %v2069 = vpop.f32.mrb[0].mxu0
  %v2070 = vpop.f32.mrb[0].mxu0
  %v2071 = vadd.f32 0.0, %v2070
  %v2072 = vpop.f32.mrb[0].mxu0
  %2073 = vdwg.mxu0
  %v2074 = vadd.f32 %v2003, %v2060
  %v2075 = vadd.f32 %v2004, %v2063
  %v2076 = vadd.f32 %v2005, %v2068
  %v2077 = vadd.f32 %v2006, %v2071
  %v2078 = vld [vmem:[#allocation3 + $0x4] sm:$0xff]
  %v2079 = vld [vmem:[#allocation3 + $0xc] sm:$0xff]
  %v2080 = vld [vmem:[#allocation3 + $0x1c] sm:$0xff]
  %v2081 = vld [vmem:[#allocation3 + $0x24] sm:$0xff]
  %v2082 = vpack.c.bf16 %v2079, %v2078
  %v2083 = vpack.c.bf16 %v2081, %v2080
  %v2086 = vunpack.c.l.b16 %v1799
  %v2087 = vunpack.c.l.b16 %v1800
  %v2088 = vpack.c.b16 %v2087, %v2086
  %v2091 = vsel %vm48, %v2082, 0
  %v2094 = vsel %vm48, %v2083, 0
  %2096 = vmatprep.subr.bf16.mxu0 0
  %2097 = vmatpush1.bf16.msra.mxu0 %v2088
  %2098 = vmatprep.subr.bf16.mxu0 0
  %2099 = vmatpush1.bf16.msra.mxu0 0
  %2100 = vmatprep.subr.bf16.mxu0 0
  %2101 = vmatpush1.bf16.msra.mxu0 0
  %2102 = vmatprep.subr.bf16.mxu0 0
  %2103 = vmatpush1.bf16.msra.mxu0 0
  %2104 = vmatprep.subr.bf16.mxu0 0
  %2105 = vmatpush1.bf16.msra.mxu0 0
  %2106 = vmatprep.subr.bf16.mxu0 0
  %2107 = vmatpush1.bf16.msra.mxu0 0
  %2108 = vmatprep.subr.bf16.mxu0 0
  %2109 = vmatpush1.bf16.msra.mxu0 0
  %2110 = vmatprep.subr.bf16.mxu0 0
  %2111 = vmatpush1.bf16.msra.mxu0 0
  %2112 = vmatprep.subr.bf16.mxu0 0
  %2113 = vmatpush1.bf16.msra.mxu0 0
  %2114 = vmatprep.subr.bf16.mxu0 0
  %2115 = vmatpush1.bf16.msra.mxu0 0
  %2116 = vmatprep.subr.bf16.mxu0 0
  %2117 = vmatpush1.bf16.msra.mxu0 0
  %2118 = vmatprep.subr.bf16.mxu0 0
  %2119 = vmatpush1.bf16.msra.mxu0 0
  %2120 = vmatprep.subr.bf16.mxu0 0
  %2121 = vmatpush1.bf16.msra.mxu0 0
  %2122 = vmatprep.subr.bf16.mxu0 0
  %2123 = vmatpush1.bf16.msra.mxu0 0
  %2124 = vmatprep.subr.bf16.mxu0 0
  %2125 = vmatpush1.bf16.msra.mxu0 0
  %2126 = vmatprep.subr.bf16.mxu0 0
  %2127 = vmatpush1.bf16.msra.mxu0 0
  %2128 = vmatprep.mubr.bf16.mxu0 0
  %2129 = vmatmul.mubr.bf16.gmra.mrb[0].mxu0 %v2091
  %v2130 = vpop.f32.mrb[0].mxu0
  %v2131 = vadd.f32 0.0, %v2130
  %v2132 = vpop.f32.mrb[0].mxu0
  %v2133 = vpop.f32.mrb[0].mxu0
  %v2134 = vadd.f32 0.0, %v2133
  %v2135 = vpop.f32.mrb[0].mxu0
  %2136 = vmatprep.mubr.bf16.mxu0 0
  %2137 = vmatmul.mubr.bf16.gmra.mrb[0].mxu0 %v2094
  %v2138 = vpop.f32.mrb[0].mxu0
  %v2139 = vadd.f32 0.0, %v2138
  %v2140 = vpop.f32.mrb[0].mxu0
  %v2141 = vpop.f32.mrb[0].mxu0
  %v2142 = vadd.f32 0.0, %v2141
  %v2143 = vpop.f32.mrb[0].mxu0
  %2144 = vdwg.mxu0
  %v2145 = vadd.f32 %v2074, %v2131
  %v2146 = vadd.f32 %v2075, %v2134
  %v2147 = vadd.f32 %v2076, %v2139
  %v2148 = vadd.f32 %v2077, %v2142
  %v2150 = vlaneseq
  %v2151 = vshrl.u32 %v2150, 7
  %v2152 = vsub.s32 0, %v2151
  %v2153 = vrot.slane %v1801, %v2152
  %v2155 = vadd.f32 %v2145, %v2153
  %v2156 = vadd.f32 %v2146, %v2153
  %v2157 = vadd.f32 %v2147, %v2153
  %v2158 = vadd.f32 %v2148, %v2153
  %v2159 = vmax.f32 %v2155, 0.0
  %v2160 = vmax.f32 %v2156, 0.0
  %v2161 = vmax.f32 %v2157, 0.0
  %v2162 = vmax.f32 %v2158, 0.0
  %2163 = vst.msk [vmem:[#allocation4 + $0x2] sm:$0xff] %vm75, %v2159
  %2164 = vst.msk [vmem:[#allocation4 + $0xa] sm:$0xff] %vm75, %v2160
  %2165 = vst.msk [vmem:[#allocation4 + $0x1a] sm:$0xff] %vm75, %v2161
  %2166 = vst.msk [vmem:[#allocation4 + $0x22] sm:$0xff] %vm75, %v2162
  %v2167 = vld [vmem:[%s7] sm:$0xf]
  %v2168 = vld [vmem:[%s7 + $0x4] sm:$0xf]
  %v2169 = vld [vmem:[%s7 + $0x8] sm:$0xf]
  %v2170 = vld [vmem:[%s7 + $0xc] sm:$0xf]
  %v2171 = vld [vmem:[%s7 + $0x10] sm:$0xf]
  %v2172 = vld [vmem:[%s7 + $0x14] sm:$0xf]
  %v2173 = vld [vmem:[%s7 + $0x18] sm:$0xf]
  %v2174 = vld [vmem:[%s7 + $0x1c] sm:$0xf]
  %v2175 = vld [vmem:[%s7 + $0x20] sm:$0xf]
  %v2176 = vld [vmem:[%s7 + $0x24] sm:$0xf]
  %v2177 = vld [vmem:[%s7 + $0x28] sm:$0xf]
  %v2178 = vld [vmem:[%s7 + $0x2c] sm:$0xf]
  %v2179 = vld [vmem:[%s7 + $0x30] sm:$0xf]
  %v2180 = vld [vmem:[%s7 + $0x34] sm:$0xf]
  %v2181 = vld [vmem:[%s7 + $0x38] sm:$0xf]
  %v2182 = vld [vmem:[%s7 + $0x3c] sm:$0xf]
  %v2183 = vld [vmem:[%s7 + $0x40] sm:$0xf]
  %v2184 = vld [vmem:[%s7 + $0x44] sm:$0xf]
  %v2185 = vld [vmem:[%s7 + $0x48] sm:$0xf]
  %v2186 = vld [vmem:[%s7 + $0x4c] sm:$0xf]
  %v2187 = vld [vmem:[%s8] sm:$0x1]
  %v2188 = vld [vmem:[#allocation4] sm:$0xff]
  %v2189 = vld [vmem:[#allocation4 + $0x8] sm:$0xff]
  %v2190 = vld [vmem:[#allocation4 + $0x18] sm:$0xff]
  %v2191 = vld [vmem:[#allocation4 + $0x20] sm:$0xff]
  %v2192 = vpack.c.bf16 %v2189, %v2188
  %v2193 = vpack.c.bf16 %v2191, %v2190
  %v2194 = vld [vmem:[#allocation4 + $0x1] sm:$0xff]
  %v2195 = vld [vmem:[#allocation4 + $0x9] sm:$0xff]
  %v2196 = vld [vmem:[#allocation4 + $0x19] sm:$0xff]
  %v2197 = vld [vmem:[#allocation4 + $0x21] sm:$0xff]
  %v2198 = vpack.c.bf16 %v2195, %v2194
  %v2199 = vpack.c.bf16 %v2197, %v2196
  %v2204 = vunpack.c.l.b16 %v2171
  %v2205 = vunpack.c.l.b16 %v2172
  %v2206 = vunpack.c.l.b16 %v2173
  %v2207 = vunpack.c.l.b16 %v2174
  %v2208 = vpack.c.b16 %v2205, %v2204
  %v2209 = vpack.c.b16 %v2207, %v2206
  %v2213 = vsel %vm75, %v2198, 0
  %v2216 = vsel %vm75, %v2199, 0
  %2218 = vmatprep.subr.bf16.mxu0 0
  %2219 = vmatpush1.bf16.msra.mxu0 %v2208
  %2220 = vmatprep.subr.bf16.mxu0 0
  %2221 = vmatpush1.bf16.msra.mxu0 %v2209
  %2222 = vmatprep.subr.bf16.mxu0 0
  %2223 = vmatpush1.bf16.msra.mxu0 0
  %2224 = vmatprep.subr.bf16.mxu0 0
  %2225 = vmatpush1.bf16.msra.mxu0 0
  %2226 = vmatprep.subr.bf16.mxu0 0
  %2227 = vmatpush1.bf16.msra.mxu0 0
  %2228 = vmatprep.subr.bf16.mxu0 0
  %2229 = vmatpush1.bf16.msra.mxu0 0
  %2230 = vmatprep.subr.bf16.mxu0 0
  %2231 = vmatpush1.bf16.msra.mxu0 0
  %2232 = vmatprep.subr.bf16.mxu0 0
  %2233 = vmatpush1.bf16.msra.mxu0 0
  %2234 = vmatprep.subr.bf16.mxu0 0
  %2235 = vmatpush1.bf16.msra.mxu0 0
  %2236 = vmatprep.subr.bf16.mxu0 0
  %2237 = vmatpush1.bf16.msra.mxu0 0
  %2238 = vmatprep.subr.bf16.mxu0 0
  %2239 = vmatpush1.bf16.msra.mxu0 0
  %2240 = vmatprep.subr.bf16.mxu0 0
  %2241 = vmatpush1.bf16.msra.mxu0 0
  %2242 = vmatprep.subr.bf16.mxu0 0
  %2243 = vmatpush1.bf16.msra.mxu0 0
  %2244 = vmatprep.subr.bf16.mxu0 0
  %2245 = vmatpush1.bf16.msra.mxu0 0
  %2246 = vmatprep.subr.bf16.mxu0 0
  %2247 = vmatpush1.bf16.msra.mxu0 0
  %2248 = vmatprep.subr.bf16.mxu0 0
  %2249 = vmatpush1.bf16.msra.mxu0 0
  %2250 = vmatprep.mubr.bf16.mxu0 0
  %2251 = vmatmul.mubr.bf16.gmra.mrb[0].mxu0 %v2213
  %v2252 = vpop.f32.mrb[0].mxu0
  %v2253 = vadd.f32 0.0, %v2252
  %v2254 = vpop.f32.mrb[0].mxu0
  %v2255 = vpop.f32.mrb[0].mxu0
  %v2256 = vadd.f32 0.0, %v2255
  %v2257 = vpop.f32.mrb[0].mxu0
  %2258 = vmatprep.mubr.bf16.mxu0 0
  %2259 = vmatmul.mubr.bf16.gmra.mrb[0].mxu0 %v2216
  %v2260 = vpop.f32.mrb[0].mxu0
  %v2261 = vadd.f32 0.0, %v2260
  %v2262 = vpop.f32.mrb[0].mxu0
  %v2263 = vpop.f32.mrb[0].mxu0
  %v2264 = vadd.f32 0.0, %v2263
  %v2265 = vpop.f32.mrb[0].mxu0
  %2266 = vdwg.mxu0
  %v2271 = vunpack.c.l.b16 %v2167
  %v2272 = vunpack.c.l.b16 %v2168
  %v2273 = vunpack.c.l.b16 %v2169
  %v2274 = vunpack.c.l.b16 %v2170
  %v2275 = vpack.c.b16 %v2272, %v2271
  %v2276 = vpack.c.b16 %v2274, %v2273
  %v2280 = vsel %vm75, %v2192, 0
  %v2283 = vsel %vm75, %v2193, 0
  %2285 = vmatprep.subr.bf16.mxu0 0
  %2286 = vmatpush1.bf16.msra.mxu0 %v2275
  %2287 = vmatprep.subr.bf16.mxu0 0
  %2288 = vmatpush1.bf16.msra.mxu0 %v2276
  %2289 = vmatprep.subr.bf16.mxu0 0
  %2290 = vmatpush1.bf16.msra.mxu0 0
  %2291 = vmatprep.subr.bf16.mxu0 0
  %2292 = vmatpush1.bf16.msra.mxu0 0
  %2293 = vmatprep.subr.bf16.mxu0 0
  %2294 = vmatpush1.bf16.msra.mxu0 0
  %2295 = vmatprep.subr.bf16.mxu0 0
  %2296 = vmatpush1.bf16.msra.mxu0 0
  %2297 = vmatprep.subr.bf16.mxu0 0
  %2298 = vmatpush1.bf16.msra.mxu0 0
  %2299 = vmatprep.subr.bf16.mxu0 0
  %2300 = vmatpush1.bf16.msra.mxu0 0
  %2301 = vmatprep.subr.bf16.mxu0 0
  %2302 = vmatpush1.bf16.msra.mxu0 0
  %2303 = vmatprep.subr.bf16.mxu0 0
  %2304 = vmatpush1.bf16.msra.mxu0 0
  %2305 = vmatprep.subr.bf16.mxu0 0
  %2306 = vmatpush1.bf16.msra.mxu0 0
  %2307 = vmatprep.subr.bf16.mxu0 0
  %2308 = vmatpush1.bf16.msra.mxu0 0
  %2309 = vmatprep.subr.bf16.mxu0 0
  %2310 = vmatpush1.bf16.msra.mxu0 0
  %2311 = vmatprep.subr.bf16.mxu0 0
  %2312 = vmatpush1.bf16.msra.mxu0 0
  %2313 = vmatprep.subr.bf16.mxu0 0
  %2314 = vmatpush1.bf16.msra.mxu0 0
  %2315 = vmatprep.subr.bf16.mxu0 0
  %2316 = vmatpush1.bf16.msra.mxu0 0
  %2317 = vmatprep.mubr.bf16.mxu0 0
  %2318 = vmatmul.mubr.bf16.gmra.mrb[0].mxu0 %v2280
  %v2319 = vpop.f32.mrb[0].mxu0
  %v2320 = vadd.f32 %v2253, %v2319
  %v2321 = vpop.f32.mrb[0].mxu0
  %v2322 = vpop.f32.mrb[0].mxu0
  %v2323 = vadd.f32 %v2256, %v2322
  %v2324 = vpop.f32.mrb[0].mxu0
  %2325 = vmatprep.mubr.bf16.mxu0 0
  %2326 = vmatmul.mubr.bf16.gmra.mrb[0].mxu0 %v2283
  %v2327 = vpop.f32.mrb[0].mxu0
  %v2328 = vadd.f32 %v2261, %v2327
  %v2329 = vpop.f32.mrb[0].mxu0
  %v2330 = vpop.f32.mrb[0].mxu0
  %v2331 = vadd.f32 %v2264, %v2330
  %v2332 = vpop.f32.mrb[0].mxu0
  %2333 = vdwg.mxu0
  %v2334 = vld [vmem:[#allocation4 + $0x2] sm:$0xff]
  %v2335 = vld [vmem:[#allocation4 + $0xa] sm:$0xff]
  %v2336 = vld [vmem:[#allocation4 + $0x1a] sm:$0xff]
  %v2337 = vld [vmem:[#allocation4 + $0x22] sm:$0xff]
  %v2338 = vpack.c.bf16 %v2335, %v2334
  %v2339 = vpack.c.bf16 %v2337, %v2336
  %v2344 = vunpack.c.l.b16 %v2175
  %v2345 = vunpack.c.l.b16 %v2176
  %v2346 = vunpack.c.l.b16 %v2177
  %v2347 = vunpack.c.l.b16 %v2178
  %v2348 = vpack.c.b16 %v2345, %v2344
  %v2349 = vpack.c.b16 %v2347, %v2346
  %v2353 = vsel %vm75, %v2338, 0
  %v2356 = vsel %vm75, %v2339, 0
  %2358 = vmatprep.subr.bf16.mxu0 0
  %2359 = vmatpush1.bf16.msra.mxu0 %v2348
  %2360 = vmatprep.subr.bf16.mxu0 0
  %2361 = vmatpush1.bf16.msra.mxu0 %v2349
  %2362 = vmatprep.subr.bf16.mxu0 0
  %2363 = vmatpush1.bf16.msra.mxu0 0
  %2364 = vmatprep.subr.bf16.mxu0 0
  %2365 = vmatpush1.bf16.msra.mxu0 0
  %2366 = vmatprep.subr.bf16.mxu0 0
  %2367 = vmatpush1.bf16.msra.mxu0 0
  %2368 = vmatprep.subr.bf16.mxu0 0
  %2369 = vmatpush1.bf16.msra.mxu0 0
  %2370 = vmatprep.subr.bf16.mxu0 0
  %2371 = vmatpush1.bf16.msra.mxu0 0
  %2372 = vmatprep.subr.bf16.mxu0 0
  %2373 = vmatpush1.bf16.msra.mxu0 0
  %2374 = vmatprep.subr.bf16.mxu0 0
  %2375 = vmatpush1.bf16.msra.mxu0 0
  %2376 = vmatprep.subr.bf16.mxu0 0
  %2377 = vmatpush1.bf16.msra.mxu0 0
  %2378 = vmatprep.subr.bf16.mxu0 0
  %2379 = vmatpush1.bf16.msra.mxu0 0
  %2380 = vmatprep.subr.bf16.mxu0 0
  %2381 = vmatpush1.bf16.msra.mxu0 0
  %2382 = vmatprep.subr.bf16.mxu0 0
  %2383 = vmatpush1.bf16.msra.mxu0 0
  %2384 = vmatprep.subr.bf16.mxu0 0
  %2385 = vmatpush1.bf16.msra.mxu0 0
  %2386 = vmatprep.subr.bf16.mxu0 0
  %2387 = vmatpush1.bf16.msra.mxu0 0
  %2388 = vmatprep.subr.bf16.mxu0 0
  %2389 = vmatpush1.bf16.msra.mxu0 0
  %2390 = vmatprep.mubr.bf16.mxu0 0
  %2391 = vmatmul.mubr.bf16.gmra.mrb[0].mxu0 %v2353
  %v2392 = vpop.f32.mrb[0].mxu0
  %v2393 = vadd.f32 0.0, %v2392
  %v2394 = vpop.f32.mrb[0].mxu0
  %v2395 = vpop.f32.mrb[0].mxu0
  %v2396 = vadd.f32 0.0, %v2395
  %v2397 = vpop.f32.mrb[0].mxu0
  %2398 = vmatprep.mubr.bf16.mxu0 0
  %2399 = vmatmul.mubr.bf16.gmra.mrb[0].mxu0 %v2356
  %v2400 = vpop.f32.mrb[0].mxu0
  %v2401 = vadd.f32 0.0, %v2400
  %v2402 = vpop.f32.mrb[0].mxu0
  %v2403 = vpop.f32.mrb[0].mxu0
  %v2404 = vadd.f32 0.0, %v2403
  %v2405 = vpop.f32.mrb[0].mxu0
  %2406 = vdwg.mxu0
  %v2407 = vadd.f32 %v2320, %v2393
  %v2408 = vadd.f32 %v2323, %v2396
  %v2409 = vadd.f32 %v2328, %v2401
  %v2410 = vadd.f32 %v2331, %v2404
  %v2411 = vld [vmem:[#allocation4 + $0x3] sm:$0xff]
  %v2412 = vld [vmem:[#allocation4 + $0xb] sm:$0xff]
  %v2413 = vld [vmem:[#allocation4 + $0x1b] sm:$0xff]
  %v2414 = vld [vmem:[#allocation4 + $0x23] sm:$0xff]
  %v2415 = vpack.c.bf16 %v2412, %v2411
  %v2416 = vpack.c.bf16 %v2414, %v2413
  %v2421 = vunpack.c.l.b16 %v2179
  %v2422 = vunpack.c.l.b16 %v2180
  %v2423 = vunpack.c.l.b16 %v2181
  %v2424 = vunpack.c.l.b16 %v2182
  %v2425 = vpack.c.b16 %v2422, %v2421
  %v2426 = vpack.c.b16 %v2424, %v2423
  %v2430 = vsel %vm75, %v2415, 0
  %v2433 = vsel %vm75, %v2416, 0
  %2435 = vmatprep.subr.bf16.mxu0 0
  %2436 = vmatpush1.bf16.msra.mxu0 %v2425
  %2437 = vmatprep.subr.bf16.mxu0 0
  %2438 = vmatpush1.bf16.msra.mxu0 %v2426
  %2439 = vmatprep.subr.bf16.mxu0 0
  %2440 = vmatpush1.bf16.msra.mxu0 0
  %2441 = vmatprep.subr.bf16.mxu0 0
  %2442 = vmatpush1.bf16.msra.mxu0 0
  %2443 = vmatprep.subr.bf16.mxu0 0
  %2444 = vmatpush1.bf16.msra.mxu0 0
  %2445 = vmatprep.subr.bf16.mxu0 0
  %2446 = vmatpush1.bf16.msra.mxu0 0
  %2447 = vmatprep.subr.bf16.mxu0 0
  %2448 = vmatpush1.bf16.msra.mxu0 0
  %2449 = vmatprep.subr.bf16.mxu0 0
  %2450 = vmatpush1.bf16.msra.mxu0 0
  %2451 = vmatprep.subr.bf16.mxu0 0
  %2452 = vmatpush1.bf16.msra.mxu0 0
  %2453 = vmatprep.subr.bf16.mxu0 0
  %2454 = vmatpush1.bf16.msra.mxu0 0
  %2455 = vmatprep.subr.bf16.mxu0 0
  %2456 = vmatpush1.bf16.msra.mxu0 0
  %2457 = vmatprep.subr.bf16.mxu0 0
  %2458 = vmatpush1.bf16.msra.mxu0 0
  %2459 = vmatprep.subr.bf16.mxu0 0
  %2460 = vmatpush1.bf16.msra.mxu0 0
  %2461 = vmatprep.subr.bf16.mxu0 0
  %2462 = vmatpush1.bf16.msra.mxu0 0
  %2463 = vmatprep.subr.bf16.mxu0 0
  %2464 = vmatpush1.bf16.msra.mxu0 0
  %2465 = vmatprep.subr.bf16.mxu0 0
  %2466 = vmatpush1.bf16.msra.mxu0 0
  %2467 = vmatprep.mubr.bf16.mxu0 0
  %2468 = vmatmul.mubr.bf16.gmra.mrb[0].mxu0 %v2430
  %v2469 = vpop.f32.mrb[0].mxu0
  %v2470 = vadd.f32 0.0, %v2469
  %v2471 = vpop.f32.mrb[0].mxu0
  %v2472 = vpop.f32.mrb[0].mxu0
  %v2473 = vadd.f32 0.0, %v2472
  %v2474 = vpop.f32.mrb[0].mxu0
  %2475 = vmatprep.mubr.bf16.mxu0 0
  %2476 = vmatmul.mubr.bf16.gmra.mrb[0].mxu0 %v2433
  %v2477 = vpop.f32.mrb[0].mxu0
  %v2478 = vadd.f32 0.0, %v2477
  %v2479 = vpop.f32.mrb[0].mxu0
  %v2480 = vpop.f32.mrb[0].mxu0
  %v2481 = vadd.f32 0.0, %v2480
  %v2482 = vpop.f32.mrb[0].mxu0
  %2483 = vdwg.mxu0
  %v2484 = vadd.f32 %v2407, %v2470
  %v2485 = vadd.f32 %v2408, %v2473
  %v2486 = vadd.f32 %v2409, %v2478
  %v2487 = vadd.f32 %v2410, %v2481
  %v2488 = vld [vmem:[#allocation4 + $0x4] sm:$0xff]
  %v2489 = vld [vmem:[#allocation4 + $0xc] sm:$0xff]
  %v2490 = vld [vmem:[#allocation4 + $0x1c] sm:$0xff]
  %v2491 = vld [vmem:[#allocation4 + $0x24] sm:$0xff]
  %v2492 = vpack.c.bf16 %v2489, %v2488
  %v2493 = vpack.c.bf16 %v2491, %v2490
  %v2498 = vunpack.c.l.b16 %v2183
  %v2499 = vunpack.c.l.b16 %v2184
  %v2500 = vunpack.c.l.b16 %v2185
  %v2501 = vunpack.c.l.b16 %v2186
  %v2502 = vpack.c.b16 %v2499, %v2498
  %v2503 = vpack.c.b16 %v2501, %v2500
  %v2507 = vsel %vm75, %v2492, 0
  %v2510 = vsel %vm75, %v2493, 0
  %2512 = vmatprep.subr.bf16.mxu0 0
  %2513 = vmatpush1.bf16.msra.mxu0 %v2502
  %2514 = vmatprep.subr.bf16.mxu0 0
  %2515 = vmatpush1.bf16.msra.mxu0 %v2503
  %2516 = vmatprep.subr.bf16.mxu0 0
  %2517 = vmatpush1.bf16.msra.mxu0 0
  %2518 = vmatprep.subr.bf16.mxu0 0
  %2519 = vmatpush1.bf16.msra.mxu0 0
  %2520 = vmatprep.subr.bf16.mxu0 0
  %2521 = vmatpush1.bf16.msra.mxu0 0
  %2522 = vmatprep.subr.bf16.mxu0 0
  %2523 = vmatpush1.bf16.msra.mxu0 0
  %2524 = vmatprep.subr.bf16.mxu0 0
  %2525 = vmatpush1.bf16.msra.mxu0 0
  %2526 = vmatprep.subr.bf16.mxu0 0
  %2527 = vmatpush1.bf16.msra.mxu0 0
  %2528 = vmatprep.subr.bf16.mxu0 0
  %2529 = vmatpush1.bf16.msra.mxu0 0
  %2530 = vmatprep.subr.bf16.mxu0 0
  %2531 = vmatpush1.bf16.msra.mxu0 0
  %2532 = vmatprep.subr.bf16.mxu0 0
  %2533 = vmatpush1.bf16.msra.mxu0 0
  %2534 = vmatprep.subr.bf16.mxu0 0
  %2535 = vmatpush1.bf16.msra.mxu0 0
  %2536 = vmatprep.subr.bf16.mxu0 0
  %2537 = vmatpush1.bf16.msra.mxu0 0
  %2538 = vmatprep.subr.bf16.mxu0 0
  %2539 = vmatpush1.bf16.msra.mxu0 0
  %2540 = vmatprep.subr.bf16.mxu0 0
  %2541 = vmatpush1.bf16.msra.mxu0 0
  %2542 = vmatprep.subr.bf16.mxu0 0
  %2543 = vmatpush1.bf16.msra.mxu0 0
  %2544 = vmatprep.mubr.bf16.mxu0 0
  %2545 = vmatmul.mubr.bf16.gmra.mrb[0].mxu0 %v2507
  %v2546 = vpop.f32.mrb[0].mxu0
  %v2547 = vadd.f32 0.0, %v2546
  %v2548 = vpop.f32.mrb[0].mxu0
  %v2549 = vpop.f32.mrb[0].mxu0
  %v2550 = vadd.f32 0.0, %v2549
  %v2551 = vpop.f32.mrb[0].mxu0
  %2552 = vmatprep.mubr.bf16.mxu0 0
  %2553 = vmatmul.mubr.bf16.gmra.mrb[0].mxu0 %v2510
  %v2554 = vpop.f32.mrb[0].mxu0
  %v2555 = vadd.f32 0.0, %v2554
  %v2556 = vpop.f32.mrb[0].mxu0
  %v2557 = vpop.f32.mrb[0].mxu0
  %v2558 = vadd.f32 0.0, %v2557
  %v2559 = vpop.f32.mrb[0].mxu0
  %2560 = vdwg.mxu0
  %v2561 = vadd.f32 %v2484, %v2547
  %v2562 = vadd.f32 %v2485, %v2550
  %v2563 = vadd.f32 %v2486, %v2555
  %v2564 = vadd.f32 %v2487, %v2558
  %v2566 = vlaneseq
  %v2567 = vshrl.u32 %v2566, 7
  %v2568 = vsub.s32 0, %v2567
  %v2569 = vrot.slane %v2187, %v2568
  %v2571 = vadd.f32 %v2561, %v2569
  %v2572 = vadd.f32 %v2562, %v2569
  %v2573 = vadd.f32 %v2563, %v2569
  %v2574 = vadd.f32 %v2564, %v2569
  %v2575 = vmax.f32 %v2571, 0.0
  %v2576 = vmax.f32 %v2572, 0.0
  %v2577 = vmax.f32 %v2573, 0.0
  %v2578 = vmax.f32 %v2574, 0.0
  %2579 = vst.msk [vmem:[%s14] sm:$0xff] %vm75, %v2575
  %2580 = vst.msk [vmem:[%s14 + $0x8] sm:$0xff] %vm75, %v2576
  %2581 = vst.msk [vmem:[%s14 + $0x10] sm:$0xff] %vm75, %v2577
  %2582 = vst.msk [vmem:[%s14 + $0x18] sm:$0xff] %vm75, %v2578
  %v2583 = vsel %vm78, %v2575, -inf
  %v2584 = vrot.slane %v2583, 4
  %v2585 = vmax.f32 %v2583, %v2584
  %v2586 = vrot.slane %v2585, 2
  %v2587 = vmax.f32 %v2585, %v2586
  %v2588 = vrot.slane %v2587, 1
  %v2589 = vmax.f32 %v2587, %v2588
  %v2590 = vsel %vm78, %v2577, -inf
  %v2591 = vrot.slane %v2590, 4
  %v2592 = vmax.f32 %v2590, %v2591
  %v2593 = vrot.slane %v2592, 2
  %v2594 = vmax.f32 %v2592, %v2593
  %v2595 = vrot.slane %v2594, 1
  %v2596 = vmax.f32 %v2594, %v2595
  %vm2597 = vcmask 253952
  %2598 = vst.msk [vmem:[#allocation5 + $0x1] sm:$0x1] %vm2597, %v2589
  %2599 = vst.msk [vmem:[#allocation5 + $0x9] sm:$0x1] %vm2597, %v2596
  %vm2600 = vcmask 261124
  %v2601 = vsel %vm2600, %v2575, -inf
  %v2602 = vrot.slane %v2601, 4
  %v2603 = vmax.f32 %v2601, %v2602
  %v2604 = vrot.slane %v2603, 2
  %v2605 = vmax.f32 %v2603, %v2604
  %v2606 = vrot.slane %v2605, 1
  %v2607 = vmax.f32 %v2605, %v2606
  %v2608 = vsel %vm2600, %v2577, -inf
  %v2609 = vrot.slane %v2608, 4
  %v2610 = vmax.f32 %v2608, %v2609
  %v2611 = vrot.slane %v2610, 2
  %v2612 = vmax.f32 %v2610, %v2611
  %v2613 = vrot.slane %v2612, 1
  %v2614 = vmax.f32 %v2612, %v2613
  %2615 = vst.msk [vmem:[#allocation5 + $0x2] sm:$0x1] %vm2597, %v2607
  %2616 = vst.msk [vmem:[#allocation5 + $0xa] sm:$0x1] %vm2597, %v2614
  %v2617 = vsel %vm78, %v2576, -inf
  %v2618 = vrot.slane %v2617, 4
  %v2619 = vmax.f32 %v2617, %v2618
  %v2620 = vrot.slane %v2619, 2
  %v2621 = vmax.f32 %v2619, %v2620
  %v2622 = vrot.slane %v2621, 1
  %v2623 = vmax.f32 %v2621, %v2622
  %v2624 = vsel %vm78, %v2578, -inf
  %v2625 = vrot.slane %v2624, 4
  %v2626 = vmax.f32 %v2624, %v2625
  %v2627 = vrot.slane %v2626, 2
  %v2628 = vmax.f32 %v2626, %v2627
  %v2629 = vrot.slane %v2628, 1
  %v2630 = vmax.f32 %v2628, %v2629
  %2631 = vst.msk [vmem:[#allocation5 + $0x3] sm:$0x1] %vm2597, %v2623
  %2632 = vst.msk [vmem:[#allocation5 + $0xb] sm:$0x1] %vm2597, %v2630
  %v2633 = vsel %vm2600, %v2576, -inf
  %v2634 = vrot.slane %v2633, 4
  %v2635 = vmax.f32 %v2633, %v2634
  %v2636 = vrot.slane %v2635, 2
  %v2637 = vmax.f32 %v2635, %v2636
  %v2638 = vrot.slane %v2637, 1
  %v2639 = vmax.f32 %v2637, %v2638
  %v2640 = vsel %vm2600, %v2578, -inf
  %v2641 = vrot.slane %v2640, 4
  %v2642 = vmax.f32 %v2640, %v2641
  %v2643 = vrot.slane %v2642, 2
  %v2644 = vmax.f32 %v2642, %v2643
  %v2645 = vrot.slane %v2644, 1
  %v2646 = vmax.f32 %v2644, %v2645
  %2647 = vst.msk [vmem:[#allocation5 + $0x4] sm:$0x1] %vm2597, %v2639
  %2648 = vst.msk [vmem:[#allocation5 + $0xc] sm:$0x1] %vm2597, %v2646
  %v2649 = vld [vmem:[%s9] sm:$0xf]
  %v2650 = vld [vmem:[%s9 + $0x4] sm:$0xf]
  %v2651 = vld [vmem:[%s9 + $0x8] sm:$0xf]
  %v2652 = vld [vmem:[%s9 + $0xc] sm:$0xf]
  %v2653 = vld [vmem:[%s9 + $0x10] sm:$0xf]
  %v2654 = vld [vmem:[%s9 + $0x14] sm:$0xf]
  %v2655 = vld [vmem:[%s9 + $0x18] sm:$0xf]
  %v2656 = vld [vmem:[%s9 + $0x1c] sm:$0xf]
  %v2657 = vld [vmem:[%s9 + $0x20] sm:$0xf]
  %v2658 = vld [vmem:[%s9 + $0x24] sm:$0xf]
  %v2659 = vld [vmem:[%s9 + $0x28] sm:$0xf]
  %v2660 = vld [vmem:[%s9 + $0x2c] sm:$0xf]
  %v2661 = vld [vmem:[%s10] sm:$0x1]
  %v2662 = vld [vmem:[#allocation5] sm:$0xf]
  %v2663 = vpack.c.bf16 %v2662, %v2662
  %v2664 = vld [vmem:[#allocation5 + $0x1] sm:$0xf]
  %v2665 = vpack.c.bf16 %v2664, %v2664
  %v2670 = vunpack.c.l.b16 %v2653
  %v2671 = vunpack.c.l.b16 %v2654
  %v2672 = vunpack.c.l.b16 %v2655
  %v2673 = vunpack.c.l.b16 %v2656
  %v2674 = vpack.c.b16 %v2671, %v2670
  %v2675 = vpack.c.b16 %v2673, %v2672
  %v2679 = vsel %vm75, %v2665, 0
  %2681 = vmatprep.subr.bf16.mxu0 0
  %2682 = vmatpush1.bf16.msra.mxu0 %v2674
  %2683 = vmatprep.subr.bf16.mxu0 0
  %2684 = vmatpush1.bf16.msra.mxu0 %v2675
  %2685 = vmatprep.subr.bf16.mxu0 0
  %2686 = vmatpush1.bf16.msra.mxu0 0
  %2687 = vmatprep.subr.bf16.mxu0 0
  %2688 = vmatpush1.bf16.msra.mxu0 0
  %2689 = vmatprep.subr.bf16.mxu0 0
  %2690 = vmatpush1.bf16.msra.mxu0 0
  %2691 = vmatprep.subr.bf16.mxu0 0
  %2692 = vmatpush1.bf16.msra.mxu0 0
  %2693 = vmatprep.subr.bf16.mxu0 0
  %2694 = vmatpush1.bf16.msra.mxu0 0
  %2695 = vmatprep.subr.bf16.mxu0 0
  %2696 = vmatpush1.bf16.msra.mxu0 0
  %2697 = vmatprep.subr.bf16.mxu0 0
  %2698 = vmatpush1.bf16.msra.mxu0 0
  %2699 = vmatprep.subr.bf16.mxu0 0
  %2700 = vmatpush1.bf16.msra.mxu0 0
  %2701 = vmatprep.subr.bf16.mxu0 0
  %2702 = vmatpush1.bf16.msra.mxu0 0
  %2703 = vmatprep.subr.bf16.mxu0 0
  %2704 = vmatpush1.bf16.msra.mxu0 0
  %2705 = vmatprep.subr.bf16.mxu0 0
  %2706 = vmatpush1.bf16.msra.mxu0 0
  %2707 = vmatprep.subr.bf16.mxu0 0
  %2708 = vmatpush1.bf16.msra.mxu0 0
  %2709 = vmatprep.subr.bf16.mxu0 0
  %2710 = vmatpush1.bf16.msra.mxu0 0
  %2711 = vmatprep.subr.bf16.mxu0 0
  %2712 = vmatpush1.bf16.msra.mxu0 0
  %2713 = vmatprep.mubr.bf16.mxu0 0
  %2714 = vmatmul.mubr.bf16.gmra.mrb[0].mxu0 %v2679
  %v2715 = vpop.f32.mrb[0].mxu0
  %v2716 = vadd.f32 0.0, %v2715
  %v2717 = vpop.f32.mrb[0].mxu0
  %v2718 = vpop.f32.mrb[0].mxu0
  %v2719 = vpop.f32.mrb[0].mxu0
  %2720 = vdwg.mxu0
  %v2725 = vunpack.c.l.b16 %v2649
  %v2726 = vunpack.c.l.b16 %v2650
  %v2727 = vunpack.c.l.b16 %v2651
  %v2728 = vunpack.c.l.b16 %v2652
  %v2729 = vpack.c.b16 %v2726, %v2725
  %v2730 = vpack.c.b16 %v2728, %v2727
  %v2734 = vsel %vm75, %v2663, 0
  %2736 = vmatprep.subr.bf16.mxu0 0
  %2737 = vmatpush1.bf16.msra.mxu0 %v2729
  %2738 = vmatprep.subr.bf16.mxu0 0
  %2739 = vmatpush1.bf16.msra.mxu0 %v2730
  %2740 = vmatprep.subr.bf16.mxu0 0
  %2741 = vmatpush1.bf16.msra.mxu0 0
  %2742 = vmatprep.subr.bf16.mxu0 0
  %2743 = vmatpush1.bf16.msra.mxu0 0
  %2744 = vmatprep.subr.bf16.mxu0 0
  %2745 = vmatpush1.bf16.msra.mxu0 0
  %2746 = vmatprep.subr.bf16.mxu0 0
  %2747 = vmatpush1.bf16.msra.mxu0 0
  %2748 = vmatprep.subr.bf16.mxu0 0
  %2749 = vmatpush1.bf16.msra.mxu0 0
  %2750 = vmatprep.subr.bf16.mxu0 0
  %2751 = vmatpush1.bf16.msra.mxu0 0
  %2752 = vmatprep.subr.bf16.mxu0 0
  %2753 = vmatpush1.bf16.msra.mxu0 0
  %2754 = vmatprep.subr.bf16.mxu0 0
  %2755 = vmatpush1.bf16.msra.mxu0 0
  %2756 = vmatprep.subr.bf16.mxu0 0
  %2757 = vmatpush1.bf16.msra.mxu0 0
  %2758 = vmatprep.subr.bf16.mxu0 0
  %2759 = vmatpush1.bf16.msra.mxu0 0
  %2760 = vmatprep.subr.bf16.mxu0 0
  %2761 = vmatpush1.bf16.msra.mxu0 0
  %2762 = vmatprep.subr.bf16.mxu0 0
  %2763 = vmatpush1.bf16.msra.mxu0 0
  %2764 = vmatprep.subr.bf16.mxu0 0
  %2765 = vmatpush1.bf16.msra.mxu0 0
  %2766 = vmatprep.subr.bf16.mxu0 0
  %2767 = vmatpush1.bf16.msra.mxu0 0
  %2768 = vmatprep.mubr.bf16.mxu0 0
  %2769 = vmatmul.mubr.bf16.gmra.mrb[0].mxu0 %v2734
  %v2770 = vpop.f32.mrb[0].mxu0
  %v2771 = vadd.f32 %v2716, %v2770
  %v2772 = vpop.f32.mrb[0].mxu0
  %v2773 = vpop.f32.mrb[0].mxu0
  %v2774 = vpop.f32.mrb[0].mxu0
  %2775 = vdwg.mxu0
  %v2776 = vld [vmem:[#allocation5 + $0x2] sm:$0xf]
  %v2777 = vpack.c.bf16 %v2776, %v2776
  %v2782 = vunpack.c.l.b16 %v2657
  %v2783 = vunpack.c.l.b16 %v2658
  %v2784 = vunpack.c.l.b16 %v2659
  %v2785 = vunpack.c.l.b16 %v2660
  %v2786 = vpack.c.b16 %v2783, %v2782
  %v2787 = vpack.c.b16 %v2785, %v2784
  %v2791 = vsel %vm75, %v2777, 0
  %2793 = vmatprep.subr.bf16.mxu0 0
  %2794 = vmatpush1.bf16.msra.mxu0 %v2786
  %2795 = vmatprep.subr.bf16.mxu0 0
  %2796 = vmatpush1.bf16.msra.mxu0 %v2787
  %2797 = vmatprep.subr.bf16.mxu0 0
  %2798 = vmatpush1.bf16.msra.mxu0 0
  %2799 = vmatprep.subr.bf16.mxu0 0
  %2800 = vmatpush1.bf16.msra.mxu0 0
  %2801 = vmatprep.subr.bf16.mxu0 0
  %2802 = vmatpush1.bf16.msra.mxu0 0
  %2803 = vmatprep.subr.bf16.mxu0 0
  %2804 = vmatpush1.bf16.msra.mxu0 0
  %2805 = vmatprep.subr.bf16.mxu0 0
  %2806 = vmatpush1.bf16.msra.mxu0 0
  %2807 = vmatprep.subr.bf16.mxu0 0
  %2808 = vmatpush1.bf16.msra.mxu0 0
  %2809 = vmatprep.subr.bf16.mxu0 0
  %2810 = vmatpush1.bf16.msra.mxu0 0
  %2811 = vmatprep.subr.bf16.mxu0 0
  %2812 = vmatpush1.bf16.msra.mxu0 0
  %2813 = vmatprep.subr.bf16.mxu0 0
  %2814 = vmatpush1.bf16.msra.mxu0 0
  %2815 = vmatprep.subr.bf16.mxu0 0
  %2816 = vmatpush1.bf16.msra.mxu0 0
  %2817 = vmatprep.subr.bf16.mxu0 0
  %2818 = vmatpush1.bf16.msra.mxu0 0
  %2819 = vmatprep.subr.bf16.mxu0 0
  %2820 = vmatpush1.bf16.msra.mxu0 0
  %2821 = vmatprep.subr.bf16.mxu0 0
  %2822 = vmatpush1.bf16.msra.mxu0 0
  %2823 = vmatprep.subr.bf16.mxu0 0
  %2824 = vmatpush1.bf16.msra.mxu0 0
  %2825 = vmatprep.mubr.bf16.mxu0 0
  %2826 = vmatmul.mubr.bf16.gmra.mrb[0].mxu0 %v2791
  %v2827 = vpop.f32.mrb[0].mxu0
  %v2828 = vadd.f32 0.0, %v2827
  %v2829 = vpop.f32.mrb[0].mxu0
  %v2830 = vpop.f32.mrb[0].mxu0
  %v2831 = vpop.f32.mrb[0].mxu0
  %2832 = vdwg.mxu0
  %v2833 = vadd.f32 %v2771, %v2828
  %s2834 = scalar_lea.vmem [#allocation5], 8
  %v2835 = vld [vmem:[%s2834] sm:$0xf]
  %v2836 = vpack.c.bf16 %v2835, %v2835
  %v2837 = vld [vmem:[%s2834 + $0x1] sm:$0xf]
  %v2838 = vpack.c.bf16 %v2837, %v2837
  %v2840 = vsel %vm75, %v2838, 0
  %2842 = vmatprep.subr.bf16.mxu0 0
  %2843 = vmatpush1.bf16.msra.mxu0 %v2674
  %2844 = vmatprep.subr.bf16.mxu0 0
  %2845 = vmatpush1.bf16.msra.mxu0 %v2675
  %2846 = vmatprep.subr.bf16.mxu0 0
  %2847 = vmatpush1.bf16.msra.mxu0 0
  %2848 = vmatprep.subr.bf16.mxu0 0
  %2849 = vmatpush1.bf16.msra.mxu0 0
  %2850 = vmatprep.subr.bf16.mxu0 0
  %2851 = vmatpush1.bf16.msra.mxu0 0
  %2852 = vmatprep.subr.bf16.mxu0 0
  %2853 = vmatpush1.bf16.msra.mxu0 0
  %2854 = vmatprep.subr.bf16.mxu0 0
  %2855 = vmatpush1.bf16.msra.mxu0 0
  %2856 = vmatprep.subr.bf16.mxu0 0
  %2857 = vmatpush1.bf16.msra.mxu0 0
  %2858 = vmatprep.subr.bf16.mxu0 0
  %2859 = vmatpush1.bf16.msra.mxu0 0
  %2860 = vmatprep.subr.bf16.mxu0 0
  %2861 = vmatpush1.bf16.msra.mxu0 0
  %2862 = vmatprep.subr.bf16.mxu0 0
  %2863 = vmatpush1.bf16.msra.mxu0 0
  %2864 = vmatprep.subr.bf16.mxu0 0
  %2865 = vmatpush1.bf16.msra.mxu0 0
  %2866 = vmatprep.subr.bf16.mxu0 0
  %2867 = vmatpush1.bf16.msra.mxu0 0
  %2868 = vmatprep.subr.bf16.mxu0 0
  %2869 = vmatpush1.bf16.msra.mxu0 0
  %2870 = vmatprep.subr.bf16.mxu0 0
  %2871 = vmatpush1.bf16.msra.mxu0 0
  %2872 = vmatprep.subr.bf16.mxu0 0
  %2873 = vmatpush1.bf16.msra.mxu0 0
  %2874 = vmatprep.mubr.bf16.mxu0 0
  %2875 = vmatmul.mubr.bf16.gmra.mrb[0].mxu0 %v2840
  %v2876 = vpop.f32.mrb[0].mxu0
  %v2877 = vadd.f32 0.0, %v2876
  %v2878 = vpop.f32.mrb[0].mxu0
  %v2879 = vpop.f32.mrb[0].mxu0
  %v2880 = vpop.f32.mrb[0].mxu0
  %2881 = vdwg.mxu0
  %v2883 = vsel %vm75, %v2836, 0
  %2885 = vmatprep.subr.bf16.mxu0 0
  %2886 = vmatpush1.bf16.msra.mxu0 %v2729
  %2887 = vmatprep.subr.bf16.mxu0 0
  %2888 = vmatpush1.bf16.msra.mxu0 %v2730
  %2889 = vmatprep.subr.bf16.mxu0 0
  %2890 = vmatpush1.bf16.msra.mxu0 0
  %2891 = vmatprep.subr.bf16.mxu0 0
  %2892 = vmatpush1.bf16.msra.mxu0 0
  %2893 = vmatprep.subr.bf16.mxu0 0
  %2894 = vmatpush1.bf16.msra.mxu0 0
  %2895 = vmatprep.subr.bf16.mxu0 0
  %2896 = vmatpush1.bf16.msra.mxu0 0
  %2897 = vmatprep.subr.bf16.mxu0 0
  %2898 = vmatpush1.bf16.msra.mxu0 0
  %2899 = vmatprep.subr.bf16.mxu0 0
  %2900 = vmatpush1.bf16.msra.mxu0 0
  %2901 = vmatprep.subr.bf16.mxu0 0
  %2902 = vmatpush1.bf16.msra.mxu0 0
  %2903 = vmatprep.subr.bf16.mxu0 0
  %2904 = vmatpush1.bf16.msra.mxu0 0
  %2905 = vmatprep.subr.bf16.mxu0 0
  %2906 = vmatpush1.bf16.msra.mxu0 0
  %2907 = vmatprep.subr.bf16.mxu0 0
  %2908 = vmatpush1.bf16.msra.mxu0 0
  %2909 = vmatprep.subr.bf16.mxu0 0
  %2910 = vmatpush1.bf16.msra.mxu0 0
  %2911 = vmatprep.subr.bf16.mxu0 0
  %2912 = vmatpush1.bf16.msra.mxu0 0
  %2913 = vmatprep.subr.bf16.mxu0 0
  %2914 = vmatpush1.bf16.msra.mxu0 0
  %2915 = vmatprep.subr.bf16.mxu0 0
  %2916 = vmatpush1.bf16.msra.mxu0 0
  %2917 = vmatprep.mubr.bf16.mxu0 0
  %2918 = vmatmul.mubr.bf16.gmra.mrb[0].mxu0 %v2883
  %v2919 = vpop.f32.mrb[0].mxu0
  %v2920 = vadd.f32 %v2877, %v2919
  %v2921 = vpop.f32.mrb[0].mxu0
  %v2922 = vpop.f32.mrb[0].mxu0
  %v2923 = vpop.f32.mrb[0].mxu0
  %2924 = vdwg.mxu0
  %v2925 = vld [vmem:[%s2834 + $0x2] sm:$0xf]
  %v2926 = vpack.c.bf16 %v2925, %v2925
  %v2928 = vsel %vm75, %v2926, 0
  %2930 = vmatprep.subr.bf16.mxu0 0
  %2931 = vmatpush1.bf16.msra.mxu0 %v2786
  %2932 = vmatprep.subr.bf16.mxu0 0
  %2933 = vmatpush1.bf16.msra.mxu0 %v2787
  %2934 = vmatprep.subr.bf16.mxu0 0
  %2935 = vmatpush1.bf16.msra.mxu0 0
  %2936 = vmatprep.subr.bf16.mxu0 0
  %2937 = vmatpush1.bf16.msra.mxu0 0
  %2938 = vmatprep.subr.bf16.mxu0 0
  %2939 = vmatpush1.bf16.msra.mxu0 0
  %2940 = vmatprep.subr.bf16.mxu0 0
  %2941 = vmatpush1.bf16.msra.mxu0 0
  %2942 = vmatprep.subr.bf16.mxu0 0
  %2943 = vmatpush1.bf16.msra.mxu0 0
  %2944 = vmatprep.subr.bf16.mxu0 0
  %2945 = vmatpush1.bf16.msra.mxu0 0
  %2946 = vmatprep.subr.bf16.mxu0 0
  %2947 = vmatpush1.bf16.msra.mxu0 0
  %2948 = vmatprep.subr.bf16.mxu0 0
  %2949 = vmatpush1.bf16.msra.mxu0 0
  %2950 = vmatprep.subr.bf16.mxu0 0
  %2951 = vmatpush1.bf16.msra.mxu0 0
  %2952 = vmatprep.subr.bf16.mxu0 0
  %2953 = vmatpush1.bf16.msra.mxu0 0
  %2954 = vmatprep.subr.bf16.mxu0 0
  %2955 = vmatpush1.bf16.msra.mxu0 0
  %2956 = vmatprep.subr.bf16.mxu0 0
  %2957 = vmatpush1.bf16.msra.mxu0 0
  %2958 = vmatprep.subr.bf16.mxu0 0
  %2959 = vmatpush1.bf16.msra.mxu0 0
  %2960 = vmatprep.subr.bf16.mxu0 0
  %2961 = vmatpush1.bf16.msra.mxu0 0
  %2962 = vmatprep.mubr.bf16.mxu0 0
  %2963 = vmatmul.mubr.bf16.gmra.mrb[0].mxu0 %v2928
  %v2964 = vpop.f32.mrb[0].mxu0
  %v2965 = vadd.f32 0.0, %v2964
  %v2966 = vpop.f32.mrb[0].mxu0
  %v2967 = vpop.f32.mrb[0].mxu0
  %v2968 = vpop.f32.mrb[0].mxu0
  %2969 = vdwg.mxu0
  %v2970 = vadd.f32 %v2920, %v2965
  %v2972 = vlaneseq
  %v2973 = vshrl.u32 %v2972, 7
  %v2974 = vsub.s32 0, %v2973
  %v2975 = vrot.slane %v2661, %v2974
  %v2977 = vadd.f32 %v2833, %v2975
  %v2978 = vadd.f32 %v2970, %v2975
  %v2979 = vmax.f32 %v2977, 0.0
  %v2980 = vmax.f32 %v2978, 0.0
  %vm2981 = vcmask 519168
  %2982 = vst.msk [vmem:[#allocation6 + $0x1] sm:$0xf] %vm2981, %v2979
  %2983 = vst.msk [vmem:[#allocation6 + $0x9] sm:$0xf] %vm2981, %v2980
  %v2984 = vld [vmem:[%s11] sm:$0xf]
  %v2985 = vld [vmem:[%s11 + $0x4] sm:$0xf]
  %v2986 = vld [vmem:[%s11 + $0x8] sm:$0xf]
  %v2987 = vld [vmem:[%s11 + $0xc] sm:$0xf]
  %v2988 = vld [vmem:[%s11 + $0x10] sm:$0xf]
  %v2989 = vld [vmem:[%s11 + $0x14] sm:$0xf]
  %v2990 = vld [vmem:[%s11 + $0x18] sm:$0xf]
  %v2991 = vld [vmem:[%s11 + $0x1c] sm:$0xf]
  %v2992 = vld [vmem:[%s11 + $0x20] sm:$0xf]
  %v2993 = vld [vmem:[%s11 + $0x24] sm:$0xf]
  %v2994 = vld [vmem:[%s11 + $0x28] sm:$0xf]
  %v2995 = vld [vmem:[%s11 + $0x2c] sm:$0xf]
  %v2996 = vld [vmem:[%s11 + $0x30] sm:$0xf]
  %v2997 = vld [vmem:[%s11 + $0x34] sm:$0xf]
  %v2998 = vld [vmem:[%s11 + $0x38] sm:$0xf]
  %v2999 = vld [vmem:[%s11 + $0x3c] sm:$0xf]
  %v3000 = vld [vmem:[%s11 + $0x40] sm:$0xf]
  %v3001 = vld [vmem:[%s11 + $0x44] sm:$0xf]
  %v3002 = vld [vmem:[%s11 + $0x48] sm:$0xf]
  %v3003 = vld [vmem:[%s11 + $0x4c] sm:$0xf]
  %v3004 = vld [vmem:[%s11 + $0x50] sm:$0xf]
  %v3005 = vld [vmem:[%s11 + $0x54] sm:$0xf]
  %v3006 = vld [vmem:[%s11 + $0x58] sm:$0xf]
  %v3007 = vld [vmem:[%s11 + $0x5c] sm:$0xf]
  %v3008 = vld [vmem:[%s12] sm:$0x1]
  %v3009 = vld [vmem:[#allocation6] sm:$0xf]
  %v3010 = vpack.c.bf16 %v3009, %v3009
  %v3011 = vld [vmem:[#allocation6 + $0x1] sm:$0xf]
  %v3012 = vpack.c.bf16 %v3011, %v3011
  %v3021 = vunpack.c.l.b16 %v2992
  %v3022 = vunpack.c.l.b16 %v2993
  %v3023 = vunpack.c.l.b16 %v2994
  %v3024 = vunpack.c.l.b16 %v2995
  %v3025 = vunpack.c.l.b16 %v2996
  %v3026 = vunpack.c.l.b16 %v2997
  %v3027 = vunpack.c.l.b16 %v2998
  %v3028 = vunpack.c.l.b16 %v2999
  %v3029 = vpack.c.b16 %v3022, %v3021
  %v3030 = vpack.c.b16 %v3024, %v3023
  %v3031 = vpack.c.b16 %v3026, %v3025
  %v3032 = vpack.c.b16 %v3028, %v3027
  %vm3037 = vcmask 523264
  %v3039 = vsel %vm3037, %v3012, 0
  %3041 = vmatprep.subr.bf16.mxu0 0
  %3042 = vmatpush1.bf16.msra.mxu0 %v3029
  %3043 = vmatprep.subr.bf16.mxu0 0
  %3044 = vmatpush1.bf16.msra.mxu0 %v3030
  %3045 = vmatprep.subr.bf16.mxu0 0
  %3046 = vmatpush1.bf16.msra.mxu0 %v3031
  %3047 = vmatprep.subr.bf16.mxu0 0
  %3048 = vmatpush1.bf16.msra.mxu0 %v3032
  %3049 = vmatprep.subr.bf16.mxu0 0
  %3050 = vmatpush1.bf16.msra.mxu0 0
  %3051 = vmatprep.subr.bf16.mxu0 0
  %3052 = vmatpush1.bf16.msra.mxu0 0
  %3053 = vmatprep.subr.bf16.mxu0 0
  %3054 = vmatpush1.bf16.msra.mxu0 0
  %3055 = vmatprep.subr.bf16.mxu0 0
  %3056 = vmatpush1.bf16.msra.mxu0 0
  %3057 = vmatprep.subr.bf16.mxu0 0
  %3058 = vmatpush1.bf16.msra.mxu0 0
  %3059 = vmatprep.subr.bf16.mxu0 0
  %3060 = vmatpush1.bf16.msra.mxu0 0
  %3061 = vmatprep.subr.bf16.mxu0 0
  %3062 = vmatpush1.bf16.msra.mxu0 0
  %3063 = vmatprep.subr.bf16.mxu0 0
  %3064 = vmatpush1.bf16.msra.mxu0 0
  %3065 = vmatprep.subr.bf16.mxu0 0
  %3066 = vmatpush1.bf16.msra.mxu0 0
  %3067 = vmatprep.subr.bf16.mxu0 0
  %3068 = vmatpush1.bf16.msra.mxu0 0
  %3069 = vmatprep.subr.bf16.mxu0 0
  %3070 = vmatpush1.bf16.msra.mxu0 0
  %3071 = vmatprep.subr.bf16.mxu0 0
  %3072 = vmatpush1.bf16.msra.mxu0 0
  %3073 = vmatprep.mubr.bf16.mxu0 0
  %3074 = vmatmul.mubr.bf16.gmra.mrb[0].mxu0 %v3039
  %v3075 = vpop.f32.mrb[0].mxu0
  %v3076 = vadd.f32 0.0, %v3075
  %v3077 = vpop.f32.mrb[0].mxu0
  %v3078 = vpop.f32.mrb[0].mxu0
  %v3079 = vpop.f32.mrb[0].mxu0
  %3080 = vdwg.mxu0
  %v3089 = vunpack.c.l.b16 %v2984
  %v3090 = vunpack.c.l.b16 %v2985
  %v3091 = vunpack.c.l.b16 %v2986
  %v3092 = vunpack.c.l.b16 %v2987
  %v3093 = vunpack.c.l.b16 %v2988
  %v3094 = vunpack.c.l.b16 %v2989
  %v3095 = vunpack.c.l.b16 %v2990
  %v3096 = vunpack.c.l.b16 %v2991
  %v3097 = vpack.c.b16 %v3090, %v3089
  %v3098 = vpack.c.b16 %v3092, %v3091
  %v3099 = vpack.c.b16 %v3094, %v3093
  %v3100 = vpack.c.b16 %v3096, %v3095
  %v3106 = vsel %vm3037, %v3010, 0
  %3108 = vmatprep.subr.bf16.mxu0 0
  %3109 = vmatpush1.bf16.msra.mxu0 %v3097
  %3110 = vmatprep.subr.bf16.mxu0 0
  %3111 = vmatpush1.bf16.msra.mxu0 %v3098
  %3112 = vmatprep.subr.bf16.mxu0 0
  %3113 = vmatpush1.bf16.msra.mxu0 %v3099
  %3114 = vmatprep.subr.bf16.mxu0 0
  %3115 = vmatpush1.bf16.msra.mxu0 %v3100
  %3116 = vmatprep.subr.bf16.mxu0 0
  %3117 = vmatpush1.bf16.msra.mxu0 0
  %3118 = vmatprep.subr.bf16.mxu0 0
  %3119 = vmatpush1.bf16.msra.mxu0 0
  %3120 = vmatprep.subr.bf16.mxu0 0
  %3121 = vmatpush1.bf16.msra.mxu0 0
  %3122 = vmatprep.subr.bf16.mxu0 0
  %3123 = vmatpush1.bf16.msra.mxu0 0
  %3124 = vmatprep.subr.bf16.mxu0 0
  %3125 = vmatpush1.bf16.msra.mxu0 0
  %3126 = vmatprep.subr.bf16.mxu0 0
  %3127 = vmatpush1.bf16.msra.mxu0 0
  %3128 = vmatprep.subr.bf16.mxu0 0
  %3129 = vmatpush1.bf16.msra.mxu0 0
  %3130 = vmatprep.subr.bf16.mxu0 0
  %3131 = vmatpush1.bf16.msra.mxu0 0
  %3132 = vmatprep.subr.bf16.mxu0 0
  %3133 = vmatpush1.bf16.msra.mxu0 0
  %3134 = vmatprep.subr.bf16.mxu0 0
  %3135 = vmatpush1.bf16.msra.mxu0 0
  %3136 = vmatprep.subr.bf16.mxu0 0
  %3137 = vmatpush1.bf16.msra.mxu0 0
  %3138 = vmatprep.subr.bf16.mxu0 0
  %3139 = vmatpush1.bf16.msra.mxu0 0
  %3140 = vmatprep.mubr.bf16.mxu0 0
  %3141 = vmatmul.mubr.bf16.gmra.mrb[0].mxu0 %v3106
  %v3142 = vpop.f32.mrb[0].mxu0
  %v3143 = vadd.f32 %v3076, %v3142
  %v3144 = vpop.f32.mrb[0].mxu0
  %v3145 = vpop.f32.mrb[0].mxu0
  %v3146 = vpop.f32.mrb[0].mxu0
  %3147 = vdwg.mxu0
  %v3148 = vld [vmem:[#allocation6 + $0x2] sm:$0xf]
  %v3149 = vpack.c.bf16 %v3148, %v3148
  %v3158 = vunpack.c.l.b16 %v3000
  %v3159 = vunpack.c.l.b16 %v3001
  %v3160 = vunpack.c.l.b16 %v3002
  %v3161 = vunpack.c.l.b16 %v3003
  %v3162 = vunpack.c.l.b16 %v3004
  %v3163 = vunpack.c.l.b16 %v3005
  %v3164 = vunpack.c.l.b16 %v3006
  %v3165 = vunpack.c.l.b16 %v3007
  %v3166 = vpack.c.b16 %v3159, %v3158
  %v3167 = vpack.c.b16 %v3161, %v3160
  %v3168 = vpack.c.b16 %v3163, %v3162
  %v3169 = vpack.c.b16 %v3165, %v3164
  %v3175 = vsel %vm3037, %v3149, 0
  %3177 = vmatprep.subr.bf16.mxu0 0
  %3178 = vmatpush1.bf16.msra.mxu0 %v3166
  %3179 = vmatprep.subr.bf16.mxu0 0
  %3180 = vmatpush1.bf16.msra.mxu0 %v3167
  %3181 = vmatprep.subr.bf16.mxu0 0
  %3182 = vmatpush1.bf16.msra.mxu0 %v3168
  %3183 = vmatprep.subr.bf16.mxu0 0
  %3184 = vmatpush1.bf16.msra.mxu0 %v3169
  %3185 = vmatprep.subr.bf16.mxu0 0
  %3186 = vmatpush1.bf16.msra.mxu0 0
  %3187 = vmatprep.subr.bf16.mxu0 0
  %3188 = vmatpush1.bf16.msra.mxu0 0
  %3189 = vmatprep.subr.bf16.mxu0 0
  %3190 = vmatpush1.bf16.msra.mxu0 0
  %3191 = vmatprep.subr.bf16.mxu0 0
  %3192 = vmatpush1.bf16.msra.mxu0 0
  %3193 = vmatprep.subr.bf16.mxu0 0
  %3194 = vmatpush1.bf16.msra.mxu0 0
  %3195 = vmatprep.subr.bf16.mxu0 0
  %3196 = vmatpush1.bf16.msra.mxu0 0
  %3197 = vmatprep.subr.bf16.mxu0 0
  %3198 = vmatpush1.bf16.msra.mxu0 0
  %3199 = vmatprep.subr.bf16.mxu0 0
  %3200 = vmatpush1.bf16.msra.mxu0 0
  %3201 = vmatprep.subr.bf16.mxu0 0
  %3202 = vmatpush1.bf16.msra.mxu0 0
  %3203 = vmatprep.subr.bf16.mxu0 0
  %3204 = vmatpush1.bf16.msra.mxu0 0
  %3205 = vmatprep.subr.bf16.mxu0 0
  %3206 = vmatpush1.bf16.msra.mxu0 0
  %3207 = vmatprep.subr.bf16.mxu0 0
  %3208 = vmatpush1.bf16.msra.mxu0 0
  %3209 = vmatprep.mubr.bf16.mxu0 0
  %3210 = vmatmul.mubr.bf16.gmra.mrb[0].mxu0 %v3175
  %v3211 = vpop.f32.mrb[0].mxu0
  %v3212 = vadd.f32 0.0, %v3211
  %v3213 = vpop.f32.mrb[0].mxu0
  %v3214 = vpop.f32.mrb[0].mxu0
  %v3215 = vpop.f32.mrb[0].mxu0
  %3216 = vdwg.mxu0
  %v3217 = vadd.f32 %v3143, %v3212
  %s3218 = scalar_lea.vmem [#allocation6], 8
  %v3219 = vld [vmem:[%s3218] sm:$0xf]
  %v3220 = vpack.c.bf16 %v3219, %v3219
  %v3221 = vld [vmem:[%s3218 + $0x1] sm:$0xf]
  %v3222 = vpack.c.bf16 %v3221, %v3221
  %v3224 = vsel %vm3037, %v3222, 0
  %3226 = vmatprep.subr.bf16.mxu0 0
  %3227 = vmatpush1.bf16.msra.mxu0 %v3029
  %3228 = vmatprep.subr.bf16.mxu0 0
  %3229 = vmatpush1.bf16.msra.mxu0 %v3030
  %3230 = vmatprep.subr.bf16.mxu0 0
  %3231 = vmatpush1.bf16.msra.mxu0 %v3031
  %3232 = vmatprep.subr.bf16.mxu0 0
  %3233 = vmatpush1.bf16.msra.mxu0 %v3032
  %3234 = vmatprep.subr.bf16.mxu0 0
  %3235 = vmatpush1.bf16.msra.mxu0 0
  %3236 = vmatprep.subr.bf16.mxu0 0
  %3237 = vmatpush1.bf16.msra.mxu0 0
  %3238 = vmatprep.subr.bf16.mxu0 0
  %3239 = vmatpush1.bf16.msra.mxu0 0
  %3240 = vmatprep.subr.bf16.mxu0 0
  %3241 = vmatpush1.bf16.msra.mxu0 0
  %3242 = vmatprep.subr.bf16.mxu0 0
  %3243 = vmatpush1.bf16.msra.mxu0 0
  %3244 = vmatprep.subr.bf16.mxu0 0
  %3245 = vmatpush1.bf16.msra.mxu0 0
  %3246 = vmatprep.subr.bf16.mxu0 0
  %3247 = vmatpush1.bf16.msra.mxu0 0
  %3248 = vmatprep.subr.bf16.mxu0 0
  %3249 = vmatpush1.bf16.msra.mxu0 0
  %3250 = vmatprep.subr.bf16.mxu0 0
  %3251 = vmatpush1.bf16.msra.mxu0 0
  %3252 = vmatprep.subr.bf16.mxu0 0
  %3253 = vmatpush1.bf16.msra.mxu0 0
  %3254 = vmatprep.subr.bf16.mxu0 0
  %3255 = vmatpush1.bf16.msra.mxu0 0
  %3256 = vmatprep.subr.bf16.mxu0 0
  %3257 = vmatpush1.bf16.msra.mxu0 0
  %3258 = vmatprep.mubr.bf16.mxu0 0
  %3259 = vmatmul.mubr.bf16.gmra.mrb[0].mxu0 %v3224
  %v3260 = vpop.f32.mrb[0].mxu0
  %v3261 = vadd.f32 0.0, %v3260
  %v3262 = vpop.f32.mrb[0].mxu0
  %v3263 = vpop.f32.mrb[0].mxu0
  %v3264 = vpop.f32.mrb[0].mxu0
  %3265 = vdwg.mxu0
  %v3267 = vsel %vm3037, %v3220, 0
  %3269 = vmatprep.subr.bf16.mxu0 0
  %3270 = vmatpush1.bf16.msra.mxu0 %v3097
  %3271 = vmatprep.subr.bf16.mxu0 0
  %3272 = vmatpush1.bf16.msra.mxu0 %v3098
  %3273 = vmatprep.subr.bf16.mxu0 0
  %3274 = vmatpush1.bf16.msra.mxu0 %v3099
  %3275 = vmatprep.subr.bf16.mxu0 0
  %3276 = vmatpush1.bf16.msra.mxu0 %v3100
  %3277 = vmatprep.subr.bf16.mxu0 0
  %3278 = vmatpush1.bf16.msra.mxu0 0
  %3279 = vmatprep.subr.bf16.mxu0 0
  %3280 = vmatpush1.bf16.msra.mxu0 0
  %3281 = vmatprep.subr.bf16.mxu0 0
  %3282 = vmatpush1.bf16.msra.mxu0 0
  %3283 = vmatprep.subr.bf16.mxu0 0
  %3284 = vmatpush1.bf16.msra.mxu0 0
  %3285 = vmatprep.subr.bf16.mxu0 0
  %3286 = vmatpush1.bf16.msra.mxu0 0
  %3287 = vmatprep.subr.bf16.mxu0 0
  %3288 = vmatpush1.bf16.msra.mxu0 0
  %3289 = vmatprep.subr.bf16.mxu0 0
  %3290 = vmatpush1.bf16.msra.mxu0 0
  %3291 = vmatprep.subr.bf16.mxu0 0
  %3292 = vmatpush1.bf16.msra.mxu0 0
  %3293 = vmatprep.subr.bf16.mxu0 0
  %3294 = vmatpush1.bf16.msra.mxu0 0
  %3295 = vmatprep.subr.bf16.mxu0 0
  %3296 = vmatpush1.bf16.msra.mxu0 0
  %3297 = vmatprep.subr.bf16.mxu0 0
  %3298 = vmatpush1.bf16.msra.mxu0 0
  %3299 = vmatprep.subr.bf16.mxu0 0
  %3300 = vmatpush1.bf16.msra.mxu0 0
  %3301 = vmatprep.mubr.bf16.mxu0 0
  %3302 = vmatmul.mubr.bf16.gmra.mrb[0].mxu0 %v3267
  %v3303 = vpop.f32.mrb[0].mxu0
  %v3304 = vadd.f32 %v3261, %v3303
  %v3305 = vpop.f32.mrb[0].mxu0
  %v3306 = vpop.f32.mrb[0].mxu0
  %v3307 = vpop.f32.mrb[0].mxu0
  %3308 = vdwg.mxu0
  %v3309 = vld [vmem:[%s3218 + $0x2] sm:$0xf]
  %v3310 = vpack.c.bf16 %v3309, %v3309
  %v3312 = vsel %vm3037, %v3310, 0
  %3314 = vmatprep.subr.bf16.mxu0 0
  %3315 = vmatpush1.bf16.msra.mxu0 %v3166
  %3316 = vmatprep.subr.bf16.mxu0 0
  %3317 = vmatpush1.bf16.msra.mxu0 %v3167
  %3318 = vmatprep.subr.bf16.mxu0 0
  %3319 = vmatpush1.bf16.msra.mxu0 %v3168
  %3320 = vmatprep.subr.bf16.mxu0 0
  %3321 = vmatpush1.bf16.msra.mxu0 %v3169
  %3322 = vmatprep.subr.bf16.mxu0 0
  %3323 = vmatpush1.bf16.msra.mxu0 0
  %3324 = vmatprep.subr.bf16.mxu0 0
  %3325 = vmatpush1.bf16.msra.mxu0 0
  %3326 = vmatprep.subr.bf16.mxu0 0
  %3327 = vmatpush1.bf16.msra.mxu0 0
  %3328 = vmatprep.subr.bf16.mxu0 0
  %3329 = vmatpush1.bf16.msra.mxu0 0
  %3330 = vmatprep.subr.bf16.mxu0 0
  %3331 = vmatpush1.bf16.msra.mxu0 0
  %3332 = vmatprep.subr.bf16.mxu0 0
  %3333 = vmatpush1.bf16.msra.mxu0 0
  %3334 = vmatprep.subr.bf16.mxu0 0
  %3335 = vmatpush1.bf16.msra.mxu0 0
  %3336 = vmatprep.subr.bf16.mxu0 0
  %3337 = vmatpush1.bf16.msra.mxu0 0
  %3338 = vmatprep.subr.bf16.mxu0 0
  %3339 = vmatpush1.bf16.msra.mxu0 0
  %3340 = vmatprep.subr.bf16.mxu0 0
  %3341 = vmatpush1.bf16.msra.mxu0 0
  %3342 = vmatprep.subr.bf16.mxu0 0
  %3343 = vmatpush1.bf16.msra.mxu0 0
  %3344 = vmatprep.subr.bf16.mxu0 0
  %3345 = vmatpush1.bf16.msra.mxu0 0
  %3346 = vmatprep.mubr.bf16.mxu0 0
  %3347 = vmatmul.mubr.bf16.gmra.mrb[0].mxu0 %v3312
  %v3348 = vpop.f32.mrb[0].mxu0
  %v3349 = vadd.f32 0.0, %v3348
  %v3350 = vpop.f32.mrb[0].mxu0
  %v3351 = vpop.f32.mrb[0].mxu0
  %v3352 = vpop.f32.mrb[0].mxu0
  %3353 = vdwg.mxu0
  %v3354 = vadd.f32 %v3304, %v3349
  %v3356 = vlaneseq
  %v3357 = vshrl.u32 %v3356, 7
  %v3358 = vsub.s32 0, %v3357
  %v3359 = vrot.slane %v3008, %v3358
  %v3361 = vadd.f32 %v3217, %v3359
  %v3362 = vadd.f32 %v3354, %v3359
  %v3363 = vmax.f32 %v3361, 0.0
  %v3364 = vmax.f32 %v3362, 0.0
  %3365 = vst.msk [vmem:[%s15] sm:$0xf] %vm2981, %v3363
  %3366 = vst.msk [vmem:[%s15 + $0x4] sm:$0xf] %vm2981, %v3364
  // Predicated region
  $region54: #{mtagn_forward.2} parent=0 // pred_check
    _
  $region55: #{mtagn_forward.2} parent=0 // pred_check_branch
    %3368 = sbr.rel (0) target = $region57
  $region56: #{mtagn_forward.2} parent=0 // pred_region
    _
  $region57: #{mtagn_forward.2} parent=0 // pred_fallthru
    _
  // Predicated region
  $region58: #{mtagn_forward.2} parent=0 // pred_check
    _
  $region59: #{mtagn_forward.2} parent=0 // pred_check_branch
    %3370 = sbr.rel (0) target = $region61
  $region60: #{mtagn_forward.2} parent=0 // pred_region
    _
  $region61: #{mtagn_forward.2} parent=0 // pred_fallthru
    _
  // Predicated region
  $region62: #{mtagn_forward.2} parent=0 // pred_check
    _
  $region63: #{mtagn_forward.2} parent=0 // pred_check_branch
    %3372 = sbr.rel (0) target = $region65
  $region64: #{mtagn_forward.2} parent=0 // pred_region
    _
  $region65: #{mtagn_forward.2} parent=0 // pred_fallthru
    _
  // Predicated region
  $region66: #{mtagn_forward.2} parent=0 // pred_check
    _
  $region67: #{mtagn_forward.2} parent=0 // pred_check_branch
    %3374 = sbr.rel (0) target = $region69
  $region68: #{mtagn_forward.2} parent=0 // pred_region
    _
  $region69: #{mtagn_forward.2} parent=0 // pred_fallthru
    _
  // Predicated region
  $region70: #{mtagn_forward.2} parent=0 // pred_check
    _
  $region71: #{mtagn_forward.2} parent=0 // pred_check_branch
    %3376 = sbr.rel (0) target = $region73
  $region72: #{mtagn_forward.2} parent=0 // pred_region
    _
  $region73: #{mtagn_forward.2} parent=0 // pred_fallthru
    _
  // Predicated region
  $region74: #{mtagn_forward.2} parent=0 // pred_check
    _
  $region75: #{mtagn_forward.2} parent=0 // pred_check_branch
    %3378 = sbr.rel (0) target = $region77
  $region76: #{mtagn_forward.2} parent=0 // pred_region
    _
  $region77: #{mtagn_forward.2} parent=0 // pred_fallthru
    _

</llo_original>
